<compile_context>
chip_gen: v5e
topology: v5e:2x2
jax: 0.10.0
libtpu: 0.0.40
codegen_flags: <defaults>
</compile_context>

<pallas_src>
import functools
import math

import jax
import jax.numpy as jnp
import numpy as np
from jax.experimental import pallas as pl
from jax.experimental.pallas import tpu as pltpu


def _round_up(v, m):
    return (v + m - 1) // m * m


# ----------------------------------------------------------------------------
# Fused kernel: GAP over HW (lane reduce) + Decorrelation + embedding head +
# similarity / distance vs. centroids.  1-D grid over batch tiles.
# ----------------------------------------------------------------------------
def _dfp_kernel(prelu_ref,              # SMEM (2,)            PReLU slopes [a1, a2]
                x_ref,                  # VMEM (TB, C, HW)     backbone features (NCHW, f32)
                dec_w_ref, dec_b_ref,   # VMEM (1, C)          Decorrelation weight / bias
                w1_ref,                 # VMEM (C, C16p)       Linear1 weight (transposed, padded)
                w2_ref,                 # VMEM (C16p, Ep)      Linear2 weight (transposed, padded)
                cen_ref,                # VMEM (Kp, Ep)        centroids (padded)
                cen_sq_ref,             # VMEM (1, Kp)         precomputed ||centroid||^2 row
                gap_ref,                # out (TB, C)
                embed_ref,              # out (TB, Ep)
                sim_ref,                # out (TB, Kp)
                dfc_ref,                # out (TB, Kp)
                *, hw_true, c_true, e_true):
    # --- adaptive_avg_pool2d(x, 1): mean over HW (lane axis reduce, XLU) ---
    gap = jnp.sum(x_ref[...].astype(jnp.float32), axis=-1) * (1.0 / hw_true)   # (TB, C)

    # --- Decorrelation (torch.std is unbiased: divide by C-1) ---
    mu = jnp.mean(gap, axis=1, keepdims=True)                                  # (TB, 1)
    var = jnp.sum((gap - mu) ** 2, axis=1, keepdims=True) * (1.0 / (c_true - 1))
    std = jnp.sqrt(var)
    y = (gap - mu) / (std + 1e-5)
    y = jax.nn.sigmoid(y * dec_w_ref[...] + dec_b_ref[...])
    gap = gap * y
    gap_ref[...] = gap

    # --- embeddingLayer: PReLU -> Linear(C, C//16) -> PReLU -> Linear(C//16, E) ---
    a1 = prelu_ref[0]
    a2 = prelu_ref[1]
    h = jnp.where(gap >= 0, gap, a1 * gap)
    h = jnp.dot(h, w1_ref[...], preferred_element_type=jnp.float32)
    h = jnp.where(h >= 0, h, a2 * h)
    embed = jnp.dot(h, w2_ref[...], preferred_element_type=jnp.float32)
    embed_ref[...] = embed

    cen = cen_ref[...]                                                         # (Kp, Ep)
    inv_e = 1.0 / float(e_true)

    # --- Similarity.dotproduct (scaled): MXU ---
    sim_raw = jax.lax.dot_general(embed, cen, (((1,), (1,)), ((), ())),
                                  preferred_element_type=jnp.float32)          # (TB, Kp)
    sim_ref[...] = sim_raw * inv_e

    # --- Distance.l2 (scaled) via ||a||^2 + ||b||^2 - 2ab, reusing sim_raw ---
    e_sq = jnp.sum(embed * embed, axis=1, keepdims=True)                       # (TB, 1)
    dfc_ref[...] = jnp.maximum(e_sq + cen_sq_ref[...] - 2.0 * sim_raw, 0.0) * inv_e


# ----------------------------------------------------------------------------
# One-time parameter preparation: transpose + pad weights to lane-dense widths,
# precompute centroid norms and the parameter-only dis_cen2cen output.
# ----------------------------------------------------------------------------
def prepare_dfp_params(params):
    w1 = jnp.asarray(params["w1"], jnp.float32)            # torch layout (C//16, C)
    w2 = jnp.asarray(params["w2"], jnp.float32)            # torch layout (E, C//16)
    cen = jnp.asarray(params["centroids"], jnp.float32)    # (K, E)
    C16, C = w1.shape
    E = w2.shape[0]
    K = cen.shape[0]
    C16p = _round_up(C16, 128)
    Ep = _round_up(E, 128)
    Kp = _round_up(K, 128)

    w1t = jnp.zeros((C, C16p), jnp.float32).at[:, :C16].set(w1.T)
    w2t = jnp.zeros((C16p, Ep), jnp.float32).at[:C16, :E].set(w2.T)
    cenp = jnp.zeros((Kp, Ep), jnp.float32).at[:K, :E].set(cen)

    # Precomputed centroid squared-norm row (used in the feature->centroid L2).
    cen_sq_row = jnp.zeros((1, Kp), jnp.float32).at[0, :K].set(jnp.sum(cen * cen, axis=1))

    # dis_cen2cen depends only on parameters -> compute once here (plain XLA).
    diff = cen[:, None, :] - cen[None, :, :]
    dis_cen2cen = jnp.sum(diff * diff, axis=-1) / float(E)

    prelu = jnp.stack([jnp.asarray(params["prelu1"], jnp.float32),
                       jnp.asarray(params["prelu2"], jnp.float32)])
    return {
        "w1t": w1t, "w2t": w2t, "cen": cenp, "cen_sq_row": cen_sq_row,
        "dis_cen2cen": dis_cen2cen,
        "dec_w": jnp.asarray(params["dec_w"], jnp.float32),
        "dec_b": jnp.asarray(params["dec_b"], jnp.float32),
        "prelu": prelu,
        "thresholds": jnp.asarray(params["thresholds"], jnp.float32),
        "dims": (int(C), int(C16), int(E), int(K)),
    }


# ----------------------------------------------------------------------------
# DFPNet.forward (post-backbone) driven by a single pallas_call.
# ----------------------------------------------------------------------------
def dfpnet_forward(x_nchw, prep, *, tile_b_max=128, vmem_limit_bytes=48 * 1024 * 1024):
    C, C16, E, K = prep["dims"]
    B, Cx, H, W = x_nchw.shape
    assert Cx == C
    HW = H * W

    # Consume NCHW in place: (B, C, H, W) -> (B, C, HW) is a free reshape, no
    # transpose / cast / extra HBM pass over the dominant tensor.
    x = x_nchw.reshape(B, C, HW)

    # Pick the largest batch tile that fits VMEM (double-buffered x tile with the
    # lane dim padded to 128 inside VMEM), capped at tile_b_max so a large batch
    # still gives >=2 parallel tiles for v7x megacore.
    itemsize = jnp.dtype(x.dtype).itemsize
    lane_hw = _round_up(HW, 128)
    sub_c = _round_up(C, 8)
    slack_bytes = 4 * 1024 * 1024       # weights / outputs / compiler scratch

    def _x_bytes(tb):
        return 2 * tb * sub_c * lane_hw * itemsize

    tile_b = min(int(tile_b_max), B)
    if tile_b < B:
        tile_b = _round_up(tile_b, 8)
    while tile_b > 8 and _x_bytes(tile_b) + slack_bytes > vmem_limit_bytes:
        tile_b = _round_up(max(8, tile_b // 2), 8)
    Bp = _round_up(B, tile_b)
    if Bp != B:
        # Zero padding keeps padded rows finite through the head (std=0 -> y=0).
        x = jnp.pad(x, ((0, Bp - B), (0, 0), (0, 0)))

    C16p = prep["w1t"].shape[1]
    Ep = prep["w2t"].shape[1]
    Kp = prep["cen"].shape[0]

    grid = (Bp // tile_b,)
    kern = functools.partial(_dfp_kernel, hw_true=HW, c_true=C, e_true=E)

    gap_p, embed_p, sim_p, dfc_p = pl.pallas_call(
        kern,
        grid=grid,
        out_shape=(
            jax.ShapeDtypeStruct((Bp, C), jnp.float32),    # gap
            jax.ShapeDtypeStruct((Bp, Ep), jnp.float32),   # embed_fea (padded)
            jax.ShapeDtypeStruct((Bp, Kp), jnp.float32),   # sim_fea2cen (padded)
            jax.ShapeDtypeStruct((Bp, Kp), jnp.float32),   # dis_fea2cen (padded)
        ),
        in_specs=[
            pl.BlockSpec(memory_space=pltpu.MemorySpace.SMEM),          # prelu slopes
            pl.BlockSpec((tile_b, C, HW), lambda i: (i, 0, 0)),         # x batch tile
            pl.BlockSpec((1, C), lambda i: (0, 0)),                     # dec_w
            pl.BlockSpec((1, C), lambda i: (0, 0)),                     # dec_b
            pl.BlockSpec((C, C16p), lambda i: (0, 0)),                  # w1^T
            pl.BlockSpec((C16p, Ep), lambda i: (0, 0)),                 # w2^T
            pl.BlockSpec((Kp, Ep), lambda i: (0, 0)),                   # centroids
            pl.BlockSpec((1, Kp), lambda i: (0, 0)),                    # ||centroid||^2 row
        ],
        out_specs=(
            pl.BlockSpec((tile_b, C), lambda i: (i, 0)),
            pl.BlockSpec((tile_b, Ep), lambda i: (i, 0)),
            pl.BlockSpec((tile_b, Kp), lambda i: (i, 0)),
            pl.BlockSpec((tile_b, Kp), lambda i: (i, 0)),
        ),
        compiler_params=pltpu.CompilerParams(
            dimension_semantics=("parallel",),
            vmem_limit_bytes=int(vmem_limit_bytes)),
    )(prep["prelu"], x, prep["dec_w"], prep["dec_b"],
      prep["w1t"], prep["w2t"], prep["cen"], prep["cen_sq_row"])

    return {
        "gap": gap_p[:B],
        "embed_fea": embed_p[:B, :E],
        "embed_gen": None,
        "sim_fea2cen": sim_p[:B, :K],
        "dis_fea2cen": dfc_p[:B, :K],
        "dis_cen2cen": prep["dis_cen2cen"],       # parameter-only, computed at prep
        # cal_thr2thr(): thresholds buffer defaults to tensor(0) -> returns 0.
        "dis_thr2thr": 0,
        "thresholds": prep["thresholds"],
    }


# ----------------------------------------------------------------------------
# Pure-JAX reference (same f32 math) for correctness.
# ----------------------------------------------------------------------------
def dfpnet_ref(x_nchw, params):
    B, C, H, W = x_nchw.shape
    gap = jnp.mean(x_nchw.reshape(B, C, H * W).astype(jnp.float32), axis=-1)
    mu = jnp.mean(gap, axis=1, keepdims=True)
    std = jnp.sqrt(jnp.sum((gap - mu) ** 2, axis=1, keepdims=True) / (C - 1))
    y = jax.nn.sigmoid((gap - mu) / (std + 1e-5) * params["dec_w"] + params["dec_b"])
    gap = gap * y
    a1, a2 = params["prelu1"], params["prelu2"]
    h = jnp.where(gap >= 0, gap, a1 * gap)
    h = jnp.dot(h, params["w1"].T, precision="highest")
    h = jnp.where(h >= 0, h, a2 * h)
    embed = jnp.dot(h, params["w2"].T, precision="highest")
    cen = params["centroids"]
    E = cen.shape[1]
    sim = jnp.dot(embed, cen.T, precision="highest") / E
    dfc = jnp.sum((embed[:, None, :] - cen[None, :, :]) ** 2, axis=-1) / E
    dcc = jnp.sum((cen[:, None, :] - cen[None, :, :]) ** 2, axis=-1) / E
    return gap, embed, sim, dfc, dcc


if __name__ == "__main__":
    # Small synthetic shapes: ResNet18-like feat_dim=256, embed_dim=64, 8 classes.
    B, C, H, W = 4, 256, 8, 8
    C16 = C // 16          # 16
    E = 64                 # embed_dim
    K = 8                  # num_classes

    key = jax.random.PRNGKey(0)
    kx, k1, k2, k3 = jax.random.split(key, 4)

    x = jax.random.normal(kx, (B, C, H, W), dtype=jnp.float32)

    params = {
        # Decorrelation: weight=ones, bias=zeros (as in __init__)
        "dec_w": jnp.ones((1, C), jnp.float32),
        "dec_b": jnp.zeros((1, C), jnp.float32),
        # PReLU default single slope 0.25
        "prelu1": jnp.float32(0.25),
        "prelu2": jnp.float32(0.25),
        # Linear weights in torch layout (out_features, in_features), bias=False
        "w1": (jax.random.normal(k1, (C16, C), jnp.float32) / math.sqrt(C)),
        "w2": (jax.random.normal(k2, (E, C16), jnp.float32) / math.sqrt(C16)),
        # centroids ~ randn(num_classes, embed_dim)
        "centroids": jax.random.normal(k3, (K, E), jnp.float32),
        # thresholds buffer defaults to tensor(0)
        "thresholds": jnp.array(0, jnp.float32),
    }

    prep = prepare_dfp_params(params)   # one-time transpose/pad + centroid-only work
    out = dfpnet_forward(x, prep)
    jax.block_until_ready(out["dis_fea2cen"])

    # sanity check against the pure-JAX reference
    ref = dfpnet_ref(x, params)
    got = (out["gap"], out["embed_fea"], out["sim_fea2cen"],
           out["dis_fea2cen"], out["dis_cen2cen"])
    for g, r in zip(got, ref):
        np.testing.assert_allclose(np.asarray(g), np.asarray(r),
                                   rtol=1e-2, atol=1e-2)

    print("KERNEL_OK")
</pallas_src>

<mosaic_0001>
module attributes {stable_mosaic.version = 11 : i64} {
  func.func @_dfp_kernel(%arg0: i32, %arg1: memref<2xf32, #tpu.memory_space<smem>>, %arg2: memref<4x256x64xf32, #tpu.memory_space<vmem>>, %arg3: memref<1x256xf32, #tpu.memory_space<vmem>>, %arg4: memref<1x256xf32, #tpu.memory_space<vmem>>, %arg5: memref<256x128xf32, #tpu.memory_space<vmem>>, %arg6: memref<128x128xf32, #tpu.memory_space<vmem>>, %arg7: memref<128x128xf32, #tpu.memory_space<vmem>>, %arg8: memref<1x128xf32, #tpu.memory_space<vmem>>, %arg9: memref<4x256xf32, #tpu.memory_space<vmem>>, %arg10: memref<4x128xf32, #tpu.memory_space<vmem>>, %arg11: memref<4x128xf32, #tpu.memory_space<vmem>>, %arg12: memref<4x128xf32, #tpu.memory_space<vmem>>) attributes {dimension_semantics = [#tpu.dimension_semantics<parallel>], iteration_bounds = array<i64: 1>, scalar_prefetch = 0 : i64, scratch_operands = 0 : i64, tpu.core_type = #tpu.core_type<tc>, window_params = [{transform_indices = @transform_0, window_bounds = array<i64: 2>}, {transform_indices = @transform_1, window_bounds = array<i64: 4, 256, 64>}, {pipeline_mode = #tpu.pipeline_mode<synchronous>, transform_indices = @transform_2, window_bounds = array<i64: 1, 256>}, {pipeline_mode = #tpu.pipeline_mode<synchronous>, transform_indices = @transform_3, window_bounds = array<i64: 1, 256>}, {pipeline_mode = #tpu.pipeline_mode<synchronous>, transform_indices = @transform_4, window_bounds = array<i64: 256, 128>}, {pipeline_mode = #tpu.pipeline_mode<synchronous>, transform_indices = @transform_5, window_bounds = array<i64: 128, 128>}, {pipeline_mode = #tpu.pipeline_mode<synchronous>, transform_indices = @transform_6, window_bounds = array<i64: 128, 128>}, {pipeline_mode = #tpu.pipeline_mode<synchronous>, transform_indices = @transform_7, window_bounds = array<i64: 1, 128>}, {transform_indices = @transform_8, window_bounds = array<i64: 4, 256>}, {transform_indices = @transform_9, window_bounds = array<i64: 4, 128>}, {transform_indices = @transform_10, window_bounds = array<i64: 4, 128>}, {transform_indices = @transform_11, window_bounds = array<i64: 4, 128>}]} {
    %c0 = arith.constant 0 : index
    %c0_0 = arith.constant 0 : index
    %c0_1 = arith.constant 0 : index
    %0 = vector.load %arg2[%c0, %c0_0, %c0_1] : memref<4x256x64xf32, #tpu.memory_space<vmem>>, vector<4x256x64xf32>
    %cst = arith.constant dense<0.000000e+00> : vector<4x256xf32>
    %1 = vector.multi_reduction <add>, %0, %cst [2] : vector<4x256x64xf32> to vector<4x256xf32>
    %cst_2 = arith.constant 1.562500e-02 : f32
    %2 = vector.broadcast %cst_2 : f32 to vector<4x256xf32>
    %3 = arith.mulf %1, %2 : vector<4x256xf32>
    %cst_3 = arith.constant dense<0.000000e+00> : vector<4xf32>
    %4 = vector.multi_reduction <add>, %3, %cst_3 [1] : vector<4x256xf32> to vector<4xf32>
    %5 = vector.shape_cast %4 : vector<4xf32> to vector<4x1xf32>
    %cst_4 = arith.constant 2.560000e+02 : f32
    %6 = vector.broadcast %cst_4 : f32 to vector<4x1xf32>
    %7 = arith.divf %5, %6 : vector<4x1xf32>
    %8 = vector.broadcast %7 : vector<4x1xf32> to vector<4x256xf32>
    %9 = arith.subf %3, %8 : vector<4x256xf32>
    %10 = arith.mulf %9, %9 : vector<4x256xf32>
    %cst_5 = arith.constant dense<0.000000e+00> : vector<4xf32>
    %11 = vector.multi_reduction <add>, %10, %cst_5 [1] : vector<4x256xf32> to vector<4xf32>
    %12 = vector.shape_cast %11 : vector<4xf32> to vector<4x1xf32>
    %cst_6 = arith.constant 0.00392156886 : f32
    %13 = vector.broadcast %cst_6 : f32 to vector<4x1xf32>
    %14 = arith.mulf %12, %13 : vector<4x1xf32>
    %15 = math.sqrt %14 : vector<4x1xf32>
    %16 = vector.broadcast %7 : vector<4x1xf32> to vector<4x256xf32>
    %17 = arith.subf %3, %16 : vector<4x256xf32>
    %cst_7 = arith.constant 9.99999974E-6 : f32
    %18 = vector.broadcast %cst_7 : f32 to vector<4x1xf32>
    %19 = arith.addf %15, %18 : vector<4x1xf32>
    %20 = vector.broadcast %19 : vector<4x1xf32> to vector<4x256xf32>
    %21 = arith.divf %17, %20 : vector<4x256xf32>
    %c0_8 = arith.constant 0 : index
    %c0_9 = arith.constant 0 : index
    %22 = vector.load %arg3[%c0_8, %c0_9] : memref<1x256xf32, #tpu.memory_space<vmem>>, vector<1x256xf32>
    %23 = vector.broadcast %22 : vector<1x256xf32> to vector<4x256xf32>
    %24 = arith.mulf %21, %23 : vector<4x256xf32>
    %c0_10 = arith.constant 0 : index
    %c0_11 = arith.constant 0 : index
    %25 = vector.load %arg4[%c0_10, %c0_11] : memref<1x256xf32, #tpu.memory_space<vmem>>, vector<1x256xf32>
    %26 = vector.broadcast %25 : vector<1x256xf32> to vector<4x256xf32>
    %27 = arith.addf %24, %26 : vector<4x256xf32>
    %28 = arith.negf %27 : vector<4x256xf32>
    %29 = math.exp %28 : vector<4x256xf32>
    %cst_12 = arith.constant 1.000000e+00 : f32
    %30 = vector.broadcast %cst_12 : f32 to vector<4x256xf32>
    %31 = arith.addf %30, %29 : vector<4x256xf32>
    %32 = arith.divf %30, %31 : vector<4x256xf32>
    %33 = arith.mulf %3, %32 : vector<4x256xf32>
    %c0_13 = arith.constant 0 : index
    %c0_14 = arith.constant 0 : index
    %34 = vector.load %arg9[%c0_13, %c0_14] : memref<4x256xf32, #tpu.memory_space<vmem>>, vector<4x256xf32>
    tpu.vector_store %arg9[%c0_13, %c0_14], %33 {strides = array<i32>} : memref<4x256xf32, #tpu.memory_space<vmem>>, vector<4x256xf32>,
    %c0_15 = arith.constant 0 : index
    %35 = memref.load %arg1[%c0_15] : memref<2xf32, #tpu.memory_space<smem>>
    %c1 = arith.constant 1 : index
    %36 = memref.load %arg1[%c1] : memref<2xf32, #tpu.memory_space<smem>>
    %cst_16 = arith.constant 0.000000e+00 : f32
    %37 = vector.broadcast %cst_16 : f32 to vector<4x256xf32>
    %38 = arith.cmpf oge, %33, %37 : vector<4x256xf32>
    %39 = vector.broadcast %35 : f32 to vector<4x256xf32>
    %40 = arith.mulf %39, %33 : vector<4x256xf32>
    %41 = arith.select %38, %33, %40 : vector<4x256xi1>, vector<4x256xf32>
    %c0_17 = arith.constant 0 : index
    %c0_18 = arith.constant 0 : index
    %42 = vector.load %arg5[%c0_17, %c0_18] : memref<256x128xf32, #tpu.memory_space<vmem>>, vector<256x128xf32>
    %cst_19 = arith.constant dense<0.000000e+00> : vector<4x128xf32>
    %43 = tpu.matmul %41, %42, %cst_19 {dimension_numbers = #tpu.dot_dimension_numbers<[1], [0], [0], [1], [0, 0, 1, 1], [], []>} : vector<4x256xf32>, vector<256x128xf32>, vector<4x128xf32> -> vector<4x128xf32>
    %cst_20 = arith.constant 0.000000e+00 : f32
    %44 = vector.broadcast %cst_20 : f32 to vector<4x128xf32>
    %45 = arith.cmpf oge, %43, %44 : vector<4x128xf32>
    %46 = vector.broadcast %36 : f32 to vector<4x128xf32>
    %47 = arith.mulf %46, %43 : vector<4x128xf32>
    %48 = arith.select %45, %43, %47 : vector<4x128xi1>, vector<4x128xf32>
    %c0_21 = arith.constant 0 : index
    %c0_22 = arith.constant 0 : index
    %49 = vector.load %arg6[%c0_21, %c0_22] : memref<128x128xf32, #tpu.memory_space<vmem>>, vector<128x128xf32>
    %cst_23 = arith.constant dense<0.000000e+00> : vector<4x128xf32>
    %50 = tpu.matmul %48, %49, %cst_23 {dimension_numbers = #tpu.dot_dimension_numbers<[1], [0], [0], [1], [0, 0, 1, 1], [], []>} : vector<4x128xf32>, vector<128x128xf32>, vector<4x128xf32> -> vector<4x128xf32>
    %c0_24 = arith.constant 0 : index
    %c0_25 = arith.constant 0 : index
    %51 = vector.load %arg10[%c0_24, %c0_25] : memref<4x128xf32, #tpu.memory_space<vmem>>, vector<4x128xf32>
    tpu.vector_store %arg10[%c0_24, %c0_25], %50 {strides = array<i32>} : memref<4x128xf32, #tpu.memory_space<vmem>>, vector<4x128xf32>,
    %c0_26 = arith.constant 0 : index
    %c0_27 = arith.constant 0 : index
    %52 = vector.load %arg7[%c0_26, %c0_27] : memref<128x128xf32, #tpu.memory_space<vmem>>, vector<128x128xf32>
    %cst_28 = arith.constant dense<0.000000e+00> : vector<4x128xf32>
    %53 = tpu.matmul %50, %52, %cst_28 {dimension_numbers = #tpu.dot_dimension_numbers<[1], [1], [0], [0], [0, 0, 1, 0], [], []>} : vector<4x128xf32>, vector<128x128xf32>, vector<4x128xf32> -> vector<4x128xf32>
    %cst_29 = arith.constant 1.562500e-02 : f32
    %54 = vector.broadcast %cst_29 : f32 to vector<4x128xf32>
    %55 = arith.mulf %53, %54 : vector<4x128xf32>
    %c0_30 = arith.constant 0 : index
    %c0_31 = arith.constant 0 : index
    %56 = vector.load %arg11[%c0_30, %c0_31] : memref<4x128xf32, #tpu.memory_space<vmem>>, vector<4x128xf32>
    tpu.vector_store %arg11[%c0_30, %c0_31], %55 {strides = array<i32>} : memref<4x128xf32, #tpu.memory_space<vmem>>, vector<4x128xf32>,
    %57 = arith.mulf %50, %50 : vector<4x128xf32>
    %cst_32 = arith.constant dense<0.000000e+00> : vector<4xf32>
    %58 = vector.multi_reduction <add>, %57, %cst_32 [1] : vector<4x128xf32> to vector<4xf32>
    %59 = vector.shape_cast %58 : vector<4xf32> to vector<4x1xf32>
    %c0_33 = arith.constant 0 : index
    %c0_34 = arith.constant 0 : index
    %60 = vector.load %arg8[%c0_33, %c0_34] : memref<1x128xf32, #tpu.memory_space<vmem>>, vector<1x128xf32>
    %61 = vector.broadcast %59 : vector<4x1xf32> to vector<4x128xf32>
    %62 = vector.broadcast %60 : vector<1x128xf32> to vector<4x128xf32>
    %63 = arith.addf %61, %62 : vector<4x128xf32>
    %cst_35 = arith.constant 2.000000e+00 : f32
    %64 = vector.broadcast %cst_35 : f32 to vector<4x128xf32>
    %65 = arith.mulf %64, %53 : vector<4x128xf32>
    %66 = arith.subf %63, %65 : vector<4x128xf32>
    %cst_36 = arith.constant 0.000000e+00 : f32
    %67 = vector.broadcast %cst_36 : f32 to vector<4x128xf32>
    %68 = arith.maximumf %66, %67 : vector<4x128xf32>
    %cst_37 = arith.constant 1.562500e-02 : f32
    %69 = vector.broadcast %cst_37 : f32 to vector<4x128xf32>
    %70 = arith.mulf %68, %69 : vector<4x128xf32>
    %c0_38 = arith.constant 0 : index
    %c0_39 = arith.constant 0 : index
    %71 = vector.load %arg12[%c0_38, %c0_39] : memref<4x128xf32, #tpu.memory_space<vmem>>, vector<4x128xf32>
    tpu.vector_store %arg12[%c0_38, %c0_39], %70 {strides = array<i32>} : memref<4x128xf32, #tpu.memory_space<vmem>>, vector<4x128xf32>,
    return
  }
  func.func @transform_0(%arg0: i32) -> i32 {
    %c0_i32 = arith.constant 0 : i32
    %c0_i32_0 = arith.constant 0 : i32
    return %c0_i32 : i32
  }
  func.func @transform_1(%arg0: i32) -> (i32, i32, i32) {
    %c0_i32 = arith.constant 0 : i32
    %c0_i32_0 = arith.constant 0 : i32
    %c0_i32_1 = arith.constant 0 : i32
    return %arg0, %c0_i32, %c0_i32_0 : i32, i32, i32
  }
  func.func @transform_2(%arg0: i32) -> (i32, i32) {
    %c0_i32 = arith.constant 0 : i32
    %c0_i32_0 = arith.constant 0 : i32
    %c0_i32_1 = arith.constant 0 : i32
    return %c0_i32, %c0_i32_0 : i32, i32
  }
  func.func @transform_3(%arg0: i32) -> (i32, i32) {
    %c0_i32 = arith.constant 0 : i32
    %c0_i32_0 = arith.constant 0 : i32
    %c0_i32_1 = arith.constant 0 : i32
    return %c0_i32, %c0_i32_0 : i32, i32
  }
  func.func @transform_4(%arg0: i32) -> (i32, i32) {
    %c0_i32 = arith.constant 0 : i32
    %c0_i32_0 = arith.constant 0 : i32
    %c0_i32_1 = arith.constant 0 : i32
    return %c0_i32, %c0_i32_0 : i32, i32
  }
  func.func @transform_5(%arg0: i32) -> (i32, i32) {
    %c0_i32 = arith.constant 0 : i32
    %c0_i32_0 = arith.constant 0 : i32
    %c0_i32_1 = arith.constant 0 : i32
    return %c0_i32, %c0_i32_0 : i32, i32
  }
  func.func @transform_6(%arg0: i32) -> (i32, i32) {
    %c0_i32 = arith.constant 0 : i32
    %c0_i32_0 = arith.constant 0 : i32
    %c0_i32_1 = arith.constant 0 : i32
    return %c0_i32, %c0_i32_0 : i32, i32
  }
  func.func @transform_7(%arg0: i32) -> (i32, i32) {
    %c0_i32 = arith.constant 0 : i32
    %c0_i32_0 = arith.constant 0 : i32
    %c0_i32_1 = arith.constant 0 : i32
    return %c0_i32, %c0_i32_0 : i32, i32
  }
  func.func @transform_8(%arg0: i32) -> (i32, i32) {
    %c0_i32 = arith.constant 0 : i32
    %c0_i32_0 = arith.constant 0 : i32
    return %arg0, %c0_i32 : i32, i32
  }
  func.func @transform_9(%arg0: i32) -> (i32, i32) {
    %c0_i32 = arith.constant 0 : i32
    %c0_i32_0 = arith.constant 0 : i32
    return %arg0, %c0_i32 : i32, i32
  }
  func.func @transform_10(%arg0: i32) -> (i32, i32) {
    %c0_i32 = arith.constant 0 : i32
    %c0_i32_0 = arith.constant 0 : i32
    return %arg0, %c0_i32 : i32, i32
  }
  func.func @transform_11(%arg0: i32) -> (i32, i32) {
    %c0_i32 = arith.constant 0 : i32
    %c0_i32_0 = arith.constant 0 : i32
    return %arg0, %c0_i32 : i32, i32
  }
}

</mosaic_0001>

<llo_original>
// kernel: tpu_custom_call.1
$region0: #{tpu_custom_call.1}
  #allocation0 [shape = 'u32[]', space=smem, size = 0x4, offset = 0x4, fixed_abs, tag = 'smem constant byte address 0x4 - core index']
  #allocation1 [shape = 'u32[72,128]{1,0:T(1,128)}', space=vmem, size = 0x9000, scoped, tag = 'internal scratch']
  %s0 = inlined_call_operand.vmem [shape: f32[2], index: 0, kind: input, shape index: {}]
  %s1 = inlined_call_operand.vmem [shape: f32[4,256,64], index: 1, kind: input, shape index: {}]
  %s2 = inlined_call_operand.vmem [shape: f32[1,256], index: 2, kind: input, shape index: {}]
  %s3 = inlined_call_operand.vmem [shape: f32[1,256], index: 3, kind: input, shape index: {}]
  %s4 = inlined_call_operand.vmem [shape: f32[256,128], index: 4, kind: input, shape index: {}]
  %s5 = inlined_call_operand.vmem [shape: f32[128,128], index: 5, kind: input, shape index: {}]
  %s6 = inlined_call_operand.vmem [shape: f32[128,128], index: 6, kind: input, shape index: {}]
  %s7 = inlined_call_operand.vmem [shape: f32[1,128], index: 7, kind: input, shape index: {}]
  %s8 = inlined_call_operand.hbm [shape: f32[4,256], index: 8, kind: output, shape index: {0}]
  %s9 = inlined_call_operand.hbm [shape: f32[4,128], index: 9, kind: output, shape index: {1}]
  %s10 = inlined_call_operand.hbm [shape: f32[4,128], index: 10, kind: output, shape index: {2}]
  %s11 = inlined_call_operand.hbm [shape: f32[4,128], index: 11, kind: output, shape index: {3}]
  %12 = xla_tuple %s8, %s9, %s10, %s11
  %s13 = sld [smem:[#allocation0]]
  $region70: #{tpu_custom_call.1} parent=0
    _
  %s15 = ssub.s32 1, %s13
  %s16 = scalar_select 0, %s15, %s13
  $region1: #{tpu_custom_call.1} parent=0
    #allocation2 [shape = 'u8[512]{0}', space=smem, size = 0x200, scoped, tag = 'input window, operand 0, single buffered']
    #allocation3 [shape = 's32[1]{0}', space=sflag, size = 0x4, scoped, tag = 'scoped memory for tpu_custom_call.1']
    #allocation4 [shape = 's32[1]{0}', space=sflag, size = 0x4, scoped, tag = 'scoped memory for tpu_custom_call.1']
    #allocation5 [shape = 'u8[4096]{0}', space=vmem, size = 0x1000, scoped, tag = 'output window, operand 0, single buffered']
    #allocation6 [shape = 'u8[2048]{0}', space=vmem, size = 0x800, scoped, tag = 'output window, operand 1, single buffered']
    #allocation7 [shape = 's32[1]{0}', space=sflag, size = 0x4, scoped, tag = 'scoped memory for tpu_custom_call.1']
    #allocation8 [shape = 'u8[2048]{0}', space=vmem, size = 0x800, scoped, tag = 'output window, operand 2, single buffered']
    #allocation9 [shape = 'u8[2048]{0}', space=vmem, size = 0x800, scoped, tag = 'output window, operand 3, single buffered']
    #allocation10 [shape = 's32[1]{0}', space=sflag, size = 0x4, scoped, tag = 'scoped memory for tpu_custom_call.1']
    %17 = vsyncpa [#allocation4], 0
    %18 = vsyncpa [#allocation3], 0
    %19 = vsyncpa [#allocation7], 0
    %20 = vsyncpa [#allocation10], 0
    // Predicated region
    $region2: #{tpu_custom_call.1} parent=1 // pred_check
      _
    $region3: #{tpu_custom_call.1} parent=1 // pred_check_branch
      %22 = sbr.rel (0) target = $region5
    $region4: #{tpu_custom_call.1} parent=1 // pred_region
      %24 = vsyncadd [#allocation4], 0
      %s26 = sshll.u32 %s0, 4
      %s27 = int_to_ptr.vmem [resolvable:$true] %s26
      %29 = dma.vmem_to_smem %s27, 16, [#allocation2], [#allocation4]
    $region5: #{tpu_custom_call.1} parent=1 // pred_fallthru
      _
    // Predicated region
    $region6: #{tpu_custom_call.1} parent=1 // pred_check
      _
    $region7: #{tpu_custom_call.1} parent=1 // pred_check_branch
      %31 = sbr.rel (0) target = $region9
    $region8: #{tpu_custom_call.1} parent=1 // pred_region
      _
    $region9: #{tpu_custom_call.1} parent=1 // pred_fallthru
      _
    // Predicated region
    $region10: #{tpu_custom_call.1} parent=1 // pred_check
      _
    $region11: #{tpu_custom_call.1} parent=1 // pred_check_branch
      %33 = sbr.rel (0) target = $region13
    $region12: #{tpu_custom_call.1} parent=1 // pred_region
      _
    $region13: #{tpu_custom_call.1} parent=1 // pred_fallthru
      _
    // Predicated region
    $region14: #{tpu_custom_call.1} parent=1 // pred_check
      _
    $region15: #{tpu_custom_call.1} parent=1 // pred_check_branch
      %35 = sbr.rel (0) target = $region17
    $region16: #{tpu_custom_call.1} parent=1 // pred_region
      _
    $region17: #{tpu_custom_call.1} parent=1 // pred_fallthru
      _
    // Predicated region
    $region18: #{tpu_custom_call.1} parent=1 // pred_check
      _
    $region19: #{tpu_custom_call.1} parent=1 // pred_check_branch
      %37 = sbr.rel (0) target = $region21
    $region20: #{tpu_custom_call.1} parent=1 // pred_region
      _
    $region21: #{tpu_custom_call.1} parent=1 // pred_fallthru
      _
    // Predicated region
    $region22: #{tpu_custom_call.1} parent=1 // pred_check
      _
    $region23: #{tpu_custom_call.1} parent=1 // pred_check_branch
      %39 = sbr.rel (0) target = $region25
    $region24: #{tpu_custom_call.1} parent=1 // pred_region
      _
    $region25: #{tpu_custom_call.1} parent=1 // pred_fallthru
      _
    // Predicated region
    $region26: #{tpu_custom_call.1} parent=1 // pred_check
      _
    $region27: #{tpu_custom_call.1} parent=1 // pred_check_branch
      %41 = sbr.rel (0) target = $region29
    $region28: #{tpu_custom_call.1} parent=1 // pred_region
      _
    $region29: #{tpu_custom_call.1} parent=1 // pred_fallthru
      _
    // Predicated region
    $region30: #{tpu_custom_call.1} parent=1 // pred_check
      _
    $region31: #{tpu_custom_call.1} parent=1 // pred_check_branch
      %43 = sbr.rel (0) target = $region33
    $region32: #{tpu_custom_call.1} parent=1 // pred_region
      _
    $region33: #{tpu_custom_call.1} parent=1 // pred_fallthru
      _
    // Predicated region
    $region34: #{tpu_custom_call.1} parent=1 // pred_check
      _
    $region35: #{tpu_custom_call.1} parent=1 // pred_check_branch
      %45 = sbr.rel (0) target = $region37
    $region36: #{tpu_custom_call.1} parent=1 // pred_region
      %47 = dma.done [#allocation4], 16
    $region37: #{tpu_custom_call.1} parent=1 // pred_fallthru
      _
    %48 = sfence
    %v49 = vld [vmem:[%s1] sm:$0xff]
    %v50 = vld [vmem:[%s1 + $0x8] sm:$0xff]
    %v51 = vld [vmem:[%s1 + $0x10] sm:$0xff]
    %v52 = vld [vmem:[%s1 + $0x18] sm:$0xff]
    %v53 = vld [vmem:[%s1 + $0x20] sm:$0xff]
    %v54 = vld [vmem:[%s1 + $0x28] sm:$0xff]
    %v55 = vld [vmem:[%s1 + $0x30] sm:$0xff]
    %v56 = vld [vmem:[%s1 + $0x38] sm:$0xff]
    %v57 = vld [vmem:[%s1 + $0x40] sm:$0xff]
    %v58 = vld [vmem:[%s1 + $0x48] sm:$0xff]
    %v59 = vld [vmem:[%s1 + $0x50] sm:$0xff]
    %v60 = vld [vmem:[%s1 + $0x58] sm:$0xff]
    %v61 = vld [vmem:[%s1 + $0x60] sm:$0xff]
    %v62 = vld [vmem:[%s1 + $0x68] sm:$0xff]
    %v63 = vld [vmem:[%s1 + $0x70] sm:$0xff]
    %v64 = vld [vmem:[%s1 + $0x78] sm:$0xff]
    %v65 = vld [vmem:[%s1 + $0x80] sm:$0xff]
    %v66 = vld [vmem:[%s1 + $0x88] sm:$0xff]
    %v67 = vld [vmem:[%s1 + $0x90] sm:$0xff]
    %v68 = vld [vmem:[%s1 + $0x98] sm:$0xff]
    %v69 = vld [vmem:[%s1 + $0xa0] sm:$0xff]
    %v70 = vld [vmem:[%s1 + $0xa8] sm:$0xff]
    %v71 = vld [vmem:[%s1 + $0xb0] sm:$0xff]
    %v72 = vld [vmem:[%s1 + $0xb8] sm:$0xff]
    %v73 = vld [vmem:[%s1 + $0xc0] sm:$0xff]
    %v74 = vld [vmem:[%s1 + $0xc8] sm:$0xff]
    %v75 = vld [vmem:[%s1 + $0xd0] sm:$0xff]
    %v76 = vld [vmem:[%s1 + $0xd8] sm:$0xff]
    %v77 = vld [vmem:[%s1 + $0xe0] sm:$0xff]
    %v78 = vld [vmem:[%s1 + $0xe8] sm:$0xff]
    %v79 = vld [vmem:[%s1 + $0xf0] sm:$0xff]
    %v80 = vld [vmem:[%s1 + $0xf8] sm:$0xff]
    %v81 = vld [vmem:[%s1 + $0x100] sm:$0xff]
    %v82 = vld [vmem:[%s1 + $0x108] sm:$0xff]
    %v83 = vld [vmem:[%s1 + $0x110] sm:$0xff]
    %v84 = vld [vmem:[%s1 + $0x118] sm:$0xff]
    %v85 = vld [vmem:[%s1 + $0x120] sm:$0xff]
    %v86 = vld [vmem:[%s1 + $0x128] sm:$0xff]
    %v87 = vld [vmem:[%s1 + $0x130] sm:$0xff]
    %v88 = vld [vmem:[%s1 + $0x138] sm:$0xff]
    %v89 = vld [vmem:[%s1 + $0x140] sm:$0xff]
    %v90 = vld [vmem:[%s1 + $0x148] sm:$0xff]
    %v91 = vld [vmem:[%s1 + $0x150] sm:$0xff]
    %v92 = vld [vmem:[%s1 + $0x158] sm:$0xff]
    %v93 = vld [vmem:[%s1 + $0x160] sm:$0xff]
    %v94 = vld [vmem:[%s1 + $0x168] sm:$0xff]
    %v95 = vld [vmem:[%s1 + $0x170] sm:$0xff]
    %v96 = vld [vmem:[%s1 + $0x178] sm:$0xff]
    %v97 = vld [vmem:[%s1 + $0x180] sm:$0xff]
    %v98 = vld [vmem:[%s1 + $0x188] sm:$0xff]
    %v99 = vld [vmem:[%s1 + $0x190] sm:$0xff]
    %v100 = vld [vmem:[%s1 + $0x198] sm:$0xff]
    %v101 = vld [vmem:[%s1 + $0x1a0] sm:$0xff]
    %v102 = vld [vmem:[%s1 + $0x1a8] sm:$0xff]
    %v103 = vld [vmem:[%s1 + $0x1b0] sm:$0xff]
    %v104 = vld [vmem:[%s1 + $0x1b8] sm:$0xff]
    %v105 = vld [vmem:[%s1 + $0x1c0] sm:$0xff]
    %v106 = vld [vmem:[%s1 + $0x1c8] sm:$0xff]
    %v107 = vld [vmem:[%s1 + $0x1d0] sm:$0xff]
    %v108 = vld [vmem:[%s1 + $0x1d8] sm:$0xff]
    %v109 = vld [vmem:[%s1 + $0x1e0] sm:$0xff]
    %v110 = vld [vmem:[%s1 + $0x1e8] sm:$0xff]
    %v111 = vld [vmem:[%s1 + $0x1f0] sm:$0xff]
    %v112 = vld [vmem:[%s1 + $0x1f8] sm:$0xff]
    %v113 = vld [vmem:[%s1 + $0x200] sm:$0xff]
    %v114 = vld [vmem:[%s1 + $0x208] sm:$0xff]
    %v115 = vld [vmem:[%s1 + $0x210] sm:$0xff]
    %v116 = vld [vmem:[%s1 + $0x218] sm:$0xff]
    %v117 = vld [vmem:[%s1 + $0x220] sm:$0xff]
    %v118 = vld [vmem:[%s1 + $0x228] sm:$0xff]
    %v119 = vld [vmem:[%s1 + $0x230] sm:$0xff]
    %v120 = vld [vmem:[%s1 + $0x238] sm:$0xff]
    %v121 = vld [vmem:[%s1 + $0x240] sm:$0xff]
    %v122 = vld [vmem:[%s1 + $0x248] sm:$0xff]
    %v123 = vld [vmem:[%s1 + $0x250] sm:$0xff]
    %v124 = vld [vmem:[%s1 + $0x258] sm:$0xff]
    %v125 = vld [vmem:[%s1 + $0x260] sm:$0xff]
    %v126 = vld [vmem:[%s1 + $0x268] sm:$0xff]
    %v127 = vld [vmem:[%s1 + $0x270] sm:$0xff]
    %v128 = vld [vmem:[%s1 + $0x278] sm:$0xff]
    %v129 = vld [vmem:[%s1 + $0x280] sm:$0xff]
    %v130 = vld [vmem:[%s1 + $0x288] sm:$0xff]
    %v131 = vld [vmem:[%s1 + $0x290] sm:$0xff]
    %v132 = vld [vmem:[%s1 + $0x298] sm:$0xff]
    %v133 = vld [vmem:[%s1 + $0x2a0] sm:$0xff]
    %v134 = vld [vmem:[%s1 + $0x2a8] sm:$0xff]
    %v135 = vld [vmem:[%s1 + $0x2b0] sm:$0xff]
    %v136 = vld [vmem:[%s1 + $0x2b8] sm:$0xff]
    %v137 = vld [vmem:[%s1 + $0x2c0] sm:$0xff]
    %v138 = vld [vmem:[%s1 + $0x2c8] sm:$0xff]
    %v139 = vld [vmem:[%s1 + $0x2d0] sm:$0xff]
    %v140 = vld [vmem:[%s1 + $0x2d8] sm:$0xff]
    %v141 = vld [vmem:[%s1 + $0x2e0] sm:$0xff]
    %v142 = vld [vmem:[%s1 + $0x2e8] sm:$0xff]
    %v143 = vld [vmem:[%s1 + $0x2f0] sm:$0xff]
    %v144 = vld [vmem:[%s1 + $0x2f8] sm:$0xff]
    %v145 = vld [vmem:[%s1 + $0x300] sm:$0xff]
    %v146 = vld [vmem:[%s1 + $0x308] sm:$0xff]
    %v147 = vld [vmem:[%s1 + $0x310] sm:$0xff]
    %v148 = vld [vmem:[%s1 + $0x318] sm:$0xff]
    %v149 = vld [vmem:[%s1 + $0x320] sm:$0xff]
    %v150 = vld [vmem:[%s1 + $0x328] sm:$0xff]
    %v151 = vld [vmem:[%s1 + $0x330] sm:$0xff]
    %v152 = vld [vmem:[%s1 + $0x338] sm:$0xff]
    %v153 = vld [vmem:[%s1 + $0x340] sm:$0xff]
    %v154 = vld [vmem:[%s1 + $0x348] sm:$0xff]
    %v155 = vld [vmem:[%s1 + $0x350] sm:$0xff]
    %v156 = vld [vmem:[%s1 + $0x358] sm:$0xff]
    %v157 = vld [vmem:[%s1 + $0x360] sm:$0xff]
    %v158 = vld [vmem:[%s1 + $0x368] sm:$0xff]
    %v159 = vld [vmem:[%s1 + $0x370] sm:$0xff]
    %v160 = vld [vmem:[%s1 + $0x378] sm:$0xff]
    %v161 = vld [vmem:[%s1 + $0x380] sm:$0xff]
    %v162 = vld [vmem:[%s1 + $0x388] sm:$0xff]
    %v163 = vld [vmem:[%s1 + $0x390] sm:$0xff]
    %v164 = vld [vmem:[%s1 + $0x398] sm:$0xff]
    %v165 = vld [vmem:[%s1 + $0x3a0] sm:$0xff]
    %v166 = vld [vmem:[%s1 + $0x3a8] sm:$0xff]
    %v167 = vld [vmem:[%s1 + $0x3b0] sm:$0xff]
    %v168 = vld [vmem:[%s1 + $0x3b8] sm:$0xff]
    %v169 = vld [vmem:[%s1 + $0x3c0] sm:$0xff]
    %v170 = vld [vmem:[%s1 + $0x3c8] sm:$0xff]
    %v171 = vld [vmem:[%s1 + $0x3d0] sm:$0xff]
    %v172 = vld [vmem:[%s1 + $0x3d8] sm:$0xff]
    %v173 = vld [vmem:[%s1 + $0x3e0] sm:$0xff]
    %v174 = vld [vmem:[%s1 + $0x3e8] sm:$0xff]
    %v175 = vld [vmem:[%s1 + $0x3f0] sm:$0xff]
    %v176 = vld [vmem:[%s1 + $0x3f8] sm:$0xff]
    %vm177 = vcmask 523264
    %v178 = vsel %vm177, %v49, 0.0
    %179 = vadd.xlane.f32.xlu0 %v178
    %v180 = vpop.xlane.xlu0 %179
    %v181 = vsel %vm177, %v50, 0.0
    %182 = vadd.xlane.f32.xlu0 %v181
    %v183 = vpop.xlane.xlu0 %182
    %v184 = vsel %vm177, %v51, 0.0
    %185 = vadd.xlane.f32.xlu0 %v184
    %v186 = vpop.xlane.xlu0 %185
    %v187 = vsel %vm177, %v52, 0.0
    %188 = vadd.xlane.f32.xlu0 %v187
    %v189 = vpop.xlane.xlu0 %188
    %v190 = vsel %vm177, %v53, 0.0
    %191 = vadd.xlane.f32.xlu0 %v190
    %v192 = vpop.xlane.xlu0 %191
    %v193 = vsel %vm177, %v54, 0.0
    %194 = vadd.xlane.f32.xlu0 %v193
    %v195 = vpop.xlane.xlu0 %194
    %v196 = vsel %vm177, %v55, 0.0
    %197 = vadd.xlane.f32.xlu0 %v196
    %v198 = vpop.xlane.xlu0 %197
    %v199 = vsel %vm177, %v56, 0.0
    %200 = vadd.xlane.f32.xlu0 %v199
    %v201 = vpop.xlane.xlu0 %200
    %v202 = vsel %vm177, %v57, 0.0
    %203 = vadd.xlane.f32.xlu0 %v202
    %v204 = vpop.xlane.xlu0 %203
    %v205 = vsel %vm177, %v58, 0.0
    %206 = vadd.xlane.f32.xlu0 %v205
    %v207 = vpop.xlane.xlu0 %206
    %v208 = vsel %vm177, %v59, 0.0
    %209 = vadd.xlane.f32.xlu0 %v208
    %v210 = vpop.xlane.xlu0 %209
    %v211 = vsel %vm177, %v60, 0.0
    %212 = vadd.xlane.f32.xlu0 %v211
    %v213 = vpop.xlane.xlu0 %212
    %v214 = vsel %vm177, %v61, 0.0
    %215 = vadd.xlane.f32.xlu0 %v214
    %v216 = vpop.xlane.xlu0 %215
    %v217 = vsel %vm177, %v62, 0.0
    %218 = vadd.xlane.f32.xlu0 %v217
    %v219 = vpop.xlane.xlu0 %218
    %v220 = vsel %vm177, %v63, 0.0
    %221 = vadd.xlane.f32.xlu0 %v220
    %v222 = vpop.xlane.xlu0 %221
    %v223 = vsel %vm177, %v64, 0.0
    %224 = vadd.xlane.f32.xlu0 %v223
    %v225 = vpop.xlane.xlu0 %224
    %v226 = vsel %vm177, %v65, 0.0
    %227 = vadd.xlane.f32.xlu0 %v226
    %v228 = vpop.xlane.xlu0 %227
    %v229 = vsel %vm177, %v66, 0.0
    %230 = vadd.xlane.f32.xlu0 %v229
    %v231 = vpop.xlane.xlu0 %230
    %v232 = vsel %vm177, %v67, 0.0
    %233 = vadd.xlane.f32.xlu0 %v232
    %v234 = vpop.xlane.xlu0 %233
    %v235 = vsel %vm177, %v68, 0.0
    %236 = vadd.xlane.f32.xlu0 %v235
    %v237 = vpop.xlane.xlu0 %236
    %v238 = vsel %vm177, %v69, 0.0
    %239 = vadd.xlane.f32.xlu0 %v238
    %v240 = vpop.xlane.xlu0 %239
    %v241 = vsel %vm177, %v70, 0.0
    %242 = vadd.xlane.f32.xlu0 %v241
    %v243 = vpop.xlane.xlu0 %242
    %v244 = vsel %vm177, %v71, 0.0
    %245 = vadd.xlane.f32.xlu0 %v244
    %v246 = vpop.xlane.xlu0 %245
    %v247 = vsel %vm177, %v72, 0.0
    %248 = vadd.xlane.f32.xlu0 %v247
    %v249 = vpop.xlane.xlu0 %248
    %v250 = vsel %vm177, %v73, 0.0
    %251 = vadd.xlane.f32.xlu0 %v250
    %v252 = vpop.xlane.xlu0 %251
    %v253 = vsel %vm177, %v74, 0.0
    %254 = vadd.xlane.f32.xlu0 %v253
    %v255 = vpop.xlane.xlu0 %254
    %v256 = vsel %vm177, %v75, 0.0
    %257 = vadd.xlane.f32.xlu0 %v256
    %v258 = vpop.xlane.xlu0 %257
    %v259 = vsel %vm177, %v76, 0.0
    %260 = vadd.xlane.f32.xlu0 %v259
    %v261 = vpop.xlane.xlu0 %260
    %v262 = vsel %vm177, %v77, 0.0
    %263 = vadd.xlane.f32.xlu0 %v262
    %v264 = vpop.xlane.xlu0 %263
    %v265 = vsel %vm177, %v78, 0.0
    %266 = vadd.xlane.f32.xlu0 %v265
    %v267 = vpop.xlane.xlu0 %266
    %v268 = vsel %vm177, %v79, 0.0
    %269 = vadd.xlane.f32.xlu0 %v268
    %v270 = vpop.xlane.xlu0 %269
    %v271 = vsel %vm177, %v80, 0.0
    %272 = vadd.xlane.f32.xlu0 %v271
    %v273 = vpop.xlane.xlu0 %272
    %v274 = vsel %vm177, %v81, 0.0
    %275 = vadd.xlane.f32.xlu0 %v274
    %v276 = vpop.xlane.xlu0 %275
    %v277 = vsel %vm177, %v82, 0.0
    %278 = vadd.xlane.f32.xlu0 %v277
    %v279 = vpop.xlane.xlu0 %278
    %v280 = vsel %vm177, %v83, 0.0
    %281 = vadd.xlane.f32.xlu0 %v280
    %v282 = vpop.xlane.xlu0 %281
    %v283 = vsel %vm177, %v84, 0.0
    %284 = vadd.xlane.f32.xlu0 %v283
    %v285 = vpop.xlane.xlu0 %284
    %v286 = vsel %vm177, %v85, 0.0
    %287 = vadd.xlane.f32.xlu0 %v286
    %v288 = vpop.xlane.xlu0 %287
    %v289 = vsel %vm177, %v86, 0.0
    %290 = vadd.xlane.f32.xlu0 %v289
    %v291 = vpop.xlane.xlu0 %290
    %v292 = vsel %vm177, %v87, 0.0
    %293 = vadd.xlane.f32.xlu0 %v292
    %v294 = vpop.xlane.xlu0 %293
    %v295 = vsel %vm177, %v88, 0.0
    %296 = vadd.xlane.f32.xlu0 %v295
    %v297 = vpop.xlane.xlu0 %296
    %v298 = vsel %vm177, %v89, 0.0
    %299 = vadd.xlane.f32.xlu0 %v298
    %v300 = vpop.xlane.xlu0 %299
    %v301 = vsel %vm177, %v90, 0.0
    %302 = vadd.xlane.f32.xlu0 %v301
    %v303 = vpop.xlane.xlu0 %302
    %v304 = vsel %vm177, %v91, 0.0
    %305 = vadd.xlane.f32.xlu0 %v304
    %v306 = vpop.xlane.xlu0 %305
    %v307 = vsel %vm177, %v92, 0.0
    %308 = vadd.xlane.f32.xlu0 %v307
    %v309 = vpop.xlane.xlu0 %308
    %v310 = vsel %vm177, %v93, 0.0
    %311 = vadd.xlane.f32.xlu0 %v310
    %v312 = vpop.xlane.xlu0 %311
    %v313 = vsel %vm177, %v94, 0.0
    %314 = vadd.xlane.f32.xlu0 %v313
    %v315 = vpop.xlane.xlu0 %314
    %v316 = vsel %vm177, %v95, 0.0
    %317 = vadd.xlane.f32.xlu0 %v316
    %v318 = vpop.xlane.xlu0 %317
    %v319 = vsel %vm177, %v96, 0.0
    %320 = vadd.xlane.f32.xlu0 %v319
    %v321 = vpop.xlane.xlu0 %320
    %v322 = vsel %vm177, %v97, 0.0
    %323 = vadd.xlane.f32.xlu0 %v322
    %v324 = vpop.xlane.xlu0 %323
    %v325 = vsel %vm177, %v98, 0.0
    %326 = vadd.xlane.f32.xlu0 %v325
    %v327 = vpop.xlane.xlu0 %326
    %v328 = vsel %vm177, %v99, 0.0
    %329 = vadd.xlane.f32.xlu0 %v328
    %v330 = vpop.xlane.xlu0 %329
    %v331 = vsel %vm177, %v100, 0.0
    %332 = vadd.xlane.f32.xlu0 %v331
    %v333 = vpop.xlane.xlu0 %332
    %v334 = vsel %vm177, %v101, 0.0
    %335 = vadd.xlane.f32.xlu0 %v334
    %v336 = vpop.xlane.xlu0 %335
    %v337 = vsel %vm177, %v102, 0.0
    %338 = vadd.xlane.f32.xlu0 %v337
    %v339 = vpop.xlane.xlu0 %338
    %v340 = vsel %vm177, %v103, 0.0
    %341 = vadd.xlane.f32.xlu0 %v340
    %v342 = vpop.xlane.xlu0 %341
    %v343 = vsel %vm177, %v104, 0.0
    %344 = vadd.xlane.f32.xlu0 %v343
    %v345 = vpop.xlane.xlu0 %344
    %v346 = vsel %vm177, %v105, 0.0
    %347 = vadd.xlane.f32.xlu0 %v346
    %v348 = vpop.xlane.xlu0 %347
    %v349 = vsel %vm177, %v106, 0.0
    %350 = vadd.xlane.f32.xlu0 %v349
    %v351 = vpop.xlane.xlu0 %350
    %v352 = vsel %vm177, %v107, 0.0
    %353 = vadd.xlane.f32.xlu0 %v352
    %v354 = vpop.xlane.xlu0 %353
    %v355 = vsel %vm177, %v108, 0.0
    %356 = vadd.xlane.f32.xlu0 %v355
    %v357 = vpop.xlane.xlu0 %356
    %v358 = vsel %vm177, %v109, 0.0
    %359 = vadd.xlane.f32.xlu0 %v358
    %v360 = vpop.xlane.xlu0 %359
    %v361 = vsel %vm177, %v110, 0.0
    %362 = vadd.xlane.f32.xlu0 %v361
    %v363 = vpop.xlane.xlu0 %362
    %v364 = vsel %vm177, %v111, 0.0
    %365 = vadd.xlane.f32.xlu0 %v364
    %v366 = vpop.xlane.xlu0 %365
    %v367 = vsel %vm177, %v112, 0.0
    %368 = vadd.xlane.f32.xlu0 %v367
    %v369 = vpop.xlane.xlu0 %368
    %v370 = vsel %vm177, %v113, 0.0
    %371 = vadd.xlane.f32.xlu0 %v370
    %v372 = vpop.xlane.xlu0 %371
    %v373 = vsel %vm177, %v114, 0.0
    %374 = vadd.xlane.f32.xlu0 %v373
    %v375 = vpop.xlane.xlu0 %374
    %v376 = vsel %vm177, %v115, 0.0
    %377 = vadd.xlane.f32.xlu0 %v376
    %v378 = vpop.xlane.xlu0 %377
    %v379 = vsel %vm177, %v116, 0.0
    %380 = vadd.xlane.f32.xlu0 %v379
    %v381 = vpop.xlane.xlu0 %380
    %v382 = vsel %vm177, %v117, 0.0
    %383 = vadd.xlane.f32.xlu0 %v382
    %v384 = vpop.xlane.xlu0 %383
    %v385 = vsel %vm177, %v118, 0.0
    %386 = vadd.xlane.f32.xlu0 %v385
    %v387 = vpop.xlane.xlu0 %386
    %v388 = vsel %vm177, %v119, 0.0
    %389 = vadd.xlane.f32.xlu0 %v388
    %v390 = vpop.xlane.xlu0 %389
    %v391 = vsel %vm177, %v120, 0.0
    %392 = vadd.xlane.f32.xlu0 %v391
    %v393 = vpop.xlane.xlu0 %392
    %v394 = vsel %vm177, %v121, 0.0
    %395 = vadd.xlane.f32.xlu0 %v394
    %v396 = vpop.xlane.xlu0 %395
    %v397 = vsel %vm177, %v122, 0.0
    %398 = vadd.xlane.f32.xlu0 %v397
    %v399 = vpop.xlane.xlu0 %398
    %v400 = vsel %vm177, %v123, 0.0
    %401 = vadd.xlane.f32.xlu0 %v400
    %v402 = vpop.xlane.xlu0 %401
    %v403 = vsel %vm177, %v124, 0.0
    %404 = vadd.xlane.f32.xlu0 %v403
    %v405 = vpop.xlane.xlu0 %404
    %v406 = vsel %vm177, %v125, 0.0
    %407 = vadd.xlane.f32.xlu0 %v406
    %v408 = vpop.xlane.xlu0 %407
    %v409 = vsel %vm177, %v126, 0.0
    %410 = vadd.xlane.f32.xlu0 %v409
    %v411 = vpop.xlane.xlu0 %410
    %v412 = vsel %vm177, %v127, 0.0
    %413 = vadd.xlane.f32.xlu0 %v412
    %v414 = vpop.xlane.xlu0 %413
    %v415 = vsel %vm177, %v128, 0.0
    %416 = vadd.xlane.f32.xlu0 %v415
    %v417 = vpop.xlane.xlu0 %416
    %v418 = vsel %vm177, %v129, 0.0
    %419 = vadd.xlane.f32.xlu0 %v418
    %v420 = vpop.xlane.xlu0 %419
    %v421 = vsel %vm177, %v130, 0.0
    %422 = vadd.xlane.f32.xlu0 %v421
    %v423 = vpop.xlane.xlu0 %422
    %v424 = vsel %vm177, %v131, 0.0
    %425 = vadd.xlane.f32.xlu0 %v424
    %v426 = vpop.xlane.xlu0 %425
    %v427 = vsel %vm177, %v132, 0.0
    %428 = vadd.xlane.f32.xlu0 %v427
    %v429 = vpop.xlane.xlu0 %428
    %v430 = vsel %vm177, %v133, 0.0
    %431 = vadd.xlane.f32.xlu0 %v430
    %v432 = vpop.xlane.xlu0 %431
    %v433 = vsel %vm177, %v134, 0.0
    %434 = vadd.xlane.f32.xlu0 %v433
    %v435 = vpop.xlane.xlu0 %434
    %v436 = vsel %vm177, %v135, 0.0
    %437 = vadd.xlane.f32.xlu0 %v436
    %v438 = vpop.xlane.xlu0 %437
    %v439 = vsel %vm177, %v136, 0.0
    %440 = vadd.xlane.f32.xlu0 %v439
    %v441 = vpop.xlane.xlu0 %440
    %v442 = vsel %vm177, %v137, 0.0
    %443 = vadd.xlane.f32.xlu0 %v442
    %v444 = vpop.xlane.xlu0 %443
    %v445 = vsel %vm177, %v138, 0.0
    %446 = vadd.xlane.f32.xlu0 %v445
    %v447 = vpop.xlane.xlu0 %446
    %v448 = vsel %vm177, %v139, 0.0
    %449 = vadd.xlane.f32.xlu0 %v448
    %v450 = vpop.xlane.xlu0 %449
    %v451 = vsel %vm177, %v140, 0.0
    %452 = vadd.xlane.f32.xlu0 %v451
    %v453 = vpop.xlane.xlu0 %452
    %v454 = vsel %vm177, %v141, 0.0
    %455 = vadd.xlane.f32.xlu0 %v454
    %v456 = vpop.xlane.xlu0 %455
    %v457 = vsel %vm177, %v142, 0.0
    %458 = vadd.xlane.f32.xlu0 %v457
    %v459 = vpop.xlane.xlu0 %458
    %v460 = vsel %vm177, %v143, 0.0
    %461 = vadd.xlane.f32.xlu0 %v460
    %v462 = vpop.xlane.xlu0 %461
    %v463 = vsel %vm177, %v144, 0.0
    %464 = vadd.xlane.f32.xlu0 %v463
    %v465 = vpop.xlane.xlu0 %464
    %v466 = vsel %vm177, %v145, 0.0
    %467 = vadd.xlane.f32.xlu0 %v466
    %v468 = vpop.xlane.xlu0 %467
    %v469 = vsel %vm177, %v146, 0.0
    %470 = vadd.xlane.f32.xlu0 %v469
    %v471 = vpop.xlane.xlu0 %470
    %v472 = vsel %vm177, %v147, 0.0
    %473 = vadd.xlane.f32.xlu0 %v472
    %v474 = vpop.xlane.xlu0 %473
    %v475 = vsel %vm177, %v148, 0.0
    %476 = vadd.xlane.f32.xlu0 %v475
    %v477 = vpop.xlane.xlu0 %476
    %v478 = vsel %vm177, %v149, 0.0
    %479 = vadd.xlane.f32.xlu0 %v478
    %v480 = vpop.xlane.xlu0 %479
    %v481 = vsel %vm177, %v150, 0.0
    %482 = vadd.xlane.f32.xlu0 %v481
    %v483 = vpop.xlane.xlu0 %482
    %v484 = vsel %vm177, %v151, 0.0
    %485 = vadd.xlane.f32.xlu0 %v484
    %v486 = vpop.xlane.xlu0 %485
    %v487 = vsel %vm177, %v152, 0.0
    %488 = vadd.xlane.f32.xlu0 %v487
    %v489 = vpop.xlane.xlu0 %488
    %v490 = vsel %vm177, %v153, 0.0
    %491 = vadd.xlane.f32.xlu0 %v490
    %v492 = vpop.xlane.xlu0 %491
    %v493 = vsel %vm177, %v154, 0.0
    %494 = vadd.xlane.f32.xlu0 %v493
    %v495 = vpop.xlane.xlu0 %494
    %v496 = vsel %vm177, %v155, 0.0
    %497 = vadd.xlane.f32.xlu0 %v496
    %v498 = vpop.xlane.xlu0 %497
    %v499 = vsel %vm177, %v156, 0.0
    %500 = vadd.xlane.f32.xlu0 %v499
    %v501 = vpop.xlane.xlu0 %500
    %v502 = vsel %vm177, %v157, 0.0
    %503 = vadd.xlane.f32.xlu0 %v502
    %v504 = vpop.xlane.xlu0 %503
    %v505 = vsel %vm177, %v158, 0.0
    %506 = vadd.xlane.f32.xlu0 %v505
    %v507 = vpop.xlane.xlu0 %506
    %v508 = vsel %vm177, %v159, 0.0
    %509 = vadd.xlane.f32.xlu0 %v508
    %v510 = vpop.xlane.xlu0 %509
    %v511 = vsel %vm177, %v160, 0.0
    %512 = vadd.xlane.f32.xlu0 %v511
    %v513 = vpop.xlane.xlu0 %512
    %v514 = vsel %vm177, %v161, 0.0
    %515 = vadd.xlane.f32.xlu0 %v514
    %v516 = vpop.xlane.xlu0 %515
    %v517 = vsel %vm177, %v162, 0.0
    %518 = vadd.xlane.f32.xlu0 %v517
    %v519 = vpop.xlane.xlu0 %518
    %v520 = vsel %vm177, %v163, 0.0
    %521 = vadd.xlane.f32.xlu0 %v520
    %v522 = vpop.xlane.xlu0 %521
    %v523 = vsel %vm177, %v164, 0.0
    %524 = vadd.xlane.f32.xlu0 %v523
    %v525 = vpop.xlane.xlu0 %524
    %v526 = vsel %vm177, %v165, 0.0
    %527 = vadd.xlane.f32.xlu0 %v526
    %v528 = vpop.xlane.xlu0 %527
    %v529 = vsel %vm177, %v166, 0.0
    %530 = vadd.xlane.f32.xlu0 %v529
    %v531 = vpop.xlane.xlu0 %530
    %v532 = vsel %vm177, %v167, 0.0
    %533 = vadd.xlane.f32.xlu0 %v532
    %v534 = vpop.xlane.xlu0 %533
    %v535 = vsel %vm177, %v168, 0.0
    %536 = vadd.xlane.f32.xlu0 %v535
    %v537 = vpop.xlane.xlu0 %536
    %v538 = vsel %vm177, %v169, 0.0
    %539 = vadd.xlane.f32.xlu0 %v538
    %v540 = vpop.xlane.xlu0 %539
    %v541 = vsel %vm177, %v170, 0.0
    %542 = vadd.xlane.f32.xlu0 %v541
    %v543 = vpop.xlane.xlu0 %542
    %v544 = vsel %vm177, %v171, 0.0
    %545 = vadd.xlane.f32.xlu0 %v544
    %v546 = vpop.xlane.xlu0 %545
    %v547 = vsel %vm177, %v172, 0.0
    %548 = vadd.xlane.f32.xlu0 %v547
    %v549 = vpop.xlane.xlu0 %548
    %v550 = vsel %vm177, %v173, 0.0
    %551 = vadd.xlane.f32.xlu0 %v550
    %v552 = vpop.xlane.xlu0 %551
    %v553 = vsel %vm177, %v174, 0.0
    %554 = vadd.xlane.f32.xlu0 %v553
    %v555 = vpop.xlane.xlu0 %554
    %v556 = vsel %vm177, %v175, 0.0
    %557 = vadd.xlane.f32.xlu0 %v556
    %v558 = vpop.xlane.xlu0 %557
    %v559 = vsel %vm177, %v176, 0.0
    %560 = vadd.xlane.f32.xlu0 %v559
    %v561 = vpop.xlane.xlu0 %560
    %v562 = vmul.f32 %v180, 0.015625
    %v563 = vmul.f32 %v183, 0.015625
    %v564 = vmul.f32 %v186, 0.015625
    %v565 = vmul.f32 %v189, 0.015625
    %v566 = vmul.f32 %v192, 0.015625
    %v567 = vmul.f32 %v195, 0.015625
    %v568 = vmul.f32 %v198, 0.015625
    %v569 = vmul.f32 %v201, 0.015625
    %v570 = vmul.f32 %v204, 0.015625
    %v571 = vmul.f32 %v207, 0.015625
    %v572 = vmul.f32 %v210, 0.015625
    %v573 = vmul.f32 %v213, 0.015625
    %v574 = vmul.f32 %v216, 0.015625
    %v575 = vmul.f32 %v219, 0.015625
    %v576 = vmul.f32 %v222, 0.015625
    %v577 = vmul.f32 %v225, 0.015625
    %v578 = vmul.f32 %v228, 0.015625
    %v579 = vmul.f32 %v231, 0.015625
    %v580 = vmul.f32 %v234, 0.015625
    %v581 = vmul.f32 %v237, 0.015625
    %v582 = vmul.f32 %v240, 0.015625
    %v583 = vmul.f32 %v243, 0.015625
    %v584 = vmul.f32 %v246, 0.015625
    %v585 = vmul.f32 %v249, 0.015625
    %v586 = vmul.f32 %v252, 0.015625
    %v587 = vmul.f32 %v255, 0.015625
    %v588 = vmul.f32 %v258, 0.015625
    %v589 = vmul.f32 %v261, 0.015625
    %v590 = vmul.f32 %v264, 0.015625
    %v591 = vmul.f32 %v267, 0.015625
    %v592 = vmul.f32 %v270, 0.015625
    %v593 = vmul.f32 %v273, 0.015625
    %v594 = vmul.f32 %v276, 0.015625
    %v595 = vmul.f32 %v279, 0.015625
    %v596 = vmul.f32 %v282, 0.015625
    %v597 = vmul.f32 %v285, 0.015625
    %v598 = vmul.f32 %v288, 0.015625
    %v599 = vmul.f32 %v291, 0.015625
    %v600 = vmul.f32 %v294, 0.015625
    %v601 = vmul.f32 %v297, 0.015625
    %v602 = vmul.f32 %v300, 0.015625
    %v603 = vmul.f32 %v303, 0.015625
    %v604 = vmul.f32 %v306, 0.015625
    %v605 = vmul.f32 %v309, 0.015625
    %v606 = vmul.f32 %v312, 0.015625
    %v607 = vmul.f32 %v315, 0.015625
    %v608 = vmul.f32 %v318, 0.015625
    %v609 = vmul.f32 %v321, 0.015625
    %v610 = vmul.f32 %v324, 0.015625
    %v611 = vmul.f32 %v327, 0.015625
    %v612 = vmul.f32 %v330, 0.015625
    %v613 = vmul.f32 %v333, 0.015625
    %v614 = vmul.f32 %v336, 0.015625
    %v615 = vmul.f32 %v339, 0.015625
    %v616 = vmul.f32 %v342, 0.015625
    %v617 = vmul.f32 %v345, 0.015625
    %v618 = vmul.f32 %v348, 0.015625
    %v619 = vmul.f32 %v351, 0.015625
    %v620 = vmul.f32 %v354, 0.015625
    %v621 = vmul.f32 %v357, 0.015625
    %v622 = vmul.f32 %v360, 0.015625
    %v623 = vmul.f32 %v363, 0.015625
    %v624 = vmul.f32 %v366, 0.015625
    %v625 = vmul.f32 %v369, 0.015625
    %v626 = vmul.f32 %v372, 0.015625
    %v627 = vmul.f32 %v375, 0.015625
    %v628 = vmul.f32 %v378, 0.015625
    %v629 = vmul.f32 %v381, 0.015625
    %v630 = vmul.f32 %v384, 0.015625
    %v631 = vmul.f32 %v387, 0.015625
    %v632 = vmul.f32 %v390, 0.015625
    %v633 = vmul.f32 %v393, 0.015625
    %v634 = vmul.f32 %v396, 0.015625
    %v635 = vmul.f32 %v399, 0.015625
    %v636 = vmul.f32 %v402, 0.015625
    %v637 = vmul.f32 %v405, 0.015625
    %v638 = vmul.f32 %v408, 0.015625
    %v639 = vmul.f32 %v411, 0.015625
    %v640 = vmul.f32 %v414, 0.015625
    %v641 = vmul.f32 %v417, 0.015625
    %v642 = vmul.f32 %v420, 0.015625
    %v643 = vmul.f32 %v423, 0.015625
    %v644 = vmul.f32 %v426, 0.015625
    %v645 = vmul.f32 %v429, 0.015625
    %v646 = vmul.f32 %v432, 0.015625
    %v647 = vmul.f32 %v435, 0.015625
    %v648 = vmul.f32 %v438, 0.015625
    %v649 = vmul.f32 %v441, 0.015625
    %v650 = vmul.f32 %v444, 0.015625
    %v651 = vmul.f32 %v447, 0.015625
    %v652 = vmul.f32 %v450, 0.015625
    %v653 = vmul.f32 %v453, 0.015625
    %v654 = vmul.f32 %v456, 0.015625
    %v655 = vmul.f32 %v459, 0.015625
    %v656 = vmul.f32 %v462, 0.015625
    %v657 = vmul.f32 %v465, 0.015625
    %v658 = vmul.f32 %v468, 0.015625
    %v659 = vmul.f32 %v471, 0.015625
    %v660 = vmul.f32 %v474, 0.015625
    %v661 = vmul.f32 %v477, 0.015625
    %v662 = vmul.f32 %v480, 0.015625
    %v663 = vmul.f32 %v483, 0.015625
    %v664 = vmul.f32 %v486, 0.015625
    %v665 = vmul.f32 %v489, 0.015625
    %v666 = vmul.f32 %v492, 0.015625
    %v667 = vmul.f32 %v495, 0.015625
    %v668 = vmul.f32 %v498, 0.015625
    %v669 = vmul.f32 %v501, 0.015625
    %v670 = vmul.f32 %v504, 0.015625
    %v671 = vmul.f32 %v507, 0.015625
    %v672 = vmul.f32 %v510, 0.015625
    %v673 = vmul.f32 %v513, 0.015625
    %v674 = vmul.f32 %v516, 0.015625
    %v675 = vmul.f32 %v519, 0.015625
    %v676 = vmul.f32 %v522, 0.015625
    %v677 = vmul.f32 %v525, 0.015625
    %v678 = vmul.f32 %v528, 0.015625
    %v679 = vmul.f32 %v531, 0.015625
    %v680 = vmul.f32 %v534, 0.015625
    %v681 = vmul.f32 %v537, 0.015625
    %v682 = vmul.f32 %v540, 0.015625
    %v683 = vmul.f32 %v543, 0.015625
    %v684 = vmul.f32 %v546, 0.015625
    %v685 = vmul.f32 %v549, 0.015625
    %v686 = vmul.f32 %v552, 0.015625
    %v687 = vmul.f32 %v555, 0.015625
    %v688 = vmul.f32 %v558, 0.015625
    %v689 = vmul.f32 %v561, 0.015625
    %v818 = vlaneseq
    %v819 = vand.u32 %v818, 127
    %v820 = vperm.slane %v562, %v819
    %v821 = vadd.s32 %v819, 4294967288
    %v822 = vperm.slane %v563, %v821
    %vm823 = vcmask 130112
    %v824 = vsel %vm823, %v822, %v820
    %v825 = vadd.s32 %v819, 4294967280
    %v826 = vperm.slane %v564, %v825
    %vm827 = vcmask 195712
    %v828 = vsel %vm827, %v826, %v824
    %v829 = vadd.s32 %v819, 4294967272
    %v830 = vperm.slane %v565, %v829
    %vm831 = vcmask 261312
    %v832 = vsel %vm831, %v830, %v828
    %v833 = vadd.s32 %v819, 4294967264
    %v834 = vperm.slane %v566, %v833
    %vm835 = vcmask 326912
    %v836 = vsel %vm835, %v834, %v832
    %v837 = vadd.s32 %v819, 4294967256
    %v838 = vperm.slane %v567, %v837
    %vm839 = vcmask 392512
    %v840 = vsel %vm839, %v838, %v836
    %v841 = vadd.s32 %v819, 4294967248
    %v842 = vperm.slane %v568, %v841
    %vm843 = vcmask 458112
    %v844 = vsel %vm843, %v842, %v840
    %v845 = vadd.s32 %v819, 4294967240
    %v846 = vperm.slane %v569, %v845
    %vm847 = vcmask 523712
    %v848 = vsel %vm847, %v846, %v844
    %v849 = vadd.s32 %v819, 4294967232
    %v850 = vperm.slane %v570, %v849
    %vm851 = vcmask 589312
    %v852 = vsel %vm851, %v850, %v848
    %v853 = vadd.s32 %v819, 4294967224
    %v854 = vperm.slane %v571, %v853
    %vm855 = vcmask 654912
    %v856 = vsel %vm855, %v854, %v852
    %v857 = vadd.s32 %v819, 4294967216
    %v858 = vperm.slane %v572, %v857
    %vm859 = vcmask 720512
    %v860 = vsel %vm859, %v858, %v856
    %v861 = vadd.s32 %v819, 4294967208
    %v862 = vperm.slane %v573, %v861
    %vm863 = vcmask 786112
    %v864 = vsel %vm863, %v862, %v860
    %v865 = vadd.s32 %v819, 4294967200
    %v866 = vperm.slane %v574, %v865
    %vm867 = vcmask 851712
    %v868 = vsel %vm867, %v866, %v864
    %v869 = vadd.s32 %v819, 4294967192
    %v870 = vperm.slane %v575, %v869
    %vm871 = vcmask 917312
    %v872 = vsel %vm871, %v870, %v868
    %v873 = vadd.s32 %v819, 4294967184
    %v874 = vperm.slane %v576, %v873
    %vm875 = vcmask 982912
    %v876 = vsel %vm875, %v874, %v872
    %v877 = vadd.s32 %v819, 4294967176
    %v878 = vperm.slane %v577, %v877
    %vm879 = vcmask 1048512
    %v880 = vsel %vm879, %v878, %v876
    %v881 = vperm.slane %v578, %v819
    %v882 = vperm.slane %v579, %v821
    %v883 = vsel %vm823, %v882, %v881
    %v884 = vperm.slane %v580, %v825
    %v885 = vsel %vm827, %v884, %v883
    %v886 = vperm.slane %v581, %v829
    %v887 = vsel %vm831, %v886, %v885
    %v888 = vperm.slane %v582, %v833
    %v889 = vsel %vm835, %v888, %v887
    %v890 = vperm.slane %v583, %v837
    %v891 = vsel %vm839, %v890, %v889
    %v892 = vperm.slane %v584, %v841
    %v893 = vsel %vm843, %v892, %v891
    %v894 = vperm.slane %v585, %v845
    %v895 = vsel %vm847, %v894, %v893
    %v896 = vperm.slane %v586, %v849
    %v897 = vsel %vm851, %v896, %v895
    %v898 = vperm.slane %v587, %v853
    %v899 = vsel %vm855, %v898, %v897
    %v900 = vperm.slane %v588, %v857
    %v901 = vsel %vm859, %v900, %v899
    %v902 = vperm.slane %v589, %v861
    %v903 = vsel %vm863, %v902, %v901
    %v904 = vperm.slane %v590, %v865
    %v905 = vsel %vm867, %v904, %v903
    %v906 = vperm.slane %v591, %v869
    %v907 = vsel %vm871, %v906, %v905
    %v908 = vperm.slane %v592, %v873
    %v909 = vsel %vm875, %v908, %v907
    %v910 = vperm.slane %v593, %v877
    %v911 = vsel %vm879, %v910, %v909
    %v912 = vperm.slane %v594, %v819
    %v913 = vperm.slane %v595, %v821
    %v914 = vsel %vm823, %v913, %v912
    %v915 = vperm.slane %v596, %v825
    %v916 = vsel %vm827, %v915, %v914
    %v917 = vperm.slane %v597, %v829
    %v918 = vsel %vm831, %v917, %v916
    %v919 = vperm.slane %v598, %v833
    %v920 = vsel %vm835, %v919, %v918
    %v921 = vperm.slane %v599, %v837
    %v922 = vsel %vm839, %v921, %v920
    %v923 = vperm.slane %v600, %v841
    %v924 = vsel %vm843, %v923, %v922
    %v925 = vperm.slane %v601, %v845
    %v926 = vsel %vm847, %v925, %v924
    %v927 = vperm.slane %v602, %v849
    %v928 = vsel %vm851, %v927, %v926
    %v929 = vperm.slane %v603, %v853
    %v930 = vsel %vm855, %v929, %v928
    %v931 = vperm.slane %v604, %v857
    %v932 = vsel %vm859, %v931, %v930
    %v933 = vperm.slane %v605, %v861
    %v934 = vsel %vm863, %v933, %v932
    %v935 = vperm.slane %v606, %v865
    %v936 = vsel %vm867, %v935, %v934
    %v937 = vperm.slane %v607, %v869
    %v938 = vsel %vm871, %v937, %v936
    %v939 = vperm.slane %v608, %v873
    %v940 = vsel %vm875, %v939, %v938
    %v941 = vperm.slane %v609, %v877
    %v942 = vsel %vm879, %v941, %v940
    %v943 = vperm.slane %v610, %v819
    %v944 = vperm.slane %v611, %v821
    %v945 = vsel %vm823, %v944, %v943
    %v946 = vperm.slane %v612, %v825
    %v947 = vsel %vm827, %v946, %v945
    %v948 = vperm.slane %v613, %v829
    %v949 = vsel %vm831, %v948, %v947
    %v950 = vperm.slane %v614, %v833
    %v951 = vsel %vm835, %v950, %v949
    %v952 = vperm.slane %v615, %v837
    %v953 = vsel %vm839, %v952, %v951
    %v954 = vperm.slane %v616, %v841
    %v955 = vsel %vm843, %v954, %v953
    %v956 = vperm.slane %v617, %v845
    %v957 = vsel %vm847, %v956, %v955
    %v958 = vperm.slane %v618, %v849
    %v959 = vsel %vm851, %v958, %v957
    %v960 = vperm.slane %v619, %v853
    %v961 = vsel %vm855, %v960, %v959
    %v962 = vperm.slane %v620, %v857
    %v963 = vsel %vm859, %v962, %v961
    %v964 = vperm.slane %v621, %v861
    %v965 = vsel %vm863, %v964, %v963
    %v966 = vperm.slane %v622, %v865
    %v967 = vsel %vm867, %v966, %v965
    %v968 = vperm.slane %v623, %v869
    %v969 = vsel %vm871, %v968, %v967
    %v970 = vperm.slane %v624, %v873
    %v971 = vsel %vm875, %v970, %v969
    %v972 = vperm.slane %v625, %v877
    %v973 = vsel %vm879, %v972, %v971
    %v974 = vperm.slane %v626, %v819
    %v975 = vperm.slane %v627, %v821
    %v976 = vsel %vm823, %v975, %v974
    %v977 = vperm.slane %v628, %v825
    %v978 = vsel %vm827, %v977, %v976
    %v979 = vperm.slane %v629, %v829
    %v980 = vsel %vm831, %v979, %v978
    %v981 = vperm.slane %v630, %v833
    %v982 = vsel %vm835, %v981, %v980
    %v983 = vperm.slane %v631, %v837
    %v984 = vsel %vm839, %v983, %v982
    %v985 = vperm.slane %v632, %v841
    %v986 = vsel %vm843, %v985, %v984
    %v987 = vperm.slane %v633, %v845
    %v988 = vsel %vm847, %v987, %v986
    %v989 = vperm.slane %v634, %v849
    %v990 = vsel %vm851, %v989, %v988
    %v991 = vperm.slane %v635, %v853
    %v992 = vsel %vm855, %v991, %v990
    %v993 = vperm.slane %v636, %v857
    %v994 = vsel %vm859, %v993, %v992
    %v995 = vperm.slane %v637, %v861
    %v996 = vsel %vm863, %v995, %v994
    %v997 = vperm.slane %v638, %v865
    %v998 = vsel %vm867, %v997, %v996
    %v999 = vperm.slane %v639, %v869
    %v1000 = vsel %vm871, %v999, %v998
    %v1001 = vperm.slane %v640, %v873
    %v1002 = vsel %vm875, %v1001, %v1000
    %v1003 = vperm.slane %v641, %v877
    %v1004 = vsel %vm879, %v1003, %v1002
    %v1005 = vperm.slane %v642, %v819
    %v1006 = vperm.slane %v643, %v821
    %v1007 = vsel %vm823, %v1006, %v1005
    %v1008 = vperm.slane %v644, %v825
    %v1009 = vsel %vm827, %v1008, %v1007
    %v1010 = vperm.slane %v645, %v829
    %v1011 = vsel %vm831, %v1010, %v1009
    %v1012 = vperm.slane %v646, %v833
    %v1013 = vsel %vm835, %v1012, %v1011
    %v1014 = vperm.slane %v647, %v837
    %v1015 = vsel %vm839, %v1014, %v1013
    %v1016 = vperm.slane %v648, %v841
    %v1017 = vsel %vm843, %v1016, %v1015
    %v1018 = vperm.slane %v649, %v845
    %v1019 = vsel %vm847, %v1018, %v1017
    %v1020 = vperm.slane %v650, %v849
    %v1021 = vsel %vm851, %v1020, %v1019
    %v1022 = vperm.slane %v651, %v853
    %v1023 = vsel %vm855, %v1022, %v1021
    %v1024 = vperm.slane %v652, %v857
    %v1025 = vsel %vm859, %v1024, %v1023
    %v1026 = vperm.slane %v653, %v861
    %v1027 = vsel %vm863, %v1026, %v1025
    %v1028 = vperm.slane %v654, %v865
    %v1029 = vsel %vm867, %v1028, %v1027
    %v1030 = vperm.slane %v655, %v869
    %v1031 = vsel %vm871, %v1030, %v1029
    %v1032 = vperm.slane %v656, %v873
    %v1033 = vsel %vm875, %v1032, %v1031
    %v1034 = vperm.slane %v657, %v877
    %v1035 = vsel %vm879, %v1034, %v1033
    %v1036 = vperm.slane %v658, %v819
    %v1037 = vperm.slane %v659, %v821
    %v1038 = vsel %vm823, %v1037, %v1036
    %v1039 = vperm.slane %v660, %v825
    %v1040 = vsel %vm827, %v1039, %v1038
    %v1041 = vperm.slane %v661, %v829
    %v1042 = vsel %vm831, %v1041, %v1040
    %v1043 = vperm.slane %v662, %v833
    %v1044 = vsel %vm835, %v1043, %v1042
    %v1045 = vperm.slane %v663, %v837
    %v1046 = vsel %vm839, %v1045, %v1044
    %v1047 = vperm.slane %v664, %v841
    %v1048 = vsel %vm843, %v1047, %v1046
    %v1049 = vperm.slane %v665, %v845
    %v1050 = vsel %vm847, %v1049, %v1048
    %v1051 = vperm.slane %v666, %v849
    %v1052 = vsel %vm851, %v1051, %v1050
    %v1053 = vperm.slane %v667, %v853
    %v1054 = vsel %vm855, %v1053, %v1052
    %v1055 = vperm.slane %v668, %v857
    %v1056 = vsel %vm859, %v1055, %v1054
    %v1057 = vperm.slane %v669, %v861
    %v1058 = vsel %vm863, %v1057, %v1056
    %v1059 = vperm.slane %v670, %v865
    %v1060 = vsel %vm867, %v1059, %v1058
    %v1061 = vperm.slane %v671, %v869
    %v1062 = vsel %vm871, %v1061, %v1060
    %v1063 = vperm.slane %v672, %v873
    %v1064 = vsel %vm875, %v1063, %v1062
    %v1065 = vperm.slane %v673, %v877
    %v1066 = vsel %vm879, %v1065, %v1064
    %v1067 = vperm.slane %v674, %v819
    %v1068 = vperm.slane %v675, %v821
    %v1069 = vsel %vm823, %v1068, %v1067
    %v1070 = vperm.slane %v676, %v825
    %v1071 = vsel %vm827, %v1070, %v1069
    %v1072 = vperm.slane %v677, %v829
    %v1073 = vsel %vm831, %v1072, %v1071
    %v1074 = vperm.slane %v678, %v833
    %v1075 = vsel %vm835, %v1074, %v1073
    %v1076 = vperm.slane %v679, %v837
    %v1077 = vsel %vm839, %v1076, %v1075
    %v1078 = vperm.slane %v680, %v841
    %v1079 = vsel %vm843, %v1078, %v1077
    %v1080 = vperm.slane %v681, %v845
    %v1081 = vsel %vm847, %v1080, %v1079
    %v1082 = vperm.slane %v682, %v849
    %v1083 = vsel %vm851, %v1082, %v1081
    %v1084 = vperm.slane %v683, %v853
    %v1085 = vsel %vm855, %v1084, %v1083
    %v1086 = vperm.slane %v684, %v857
    %v1087 = vsel %vm859, %v1086, %v1085
    %v1088 = vperm.slane %v685, %v861
    %v1089 = vsel %vm863, %v1088, %v1087
    %v1090 = vperm.slane %v686, %v865
    %v1091 = vsel %vm867, %v1090, %v1089
    %v1092 = vperm.slane %v687, %v869
    %v1093 = vsel %vm871, %v1092, %v1091
    %v1094 = vperm.slane %v688, %v873
    %v1095 = vsel %vm875, %v1094, %v1093
    %v1096 = vperm.slane %v689, %v877
    %v1097 = vsel %vm879, %v1096, %v1095
    %vm1098 = vcmask 1041409
    %v1099 = vsel %vm1098, %v942, %v880
    %vm1100 = vcmask 1042434
    %v1101 = vsel %vm1100, %v1004, %v1099
    %vm1102 = vcmask 1043459
    %v1103 = vsel %vm1102, %v1066, %v1101
    %v1104 = vsel %vm1098, %v973, %v911
    %v1105 = vsel %vm1100, %v1035, %v1104
    %v1106 = vsel %vm1102, %v1097, %v1105
    %vm1109 = vcmask 1043456
    %v1110 = vsel %vm1109, %v1103, 0.0
    %v1111 = vsel %vm1109, %v1106, 0.0
    %v1112 = vadd.f32 %v1110, %v1111
    %1113 = vadd.xlane.f32.xlu0 %v1112
    %v1114 = vpop.xlane.xlu0 %1113
    %v1115 = vrcp.pop 256.0
    %v1116 = vmul.f32 256.0, %v1115
    %v1117 = vsub.f32 1.0, %v1116
    %v1118 = vmul.f32 %v1115, %v1117
    %v1119 = vadd.f32 %v1115, %v1118
    %vm1120 = vweird.f32 %v1115
    %v1121 = vsel %vm1120, %v1115, %v1119
    %v1122 = vmul.f32 %v1114, %v1121
    %v1124 = vperm.slane %v1122, 0
    %v1125 = vperm.slane %v1122, 1
    %v1126 = vperm.slane %v1122, 2
    %v1127 = vperm.slane %v1122, 3
    %v1132 = vsub.f32 %v562, %v1124
    %v1133 = vsub.f32 %v563, %v1124
    %v1134 = vsub.f32 %v564, %v1124
    %v1135 = vsub.f32 %v565, %v1124
    %v1136 = vsub.f32 %v566, %v1124
    %v1137 = vsub.f32 %v567, %v1124
    %v1138 = vsub.f32 %v568, %v1124
    %v1139 = vsub.f32 %v569, %v1124
    %v1140 = vsub.f32 %v570, %v1124
    %v1141 = vsub.f32 %v571, %v1124
    %v1142 = vsub.f32 %v572, %v1124
    %v1143 = vsub.f32 %v573, %v1124
    %v1144 = vsub.f32 %v574, %v1124
    %v1145 = vsub.f32 %v575, %v1124
    %v1146 = vsub.f32 %v576, %v1124
    %v1147 = vsub.f32 %v577, %v1124
    %v1148 = vsub.f32 %v578, %v1124
    %v1149 = vsub.f32 %v579, %v1124
    %v1150 = vsub.f32 %v580, %v1124
    %v1151 = vsub.f32 %v581, %v1124
    %v1152 = vsub.f32 %v582, %v1124
    %v1153 = vsub.f32 %v583, %v1124
    %v1154 = vsub.f32 %v584, %v1124
    %v1155 = vsub.f32 %v585, %v1124
    %v1156 = vsub.f32 %v586, %v1124
    %v1157 = vsub.f32 %v587, %v1124
    %v1158 = vsub.f32 %v588, %v1124
    %v1159 = vsub.f32 %v589, %v1124
    %v1160 = vsub.f32 %v590, %v1124
    %v1161 = vsub.f32 %v591, %v1124
    %v1162 = vsub.f32 %v592, %v1124
    %v1163 = vsub.f32 %v593, %v1124
    %v1164 = vsub.f32 %v594, %v1125
    %v1165 = vsub.f32 %v595, %v1125
    %v1166 = vsub.f32 %v596, %v1125
    %v1167 = vsub.f32 %v597, %v1125
    %v1168 = vsub.f32 %v598, %v1125
    %v1169 = vsub.f32 %v599, %v1125
    %v1170 = vsub.f32 %v600, %v1125
    %v1171 = vsub.f32 %v601, %v1125
    %v1172 = vsub.f32 %v602, %v1125
    %v1173 = vsub.f32 %v603, %v1125
    %v1174 = vsub.f32 %v604, %v1125
    %v1175 = vsub.f32 %v605, %v1125
    %v1176 = vsub.f32 %v606, %v1125
    %v1177 = vsub.f32 %v607, %v1125
    %v1178 = vsub.f32 %v608, %v1125
    %v1179 = vsub.f32 %v609, %v1125
    %v1180 = vsub.f32 %v610, %v1125
    %v1181 = vsub.f32 %v611, %v1125
    %v1182 = vsub.f32 %v612, %v1125
    %v1183 = vsub.f32 %v613, %v1125
    %v1184 = vsub.f32 %v614, %v1125
    %v1185 = vsub.f32 %v615, %v1125
    %v1186 = vsub.f32 %v616, %v1125
    %v1187 = vsub.f32 %v617, %v1125
    %v1188 = vsub.f32 %v618, %v1125
    %v1189 = vsub.f32 %v619, %v1125
    %v1190 = vsub.f32 %v620, %v1125
    %v1191 = vsub.f32 %v621, %v1125
    %v1192 = vsub.f32 %v622, %v1125
    %v1193 = vsub.f32 %v623, %v1125
    %v1194 = vsub.f32 %v624, %v1125
    %v1195 = vsub.f32 %v625, %v1125
    %v1196 = vsub.f32 %v626, %v1126
    %v1197 = vsub.f32 %v627, %v1126
    %v1198 = vsub.f32 %v628, %v1126
    %v1199 = vsub.f32 %v629, %v1126
    %v1200 = vsub.f32 %v630, %v1126
    %v1201 = vsub.f32 %v631, %v1126
    %v1202 = vsub.f32 %v632, %v1126
    %v1203 = vsub.f32 %v633, %v1126
    %v1204 = vsub.f32 %v634, %v1126
    %v1205 = vsub.f32 %v635, %v1126
    %v1206 = vsub.f32 %v636, %v1126
    %v1207 = vsub.f32 %v637, %v1126
    %v1208 = vsub.f32 %v638, %v1126
    %v1209 = vsub.f32 %v639, %v1126
    %v1210 = vsub.f32 %v640, %v1126
    %v1211 = vsub.f32 %v641, %v1126
    %v1212 = vsub.f32 %v642, %v1126
    %v1213 = vsub.f32 %v643, %v1126
    %v1214 = vsub.f32 %v644, %v1126
    %v1215 = vsub.f32 %v645, %v1126
    %v1216 = vsub.f32 %v646, %v1126
    %v1217 = vsub.f32 %v647, %v1126
    %v1218 = vsub.f32 %v648, %v1126
    %v1219 = vsub.f32 %v649, %v1126
    %v1220 = vsub.f32 %v650, %v1126
    %v1221 = vsub.f32 %v651, %v1126
    %v1222 = vsub.f32 %v652, %v1126
    %v1223 = vsub.f32 %v653, %v1126
    %v1224 = vsub.f32 %v654, %v1126
    %v1225 = vsub.f32 %v655, %v1126
    %v1226 = vsub.f32 %v656, %v1126
    %v1227 = vsub.f32 %v657, %v1126
    %v1228 = vsub.f32 %v658, %v1127
    %v1229 = vsub.f32 %v659, %v1127
    %v1230 = vsub.f32 %v660, %v1127
    %v1231 = vsub.f32 %v661, %v1127
    %v1232 = vsub.f32 %v662, %v1127
    %v1233 = vsub.f32 %v663, %v1127
    %v1234 = vsub.f32 %v664, %v1127
    %v1235 = vsub.f32 %v665, %v1127
    %v1236 = vsub.f32 %v666, %v1127
    %v1237 = vsub.f32 %v667, %v1127
    %v1238 = vsub.f32 %v668, %v1127
    %v1239 = vsub.f32 %v669, %v1127
    %v1240 = vsub.f32 %v670, %v1127
    %v1241 = vsub.f32 %v671, %v1127
    %v1242 = vsub.f32 %v672, %v1127
    %v1243 = vsub.f32 %v673, %v1127
    %v1244 = vsub.f32 %v674, %v1127
    %v1245 = vsub.f32 %v675, %v1127
    %v1246 = vsub.f32 %v676, %v1127
    %v1247 = vsub.f32 %v677, %v1127
    %v1248 = vsub.f32 %v678, %v1127
    %v1249 = vsub.f32 %v679, %v1127
    %v1250 = vsub.f32 %v680, %v1127
    %v1251 = vsub.f32 %v681, %v1127
    %v1252 = vsub.f32 %v682, %v1127
    %v1253 = vsub.f32 %v683, %v1127
    %v1254 = vsub.f32 %v684, %v1127
    %v1255 = vsub.f32 %v685, %v1127
    %v1256 = vsub.f32 %v686, %v1127
    %v1257 = vsub.f32 %v687, %v1127
    %v1258 = vsub.f32 %v688, %v1127
    %v1259 = vsub.f32 %v689, %v1127
    %v1260 = vmul.f32 %v1132, %v1132
    %v1261 = vmul.f32 %v1133, %v1133
    %v1262 = vmul.f32 %v1134, %v1134
    %v1263 = vmul.f32 %v1135, %v1135
    %v1264 = vmul.f32 %v1136, %v1136
    %v1265 = vmul.f32 %v1137, %v1137
    %v1266 = vmul.f32 %v1138, %v1138
    %v1267 = vmul.f32 %v1139, %v1139
    %v1268 = vmul.f32 %v1140, %v1140
    %v1269 = vmul.f32 %v1141, %v1141
    %v1270 = vmul.f32 %v1142, %v1142
    %v1271 = vmul.f32 %v1143, %v1143
    %v1272 = vmul.f32 %v1144, %v1144
    %v1273 = vmul.f32 %v1145, %v1145
    %v1274 = vmul.f32 %v1146, %v1146
    %v1275 = vmul.f32 %v1147, %v1147
    %v1276 = vmul.f32 %v1148, %v1148
    %v1277 = vmul.f32 %v1149, %v1149
    %v1278 = vmul.f32 %v1150, %v1150
    %v1279 = vmul.f32 %v1151, %v1151
    %v1280 = vmul.f32 %v1152, %v1152
    %v1281 = vmul.f32 %v1153, %v1153
    %v1282 = vmul.f32 %v1154, %v1154
    %v1283 = vmul.f32 %v1155, %v1155
    %v1284 = vmul.f32 %v1156, %v1156
    %v1285 = vmul.f32 %v1157, %v1157
    %v1286 = vmul.f32 %v1158, %v1158
    %v1287 = vmul.f32 %v1159, %v1159
    %v1288 = vmul.f32 %v1160, %v1160
    %v1289 = vmul.f32 %v1161, %v1161
    %v1290 = vmul.f32 %v1162, %v1162
    %v1291 = vmul.f32 %v1163, %v1163
    %v1292 = vmul.f32 %v1164, %v1164
    %v1293 = vmul.f32 %v1165, %v1165
    %v1294 = vmul.f32 %v1166, %v1166
    %v1295 = vmul.f32 %v1167, %v1167
    %v1296 = vmul.f32 %v1168, %v1168
    %v1297 = vmul.f32 %v1169, %v1169
    %v1298 = vmul.f32 %v1170, %v1170
    %v1299 = vmul.f32 %v1171, %v1171
    %v1300 = vmul.f32 %v1172, %v1172
    %v1301 = vmul.f32 %v1173, %v1173
    %v1302 = vmul.f32 %v1174, %v1174
    %v1303 = vmul.f32 %v1175, %v1175
    %v1304 = vmul.f32 %v1176, %v1176
    %v1305 = vmul.f32 %v1177, %v1177
    %v1306 = vmul.f32 %v1178, %v1178
    %v1307 = vmul.f32 %v1179, %v1179
    %v1308 = vmul.f32 %v1180, %v1180
    %v1309 = vmul.f32 %v1181, %v1181
    %v1310 = vmul.f32 %v1182, %v1182
    %v1311 = vmul.f32 %v1183, %v1183
    %v1312 = vmul.f32 %v1184, %v1184
    %v1313 = vmul.f32 %v1185, %v1185
    %v1314 = vmul.f32 %v1186, %v1186
    %v1315 = vmul.f32 %v1187, %v1187
    %v1316 = vmul.f32 %v1188, %v1188
    %v1317 = vmul.f32 %v1189, %v1189
    %v1318 = vmul.f32 %v1190, %v1190
    %v1319 = vmul.f32 %v1191, %v1191
    %v1320 = vmul.f32 %v1192, %v1192
    %v1321 = vmul.f32 %v1193, %v1193
    %v1322 = vmul.f32 %v1194, %v1194
    %v1323 = vmul.f32 %v1195, %v1195
    %v1324 = vmul.f32 %v1196, %v1196
    %v1325 = vmul.f32 %v1197, %v1197
    %v1326 = vmul.f32 %v1198, %v1198
    %v1327 = vmul.f32 %v1199, %v1199
    %v1328 = vmul.f32 %v1200, %v1200
    %v1329 = vmul.f32 %v1201, %v1201
    %v1330 = vmul.f32 %v1202, %v1202
    %v1331 = vmul.f32 %v1203, %v1203
    %v1332 = vmul.f32 %v1204, %v1204
    %v1333 = vmul.f32 %v1205, %v1205
    %v1334 = vmul.f32 %v1206, %v1206
    %v1335 = vmul.f32 %v1207, %v1207
    %v1336 = vmul.f32 %v1208, %v1208
    %v1337 = vmul.f32 %v1209, %v1209
    %v1338 = vmul.f32 %v1210, %v1210
    %v1339 = vmul.f32 %v1211, %v1211
    %v1340 = vmul.f32 %v1212, %v1212
    %v1341 = vmul.f32 %v1213, %v1213
    %v1342 = vmul.f32 %v1214, %v1214
    %v1343 = vmul.f32 %v1215, %v1215
    %v1344 = vmul.f32 %v1216, %v1216
    %v1345 = vmul.f32 %v1217, %v1217
    %v1346 = vmul.f32 %v1218, %v1218
    %v1347 = vmul.f32 %v1219, %v1219
    %v1348 = vmul.f32 %v1220, %v1220
    %v1349 = vmul.f32 %v1221, %v1221
    %v1350 = vmul.f32 %v1222, %v1222
    %v1351 = vmul.f32 %v1223, %v1223
    %v1352 = vmul.f32 %v1224, %v1224
    %v1353 = vmul.f32 %v1225, %v1225
    %v1354 = vmul.f32 %v1226, %v1226
    %v1355 = vmul.f32 %v1227, %v1227
    %v1356 = vmul.f32 %v1228, %v1228
    %v1357 = vmul.f32 %v1229, %v1229
    %v1358 = vmul.f32 %v1230, %v1230
    %v1359 = vmul.f32 %v1231, %v1231
    %v1360 = vmul.f32 %v1232, %v1232
    %v1361 = vmul.f32 %v1233, %v1233
    %v1362 = vmul.f32 %v1234, %v1234
    %v1363 = vmul.f32 %v1235, %v1235
    %v1364 = vmul.f32 %v1236, %v1236
    %v1365 = vmul.f32 %v1237, %v1237
    %v1366 = vmul.f32 %v1238, %v1238
    %v1367 = vmul.f32 %v1239, %v1239
    %v1368 = vmul.f32 %v1240, %v1240
    %v1369 = vmul.f32 %v1241, %v1241
    %v1370 = vmul.f32 %v1242, %v1242
    %v1371 = vmul.f32 %v1243, %v1243
    %v1372 = vmul.f32 %v1244, %v1244
    %v1373 = vmul.f32 %v1245, %v1245
    %v1374 = vmul.f32 %v1246, %v1246
    %v1375 = vmul.f32 %v1247, %v1247
    %v1376 = vmul.f32 %v1248, %v1248
    %v1377 = vmul.f32 %v1249, %v1249
    %v1378 = vmul.f32 %v1250, %v1250
    %v1379 = vmul.f32 %v1251, %v1251
    %v1380 = vmul.f32 %v1252, %v1252
    %v1381 = vmul.f32 %v1253, %v1253
    %v1382 = vmul.f32 %v1254, %v1254
    %v1383 = vmul.f32 %v1255, %v1255
    %v1384 = vmul.f32 %v1256, %v1256
    %v1385 = vmul.f32 %v1257, %v1257
    %v1386 = vmul.f32 %v1258, %v1258
    %v1387 = vmul.f32 %v1259, %v1259
    %1516 = vset.pattern.permute.xlu0 0
    %1517 = vperm.xlu0 %1516, %v1260
    %v1518 = vpop.permute.xlu0 %1517
    %1519 = vset.pattern.permute.xlu0 0
    %1520 = vperm.xlu0 %1519, %v1261
    %v1521 = vpop.permute.xlu0 %1520
    %1522 = vset.pattern.permute.xlu0 0
    %1523 = vperm.xlu0 %1522, %v1262
    %v1524 = vpop.permute.xlu0 %1523
    %1525 = vset.pattern.permute.xlu0 0
    %1526 = vperm.xlu0 %1525, %v1263
    %v1527 = vpop.permute.xlu0 %1526
    %1528 = vset.pattern.permute.xlu0 0
    %1529 = vperm.xlu0 %1528, %v1264
    %v1530 = vpop.permute.xlu0 %1529
    %1531 = vset.pattern.permute.xlu0 0
    %1532 = vperm.xlu0 %1531, %v1265
    %v1533 = vpop.permute.xlu0 %1532
    %1534 = vset.pattern.permute.xlu0 0
    %1535 = vperm.xlu0 %1534, %v1266
    %v1536 = vpop.permute.xlu0 %1535
    %1537 = vset.pattern.permute.xlu0 0
    %1538 = vperm.xlu0 %1537, %v1267
    %v1539 = vpop.permute.xlu0 %1538
    %1540 = vset.pattern.permute.xlu0 0
    %1541 = vperm.xlu0 %1540, %v1268
    %v1542 = vpop.permute.xlu0 %1541
    %1543 = vset.pattern.permute.xlu0 0
    %1544 = vperm.xlu0 %1543, %v1269
    %v1545 = vpop.permute.xlu0 %1544
    %1546 = vset.pattern.permute.xlu0 0
    %1547 = vperm.xlu0 %1546, %v1270
    %v1548 = vpop.permute.xlu0 %1547
    %1549 = vset.pattern.permute.xlu0 0
    %1550 = vperm.xlu0 %1549, %v1271
    %v1551 = vpop.permute.xlu0 %1550
    %1552 = vset.pattern.permute.xlu0 0
    %1553 = vperm.xlu0 %1552, %v1272
    %v1554 = vpop.permute.xlu0 %1553
    %1555 = vset.pattern.permute.xlu0 0
    %1556 = vperm.xlu0 %1555, %v1273
    %v1557 = vpop.permute.xlu0 %1556
    %1558 = vset.pattern.permute.xlu0 0
    %1559 = vperm.xlu0 %1558, %v1274
    %v1560 = vpop.permute.xlu0 %1559
    %1561 = vset.pattern.permute.xlu0 0
    %1562 = vperm.xlu0 %1561, %v1275
    %v1563 = vpop.permute.xlu0 %1562
    %1564 = vset.pattern.permute.xlu0 0
    %1565 = vperm.xlu0 %1564, %v1276
    %v1566 = vpop.permute.xlu0 %1565
    %1567 = vset.pattern.permute.xlu0 0
    %1568 = vperm.xlu0 %1567, %v1277
    %v1569 = vpop.permute.xlu0 %1568
    %1570 = vset.pattern.permute.xlu0 0
    %1571 = vperm.xlu0 %1570, %v1278
    %v1572 = vpop.permute.xlu0 %1571
    %1573 = vset.pattern.permute.xlu0 0
    %1574 = vperm.xlu0 %1573, %v1279
    %v1575 = vpop.permute.xlu0 %1574
    %1576 = vset.pattern.permute.xlu0 0
    %1577 = vperm.xlu0 %1576, %v1280
    %v1578 = vpop.permute.xlu0 %1577
    %1579 = vset.pattern.permute.xlu0 0
    %1580 = vperm.xlu0 %1579, %v1281
    %v1581 = vpop.permute.xlu0 %1580
    %1582 = vset.pattern.permute.xlu0 0
    %1583 = vperm.xlu0 %1582, %v1282
    %v1584 = vpop.permute.xlu0 %1583
    %1585 = vset.pattern.permute.xlu0 0
    %1586 = vperm.xlu0 %1585, %v1283
    %v1587 = vpop.permute.xlu0 %1586
    %1588 = vset.pattern.permute.xlu0 0
    %1589 = vperm.xlu0 %1588, %v1284
    %v1590 = vpop.permute.xlu0 %1589
    %1591 = vset.pattern.permute.xlu0 0
    %1592 = vperm.xlu0 %1591, %v1285
    %v1593 = vpop.permute.xlu0 %1592
    %1594 = vset.pattern.permute.xlu0 0
    %1595 = vperm.xlu0 %1594, %v1286
    %v1596 = vpop.permute.xlu0 %1595
    %1597 = vset.pattern.permute.xlu0 0
    %1598 = vperm.xlu0 %1597, %v1287
    %v1599 = vpop.permute.xlu0 %1598
    %1600 = vset.pattern.permute.xlu0 0
    %1601 = vperm.xlu0 %1600, %v1288
    %v1602 = vpop.permute.xlu0 %1601
    %1603 = vset.pattern.permute.xlu0 0
    %1604 = vperm.xlu0 %1603, %v1289
    %v1605 = vpop.permute.xlu0 %1604
    %1606 = vset.pattern.permute.xlu0 0
    %1607 = vperm.xlu0 %1606, %v1290
    %v1608 = vpop.permute.xlu0 %1607
    %1609 = vset.pattern.permute.xlu0 0
    %1610 = vperm.xlu0 %1609, %v1291
    %v1611 = vpop.permute.xlu0 %1610
    %1612 = vset.pattern.permute.xlu0 0
    %1613 = vperm.xlu0 %1612, %v1292
    %v1614 = vpop.permute.xlu0 %1613
    %1615 = vset.pattern.permute.xlu0 0
    %1616 = vperm.xlu0 %1615, %v1293
    %v1617 = vpop.permute.xlu0 %1616
    %1618 = vset.pattern.permute.xlu0 0
    %1619 = vperm.xlu0 %1618, %v1294
    %v1620 = vpop.permute.xlu0 %1619
    %1621 = vset.pattern.permute.xlu0 0
    %1622 = vperm.xlu0 %1621, %v1295
    %v1623 = vpop.permute.xlu0 %1622
    %1624 = vset.pattern.permute.xlu0 0
    %1625 = vperm.xlu0 %1624, %v1296
    %v1626 = vpop.permute.xlu0 %1625
    %1627 = vset.pattern.permute.xlu0 0
    %1628 = vperm.xlu0 %1627, %v1297
    %v1629 = vpop.permute.xlu0 %1628
    %1630 = vset.pattern.permute.xlu0 0
    %1631 = vperm.xlu0 %1630, %v1298
    %v1632 = vpop.permute.xlu0 %1631
    %1633 = vset.pattern.permute.xlu0 0
    %1634 = vperm.xlu0 %1633, %v1299
    %v1635 = vpop.permute.xlu0 %1634
    %1636 = vset.pattern.permute.xlu0 0
    %1637 = vperm.xlu0 %1636, %v1300
    %v1638 = vpop.permute.xlu0 %1637
    %1639 = vset.pattern.permute.xlu0 0
    %1640 = vperm.xlu0 %1639, %v1301
    %v1641 = vpop.permute.xlu0 %1640
    %1642 = vset.pattern.permute.xlu0 0
    %1643 = vperm.xlu0 %1642, %v1302
    %v1644 = vpop.permute.xlu0 %1643
    %1645 = vset.pattern.permute.xlu0 0
    %1646 = vperm.xlu0 %1645, %v1303
    %v1647 = vpop.permute.xlu0 %1646
    %1648 = vset.pattern.permute.xlu0 0
    %1649 = vperm.xlu0 %1648, %v1304
    %v1650 = vpop.permute.xlu0 %1649
    %1651 = vset.pattern.permute.xlu0 0
    %1652 = vperm.xlu0 %1651, %v1305
    %v1653 = vpop.permute.xlu0 %1652
    %1654 = vset.pattern.permute.xlu0 0
    %1655 = vperm.xlu0 %1654, %v1306
    %v1656 = vpop.permute.xlu0 %1655
    %1657 = vset.pattern.permute.xlu0 0
    %1658 = vperm.xlu0 %1657, %v1307
    %v1659 = vpop.permute.xlu0 %1658
    %1660 = vset.pattern.permute.xlu0 0
    %1661 = vperm.xlu0 %1660, %v1308
    %v1662 = vpop.permute.xlu0 %1661
    %1663 = vset.pattern.permute.xlu0 0
    %1664 = vperm.xlu0 %1663, %v1309
    %v1665 = vpop.permute.xlu0 %1664
    %1666 = vset.pattern.permute.xlu0 0
    %1667 = vperm.xlu0 %1666, %v1310
    %v1668 = vpop.permute.xlu0 %1667
    %1669 = vset.pattern.permute.xlu0 0
    %1670 = vperm.xlu0 %1669, %v1311
    %v1671 = vpop.permute.xlu0 %1670
    %1672 = vset.pattern.permute.xlu0 0
    %1673 = vperm.xlu0 %1672, %v1312
    %v1674 = vpop.permute.xlu0 %1673
    %1675 = vset.pattern.permute.xlu0 0
    %1676 = vperm.xlu0 %1675, %v1313
    %v1677 = vpop.permute.xlu0 %1676
    %1678 = vset.pattern.permute.xlu0 0
    %1679 = vperm.xlu0 %1678, %v1314
    %v1680 = vpop.permute.xlu0 %1679
    %1681 = vset.pattern.permute.xlu0 0
    %1682 = vperm.xlu0 %1681, %v1315
    %v1683 = vpop.permute.xlu0 %1682
    %1684 = vset.pattern.permute.xlu0 0
    %1685 = vperm.xlu0 %1684, %v1316
    %v1686 = vpop.permute.xlu0 %1685
    %1687 = vset.pattern.permute.xlu0 0
    %1688 = vperm.xlu0 %1687, %v1317
    %v1689 = vpop.permute.xlu0 %1688
    %1690 = vset.pattern.permute.xlu0 0
    %1691 = vperm.xlu0 %1690, %v1318
    %v1692 = vpop.permute.xlu0 %1691
    %1693 = vset.pattern.permute.xlu0 0
    %1694 = vperm.xlu0 %1693, %v1319
    %v1695 = vpop.permute.xlu0 %1694
    %1696 = vset.pattern.permute.xlu0 0
    %1697 = vperm.xlu0 %1696, %v1320
    %v1698 = vpop.permute.xlu0 %1697
    %1699 = vset.pattern.permute.xlu0 0
    %1700 = vperm.xlu0 %1699, %v1321
    %v1701 = vpop.permute.xlu0 %1700
    %1702 = vset.pattern.permute.xlu0 0
    %1703 = vperm.xlu0 %1702, %v1322
    %v1704 = vpop.permute.xlu0 %1703
    %1705 = vset.pattern.permute.xlu0 0
    %1706 = vperm.xlu0 %1705, %v1323
    %v1707 = vpop.permute.xlu0 %1706
    %1708 = vset.pattern.permute.xlu0 0
    %1709 = vperm.xlu0 %1708, %v1324
    %v1710 = vpop.permute.xlu0 %1709
    %1711 = vset.pattern.permute.xlu0 0
    %1712 = vperm.xlu0 %1711, %v1325
    %v1713 = vpop.permute.xlu0 %1712
    %1714 = vset.pattern.permute.xlu0 0
    %1715 = vperm.xlu0 %1714, %v1326
    %v1716 = vpop.permute.xlu0 %1715
    %1717 = vset.pattern.permute.xlu0 0
    %1718 = vperm.xlu0 %1717, %v1327
    %v1719 = vpop.permute.xlu0 %1718
    %1720 = vset.pattern.permute.xlu0 0
    %1721 = vperm.xlu0 %1720, %v1328
    %v1722 = vpop.permute.xlu0 %1721
    %1723 = vset.pattern.permute.xlu0 0
    %1724 = vperm.xlu0 %1723, %v1329
    %v1725 = vpop.permute.xlu0 %1724
    %1726 = vset.pattern.permute.xlu0 0
    %1727 = vperm.xlu0 %1726, %v1330
    %v1728 = vpop.permute.xlu0 %1727
    %1729 = vset.pattern.permute.xlu0 0
    %1730 = vperm.xlu0 %1729, %v1331
    %v1731 = vpop.permute.xlu0 %1730
    %1732 = vset.pattern.permute.xlu0 0
    %1733 = vperm.xlu0 %1732, %v1332
    %v1734 = vpop.permute.xlu0 %1733
    %1735 = vset.pattern.permute.xlu0 0
    %1736 = vperm.xlu0 %1735, %v1333
    %v1737 = vpop.permute.xlu0 %1736
    %1738 = vset.pattern.permute.xlu0 0
    %1739 = vperm.xlu0 %1738, %v1334
    %v1740 = vpop.permute.xlu0 %1739
    %1741 = vset.pattern.permute.xlu0 0
    %1742 = vperm.xlu0 %1741, %v1335
    %v1743 = vpop.permute.xlu0 %1742
    %1744 = vset.pattern.permute.xlu0 0
    %1745 = vperm.xlu0 %1744, %v1336
    %v1746 = vpop.permute.xlu0 %1745
    %1747 = vset.pattern.permute.xlu0 0
    %1748 = vperm.xlu0 %1747, %v1337
    %v1749 = vpop.permute.xlu0 %1748
    %1750 = vset.pattern.permute.xlu0 0
    %1751 = vperm.xlu0 %1750, %v1338
    %v1752 = vpop.permute.xlu0 %1751
    %1753 = vset.pattern.permute.xlu0 0
    %1754 = vperm.xlu0 %1753, %v1339
    %v1755 = vpop.permute.xlu0 %1754
    %1756 = vset.pattern.permute.xlu0 0
    %1757 = vperm.xlu0 %1756, %v1340
    %v1758 = vpop.permute.xlu0 %1757
    %1759 = vset.pattern.permute.xlu0 0
    %1760 = vperm.xlu0 %1759, %v1341
    %v1761 = vpop.permute.xlu0 %1760
    %1762 = vset.pattern.permute.xlu0 0
    %1763 = vperm.xlu0 %1762, %v1342
    %v1764 = vpop.permute.xlu0 %1763
    %1765 = vset.pattern.permute.xlu0 0
    %1766 = vperm.xlu0 %1765, %v1343
    %v1767 = vpop.permute.xlu0 %1766
    %1768 = vset.pattern.permute.xlu0 0
    %1769 = vperm.xlu0 %1768, %v1344
    %v1770 = vpop.permute.xlu0 %1769
    %1771 = vset.pattern.permute.xlu0 0
    %1772 = vperm.xlu0 %1771, %v1345
    %v1773 = vpop.permute.xlu0 %1772
    %1774 = vset.pattern.permute.xlu0 0
    %1775 = vperm.xlu0 %1774, %v1346
    %v1776 = vpop.permute.xlu0 %1775
    %1777 = vset.pattern.permute.xlu0 0
    %1778 = vperm.xlu0 %1777, %v1347
    %v1779 = vpop.permute.xlu0 %1778
    %1780 = vset.pattern.permute.xlu0 0
    %1781 = vperm.xlu0 %1780, %v1348
    %v1782 = vpop.permute.xlu0 %1781
    %1783 = vset.pattern.permute.xlu0 0
    %1784 = vperm.xlu0 %1783, %v1349
    %v1785 = vpop.permute.xlu0 %1784
    %1786 = vset.pattern.permute.xlu0 0
    %1787 = vperm.xlu0 %1786, %v1350
    %v1788 = vpop.permute.xlu0 %1787
    %1789 = vset.pattern.permute.xlu0 0
    %1790 = vperm.xlu0 %1789, %v1351
    %v1791 = vpop.permute.xlu0 %1790
    %1792 = vset.pattern.permute.xlu0 0
    %1793 = vperm.xlu0 %1792, %v1352
    %v1794 = vpop.permute.xlu0 %1793
    %1795 = vset.pattern.permute.xlu0 0
    %1796 = vperm.xlu0 %1795, %v1353
    %v1797 = vpop.permute.xlu0 %1796
    %1798 = vset.pattern.permute.xlu0 0
    %1799 = vperm.xlu0 %1798, %v1354
    %v1800 = vpop.permute.xlu0 %1799
    %1801 = vset.pattern.permute.xlu0 0
    %1802 = vperm.xlu0 %1801, %v1355
    %v1803 = vpop.permute.xlu0 %1802
    %1804 = vset.pattern.permute.xlu0 0
    %1805 = vperm.xlu0 %1804, %v1356
    %v1806 = vpop.permute.xlu0 %1805
    %1807 = vset.pattern.permute.xlu0 0
    %1808 = vperm.xlu0 %1807, %v1357
    %v1809 = vpop.permute.xlu0 %1808
    %1810 = vset.pattern.permute.xlu0 0
    %1811 = vperm.xlu0 %1810, %v1358
    %v1812 = vpop.permute.xlu0 %1811
    %1813 = vset.pattern.permute.xlu0 0
    %1814 = vperm.xlu0 %1813, %v1359
    %v1815 = vpop.permute.xlu0 %1814
    %1816 = vset.pattern.permute.xlu0 0
    %1817 = vperm.xlu0 %1816, %v1360
    %v1818 = vpop.permute.xlu0 %1817
    %1819 = vset.pattern.permute.xlu0 0
    %1820 = vperm.xlu0 %1819, %v1361
    %v1821 = vpop.permute.xlu0 %1820
    %1822 = vset.pattern.permute.xlu0 0
    %1823 = vperm.xlu0 %1822, %v1362
    %v1824 = vpop.permute.xlu0 %1823
    %1825 = vset.pattern.permute.xlu0 0
    %1826 = vperm.xlu0 %1825, %v1363
    %v1827 = vpop.permute.xlu0 %1826
    %1828 = vset.pattern.permute.xlu0 0
    %1829 = vperm.xlu0 %1828, %v1364
    %v1830 = vpop.permute.xlu0 %1829
    %1831 = vset.pattern.permute.xlu0 0
    %1832 = vperm.xlu0 %1831, %v1365
    %v1833 = vpop.permute.xlu0 %1832
    %1834 = vset.pattern.permute.xlu0 0
    %1835 = vperm.xlu0 %1834, %v1366
    %v1836 = vpop.permute.xlu0 %1835
    %1837 = vset.pattern.permute.xlu0 0
    %1838 = vperm.xlu0 %1837, %v1367
    %v1839 = vpop.permute.xlu0 %1838
    %1840 = vset.pattern.permute.xlu0 0
    %1841 = vperm.xlu0 %1840, %v1368
    %v1842 = vpop.permute.xlu0 %1841
    %1843 = vset.pattern.permute.xlu0 0
    %1844 = vperm.xlu0 %1843, %v1369
    %v1845 = vpop.permute.xlu0 %1844
    %1846 = vset.pattern.permute.xlu0 0
    %1847 = vperm.xlu0 %1846, %v1370
    %v1848 = vpop.permute.xlu0 %1847
    %1849 = vset.pattern.permute.xlu0 0
    %1850 = vperm.xlu0 %1849, %v1371
    %v1851 = vpop.permute.xlu0 %1850
    %1852 = vset.pattern.permute.xlu0 0
    %1853 = vperm.xlu0 %1852, %v1372
    %v1854 = vpop.permute.xlu0 %1853
    %1855 = vset.pattern.permute.xlu0 0
    %1856 = vperm.xlu0 %1855, %v1373
    %v1857 = vpop.permute.xlu0 %1856
    %1858 = vset.pattern.permute.xlu0 0
    %1859 = vperm.xlu0 %1858, %v1374
    %v1860 = vpop.permute.xlu0 %1859
    %1861 = vset.pattern.permute.xlu0 0
    %1862 = vperm.xlu0 %1861, %v1375
    %v1863 = vpop.permute.xlu0 %1862
    %1864 = vset.pattern.permute.xlu0 0
    %1865 = vperm.xlu0 %1864, %v1376
    %v1866 = vpop.permute.xlu0 %1865
    %1867 = vset.pattern.permute.xlu0 0
    %1868 = vperm.xlu0 %1867, %v1377
    %v1869 = vpop.permute.xlu0 %1868
    %1870 = vset.pattern.permute.xlu0 0
    %1871 = vperm.xlu0 %1870, %v1378
    %v1872 = vpop.permute.xlu0 %1871
    %1873 = vset.pattern.permute.xlu0 0
    %1874 = vperm.xlu0 %1873, %v1379
    %v1875 = vpop.permute.xlu0 %1874
    %1876 = vset.pattern.permute.xlu0 0
    %1877 = vperm.xlu0 %1876, %v1380
    %v1878 = vpop.permute.xlu0 %1877
    %1879 = vset.pattern.permute.xlu0 0
    %1880 = vperm.xlu0 %1879, %v1381
    %v1881 = vpop.permute.xlu0 %1880
    %1882 = vset.pattern.permute.xlu0 0
    %1883 = vperm.xlu0 %1882, %v1382
    %v1884 = vpop.permute.xlu0 %1883
    %1885 = vset.pattern.permute.xlu0 0
    %1886 = vperm.xlu0 %1885, %v1383
    %v1887 = vpop.permute.xlu0 %1886
    %1888 = vset.pattern.permute.xlu0 0
    %1889 = vperm.xlu0 %1888, %v1384
    %v1890 = vpop.permute.xlu0 %1889
    %1891 = vset.pattern.permute.xlu0 0
    %1892 = vperm.xlu0 %1891, %v1385
    %v1893 = vpop.permute.xlu0 %1892
    %1894 = vset.pattern.permute.xlu0 0
    %1895 = vperm.xlu0 %1894, %v1386
    %v1896 = vpop.permute.xlu0 %1895
    %1897 = vset.pattern.permute.xlu0 0
    %1898 = vperm.xlu0 %1897, %v1387
    %v1899 = vpop.permute.xlu0 %1898
    %v1900 = vperm.slane %v1518, %v819
    %v1901 = vperm.slane %v1521, %v821
    %v1902 = vsel %vm823, %v1901, %v1900
    %v1903 = vperm.slane %v1524, %v825
    %v1904 = vsel %vm827, %v1903, %v1902
    %v1905 = vperm.slane %v1527, %v829
    %v1906 = vsel %vm831, %v1905, %v1904
    %v1907 = vperm.slane %v1530, %v833
    %v1908 = vsel %vm835, %v1907, %v1906
    %v1909 = vperm.slane %v1533, %v837
    %v1910 = vsel %vm839, %v1909, %v1908
    %v1911 = vperm.slane %v1536, %v841
    %v1912 = vsel %vm843, %v1911, %v1910
    %v1913 = vperm.slane %v1539, %v845
    %v1914 = vsel %vm847, %v1913, %v1912
    %v1915 = vperm.slane %v1542, %v849
    %v1916 = vsel %vm851, %v1915, %v1914
    %v1917 = vperm.slane %v1545, %v853
    %v1918 = vsel %vm855, %v1917, %v1916
    %v1919 = vperm.slane %v1548, %v857
    %v1920 = vsel %vm859, %v1919, %v1918
    %v1921 = vperm.slane %v1551, %v861
    %v1922 = vsel %vm863, %v1921, %v1920
    %v1923 = vperm.slane %v1554, %v865
    %v1924 = vsel %vm867, %v1923, %v1922
    %v1925 = vperm.slane %v1557, %v869
    %v1926 = vsel %vm871, %v1925, %v1924
    %v1927 = vperm.slane %v1560, %v873
    %v1928 = vsel %vm875, %v1927, %v1926
    %v1929 = vperm.slane %v1563, %v877
    %v1930 = vsel %vm879, %v1929, %v1928
    %v1931 = vperm.slane %v1566, %v819
    %v1932 = vperm.slane %v1569, %v821
    %v1933 = vsel %vm823, %v1932, %v1931
    %v1934 = vperm.slane %v1572, %v825
    %v1935 = vsel %vm827, %v1934, %v1933
    %v1936 = vperm.slane %v1575, %v829
    %v1937 = vsel %vm831, %v1936, %v1935
    %v1938 = vperm.slane %v1578, %v833
    %v1939 = vsel %vm835, %v1938, %v1937
    %v1940 = vperm.slane %v1581, %v837
    %v1941 = vsel %vm839, %v1940, %v1939
    %v1942 = vperm.slane %v1584, %v841
    %v1943 = vsel %vm843, %v1942, %v1941
    %v1944 = vperm.slane %v1587, %v845
    %v1945 = vsel %vm847, %v1944, %v1943
    %v1946 = vperm.slane %v1590, %v849
    %v1947 = vsel %vm851, %v1946, %v1945
    %v1948 = vperm.slane %v1593, %v853
    %v1949 = vsel %vm855, %v1948, %v1947
    %v1950 = vperm.slane %v1596, %v857
    %v1951 = vsel %vm859, %v1950, %v1949
    %v1952 = vperm.slane %v1599, %v861
    %v1953 = vsel %vm863, %v1952, %v1951
    %v1954 = vperm.slane %v1602, %v865
    %v1955 = vsel %vm867, %v1954, %v1953
    %v1956 = vperm.slane %v1605, %v869
    %v1957 = vsel %vm871, %v1956, %v1955
    %v1958 = vperm.slane %v1608, %v873
    %v1959 = vsel %vm875, %v1958, %v1957
    %v1960 = vperm.slane %v1611, %v877
    %v1961 = vsel %vm879, %v1960, %v1959
    %v1962 = vperm.slane %v1614, %v819
    %v1963 = vperm.slane %v1617, %v821
    %v1964 = vsel %vm823, %v1963, %v1962
    %v1965 = vperm.slane %v1620, %v825
    %v1966 = vsel %vm827, %v1965, %v1964
    %v1967 = vperm.slane %v1623, %v829
    %v1968 = vsel %vm831, %v1967, %v1966
    %v1969 = vperm.slane %v1626, %v833
    %v1970 = vsel %vm835, %v1969, %v1968
    %v1971 = vperm.slane %v1629, %v837
    %v1972 = vsel %vm839, %v1971, %v1970
    %v1973 = vperm.slane %v1632, %v841
    %v1974 = vsel %vm843, %v1973, %v1972
    %v1975 = vperm.slane %v1635, %v845
    %v1976 = vsel %vm847, %v1975, %v1974
    %v1977 = vperm.slane %v1638, %v849
    %v1978 = vsel %vm851, %v1977, %v1976
    %v1979 = vperm.slane %v1641, %v853
    %v1980 = vsel %vm855, %v1979, %v1978
    %v1981 = vperm.slane %v1644, %v857
    %v1982 = vsel %vm859, %v1981, %v1980
    %v1983 = vperm.slane %v1647, %v861
    %v1984 = vsel %vm863, %v1983, %v1982
    %v1985 = vperm.slane %v1650, %v865
    %v1986 = vsel %vm867, %v1985, %v1984
    %v1987 = vperm.slane %v1653, %v869
    %v1988 = vsel %vm871, %v1987, %v1986
    %v1989 = vperm.slane %v1656, %v873
    %v1990 = vsel %vm875, %v1989, %v1988
    %v1991 = vperm.slane %v1659, %v877
    %v1992 = vsel %vm879, %v1991, %v1990
    %v1993 = vperm.slane %v1662, %v819
    %v1994 = vperm.slane %v1665, %v821
    %v1995 = vsel %vm823, %v1994, %v1993
    %v1996 = vperm.slane %v1668, %v825
    %v1997 = vsel %vm827, %v1996, %v1995
    %v1998 = vperm.slane %v1671, %v829
    %v1999 = vsel %vm831, %v1998, %v1997
    %v2000 = vperm.slane %v1674, %v833
    %v2001 = vsel %vm835, %v2000, %v1999
    %v2002 = vperm.slane %v1677, %v837
    %v2003 = vsel %vm839, %v2002, %v2001
    %v2004 = vperm.slane %v1680, %v841
    %v2005 = vsel %vm843, %v2004, %v2003
    %v2006 = vperm.slane %v1683, %v845
    %v2007 = vsel %vm847, %v2006, %v2005
    %v2008 = vperm.slane %v1686, %v849
    %v2009 = vsel %vm851, %v2008, %v2007
    %v2010 = vperm.slane %v1689, %v853
    %v2011 = vsel %vm855, %v2010, %v2009
    %v2012 = vperm.slane %v1692, %v857
    %v2013 = vsel %vm859, %v2012, %v2011
    %v2014 = vperm.slane %v1695, %v861
    %v2015 = vsel %vm863, %v2014, %v2013
    %v2016 = vperm.slane %v1698, %v865
    %v2017 = vsel %vm867, %v2016, %v2015
    %v2018 = vperm.slane %v1701, %v869
    %v2019 = vsel %vm871, %v2018, %v2017
    %v2020 = vperm.slane %v1704, %v873
    %v2021 = vsel %vm875, %v2020, %v2019
    %v2022 = vperm.slane %v1707, %v877
    %v2023 = vsel %vm879, %v2022, %v2021
    %v2024 = vperm.slane %v1710, %v819
    %v2025 = vperm.slane %v1713, %v821
    %v2026 = vsel %vm823, %v2025, %v2024
    %v2027 = vperm.slane %v1716, %v825
    %v2028 = vsel %vm827, %v2027, %v2026
    %v2029 = vperm.slane %v1719, %v829
    %v2030 = vsel %vm831, %v2029, %v2028
    %v2031 = vperm.slane %v1722, %v833
    %v2032 = vsel %vm835, %v2031, %v2030
    %v2033 = vperm.slane %v1725, %v837
    %v2034 = vsel %vm839, %v2033, %v2032
    %v2035 = vperm.slane %v1728, %v841
    %v2036 = vsel %vm843, %v2035, %v2034
    %v2037 = vperm.slane %v1731, %v845
    %v2038 = vsel %vm847, %v2037, %v2036
    %v2039 = vperm.slane %v1734, %v849
    %v2040 = vsel %vm851, %v2039, %v2038
    %v2041 = vperm.slane %v1737, %v853
    %v2042 = vsel %vm855, %v2041, %v2040
    %v2043 = vperm.slane %v1740, %v857
    %v2044 = vsel %vm859, %v2043, %v2042
    %v2045 = vperm.slane %v1743, %v861
    %v2046 = vsel %vm863, %v2045, %v2044
    %v2047 = vperm.slane %v1746, %v865
    %v2048 = vsel %vm867, %v2047, %v2046
    %v2049 = vperm.slane %v1749, %v869
    %v2050 = vsel %vm871, %v2049, %v2048
    %v2051 = vperm.slane %v1752, %v873
    %v2052 = vsel %vm875, %v2051, %v2050
    %v2053 = vperm.slane %v1755, %v877
    %v2054 = vsel %vm879, %v2053, %v2052
    %v2055 = vperm.slane %v1758, %v819
    %v2056 = vperm.slane %v1761, %v821
    %v2057 = vsel %vm823, %v2056, %v2055
    %v2058 = vperm.slane %v1764, %v825
    %v2059 = vsel %vm827, %v2058, %v2057
    %v2060 = vperm.slane %v1767, %v829
    %v2061 = vsel %vm831, %v2060, %v2059
    %v2062 = vperm.slane %v1770, %v833
    %v2063 = vsel %vm835, %v2062, %v2061
    %v2064 = vperm.slane %v1773, %v837
    %v2065 = vsel %vm839, %v2064, %v2063
    %v2066 = vperm.slane %v1776, %v841
    %v2067 = vsel %vm843, %v2066, %v2065
    %v2068 = vperm.slane %v1779, %v845
    %v2069 = vsel %vm847, %v2068, %v2067
    %v2070 = vperm.slane %v1782, %v849
    %v2071 = vsel %vm851, %v2070, %v2069
    %v2072 = vperm.slane %v1785, %v853
    %v2073 = vsel %vm855, %v2072, %v2071
    %v2074 = vperm.slane %v1788, %v857
    %v2075 = vsel %vm859, %v2074, %v2073
    %v2076 = vperm.slane %v1791, %v861
    %v2077 = vsel %vm863, %v2076, %v2075
    %v2078 = vperm.slane %v1794, %v865
    %v2079 = vsel %vm867, %v2078, %v2077
    %v2080 = vperm.slane %v1797, %v869
    %v2081 = vsel %vm871, %v2080, %v2079
    %v2082 = vperm.slane %v1800, %v873
    %v2083 = vsel %vm875, %v2082, %v2081
    %v2084 = vperm.slane %v1803, %v877
    %v2085 = vsel %vm879, %v2084, %v2083
    %v2086 = vperm.slane %v1806, %v819
    %v2087 = vperm.slane %v1809, %v821
    %v2088 = vsel %vm823, %v2087, %v2086
    %v2089 = vperm.slane %v1812, %v825
    %v2090 = vsel %vm827, %v2089, %v2088
    %v2091 = vperm.slane %v1815, %v829
    %v2092 = vsel %vm831, %v2091, %v2090
    %v2093 = vperm.slane %v1818, %v833
    %v2094 = vsel %vm835, %v2093, %v2092
    %v2095 = vperm.slane %v1821, %v837
    %v2096 = vsel %vm839, %v2095, %v2094
    %v2097 = vperm.slane %v1824, %v841
    %v2098 = vsel %vm843, %v2097, %v2096
    %v2099 = vperm.slane %v1827, %v845
    %v2100 = vsel %vm847, %v2099, %v2098
    %v2101 = vperm.slane %v1830, %v849
    %v2102 = vsel %vm851, %v2101, %v2100
    %v2103 = vperm.slane %v1833, %v853
    %v2104 = vsel %vm855, %v2103, %v2102
    %v2105 = vperm.slane %v1836, %v857
    %v2106 = vsel %vm859, %v2105, %v2104
    %v2107 = vperm.slane %v1839, %v861
    %v2108 = vsel %vm863, %v2107, %v2106
    %v2109 = vperm.slane %v1842, %v865
    %v2110 = vsel %vm867, %v2109, %v2108
    %v2111 = vperm.slane %v1845, %v869
    %v2112 = vsel %vm871, %v2111, %v2110
    %v2113 = vperm.slane %v1848, %v873
    %v2114 = vsel %vm875, %v2113, %v2112
    %v2115 = vperm.slane %v1851, %v877
    %v2116 = vsel %vm879, %v2115, %v2114
    %v2117 = vperm.slane %v1854, %v819
    %v2118 = vperm.slane %v1857, %v821
    %v2119 = vsel %vm823, %v2118, %v2117
    %v2120 = vperm.slane %v1860, %v825
    %v2121 = vsel %vm827, %v2120, %v2119
    %v2122 = vperm.slane %v1863, %v829
    %v2123 = vsel %vm831, %v2122, %v2121
    %v2124 = vperm.slane %v1866, %v833
    %v2125 = vsel %vm835, %v2124, %v2123
    %v2126 = vperm.slane %v1869, %v837
    %v2127 = vsel %vm839, %v2126, %v2125
    %v2128 = vperm.slane %v1872, %v841
    %v2129 = vsel %vm843, %v2128, %v2127
    %v2130 = vperm.slane %v1875, %v845
    %v2131 = vsel %vm847, %v2130, %v2129
    %v2132 = vperm.slane %v1878, %v849
    %v2133 = vsel %vm851, %v2132, %v2131
    %v2134 = vperm.slane %v1881, %v853
    %v2135 = vsel %vm855, %v2134, %v2133
    %v2136 = vperm.slane %v1884, %v857
    %v2137 = vsel %vm859, %v2136, %v2135
    %v2138 = vperm.slane %v1887, %v861
    %v2139 = vsel %vm863, %v2138, %v2137
    %v2140 = vperm.slane %v1890, %v865
    %v2141 = vsel %vm867, %v2140, %v2139
    %v2142 = vperm.slane %v1893, %v869
    %v2143 = vsel %vm871, %v2142, %v2141
    %v2144 = vperm.slane %v1896, %v873
    %v2145 = vsel %vm875, %v2144, %v2143
    %v2146 = vperm.slane %v1899, %v877
    %v2147 = vsel %vm879, %v2146, %v2145
    %v2148 = vsel %vm1098, %v1992, %v1930
    %v2149 = vsel %vm1100, %v2054, %v2148
    %v2150 = vsel %vm1102, %v2116, %v2149
    %v2151 = vsel %vm1098, %v2023, %v1961
    %v2152 = vsel %vm1100, %v2085, %v2151
    %v2153 = vsel %vm1102, %v2147, %v2152
    %v2156 = vsel %vm1109, %v2150, 0.0
    %v2157 = vsel %vm1109, %v2153, 0.0
    %v2158 = vadd.f32 %v2156, %v2157
    %2159 = vadd.xlane.f32.xlu0 %v2158
    %v2160 = vpop.xlane.xlu0 %2159
    %v2161 = vmul.f32 %v2160, 0.003921569
    %v2162 = vrsqrt.pop %v2161
    %v2163 = vmul.f32 %v2162, %v2161
    %v2164 = vmul.f32 %v2163, %v2162
    %v2165 = vmul.f32 0.5, %v2164
    %v2166 = vsub.f32 1.5, %v2165
    %v2167 = vmul.f32 %v2162, %v2166
    %v2168 = vmul.f32 %v2161, %v2167
    %vm2169 = vcmp.eq.f32.partialorder %v2161, inf
    %v2170 = vsel %vm2169, %v2161, %v2168
    %vm2171 = vcmp.eq.f32.partialorder %v2161, 0.0
    %v2172 = vand.u32 %v2161, 2147483648
    %v2173 = vsel %vm2171, %v2172, %v2170
    %v2174 = vadd.f32 %v2173, 1e-05
    %v2176 = vperm.slane %v2174, 0
    %v2177 = vperm.slane %v2174, 1
    %v2178 = vperm.slane %v2174, 2
    %v2179 = vperm.slane %v2174, 3
    %v2184 = vrcp.pop %v2176
    %v2185 = vmul.f32 %v2176, %v2184
    %v2186 = vsub.f32 1.0, %v2185
    %v2187 = vmul.f32 %v2184, %v2186
    %v2188 = vadd.f32 %v2184, %v2187
    %vm2189 = vweird.f32 %v2176
    %vm2190 = vweird.f32 %v2184
    %vm2191 = vmor %vm2189, %vm2190
    %v2192 = vsel %vm2191, %v2184, %v2188
    %v2193 = vand.u32 2147483647, %v2176
    %vm2194 = vcmp.eq.f32.partialorder %v2193, 8.507059e+37
    %v2195 = vand.u32 %v2176, 2147483648
    %v2196 = vor.u32 1.1754944e-38, %v2195
    %v2197 = vsel %vm2194, %v2196, %v2192
    %v2198 = vmul.f32 %v1132, %v2197
    %v2199 = vmul.f32 %v1133, %v2197
    %v2200 = vmul.f32 %v1134, %v2197
    %v2201 = vmul.f32 %v1135, %v2197
    %v2202 = vmul.f32 %v1136, %v2197
    %v2203 = vmul.f32 %v1137, %v2197
    %v2204 = vmul.f32 %v1138, %v2197
    %v2205 = vmul.f32 %v1139, %v2197
    %v2206 = vmul.f32 %v1140, %v2197
    %v2207 = vmul.f32 %v1141, %v2197
    %v2208 = vmul.f32 %v1142, %v2197
    %v2209 = vmul.f32 %v1143, %v2197
    %v2210 = vmul.f32 %v1144, %v2197
    %v2211 = vmul.f32 %v1145, %v2197
    %v2212 = vmul.f32 %v1146, %v2197
    %v2213 = vmul.f32 %v1147, %v2197
    %v2214 = vmul.f32 %v1148, %v2197
    %v2215 = vmul.f32 %v1149, %v2197
    %v2216 = vmul.f32 %v1150, %v2197
    %v2217 = vmul.f32 %v1151, %v2197
    %v2218 = vmul.f32 %v1152, %v2197
    %v2219 = vmul.f32 %v1153, %v2197
    %v2220 = vmul.f32 %v1154, %v2197
    %v2221 = vmul.f32 %v1155, %v2197
    %v2222 = vmul.f32 %v1156, %v2197
    %v2223 = vmul.f32 %v1157, %v2197
    %v2224 = vmul.f32 %v1158, %v2197
    %v2225 = vmul.f32 %v1159, %v2197
    %v2226 = vmul.f32 %v1160, %v2197
    %v2227 = vmul.f32 %v1161, %v2197
    %v2228 = vmul.f32 %v1162, %v2197
    %v2229 = vmul.f32 %v1163, %v2197
    %v2230 = vrcp.pop %v2177
    %v2231 = vmul.f32 %v2177, %v2230
    %v2232 = vsub.f32 1.0, %v2231
    %v2233 = vmul.f32 %v2230, %v2232
    %v2234 = vadd.f32 %v2230, %v2233
    %vm2235 = vweird.f32 %v2177
    %vm2236 = vweird.f32 %v2230
    %vm2237 = vmor %vm2235, %vm2236
    %v2238 = vsel %vm2237, %v2230, %v2234
    %v2239 = vand.u32 2147483647, %v2177
    %vm2240 = vcmp.eq.f32.partialorder %v2239, 8.507059e+37
    %v2241 = vand.u32 %v2177, 2147483648
    %v2242 = vor.u32 1.1754944e-38, %v2241
    %v2243 = vsel %vm2240, %v2242, %v2238
    %v2244 = vmul.f32 %v1164, %v2243
    %v2245 = vmul.f32 %v1165, %v2243
    %v2246 = vmul.f32 %v1166, %v2243
    %v2247 = vmul.f32 %v1167, %v2243
    %v2248 = vmul.f32 %v1168, %v2243
    %v2249 = vmul.f32 %v1169, %v2243
    %v2250 = vmul.f32 %v1170, %v2243
    %v2251 = vmul.f32 %v1171, %v2243
    %v2252 = vmul.f32 %v1172, %v2243
    %v2253 = vmul.f32 %v1173, %v2243
    %v2254 = vmul.f32 %v1174, %v2243
    %v2255 = vmul.f32 %v1175, %v2243
    %v2256 = vmul.f32 %v1176, %v2243
    %v2257 = vmul.f32 %v1177, %v2243
    %v2258 = vmul.f32 %v1178, %v2243
    %v2259 = vmul.f32 %v1179, %v2243
    %v2260 = vmul.f32 %v1180, %v2243
    %v2261 = vmul.f32 %v1181, %v2243
    %v2262 = vmul.f32 %v1182, %v2243
    %v2263 = vmul.f32 %v1183, %v2243
    %v2264 = vmul.f32 %v1184, %v2243
    %v2265 = vmul.f32 %v1185, %v2243
    %v2266 = vmul.f32 %v1186, %v2243
    %v2267 = vmul.f32 %v1187, %v2243
    %v2268 = vmul.f32 %v1188, %v2243
    %v2269 = vmul.f32 %v1189, %v2243
    %v2270 = vmul.f32 %v1190, %v2243
    %v2271 = vmul.f32 %v1191, %v2243
    %v2272 = vmul.f32 %v1192, %v2243
    %v2273 = vmul.f32 %v1193, %v2243
    %v2274 = vmul.f32 %v1194, %v2243
    %v2275 = vmul.f32 %v1195, %v2243
    %v2276 = vrcp.pop %v2178
    %v2277 = vmul.f32 %v2178, %v2276
    %v2278 = vsub.f32 1.0, %v2277
    %v2279 = vmul.f32 %v2276, %v2278
    %v2280 = vadd.f32 %v2276, %v2279
    %vm2281 = vweird.f32 %v2178
    %vm2282 = vweird.f32 %v2276
    %vm2283 = vmor %vm2281, %vm2282
    %v2284 = vsel %vm2283, %v2276, %v2280
    %v2285 = vand.u32 2147483647, %v2178
    %vm2286 = vcmp.eq.f32.partialorder %v2285, 8.507059e+37
    %v2287 = vand.u32 %v2178, 2147483648
    %v2288 = vor.u32 1.1754944e-38, %v2287
    %v2289 = vsel %vm2286, %v2288, %v2284
    %v2290 = vmul.f32 %v1196, %v2289
    %v2291 = vmul.f32 %v1197, %v2289
    %v2292 = vmul.f32 %v1198, %v2289
    %v2293 = vmul.f32 %v1199, %v2289
    %v2294 = vmul.f32 %v1200, %v2289
    %v2295 = vmul.f32 %v1201, %v2289
    %v2296 = vmul.f32 %v1202, %v2289
    %v2297 = vmul.f32 %v1203, %v2289
    %v2298 = vmul.f32 %v1204, %v2289
    %v2299 = vmul.f32 %v1205, %v2289
    %v2300 = vmul.f32 %v1206, %v2289
    %v2301 = vmul.f32 %v1207, %v2289
    %v2302 = vmul.f32 %v1208, %v2289
    %v2303 = vmul.f32 %v1209, %v2289
    %v2304 = vmul.f32 %v1210, %v2289
    %v2305 = vmul.f32 %v1211, %v2289
    %v2306 = vmul.f32 %v1212, %v2289
    %v2307 = vmul.f32 %v1213, %v2289
    %v2308 = vmul.f32 %v1214, %v2289
    %v2309 = vmul.f32 %v1215, %v2289
    %v2310 = vmul.f32 %v1216, %v2289
    %v2311 = vmul.f32 %v1217, %v2289
    %v2312 = vmul.f32 %v1218, %v2289
    %v2313 = vmul.f32 %v1219, %v2289
    %v2314 = vmul.f32 %v1220, %v2289
    %v2315 = vmul.f32 %v1221, %v2289
    %v2316 = vmul.f32 %v1222, %v2289
    %v2317 = vmul.f32 %v1223, %v2289
    %v2318 = vmul.f32 %v1224, %v2289
    %v2319 = vmul.f32 %v1225, %v2289
    %v2320 = vmul.f32 %v1226, %v2289
    %v2321 = vmul.f32 %v1227, %v2289
    %v2322 = vrcp.pop %v2179
    %v2323 = vmul.f32 %v2179, %v2322
    %v2324 = vsub.f32 1.0, %v2323
    %v2325 = vmul.f32 %v2322, %v2324
    %v2326 = vadd.f32 %v2322, %v2325
    %vm2327 = vweird.f32 %v2179
    %vm2328 = vweird.f32 %v2322
    %vm2329 = vmor %vm2327, %vm2328
    %v2330 = vsel %vm2329, %v2322, %v2326
    %v2331 = vand.u32 2147483647, %v2179
    %vm2332 = vcmp.eq.f32.partialorder %v2331, 8.507059e+37
    %v2333 = vand.u32 %v2179, 2147483648
    %v2334 = vor.u32 1.1754944e-38, %v2333
    %v2335 = vsel %vm2332, %v2334, %v2330
    %v2336 = vmul.f32 %v1228, %v2335
    %v2337 = vmul.f32 %v1229, %v2335
    %v2338 = vmul.f32 %v1230, %v2335
    %v2339 = vmul.f32 %v1231, %v2335
    %v2340 = vmul.f32 %v1232, %v2335
    %v2341 = vmul.f32 %v1233, %v2335
    %v2342 = vmul.f32 %v1234, %v2335
    %v2343 = vmul.f32 %v1235, %v2335
    %v2344 = vmul.f32 %v1236, %v2335
    %v2345 = vmul.f32 %v1237, %v2335
    %v2346 = vmul.f32 %v1238, %v2335
    %v2347 = vmul.f32 %v1239, %v2335
    %v2348 = vmul.f32 %v1240, %v2335
    %v2349 = vmul.f32 %v1241, %v2335
    %v2350 = vmul.f32 %v1242, %v2335
    %v2351 = vmul.f32 %v1243, %v2335
    %v2352 = vmul.f32 %v1244, %v2335
    %v2353 = vmul.f32 %v1245, %v2335
    %v2354 = vmul.f32 %v1246, %v2335
    %v2355 = vmul.f32 %v1247, %v2335
    %v2356 = vmul.f32 %v1248, %v2335
    %v2357 = vmul.f32 %v1249, %v2335
    %v2358 = vmul.f32 %v1250, %v2335
    %v2359 = vmul.f32 %v1251, %v2335
    %v2360 = vmul.f32 %v1252, %v2335
    %v2361 = vmul.f32 %v1253, %v2335
    %v2362 = vmul.f32 %v1254, %v2335
    %v2363 = vmul.f32 %v1255, %v2335
    %v2364 = vmul.f32 %v1256, %v2335
    %v2365 = vmul.f32 %v1257, %v2335
    %v2366 = vmul.f32 %v1258, %v2335
    %v2367 = vmul.f32 %v1259, %v2335
    %v2368 = vld [vmem:[%s2] sm:$0x3]
    %v2370 = vperm.slane %v2368, 0
    %v2371 = vperm.slane %v2368, 1
    %v2372 = vlaneseq
    %v2373 = vshrl.u32 %v2372, 7
    %2375 = vset.pattern.permute.xlu0 %v2373
    %2376 = vperm.xlu0 %2375, %v2370
    %v2377 = vpop.permute.xlu0 %2376
    %v2378 = vlaneseq
    %v2379 = vshrl.u32 %v2378, 7
    %v2380 = vadd.s32 %v2379, 8
    %2381 = vset.pattern.permute.xlu0 %v2380
    %2382 = vperm.xlu0 %2381, %v2370
    %v2383 = vpop.permute.xlu0 %2382
    %v2384 = vlaneseq
    %v2385 = vshrl.u32 %v2384, 7
    %v2386 = vadd.s32 %v2385, 16
    %2387 = vset.pattern.permute.xlu0 %v2386
    %2388 = vperm.xlu0 %2387, %v2370
    %v2389 = vpop.permute.xlu0 %2388
    %v2390 = vlaneseq
    %v2391 = vshrl.u32 %v2390, 7
    %v2392 = vadd.s32 %v2391, 24
    %2393 = vset.pattern.permute.xlu0 %v2392
    %2394 = vperm.xlu0 %2393, %v2370
    %v2395 = vpop.permute.xlu0 %2394
    %v2396 = vlaneseq
    %v2397 = vshrl.u32 %v2396, 7
    %v2398 = vadd.s32 %v2397, 32
    %2399 = vset.pattern.permute.xlu0 %v2398
    %2400 = vperm.xlu0 %2399, %v2370
    %v2401 = vpop.permute.xlu0 %2400
    %v2402 = vlaneseq
    %v2403 = vshrl.u32 %v2402, 7
    %v2404 = vadd.s32 %v2403, 40
    %2405 = vset.pattern.permute.xlu0 %v2404
    %2406 = vperm.xlu0 %2405, %v2370
    %v2407 = vpop.permute.xlu0 %2406
    %v2408 = vlaneseq
    %v2409 = vshrl.u32 %v2408, 7
    %v2410 = vadd.s32 %v2409, 48
    %2411 = vset.pattern.permute.xlu0 %v2410
    %2412 = vperm.xlu0 %2411, %v2370
    %v2413 = vpop.permute.xlu0 %2412
    %v2414 = vlaneseq
    %v2415 = vshrl.u32 %v2414, 7
    %v2416 = vadd.s32 %v2415, 56
    %2417 = vset.pattern.permute.xlu0 %v2416
    %2418 = vperm.xlu0 %2417, %v2370
    %v2419 = vpop.permute.xlu0 %2418
    %v2420 = vlaneseq
    %v2421 = vshrl.u32 %v2420, 7
    %v2422 = vadd.s32 %v2421, 64
    %2423 = vset.pattern.permute.xlu0 %v2422
    %2424 = vperm.xlu0 %2423, %v2370
    %v2425 = vpop.permute.xlu0 %2424
    %v2426 = vlaneseq
    %v2427 = vshrl.u32 %v2426, 7
    %v2428 = vadd.s32 %v2427, 72
    %2429 = vset.pattern.permute.xlu0 %v2428
    %2430 = vperm.xlu0 %2429, %v2370
    %v2431 = vpop.permute.xlu0 %2430
    %v2432 = vlaneseq
    %v2433 = vshrl.u32 %v2432, 7
    %v2434 = vadd.s32 %v2433, 80
    %2435 = vset.pattern.permute.xlu0 %v2434
    %2436 = vperm.xlu0 %2435, %v2370
    %v2437 = vpop.permute.xlu0 %2436
    %v2438 = vlaneseq
    %v2439 = vshrl.u32 %v2438, 7
    %v2440 = vadd.s32 %v2439, 88
    %2441 = vset.pattern.permute.xlu0 %v2440
    %2442 = vperm.xlu0 %2441, %v2370
    %v2443 = vpop.permute.xlu0 %2442
    %v2444 = vlaneseq
    %v2445 = vshrl.u32 %v2444, 7
    %v2446 = vadd.s32 %v2445, 96
    %2447 = vset.pattern.permute.xlu0 %v2446
    %2448 = vperm.xlu0 %2447, %v2370
    %v2449 = vpop.permute.xlu0 %2448
    %v2450 = vlaneseq
    %v2451 = vshrl.u32 %v2450, 7
    %v2452 = vadd.s32 %v2451, 104
    %2453 = vset.pattern.permute.xlu0 %v2452
    %2454 = vperm.xlu0 %2453, %v2370
    %v2455 = vpop.permute.xlu0 %2454
    %v2456 = vlaneseq
    %v2457 = vshrl.u32 %v2456, 7
    %v2458 = vadd.s32 %v2457, 112
    %2459 = vset.pattern.permute.xlu0 %v2458
    %2460 = vperm.xlu0 %2459, %v2370
    %v2461 = vpop.permute.xlu0 %2460
    %v2462 = vlaneseq
    %v2463 = vshrl.u32 %v2462, 7
    %v2464 = vadd.s32 %v2463, 120
    %2465 = vset.pattern.permute.xlu0 %v2464
    %2466 = vperm.xlu0 %2465, %v2370
    %v2467 = vpop.permute.xlu0 %2466
    %v2468 = vlaneseq
    %v2469 = vshrl.u32 %v2468, 7
    %2471 = vset.pattern.permute.xlu0 %v2469
    %2472 = vperm.xlu0 %2471, %v2371
    %v2473 = vpop.permute.xlu0 %2472
    %v2474 = vlaneseq
    %v2475 = vshrl.u32 %v2474, 7
    %v2476 = vadd.s32 %v2475, 8
    %2477 = vset.pattern.permute.xlu0 %v2476
    %2478 = vperm.xlu0 %2477, %v2371
    %v2479 = vpop.permute.xlu0 %2478
    %v2480 = vlaneseq
    %v2481 = vshrl.u32 %v2480, 7
    %v2482 = vadd.s32 %v2481, 16
    %2483 = vset.pattern.permute.xlu0 %v2482
    %2484 = vperm.xlu0 %2483, %v2371
    %v2485 = vpop.permute.xlu0 %2484
    %v2486 = vlaneseq
    %v2487 = vshrl.u32 %v2486, 7
    %v2488 = vadd.s32 %v2487, 24
    %2489 = vset.pattern.permute.xlu0 %v2488
    %2490 = vperm.xlu0 %2489, %v2371
    %v2491 = vpop.permute.xlu0 %2490
    %v2492 = vlaneseq
    %v2493 = vshrl.u32 %v2492, 7
    %v2494 = vadd.s32 %v2493, 32
    %2495 = vset.pattern.permute.xlu0 %v2494
    %2496 = vperm.xlu0 %2495, %v2371
    %v2497 = vpop.permute.xlu0 %2496
    %v2498 = vlaneseq
    %v2499 = vshrl.u32 %v2498, 7
    %v2500 = vadd.s32 %v2499, 40
    %2501 = vset.pattern.permute.xlu0 %v2500
    %2502 = vperm.xlu0 %2501, %v2371
    %v2503 = vpop.permute.xlu0 %2502
    %v2504 = vlaneseq
    %v2505 = vshrl.u32 %v2504, 7
    %v2506 = vadd.s32 %v2505, 48
    %2507 = vset.pattern.permute.xlu0 %v2506
    %2508 = vperm.xlu0 %2507, %v2371
    %v2509 = vpop.permute.xlu0 %2508
    %v2510 = vlaneseq
    %v2511 = vshrl.u32 %v2510, 7
    %v2512 = vadd.s32 %v2511, 56
    %2513 = vset.pattern.permute.xlu0 %v2512
    %2514 = vperm.xlu0 %2513, %v2371
    %v2515 = vpop.permute.xlu0 %2514
    %v2516 = vlaneseq
    %v2517 = vshrl.u32 %v2516, 7
    %v2518 = vadd.s32 %v2517, 64
    %2519 = vset.pattern.permute.xlu0 %v2518
    %2520 = vperm.xlu0 %2519, %v2371
    %v2521 = vpop.permute.xlu0 %2520
    %v2522 = vlaneseq
    %v2523 = vshrl.u32 %v2522, 7
    %v2524 = vadd.s32 %v2523, 72
    %2525 = vset.pattern.permute.xlu0 %v2524
    %2526 = vperm.xlu0 %2525, %v2371
    %v2527 = vpop.permute.xlu0 %2526
    %v2528 = vlaneseq
    %v2529 = vshrl.u32 %v2528, 7
    %v2530 = vadd.s32 %v2529, 80
    %2531 = vset.pattern.permute.xlu0 %v2530
    %2532 = vperm.xlu0 %2531, %v2371
    %v2533 = vpop.permute.xlu0 %2532
    %v2534 = vlaneseq
    %v2535 = vshrl.u32 %v2534, 7
    %v2536 = vadd.s32 %v2535, 88
    %2537 = vset.pattern.permute.xlu0 %v2536
    %2538 = vperm.xlu0 %2537, %v2371
    %v2539 = vpop.permute.xlu0 %2538
    %v2540 = vlaneseq
    %v2541 = vshrl.u32 %v2540, 7
    %v2542 = vadd.s32 %v2541, 96
    %2543 = vset.pattern.permute.xlu0 %v2542
    %2544 = vperm.xlu0 %2543, %v2371
    %v2545 = vpop.permute.xlu0 %2544
    %v2546 = vlaneseq
    %v2547 = vshrl.u32 %v2546, 7
    %v2548 = vadd.s32 %v2547, 104
    %2549 = vset.pattern.permute.xlu0 %v2548
    %2550 = vperm.xlu0 %2549, %v2371
    %v2551 = vpop.permute.xlu0 %2550
    %v2552 = vlaneseq
    %v2553 = vshrl.u32 %v2552, 7
    %v2554 = vadd.s32 %v2553, 112
    %2555 = vset.pattern.permute.xlu0 %v2554
    %2556 = vperm.xlu0 %2555, %v2371
    %v2557 = vpop.permute.xlu0 %2556
    %v2558 = vlaneseq
    %v2559 = vshrl.u32 %v2558, 7
    %v2560 = vadd.s32 %v2559, 120
    %2561 = vset.pattern.permute.xlu0 %v2560
    %2562 = vperm.xlu0 %2561, %v2371
    %v2563 = vpop.permute.xlu0 %2562
    %v2596 = vmul.f32 %v2198, %v2377
    %v2597 = vmul.f32 %v2199, %v2383
    %v2598 = vmul.f32 %v2200, %v2389
    %v2599 = vmul.f32 %v2201, %v2395
    %v2600 = vmul.f32 %v2202, %v2401
    %v2601 = vmul.f32 %v2203, %v2407
    %v2602 = vmul.f32 %v2204, %v2413
    %v2603 = vmul.f32 %v2205, %v2419
    %v2604 = vmul.f32 %v2206, %v2425
    %v2605 = vmul.f32 %v2207, %v2431
    %v2606 = vmul.f32 %v2208, %v2437
    %v2607 = vmul.f32 %v2209, %v2443
    %v2608 = vmul.f32 %v2210, %v2449
    %v2609 = vmul.f32 %v2211, %v2455
    %v2610 = vmul.f32 %v2212, %v2461
    %v2611 = vmul.f32 %v2213, %v2467
    %v2612 = vmul.f32 %v2214, %v2473
    %v2613 = vmul.f32 %v2215, %v2479
    %v2614 = vmul.f32 %v2216, %v2485
    %v2615 = vmul.f32 %v2217, %v2491
    %v2616 = vmul.f32 %v2218, %v2497
    %v2617 = vmul.f32 %v2219, %v2503
    %v2618 = vmul.f32 %v2220, %v2509
    %v2619 = vmul.f32 %v2221, %v2515
    %v2620 = vmul.f32 %v2222, %v2521
    %v2621 = vmul.f32 %v2223, %v2527
    %v2622 = vmul.f32 %v2224, %v2533
    %v2623 = vmul.f32 %v2225, %v2539
    %v2624 = vmul.f32 %v2226, %v2545
    %v2625 = vmul.f32 %v2227, %v2551
    %v2626 = vmul.f32 %v2228, %v2557
    %v2627 = vmul.f32 %v2229, %v2563
    %v2628 = vmul.f32 %v2244, %v2377
    %v2629 = vmul.f32 %v2245, %v2383
    %v2630 = vmul.f32 %v2246, %v2389
    %v2631 = vmul.f32 %v2247, %v2395
    %v2632 = vmul.f32 %v2248, %v2401
    %v2633 = vmul.f32 %v2249, %v2407
    %v2634 = vmul.f32 %v2250, %v2413
    %v2635 = vmul.f32 %v2251, %v2419
    %v2636 = vmul.f32 %v2252, %v2425
    %v2637 = vmul.f32 %v2253, %v2431
    %v2638 = vmul.f32 %v2254, %v2437
    %v2639 = vmul.f32 %v2255, %v2443
    %v2640 = vmul.f32 %v2256, %v2449
    %v2641 = vmul.f32 %v2257, %v2455
    %v2642 = vmul.f32 %v2258, %v2461
    %v2643 = vmul.f32 %v2259, %v2467
    %v2644 = vmul.f32 %v2260, %v2473
    %v2645 = vmul.f32 %v2261, %v2479
    %v2646 = vmul.f32 %v2262, %v2485
    %v2647 = vmul.f32 %v2263, %v2491
    %v2648 = vmul.f32 %v2264, %v2497
    %v2649 = vmul.f32 %v2265, %v2503
    %v2650 = vmul.f32 %v2266, %v2509
    %v2651 = vmul.f32 %v2267, %v2515
    %v2652 = vmul.f32 %v2268, %v2521
    %v2653 = vmul.f32 %v2269, %v2527
    %v2654 = vmul.f32 %v2270, %v2533
    %v2655 = vmul.f32 %v2271, %v2539
    %v2656 = vmul.f32 %v2272, %v2545
    %v2657 = vmul.f32 %v2273, %v2551
    %v2658 = vmul.f32 %v2274, %v2557
    %v2659 = vmul.f32 %v2275, %v2563
    %v2660 = vmul.f32 %v2290, %v2377
    %v2661 = vmul.f32 %v2291, %v2383
    %v2662 = vmul.f32 %v2292, %v2389
    %v2663 = vmul.f32 %v2293, %v2395
    %v2664 = vmul.f32 %v2294, %v2401
    %v2665 = vmul.f32 %v2295, %v2407
    %v2666 = vmul.f32 %v2296, %v2413
    %v2667 = vmul.f32 %v2297, %v2419
    %v2668 = vmul.f32 %v2298, %v2425
    %v2669 = vmul.f32 %v2299, %v2431
    %v2670 = vmul.f32 %v2300, %v2437
    %v2671 = vmul.f32 %v2301, %v2443
    %v2672 = vmul.f32 %v2302, %v2449
    %v2673 = vmul.f32 %v2303, %v2455
    %v2674 = vmul.f32 %v2304, %v2461
    %v2675 = vmul.f32 %v2305, %v2467
    %v2676 = vmul.f32 %v2306, %v2473
    %v2677 = vmul.f32 %v2307, %v2479
    %v2678 = vmul.f32 %v2308, %v2485
    %v2679 = vmul.f32 %v2309, %v2491
    %v2680 = vmul.f32 %v2310, %v2497
    %v2681 = vmul.f32 %v2311, %v2503
    %v2682 = vmul.f32 %v2312, %v2509
    %v2683 = vmul.f32 %v2313, %v2515
    %v2684 = vmul.f32 %v2314, %v2521
    %v2685 = vmul.f32 %v2315, %v2527
    %v2686 = vmul.f32 %v2316, %v2533
    %v2687 = vmul.f32 %v2317, %v2539
    %v2688 = vmul.f32 %v2318, %v2545
    %v2689 = vmul.f32 %v2319, %v2551
    %v2690 = vmul.f32 %v2320, %v2557
    %v2691 = vmul.f32 %v2321, %v2563
    %v2692 = vmul.f32 %v2336, %v2377
    %v2693 = vmul.f32 %v2337, %v2383
    %v2694 = vmul.f32 %v2338, %v2389
    %v2695 = vmul.f32 %v2339, %v2395
    %v2696 = vmul.f32 %v2340, %v2401
    %v2697 = vmul.f32 %v2341, %v2407
    %v2698 = vmul.f32 %v2342, %v2413
    %v2699 = vmul.f32 %v2343, %v2419
    %v2700 = vmul.f32 %v2344, %v2425
    %v2701 = vmul.f32 %v2345, %v2431
    %v2702 = vmul.f32 %v2346, %v2437
    %v2703 = vmul.f32 %v2347, %v2443
    %v2704 = vmul.f32 %v2348, %v2449
    %v2705 = vmul.f32 %v2349, %v2455
    %v2706 = vmul.f32 %v2350, %v2461
    %v2707 = vmul.f32 %v2351, %v2467
    %v2708 = vmul.f32 %v2352, %v2473
    %v2709 = vmul.f32 %v2353, %v2479
    %v2710 = vmul.f32 %v2354, %v2485
    %v2711 = vmul.f32 %v2355, %v2491
    %v2712 = vmul.f32 %v2356, %v2497
    %v2713 = vmul.f32 %v2357, %v2503
    %v2714 = vmul.f32 %v2358, %v2509
    %v2715 = vmul.f32 %v2359, %v2515
    %v2716 = vmul.f32 %v2360, %v2521
    %v2717 = vmul.f32 %v2361, %v2527
    %v2718 = vmul.f32 %v2362, %v2533
    %v2719 = vmul.f32 %v2363, %v2539
    %v2720 = vmul.f32 %v2364, %v2545
    %v2721 = vmul.f32 %v2365, %v2551
    %v2722 = vmul.f32 %v2366, %v2557
    %v2723 = vmul.f32 %v2367, %v2563
    %v2724 = vld [vmem:[%s3] sm:$0x3]
    %v2726 = vperm.slane %v2724, 0
    %v2727 = vperm.slane %v2724, 1
    %v2728 = vlaneseq
    %v2729 = vshrl.u32 %v2728, 7
    %2731 = vset.pattern.permute.xlu0 %v2729
    %2732 = vperm.xlu0 %2731, %v2726
    %v2733 = vpop.permute.xlu0 %2732
    %v2734 = vlaneseq
    %v2735 = vshrl.u32 %v2734, 7
    %v2736 = vadd.s32 %v2735, 8
    %2737 = vset.pattern.permute.xlu0 %v2736
    %2738 = vperm.xlu0 %2737, %v2726
    %v2739 = vpop.permute.xlu0 %2738
    %v2740 = vlaneseq
    %v2741 = vshrl.u32 %v2740, 7
    %v2742 = vadd.s32 %v2741, 16
    %2743 = vset.pattern.permute.xlu0 %v2742
    %2744 = vperm.xlu0 %2743, %v2726
    %v2745 = vpop.permute.xlu0 %2744
    %v2746 = vlaneseq
    %v2747 = vshrl.u32 %v2746, 7
    %v2748 = vadd.s32 %v2747, 24
    %2749 = vset.pattern.permute.xlu0 %v2748
    %2750 = vperm.xlu0 %2749, %v2726
    %v2751 = vpop.permute.xlu0 %2750
    %v2752 = vlaneseq
    %v2753 = vshrl.u32 %v2752, 7
    %v2754 = vadd.s32 %v2753, 32
    %2755 = vset.pattern.permute.xlu0 %v2754
    %2756 = vperm.xlu0 %2755, %v2726
    %v2757 = vpop.permute.xlu0 %2756
    %v2758 = vlaneseq
    %v2759 = vshrl.u32 %v2758, 7
    %v2760 = vadd.s32 %v2759, 40
    %2761 = vset.pattern.permute.xlu0 %v2760
    %2762 = vperm.xlu0 %2761, %v2726
    %v2763 = vpop.permute.xlu0 %2762
    %v2764 = vlaneseq
    %v2765 = vshrl.u32 %v2764, 7
    %v2766 = vadd.s32 %v2765, 48
    %2767 = vset.pattern.permute.xlu0 %v2766
    %2768 = vperm.xlu0 %2767, %v2726
    %v2769 = vpop.permute.xlu0 %2768
    %v2770 = vlaneseq
    %v2771 = vshrl.u32 %v2770, 7
    %v2772 = vadd.s32 %v2771, 56
    %2773 = vset.pattern.permute.xlu0 %v2772
    %2774 = vperm.xlu0 %2773, %v2726
    %v2775 = vpop.permute.xlu0 %2774
    %v2776 = vlaneseq
    %v2777 = vshrl.u32 %v2776, 7
    %v2778 = vadd.s32 %v2777, 64
    %2779 = vset.pattern.permute.xlu0 %v2778
    %2780 = vperm.xlu0 %2779, %v2726
    %v2781 = vpop.permute.xlu0 %2780
    %v2782 = vlaneseq
    %v2783 = vshrl.u32 %v2782, 7
    %v2784 = vadd.s32 %v2783, 72
    %2785 = vset.pattern.permute.xlu0 %v2784
    %2786 = vperm.xlu0 %2785, %v2726
    %v2787 = vpop.permute.xlu0 %2786
    %v2788 = vlaneseq
    %v2789 = vshrl.u32 %v2788, 7
    %v2790 = vadd.s32 %v2789, 80
    %2791 = vset.pattern.permute.xlu0 %v2790
    %2792 = vperm.xlu0 %2791, %v2726
    %v2793 = vpop.permute.xlu0 %2792
    %v2794 = vlaneseq
    %v2795 = vshrl.u32 %v2794, 7
    %v2796 = vadd.s32 %v2795, 88
    %2797 = vset.pattern.permute.xlu0 %v2796
    %2798 = vperm.xlu0 %2797, %v2726
    %v2799 = vpop.permute.xlu0 %2798
    %v2800 = vlaneseq
    %v2801 = vshrl.u32 %v2800, 7
    %v2802 = vadd.s32 %v2801, 96
    %2803 = vset.pattern.permute.xlu0 %v2802
    %2804 = vperm.xlu0 %2803, %v2726
    %v2805 = vpop.permute.xlu0 %2804
    %v2806 = vlaneseq
    %v2807 = vshrl.u32 %v2806, 7
    %v2808 = vadd.s32 %v2807, 104
    %2809 = vset.pattern.permute.xlu0 %v2808
    %2810 = vperm.xlu0 %2809, %v2726
    %v2811 = vpop.permute.xlu0 %2810
    %v2812 = vlaneseq
    %v2813 = vshrl.u32 %v2812, 7
    %v2814 = vadd.s32 %v2813, 112
    %2815 = vset.pattern.permute.xlu0 %v2814
    %2816 = vperm.xlu0 %2815, %v2726
    %v2817 = vpop.permute.xlu0 %2816
    %v2818 = vlaneseq
    %v2819 = vshrl.u32 %v2818, 7
    %v2820 = vadd.s32 %v2819, 120
    %2821 = vset.pattern.permute.xlu0 %v2820
    %2822 = vperm.xlu0 %2821, %v2726
    %v2823 = vpop.permute.xlu0 %2822
    %v2824 = vlaneseq
    %v2825 = vshrl.u32 %v2824, 7
    %2827 = vset.pattern.permute.xlu0 %v2825
    %2828 = vperm.xlu0 %2827, %v2727
    %v2829 = vpop.permute.xlu0 %2828
    %v2830 = vlaneseq
    %v2831 = vshrl.u32 %v2830, 7
    %v2832 = vadd.s32 %v2831, 8
    %2833 = vset.pattern.permute.xlu0 %v2832
    %2834 = vperm.xlu0 %2833, %v2727
    %v2835 = vpop.permute.xlu0 %2834
    %v2836 = vlaneseq
    %v2837 = vshrl.u32 %v2836, 7
    %v2838 = vadd.s32 %v2837, 16
    %2839 = vset.pattern.permute.xlu0 %v2838
    %2840 = vperm.xlu0 %2839, %v2727
    %v2841 = vpop.permute.xlu0 %2840
    %v2842 = vlaneseq
    %v2843 = vshrl.u32 %v2842, 7
    %v2844 = vadd.s32 %v2843, 24
    %2845 = vset.pattern.permute.xlu0 %v2844
    %2846 = vperm.xlu0 %2845, %v2727
    %v2847 = vpop.permute.xlu0 %2846
    %v2848 = vlaneseq
    %v2849 = vshrl.u32 %v2848, 7
    %v2850 = vadd.s32 %v2849, 32
    %2851 = vset.pattern.permute.xlu0 %v2850
    %2852 = vperm.xlu0 %2851, %v2727
    %v2853 = vpop.permute.xlu0 %2852
    %v2854 = vlaneseq
    %v2855 = vshrl.u32 %v2854, 7
    %v2856 = vadd.s32 %v2855, 40
    %2857 = vset.pattern.permute.xlu0 %v2856
    %2858 = vperm.xlu0 %2857, %v2727
    %v2859 = vpop.permute.xlu0 %2858
    %v2860 = vlaneseq
    %v2861 = vshrl.u32 %v2860, 7
    %v2862 = vadd.s32 %v2861, 48
    %2863 = vset.pattern.permute.xlu0 %v2862
    %2864 = vperm.xlu0 %2863, %v2727
    %v2865 = vpop.permute.xlu0 %2864
    %v2866 = vlaneseq
    %v2867 = vshrl.u32 %v2866, 7
    %v2868 = vadd.s32 %v2867, 56
    %2869 = vset.pattern.permute.xlu0 %v2868
    %2870 = vperm.xlu0 %2869, %v2727
    %v2871 = vpop.permute.xlu0 %2870
    %v2872 = vlaneseq
    %v2873 = vshrl.u32 %v2872, 7
    %v2874 = vadd.s32 %v2873, 64
    %2875 = vset.pattern.permute.xlu0 %v2874
    %2876 = vperm.xlu0 %2875, %v2727
    %v2877 = vpop.permute.xlu0 %2876
    %v2878 = vlaneseq
    %v2879 = vshrl.u32 %v2878, 7
    %v2880 = vadd.s32 %v2879, 72
    %2881 = vset.pattern.permute.xlu0 %v2880
    %2882 = vperm.xlu0 %2881, %v2727
    %v2883 = vpop.permute.xlu0 %2882
    %v2884 = vlaneseq
    %v2885 = vshrl.u32 %v2884, 7
    %v2886 = vadd.s32 %v2885, 80
    %2887 = vset.pattern.permute.xlu0 %v2886
    %2888 = vperm.xlu0 %2887, %v2727
    %v2889 = vpop.permute.xlu0 %2888
    %v2890 = vlaneseq
    %v2891 = vshrl.u32 %v2890, 7
    %v2892 = vadd.s32 %v2891, 88
    %2893 = vset.pattern.permute.xlu0 %v2892
    %2894 = vperm.xlu0 %2893, %v2727
    %v2895 = vpop.permute.xlu0 %2894
    %v2896 = vlaneseq
    %v2897 = vshrl.u32 %v2896, 7
    %v2898 = vadd.s32 %v2897, 96
    %2899 = vset.pattern.permute.xlu0 %v2898
    %2900 = vperm.xlu0 %2899, %v2727
    %v2901 = vpop.permute.xlu0 %2900
    %v2902 = vlaneseq
    %v2903 = vshrl.u32 %v2902, 7
    %v2904 = vadd.s32 %v2903, 104
    %2905 = vset.pattern.permute.xlu0 %v2904
    %2906 = vperm.xlu0 %2905, %v2727
    %v2907 = vpop.permute.xlu0 %2906
    %v2908 = vlaneseq
    %v2909 = vshrl.u32 %v2908, 7
    %v2910 = vadd.s32 %v2909, 112
    %2911 = vset.pattern.permute.xlu0 %v2910
    %2912 = vperm.xlu0 %2911, %v2727
    %v2913 = vpop.permute.xlu0 %2912
    %v2914 = vlaneseq
    %v2915 = vshrl.u32 %v2914, 7
    %v2916 = vadd.s32 %v2915, 120
    %2917 = vset.pattern.permute.xlu0 %v2916
    %2918 = vperm.xlu0 %2917, %v2727
    %v2919 = vpop.permute.xlu0 %2918
    %v2952 = vadd.f32 %v2596, %v2733
    %v2953 = vadd.f32 %v2597, %v2739
    %v2954 = vadd.f32 %v2598, %v2745
    %v2955 = vadd.f32 %v2599, %v2751
    %v2956 = vadd.f32 %v2600, %v2757
    %v2957 = vadd.f32 %v2601, %v2763
    %v2958 = vadd.f32 %v2602, %v2769
    %v2959 = vadd.f32 %v2603, %v2775
    %v2960 = vadd.f32 %v2604, %v2781
    %v2961 = vadd.f32 %v2605, %v2787
    %v2962 = vadd.f32 %v2606, %v2793
    %v2963 = vadd.f32 %v2607, %v2799
    %v2964 = vadd.f32 %v2608, %v2805
    %v2965 = vadd.f32 %v2609, %v2811
    %v2966 = vadd.f32 %v2610, %v2817
    %v2967 = vadd.f32 %v2611, %v2823
    %v2968 = vadd.f32 %v2612, %v2829
    %v2969 = vadd.f32 %v2613, %v2835
    %v2970 = vadd.f32 %v2614, %v2841
    %v2971 = vadd.f32 %v2615, %v2847
    %v2972 = vadd.f32 %v2616, %v2853
    %v2973 = vadd.f32 %v2617, %v2859
    %v2974 = vadd.f32 %v2618, %v2865
    %v2975 = vadd.f32 %v2619, %v2871
    %v2976 = vadd.f32 %v2620, %v2877
    %v2977 = vadd.f32 %v2621, %v2883
    %v2978 = vadd.f32 %v2622, %v2889
    %v2979 = vadd.f32 %v2623, %v2895
    %v2980 = vadd.f32 %v2624, %v2901
    %v2981 = vadd.f32 %v2625, %v2907
    %v2982 = vadd.f32 %v2626, %v2913
    %v2983 = vadd.f32 %v2627, %v2919
    %v2984 = vadd.f32 %v2628, %v2733
    %v2985 = vadd.f32 %v2629, %v2739
    %v2986 = vadd.f32 %v2630, %v2745
    %v2987 = vadd.f32 %v2631, %v2751
    %v2988 = vadd.f32 %v2632, %v2757
    %v2989 = vadd.f32 %v2633, %v2763
    %v2990 = vadd.f32 %v2634, %v2769
    %v2991 = vadd.f32 %v2635, %v2775
    %v2992 = vadd.f32 %v2636, %v2781
    %v2993 = vadd.f32 %v2637, %v2787
    %v2994 = vadd.f32 %v2638, %v2793
    %v2995 = vadd.f32 %v2639, %v2799
    %v2996 = vadd.f32 %v2640, %v2805
    %v2997 = vadd.f32 %v2641, %v2811
    %v2998 = vadd.f32 %v2642, %v2817
    %v2999 = vadd.f32 %v2643, %v2823
    %v3000 = vadd.f32 %v2644, %v2829
    %v3001 = vadd.f32 %v2645, %v2835
    %v3002 = vadd.f32 %v2646, %v2841
    %v3003 = vadd.f32 %v2647, %v2847
    %v3004 = vadd.f32 %v2648, %v2853
    %v3005 = vadd.f32 %v2649, %v2859
    %v3006 = vadd.f32 %v2650, %v2865
    %v3007 = vadd.f32 %v2651, %v2871
    %v3008 = vadd.f32 %v2652, %v2877
    %v3009 = vadd.f32 %v2653, %v2883
    %v3010 = vadd.f32 %v2654, %v2889
    %v3011 = vadd.f32 %v2655, %v2895
    %v3012 = vadd.f32 %v2656, %v2901
    %v3013 = vadd.f32 %v2657, %v2907
    %v3014 = vadd.f32 %v2658, %v2913
    %v3015 = vadd.f32 %v2659, %v2919
    %v3016 = vadd.f32 %v2660, %v2733
    %v3017 = vadd.f32 %v2661, %v2739
    %v3018 = vadd.f32 %v2662, %v2745
    %v3019 = vadd.f32 %v2663, %v2751
    %v3020 = vadd.f32 %v2664, %v2757
    %v3021 = vadd.f32 %v2665, %v2763
    %v3022 = vadd.f32 %v2666, %v2769
    %v3023 = vadd.f32 %v2667, %v2775
    %v3024 = vadd.f32 %v2668, %v2781
    %v3025 = vadd.f32 %v2669, %v2787
    %v3026 = vadd.f32 %v2670, %v2793
    %v3027 = vadd.f32 %v2671, %v2799
    %v3028 = vadd.f32 %v2672, %v2805
    %v3029 = vadd.f32 %v2673, %v2811
    %v3030 = vadd.f32 %v2674, %v2817
    %v3031 = vadd.f32 %v2675, %v2823
    %v3032 = vadd.f32 %v2676, %v2829
    %v3033 = vadd.f32 %v2677, %v2835
    %v3034 = vadd.f32 %v2678, %v2841
    %v3035 = vadd.f32 %v2679, %v2847
    %v3036 = vadd.f32 %v2680, %v2853
    %v3037 = vadd.f32 %v2681, %v2859
    %v3038 = vadd.f32 %v2682, %v2865
    %v3039 = vadd.f32 %v2683, %v2871
    %v3040 = vadd.f32 %v2684, %v2877
    %v3041 = vadd.f32 %v2685, %v2883
    %v3042 = vadd.f32 %v2686, %v2889
    %v3043 = vadd.f32 %v2687, %v2895
    %v3044 = vadd.f32 %v2688, %v2901
    %v3045 = vadd.f32 %v2689, %v2907
    %v3046 = vadd.f32 %v2690, %v2913
    %v3047 = vadd.f32 %v2691, %v2919
    %v3048 = vadd.f32 %v2692, %v2733
    %v3049 = vadd.f32 %v2693, %v2739
    %v3050 = vadd.f32 %v2694, %v2745
    %v3051 = vadd.f32 %v2695, %v2751
    %v3052 = vadd.f32 %v2696, %v2757
    %v3053 = vadd.f32 %v2697, %v2763
    %v3054 = vadd.f32 %v2698, %v2769
    %v3055 = vadd.f32 %v2699, %v2775
    %v3056 = vadd.f32 %v2700, %v2781
    %v3057 = vadd.f32 %v2701, %v2787
    %v3058 = vadd.f32 %v2702, %v2793
    %v3059 = vadd.f32 %v2703, %v2799
    %v3060 = vadd.f32 %v2704, %v2805
    %v3061 = vadd.f32 %v2705, %v2811
    %v3062 = vadd.f32 %v2706, %v2817
    %v3063 = vadd.f32 %v2707, %v2823
    %v3064 = vadd.f32 %v2708, %v2829
    %v3065 = vadd.f32 %v2709, %v2835
    %v3066 = vadd.f32 %v2710, %v2841
    %v3067 = vadd.f32 %v2711, %v2847
    %v3068 = vadd.f32 %v2712, %v2853
    %v3069 = vadd.f32 %v2713, %v2859
    %v3070 = vadd.f32 %v2714, %v2865
    %v3071 = vadd.f32 %v2715, %v2871
    %v3072 = vadd.f32 %v2716, %v2877
    %v3073 = vadd.f32 %v2717, %v2883
    %v3074 = vadd.f32 %v2718, %v2889
    %v3075 = vadd.f32 %v2719, %v2895
    %v3076 = vadd.f32 %v2720, %v2901
    %v3077 = vadd.f32 %v2721, %v2907
    %v3078 = vadd.f32 %v2722, %v2913
    %v3079 = vadd.f32 %v2723, %v2919
    %v3080 = vxor.u32 %v2952, 2147483648
    %v3081 = vxor.u32 %v2953, 2147483648
    %v3082 = vxor.u32 %v2954, 2147483648
    %v3083 = vxor.u32 %v2955, 2147483648
    %v3084 = vxor.u32 %v2956, 2147483648
    %v3085 = vxor.u32 %v2957, 2147483648
    %v3086 = vxor.u32 %v2958, 2147483648
    %v3087 = vxor.u32 %v2959, 2147483648
    %v3088 = vxor.u32 %v2960, 2147483648
    %v3089 = vxor.u32 %v2961, 2147483648
    %v3090 = vxor.u32 %v2962, 2147483648
    %v3091 = vxor.u32 %v2963, 2147483648
    %v3092 = vxor.u32 %v2964, 2147483648
    %v3093 = vxor.u32 %v2965, 2147483648
    %v3094 = vxor.u32 %v2966, 2147483648
    %v3095 = vxor.u32 %v2967, 2147483648
    %v3096 = vxor.u32 %v2968, 2147483648
    %v3097 = vxor.u32 %v2969, 2147483648
    %v3098 = vxor.u32 %v2970, 2147483648
    %v3099 = vxor.u32 %v2971, 2147483648
    %v3100 = vxor.u32 %v2972, 2147483648
    %v3101 = vxor.u32 %v2973, 2147483648
    %v3102 = vxor.u32 %v2974, 2147483648
    %v3103 = vxor.u32 %v2975, 2147483648
    %v3104 = vxor.u32 %v2976, 2147483648
    %v3105 = vxor.u32 %v2977, 2147483648
    %v3106 = vxor.u32 %v2978, 2147483648
    %v3107 = vxor.u32 %v2979, 2147483648
    %v3108 = vxor.u32 %v2980, 2147483648
    %v3109 = vxor.u32 %v2981, 2147483648
    %v3110 = vxor.u32 %v2982, 2147483648
    %v3111 = vxor.u32 %v2983, 2147483648
    %v3112 = vxor.u32 %v2984, 2147483648
    %v3113 = vxor.u32 %v2985, 2147483648
    %v3114 = vxor.u32 %v2986, 2147483648
    %v3115 = vxor.u32 %v2987, 2147483648
    %v3116 = vxor.u32 %v2988, 2147483648
    %v3117 = vxor.u32 %v2989, 2147483648
    %v3118 = vxor.u32 %v2990, 2147483648
    %v3119 = vxor.u32 %v2991, 2147483648
    %v3120 = vxor.u32 %v2992, 2147483648
    %v3121 = vxor.u32 %v2993, 2147483648
    %v3122 = vxor.u32 %v2994, 2147483648
    %v3123 = vxor.u32 %v2995, 2147483648
    %v3124 = vxor.u32 %v2996, 2147483648
    %v3125 = vxor.u32 %v2997, 2147483648
    %v3126 = vxor.u32 %v2998, 2147483648
    %v3127 = vxor.u32 %v2999, 2147483648
    %v3128 = vxor.u32 %v3000, 2147483648
    %v3129 = vxor.u32 %v3001, 2147483648
    %v3130 = vxor.u32 %v3002, 2147483648
    %v3131 = vxor.u32 %v3003, 2147483648
    %v3132 = vxor.u32 %v3004, 2147483648
    %v3133 = vxor.u32 %v3005, 2147483648
    %v3134 = vxor.u32 %v3006, 2147483648
    %v3135 = vxor.u32 %v3007, 2147483648
    %v3136 = vxor.u32 %v3008, 2147483648
    %v3137 = vxor.u32 %v3009, 2147483648
    %v3138 = vxor.u32 %v3010, 2147483648
    %v3139 = vxor.u32 %v3011, 2147483648
    %v3140 = vxor.u32 %v3012, 2147483648
    %v3141 = vxor.u32 %v3013, 2147483648
    %v3142 = vxor.u32 %v3014, 2147483648
    %v3143 = vxor.u32 %v3015, 2147483648
    %v3144 = vxor.u32 %v3016, 2147483648
    %v3145 = vxor.u32 %v3017, 2147483648
    %v3146 = vxor.u32 %v3018, 2147483648
    %v3147 = vxor.u32 %v3019, 2147483648
    %v3148 = vxor.u32 %v3020, 2147483648
    %v3149 = vxor.u32 %v3021, 2147483648
    %v3150 = vxor.u32 %v3022, 2147483648
    %v3151 = vxor.u32 %v3023, 2147483648
    %v3152 = vxor.u32 %v3024, 2147483648
    %v3153 = vxor.u32 %v3025, 2147483648
    %v3154 = vxor.u32 %v3026, 2147483648
    %v3155 = vxor.u32 %v3027, 2147483648
    %v3156 = vxor.u32 %v3028, 2147483648
    %v3157 = vxor.u32 %v3029, 2147483648
    %v3158 = vxor.u32 %v3030, 2147483648
    %v3159 = vxor.u32 %v3031, 2147483648
    %v3160 = vxor.u32 %v3032, 2147483648
    %v3161 = vxor.u32 %v3033, 2147483648
    %v3162 = vxor.u32 %v3034, 2147483648
    %v3163 = vxor.u32 %v3035, 2147483648
    %v3164 = vxor.u32 %v3036, 2147483648
    %v3165 = vxor.u32 %v3037, 2147483648
    %v3166 = vxor.u32 %v3038, 2147483648
    %v3167 = vxor.u32 %v3039, 2147483648
    %v3168 = vxor.u32 %v3040, 2147483648
    %v3169 = vxor.u32 %v3041, 2147483648
    %v3170 = vxor.u32 %v3042, 2147483648
    %v3171 = vxor.u32 %v3043, 2147483648
    %v3172 = vxor.u32 %v3044, 2147483648
    %v3173 = vxor.u32 %v3045, 2147483648
    %v3174 = vxor.u32 %v3046, 2147483648
    %v3175 = vxor.u32 %v3047, 2147483648
    %v3176 = vxor.u32 %v3048, 2147483648
    %v3177 = vxor.u32 %v3049, 2147483648
    %v3178 = vxor.u32 %v3050, 2147483648
    %v3179 = vxor.u32 %v3051, 2147483648
    %v3180 = vxor.u32 %v3052, 2147483648
    %v3181 = vxor.u32 %v3053, 2147483648
    %v3182 = vxor.u32 %v3054, 2147483648
    %v3183 = vxor.u32 %v3055, 2147483648
    %v3184 = vxor.u32 %v3056, 2147483648
    %v3185 = vxor.u32 %v3057, 2147483648
    %v3186 = vxor.u32 %v3058, 2147483648
    %v3187 = vxor.u32 %v3059, 2147483648
    %v3188 = vxor.u32 %v3060, 2147483648
    %v3189 = vxor.u32 %v3061, 2147483648
    %v3190 = vxor.u32 %v3062, 2147483648
    %v3191 = vxor.u32 %v3063, 2147483648
    %v3192 = vxor.u32 %v3064, 2147483648
    %v3193 = vxor.u32 %v3065, 2147483648
    %v3194 = vxor.u32 %v3066, 2147483648
    %v3195 = vxor.u32 %v3067, 2147483648
    %v3196 = vxor.u32 %v3068, 2147483648
    %v3197 = vxor.u32 %v3069, 2147483648
    %v3198 = vxor.u32 %v3070, 2147483648
    %v3199 = vxor.u32 %v3071, 2147483648
    %v3200 = vxor.u32 %v3072, 2147483648
    %v3201 = vxor.u32 %v3073, 2147483648
    %v3202 = vxor.u32 %v3074, 2147483648
    %v3203 = vxor.u32 %v3075, 2147483648
    %v3204 = vxor.u32 %v3076, 2147483648
    %v3205 = vxor.u32 %v3077, 2147483648
    %v3206 = vxor.u32 %v3078, 2147483648
    %v3207 = vxor.u32 %v3079, 2147483648
    %v3208 = vmul.f32 %v3080, 1.442695
    %v3209 = vpow.pop %v3208
    %v3210 = vmul.f32 %v3081, 1.442695
    %v3211 = vpow.pop %v3210
    %v3212 = vmul.f32 %v3082, 1.442695
    %v3213 = vpow.pop %v3212
    %v3214 = vmul.f32 %v3083, 1.442695
    %v3215 = vpow.pop %v3214
    %v3216 = vmul.f32 %v3084, 1.442695
    %v3217 = vpow.pop %v3216
    %v3218 = vmul.f32 %v3085, 1.442695
    %v3219 = vpow.pop %v3218
    %v3220 = vmul.f32 %v3086, 1.442695
    %v3221 = vpow.pop %v3220
    %v3222 = vmul.f32 %v3087, 1.442695
    %v3223 = vpow.pop %v3222
    %v3224 = vmul.f32 %v3088, 1.442695
    %v3225 = vpow.pop %v3224
    %v3226 = vmul.f32 %v3089, 1.442695
    %v3227 = vpow.pop %v3226
    %v3228 = vmul.f32 %v3090, 1.442695
    %v3229 = vpow.pop %v3228
    %v3230 = vmul.f32 %v3091, 1.442695
    %v3231 = vpow.pop %v3230
    %v3232 = vmul.f32 %v3092, 1.442695
    %v3233 = vpow.pop %v3232
    %v3234 = vmul.f32 %v3093, 1.442695
    %v3235 = vpow.pop %v3234
    %v3236 = vmul.f32 %v3094, 1.442695
    %v3237 = vpow.pop %v3236
    %v3238 = vmul.f32 %v3095, 1.442695
    %v3239 = vpow.pop %v3238
    %v3240 = vmul.f32 %v3096, 1.442695
    %v3241 = vpow.pop %v3240
    %v3242 = vmul.f32 %v3097, 1.442695
    %v3243 = vpow.pop %v3242
    %v3244 = vmul.f32 %v3098, 1.442695
    %v3245 = vpow.pop %v3244
    %v3246 = vmul.f32 %v3099, 1.442695
    %v3247 = vpow.pop %v3246
    %v3248 = vmul.f32 %v3100, 1.442695
    %v3249 = vpow.pop %v3248
    %v3250 = vmul.f32 %v3101, 1.442695
    %v3251 = vpow.pop %v3250
    %v3252 = vmul.f32 %v3102, 1.442695
    %v3253 = vpow.pop %v3252
    %v3254 = vmul.f32 %v3103, 1.442695
    %v3255 = vpow.pop %v3254
    %v3256 = vmul.f32 %v3104, 1.442695
    %v3257 = vpow.pop %v3256
    %v3258 = vmul.f32 %v3105, 1.442695
    %v3259 = vpow.pop %v3258
    %v3260 = vmul.f32 %v3106, 1.442695
    %v3261 = vpow.pop %v3260
    %v3262 = vmul.f32 %v3107, 1.442695
    %v3263 = vpow.pop %v3262
    %v3264 = vmul.f32 %v3108, 1.442695
    %v3265 = vpow.pop %v3264
    %v3266 = vmul.f32 %v3109, 1.442695
    %v3267 = vpow.pop %v3266
    %v3268 = vmul.f32 %v3110, 1.442695
    %v3269 = vpow.pop %v3268
    %v3270 = vmul.f32 %v3111, 1.442695
    %v3271 = vpow.pop %v3270
    %v3272 = vmul.f32 %v3112, 1.442695
    %v3273 = vpow.pop %v3272
    %v3274 = vmul.f32 %v3113, 1.442695
    %v3275 = vpow.pop %v3274
    %v3276 = vmul.f32 %v3114, 1.442695
    %v3277 = vpow.pop %v3276
    %v3278 = vmul.f32 %v3115, 1.442695
    %v3279 = vpow.pop %v3278
    %v3280 = vmul.f32 %v3116, 1.442695
    %v3281 = vpow.pop %v3280
    %v3282 = vmul.f32 %v3117, 1.442695
    %v3283 = vpow.pop %v3282
    %v3284 = vmul.f32 %v3118, 1.442695
    %v3285 = vpow.pop %v3284
    %v3286 = vmul.f32 %v3119, 1.442695
    %v3287 = vpow.pop %v3286
    %v3288 = vmul.f32 %v3120, 1.442695
    %v3289 = vpow.pop %v3288
    %v3290 = vmul.f32 %v3121, 1.442695
    %v3291 = vpow.pop %v3290
    %v3292 = vmul.f32 %v3122, 1.442695
    %v3293 = vpow.pop %v3292
    %v3294 = vmul.f32 %v3123, 1.442695
    %v3295 = vpow.pop %v3294
    %v3296 = vmul.f32 %v3124, 1.442695
    %v3297 = vpow.pop %v3296
    %v3298 = vmul.f32 %v3125, 1.442695
    %v3299 = vpow.pop %v3298
    %v3300 = vmul.f32 %v3126, 1.442695
    %v3301 = vpow.pop %v3300
    %v3302 = vmul.f32 %v3127, 1.442695
    %v3303 = vpow.pop %v3302
    %v3304 = vmul.f32 %v3128, 1.442695
    %v3305 = vpow.pop %v3304
    %v3306 = vmul.f32 %v3129, 1.442695
    %v3307 = vpow.pop %v3306
    %v3308 = vmul.f32 %v3130, 1.442695
    %v3309 = vpow.pop %v3308
    %v3310 = vmul.f32 %v3131, 1.442695
    %v3311 = vpow.pop %v3310
    %v3312 = vmul.f32 %v3132, 1.442695
    %v3313 = vpow.pop %v3312
    %v3314 = vmul.f32 %v3133, 1.442695
    %v3315 = vpow.pop %v3314
    %v3316 = vmul.f32 %v3134, 1.442695
    %v3317 = vpow.pop %v3316
    %v3318 = vmul.f32 %v3135, 1.442695
    %v3319 = vpow.pop %v3318
    %v3320 = vmul.f32 %v3136, 1.442695
    %v3321 = vpow.pop %v3320
    %v3322 = vmul.f32 %v3137, 1.442695
    %v3323 = vpow.pop %v3322
    %v3324 = vmul.f32 %v3138, 1.442695
    %v3325 = vpow.pop %v3324
    %v3326 = vmul.f32 %v3139, 1.442695
    %v3327 = vpow.pop %v3326
    %v3328 = vmul.f32 %v3140, 1.442695
    %v3329 = vpow.pop %v3328
    %v3330 = vmul.f32 %v3141, 1.442695
    %v3331 = vpow.pop %v3330
    %v3332 = vmul.f32 %v3142, 1.442695
    %v3333 = vpow.pop %v3332
    %v3334 = vmul.f32 %v3143, 1.442695
    %v3335 = vpow.pop %v3334
    %v3336 = vmul.f32 %v3144, 1.442695
    %v3337 = vpow.pop %v3336
    %v3338 = vmul.f32 %v3145, 1.442695
    %v3339 = vpow.pop %v3338
    %v3340 = vmul.f32 %v3146, 1.442695
    %v3341 = vpow.pop %v3340
    %v3342 = vmul.f32 %v3147, 1.442695
    %v3343 = vpow.pop %v3342
    %v3344 = vmul.f32 %v3148, 1.442695
    %v3345 = vpow.pop %v3344
    %v3346 = vmul.f32 %v3149, 1.442695
    %v3347 = vpow.pop %v3346
    %v3348 = vmul.f32 %v3150, 1.442695
    %v3349 = vpow.pop %v3348
    %v3350 = vmul.f32 %v3151, 1.442695
    %v3351 = vpow.pop %v3350
    %v3352 = vmul.f32 %v3152, 1.442695
    %v3353 = vpow.pop %v3352
    %v3354 = vmul.f32 %v3153, 1.442695
    %v3355 = vpow.pop %v3354
    %v3356 = vmul.f32 %v3154, 1.442695
    %v3357 = vpow.pop %v3356
    %v3358 = vmul.f32 %v3155, 1.442695
    %v3359 = vpow.pop %v3358
    %v3360 = vmul.f32 %v3156, 1.442695
    %v3361 = vpow.pop %v3360
    %v3362 = vmul.f32 %v3157, 1.442695
    %v3363 = vpow.pop %v3362
    %v3364 = vmul.f32 %v3158, 1.442695
    %v3365 = vpow.pop %v3364
    %v3366 = vmul.f32 %v3159, 1.442695
    %v3367 = vpow.pop %v3366
    %v3368 = vmul.f32 %v3160, 1.442695
    %v3369 = vpow.pop %v3368
    %v3370 = vmul.f32 %v3161, 1.442695
    %v3371 = vpow.pop %v3370
    %v3372 = vmul.f32 %v3162, 1.442695
    %v3373 = vpow.pop %v3372
    %v3374 = vmul.f32 %v3163, 1.442695
    %v3375 = vpow.pop %v3374
    %v3376 = vmul.f32 %v3164, 1.442695
    %v3377 = vpow.pop %v3376
    %v3378 = vmul.f32 %v3165, 1.442695
    %v3379 = vpow.pop %v3378
    %v3380 = vmul.f32 %v3166, 1.442695
    %v3381 = vpow.pop %v3380
    %v3382 = vmul.f32 %v3167, 1.442695
    %v3383 = vpow.pop %v3382
    %v3384 = vmul.f32 %v3168, 1.442695
    %v3385 = vpow.pop %v3384
    %v3386 = vmul.f32 %v3169, 1.442695
    %v3387 = vpow.pop %v3386
    %v3388 = vmul.f32 %v3170, 1.442695
    %v3389 = vpow.pop %v3388
    %v3390 = vmul.f32 %v3171, 1.442695
    %v3391 = vpow.pop %v3390
    %v3392 = vmul.f32 %v3172, 1.442695
    %v3393 = vpow.pop %v3392
    %v3394 = vmul.f32 %v3173, 1.442695
    %v3395 = vpow.pop %v3394
    %v3396 = vmul.f32 %v3174, 1.442695
    %v3397 = vpow.pop %v3396
    %v3398 = vmul.f32 %v3175, 1.442695
    %v3399 = vpow.pop %v3398
    %v3400 = vmul.f32 %v3176, 1.442695
    %v3401 = vpow.pop %v3400
    %v3402 = vmul.f32 %v3177, 1.442695
    %v3403 = vpow.pop %v3402
    %v3404 = vmul.f32 %v3178, 1.442695
    %v3405 = vpow.pop %v3404
    %v3406 = vmul.f32 %v3179, 1.442695
    %v3407 = vpow.pop %v3406
    %v3408 = vmul.f32 %v3180, 1.442695
    %v3409 = vpow.pop %v3408
    %v3410 = vmul.f32 %v3181, 1.442695
    %v3411 = vpow.pop %v3410
    %v3412 = vmul.f32 %v3182, 1.442695
    %v3413 = vpow.pop %v3412
    %v3414 = vmul.f32 %v3183, 1.442695
    %v3415 = vpow.pop %v3414
    %v3416 = vmul.f32 %v3184, 1.442695
    %v3417 = vpow.pop %v3416
    %v3418 = vmul.f32 %v3185, 1.442695
    %v3419 = vpow.pop %v3418
    %v3420 = vmul.f32 %v3186, 1.442695
    %v3421 = vpow.pop %v3420
    %v3422 = vmul.f32 %v3187, 1.442695
    %v3423 = vpow.pop %v3422
    %v3424 = vmul.f32 %v3188, 1.442695
    %v3425 = vpow.pop %v3424
    %v3426 = vmul.f32 %v3189, 1.442695
    %v3427 = vpow.pop %v3426
    %v3428 = vmul.f32 %v3190, 1.442695
    %v3429 = vpow.pop %v3428
    %v3430 = vmul.f32 %v3191, 1.442695
    %v3431 = vpow.pop %v3430
    %v3432 = vmul.f32 %v3192, 1.442695
    %v3433 = vpow.pop %v3432
    %v3434 = vmul.f32 %v3193, 1.442695
    %v3435 = vpow.pop %v3434
    %v3436 = vmul.f32 %v3194, 1.442695
    %v3437 = vpow.pop %v3436
    %v3438 = vmul.f32 %v3195, 1.442695
    %v3439 = vpow.pop %v3438
    %v3440 = vmul.f32 %v3196, 1.442695
    %v3441 = vpow.pop %v3440
    %v3442 = vmul.f32 %v3197, 1.442695
    %v3443 = vpow.pop %v3442
    %v3444 = vmul.f32 %v3198, 1.442695
    %v3445 = vpow.pop %v3444
    %v3446 = vmul.f32 %v3199, 1.442695
    %v3447 = vpow.pop %v3446
    %v3448 = vmul.f32 %v3200, 1.442695
    %v3449 = vpow.pop %v3448
    %v3450 = vmul.f32 %v3201, 1.442695
    %v3451 = vpow.pop %v3450
    %v3452 = vmul.f32 %v3202, 1.442695
    %v3453 = vpow.pop %v3452
    %v3454 = vmul.f32 %v3203, 1.442695
    %v3455 = vpow.pop %v3454
    %v3456 = vmul.f32 %v3204, 1.442695
    %v3457 = vpow.pop %v3456
    %v3458 = vmul.f32 %v3205, 1.442695
    %v3459 = vpow.pop %v3458
    %v3460 = vmul.f32 %v3206, 1.442695
    %v3461 = vpow.pop %v3460
    %v3462 = vmul.f32 %v3207, 1.442695
    %v3463 = vpow.pop %v3462
    %v3464 = vadd.f32 %v3209, 1.0
    %v3465 = vadd.f32 %v3211, 1.0
    %v3466 = vadd.f32 %v3213, 1.0
    %v3467 = vadd.f32 %v3215, 1.0
    %v3468 = vadd.f32 %v3217, 1.0
    %v3469 = vadd.f32 %v3219, 1.0
    %v3470 = vadd.f32 %v3221, 1.0
    %v3471 = vadd.f32 %v3223, 1.0
    %v3472 = vadd.f32 %v3225, 1.0
    %v3473 = vadd.f32 %v3227, 1.0
    %v3474 = vadd.f32 %v3229, 1.0
    %v3475 = vadd.f32 %v3231, 1.0
    %v3476 = vadd.f32 %v3233, 1.0
    %v3477 = vadd.f32 %v3235, 1.0
    %v3478 = vadd.f32 %v3237, 1.0
    %v3479 = vadd.f32 %v3239, 1.0
    %v3480 = vadd.f32 %v3241, 1.0
    %v3481 = vadd.f32 %v3243, 1.0
    %v3482 = vadd.f32 %v3245, 1.0
    %v3483 = vadd.f32 %v3247, 1.0
    %v3484 = vadd.f32 %v3249, 1.0
    %v3485 = vadd.f32 %v3251, 1.0
    %v3486 = vadd.f32 %v3253, 1.0
    %v3487 = vadd.f32 %v3255, 1.0
    %v3488 = vadd.f32 %v3257, 1.0
    %v3489 = vadd.f32 %v3259, 1.0
    %v3490 = vadd.f32 %v3261, 1.0
    %v3491 = vadd.f32 %v3263, 1.0
    %v3492 = vadd.f32 %v3265, 1.0
    %v3493 = vadd.f32 %v3267, 1.0
    %v3494 = vadd.f32 %v3269, 1.0
    %v3495 = vadd.f32 %v3271, 1.0
    %v3496 = vadd.f32 %v3273, 1.0
    %v3497 = vadd.f32 %v3275, 1.0
    %v3498 = vadd.f32 %v3277, 1.0
    %v3499 = vadd.f32 %v3279, 1.0
    %v3500 = vadd.f32 %v3281, 1.0
    %v3501 = vadd.f32 %v3283, 1.0
    %v3502 = vadd.f32 %v3285, 1.0
    %v3503 = vadd.f32 %v3287, 1.0
    %v3504 = vadd.f32 %v3289, 1.0
    %v3505 = vadd.f32 %v3291, 1.0
    %v3506 = vadd.f32 %v3293, 1.0
    %v3507 = vadd.f32 %v3295, 1.0
    %v3508 = vadd.f32 %v3297, 1.0
    %v3509 = vadd.f32 %v3299, 1.0
    %v3510 = vadd.f32 %v3301, 1.0
    %v3511 = vadd.f32 %v3303, 1.0
    %v3512 = vadd.f32 %v3305, 1.0
    %v3513 = vadd.f32 %v3307, 1.0
    %v3514 = vadd.f32 %v3309, 1.0
    %v3515 = vadd.f32 %v3311, 1.0
    %v3516 = vadd.f32 %v3313, 1.0
    %v3517 = vadd.f32 %v3315, 1.0
    %v3518 = vadd.f32 %v3317, 1.0
    %v3519 = vadd.f32 %v3319, 1.0
    %v3520 = vadd.f32 %v3321, 1.0
    %v3521 = vadd.f32 %v3323, 1.0
    %v3522 = vadd.f32 %v3325, 1.0
    %v3523 = vadd.f32 %v3327, 1.0
    %v3524 = vadd.f32 %v3329, 1.0
    %v3525 = vadd.f32 %v3331, 1.0
    %v3526 = vadd.f32 %v3333, 1.0
    %v3527 = vadd.f32 %v3335, 1.0
    %v3528 = vadd.f32 %v3337, 1.0
    %v3529 = vadd.f32 %v3339, 1.0
    %v3530 = vadd.f32 %v3341, 1.0
    %v3531 = vadd.f32 %v3343, 1.0
    %v3532 = vadd.f32 %v3345, 1.0
    %v3533 = vadd.f32 %v3347, 1.0
    %v3534 = vadd.f32 %v3349, 1.0
    %v3535 = vadd.f32 %v3351, 1.0
    %v3536 = vadd.f32 %v3353, 1.0
    %v3537 = vadd.f32 %v3355, 1.0
    %v3538 = vadd.f32 %v3357, 1.0
    %v3539 = vadd.f32 %v3359, 1.0
    %v3540 = vadd.f32 %v3361, 1.0
    %v3541 = vadd.f32 %v3363, 1.0
    %v3542 = vadd.f32 %v3365, 1.0
    %v3543 = vadd.f32 %v3367, 1.0
    %v3544 = vadd.f32 %v3369, 1.0
    %v3545 = vadd.f32 %v3371, 1.0
    %v3546 = vadd.f32 %v3373, 1.0
    %v3547 = vadd.f32 %v3375, 1.0
    %v3548 = vadd.f32 %v3377, 1.0
    %v3549 = vadd.f32 %v3379, 1.0
    %v3550 = vadd.f32 %v3381, 1.0
    %v3551 = vadd.f32 %v3383, 1.0
    %v3552 = vadd.f32 %v3385, 1.0
    %v3553 = vadd.f32 %v3387, 1.0
    %v3554 = vadd.f32 %v3389, 1.0
    %v3555 = vadd.f32 %v3391, 1.0
    %v3556 = vadd.f32 %v3393, 1.0
    %v3557 = vadd.f32 %v3395, 1.0
    %v3558 = vadd.f32 %v3397, 1.0
    %v3559 = vadd.f32 %v3399, 1.0
    %v3560 = vadd.f32 %v3401, 1.0
    %v3561 = vadd.f32 %v3403, 1.0
    %v3562 = vadd.f32 %v3405, 1.0
    %v3563 = vadd.f32 %v3407, 1.0
    %v3564 = vadd.f32 %v3409, 1.0
    %v3565 = vadd.f32 %v3411, 1.0
    %v3566 = vadd.f32 %v3413, 1.0
    %v3567 = vadd.f32 %v3415, 1.0
    %v3568 = vadd.f32 %v3417, 1.0
    %v3569 = vadd.f32 %v3419, 1.0
    %v3570 = vadd.f32 %v3421, 1.0
    %v3571 = vadd.f32 %v3423, 1.0
    %v3572 = vadd.f32 %v3425, 1.0
    %v3573 = vadd.f32 %v3427, 1.0
    %v3574 = vadd.f32 %v3429, 1.0
    %v3575 = vadd.f32 %v3431, 1.0
    %v3576 = vadd.f32 %v3433, 1.0
    %v3577 = vadd.f32 %v3435, 1.0
    %v3578 = vadd.f32 %v3437, 1.0
    %v3579 = vadd.f32 %v3439, 1.0
    %v3580 = vadd.f32 %v3441, 1.0
    %v3581 = vadd.f32 %v3443, 1.0
    %v3582 = vadd.f32 %v3445, 1.0
    %v3583 = vadd.f32 %v3447, 1.0
    %v3584 = vadd.f32 %v3449, 1.0
    %v3585 = vadd.f32 %v3451, 1.0
    %v3586 = vadd.f32 %v3453, 1.0
    %v3587 = vadd.f32 %v3455, 1.0
    %v3588 = vadd.f32 %v3457, 1.0
    %v3589 = vadd.f32 %v3459, 1.0
    %v3590 = vadd.f32 %v3461, 1.0
    %v3591 = vadd.f32 %v3463, 1.0
    %v3592 = vrcp.pop %v3464
    %v3593 = vmul.f32 %v3464, %v3592
    %v3594 = vsub.f32 1.0, %v3593
    %v3595 = vmul.f32 %v3592, %v3594
    %v3596 = vadd.f32 %v3592, %v3595
    %vm3597 = vweird.f32 %v3464
    %vm3598 = vweird.f32 %v3592
    %vm3599 = vmor %vm3597, %vm3598
    %v3600 = vsel %vm3599, %v3592, %v3596
    %v3601 = vand.u32 2147483647, %v3464
    %vm3602 = vcmp.eq.f32.partialorder %v3601, 8.507059e+37
    %v3603 = vand.u32 %v3464, 2147483648
    %v3604 = vor.u32 1.1754944e-38, %v3603
    %v3605 = vsel %vm3602, %v3604, %v3600
    %v3606 = vmul.f32 1.0, %v3605
    %v3607 = vrcp.pop %v3465
    %v3608 = vmul.f32 %v3465, %v3607
    %v3609 = vsub.f32 1.0, %v3608
    %v3610 = vmul.f32 %v3607, %v3609
    %v3611 = vadd.f32 %v3607, %v3610
    %vm3612 = vweird.f32 %v3465
    %vm3613 = vweird.f32 %v3607
    %vm3614 = vmor %vm3612, %vm3613
    %v3615 = vsel %vm3614, %v3607, %v3611
    %v3616 = vand.u32 2147483647, %v3465
    %vm3617 = vcmp.eq.f32.partialorder %v3616, 8.507059e+37
    %v3618 = vand.u32 %v3465, 2147483648
    %v3619 = vor.u32 1.1754944e-38, %v3618
    %v3620 = vsel %vm3617, %v3619, %v3615
    %v3621 = vmul.f32 1.0, %v3620
    %v3622 = vrcp.pop %v3466
    %v3623 = vmul.f32 %v3466, %v3622
    %v3624 = vsub.f32 1.0, %v3623
    %v3625 = vmul.f32 %v3622, %v3624
    %v3626 = vadd.f32 %v3622, %v3625
    %vm3627 = vweird.f32 %v3466
    %vm3628 = vweird.f32 %v3622
    %vm3629 = vmor %vm3627, %vm3628
    %v3630 = vsel %vm3629, %v3622, %v3626
    %v3631 = vand.u32 2147483647, %v3466
    %vm3632 = vcmp.eq.f32.partialorder %v3631, 8.507059e+37
    %v3633 = vand.u32 %v3466, 2147483648
    %v3634 = vor.u32 1.1754944e-38, %v3633
    %v3635 = vsel %vm3632, %v3634, %v3630
    %v3636 = vmul.f32 1.0, %v3635
    %v3637 = vrcp.pop %v3467
    %v3638 = vmul.f32 %v3467, %v3637
    %v3639 = vsub.f32 1.0, %v3638
    %v3640 = vmul.f32 %v3637, %v3639
    %v3641 = vadd.f32 %v3637, %v3640
    %vm3642 = vweird.f32 %v3467
    %vm3643 = vweird.f32 %v3637
    %vm3644 = vmor %vm3642, %vm3643
    %v3645 = vsel %vm3644, %v3637, %v3641
    %v3646 = vand.u32 2147483647, %v3467
    %vm3647 = vcmp.eq.f32.partialorder %v3646, 8.507059e+37
    %v3648 = vand.u32 %v3467, 2147483648
    %v3649 = vor.u32 1.1754944e-38, %v3648
    %v3650 = vsel %vm3647, %v3649, %v3645
    %v3651 = vmul.f32 1.0, %v3650
    %v3652 = vrcp.pop %v3468
    %v3653 = vmul.f32 %v3468, %v3652
    %v3654 = vsub.f32 1.0, %v3653
    %v3655 = vmul.f32 %v3652, %v3654
    %v3656 = vadd.f32 %v3652, %v3655
    %vm3657 = vweird.f32 %v3468
    %vm3658 = vweird.f32 %v3652
    %vm3659 = vmor %vm3657, %vm3658
    %v3660 = vsel %vm3659, %v3652, %v3656
    %v3661 = vand.u32 2147483647, %v3468
    %vm3662 = vcmp.eq.f32.partialorder %v3661, 8.507059e+37
    %v3663 = vand.u32 %v3468, 2147483648
    %v3664 = vor.u32 1.1754944e-38, %v3663
    %v3665 = vsel %vm3662, %v3664, %v3660
    %v3666 = vmul.f32 1.0, %v3665
    %v3667 = vrcp.pop %v3469
    %v3668 = vmul.f32 %v3469, %v3667
    %v3669 = vsub.f32 1.0, %v3668
    %v3670 = vmul.f32 %v3667, %v3669
    %v3671 = vadd.f32 %v3667, %v3670
    %vm3672 = vweird.f32 %v3469
    %vm3673 = vweird.f32 %v3667
    %vm3674 = vmor %vm3672, %vm3673
    %v3675 = vsel %vm3674, %v3667, %v3671
    %v3676 = vand.u32 2147483647, %v3469
    %vm3677 = vcmp.eq.f32.partialorder %v3676, 8.507059e+37
    %v3678 = vand.u32 %v3469, 2147483648
    %v3679 = vor.u32 1.1754944e-38, %v3678
    %v3680 = vsel %vm3677, %v3679, %v3675
    %v3681 = vmul.f32 1.0, %v3680
    %v3682 = vrcp.pop %v3470
    %v3683 = vmul.f32 %v3470, %v3682
    %v3684 = vsub.f32 1.0, %v3683
    %v3685 = vmul.f32 %v3682, %v3684
    %v3686 = vadd.f32 %v3682, %v3685
    %vm3687 = vweird.f32 %v3470
    %vm3688 = vweird.f32 %v3682
    %vm3689 = vmor %vm3687, %vm3688
    %v3690 = vsel %vm3689, %v3682, %v3686
    %v3691 = vand.u32 2147483647, %v3470
    %vm3692 = vcmp.eq.f32.partialorder %v3691, 8.507059e+37
    %v3693 = vand.u32 %v3470, 2147483648
    %v3694 = vor.u32 1.1754944e-38, %v3693
    %v3695 = vsel %vm3692, %v3694, %v3690
    %v3696 = vmul.f32 1.0, %v3695
    %v3697 = vrcp.pop %v3471
    %v3698 = vmul.f32 %v3471, %v3697
    %v3699 = vsub.f32 1.0, %v3698
    %v3700 = vmul.f32 %v3697, %v3699
    %v3701 = vadd.f32 %v3697, %v3700
    %vm3702 = vweird.f32 %v3471
    %vm3703 = vweird.f32 %v3697
    %vm3704 = vmor %vm3702, %vm3703
    %v3705 = vsel %vm3704, %v3697, %v3701
    %v3706 = vand.u32 2147483647, %v3471
    %vm3707 = vcmp.eq.f32.partialorder %v3706, 8.507059e+37
    %v3708 = vand.u32 %v3471, 2147483648
    %v3709 = vor.u32 1.1754944e-38, %v3708
    %v3710 = vsel %vm3707, %v3709, %v3705
    %v3711 = vmul.f32 1.0, %v3710
    %v3712 = vrcp.pop %v3472
    %v3713 = vmul.f32 %v3472, %v3712
    %v3714 = vsub.f32 1.0, %v3713
    %v3715 = vmul.f32 %v3712, %v3714
    %v3716 = vadd.f32 %v3712, %v3715
    %vm3717 = vweird.f32 %v3472
    %vm3718 = vweird.f32 %v3712
    %vm3719 = vmor %vm3717, %vm3718
    %v3720 = vsel %vm3719, %v3712, %v3716
    %v3721 = vand.u32 2147483647, %v3472
    %vm3722 = vcmp.eq.f32.partialorder %v3721, 8.507059e+37
    %v3723 = vand.u32 %v3472, 2147483648
    %v3724 = vor.u32 1.1754944e-38, %v3723
    %v3725 = vsel %vm3722, %v3724, %v3720
    %v3726 = vmul.f32 1.0, %v3725
    %v3727 = vrcp.pop %v3473
    %v3728 = vmul.f32 %v3473, %v3727
    %v3729 = vsub.f32 1.0, %v3728
    %v3730 = vmul.f32 %v3727, %v3729
    %v3731 = vadd.f32 %v3727, %v3730
    %vm3732 = vweird.f32 %v3473
    %vm3733 = vweird.f32 %v3727
    %vm3734 = vmor %vm3732, %vm3733
    %v3735 = vsel %vm3734, %v3727, %v3731
    %v3736 = vand.u32 2147483647, %v3473
    %vm3737 = vcmp.eq.f32.partialorder %v3736, 8.507059e+37
    %v3738 = vand.u32 %v3473, 2147483648
    %v3739 = vor.u32 1.1754944e-38, %v3738
    %v3740 = vsel %vm3737, %v3739, %v3735
    %v3741 = vmul.f32 1.0, %v3740
    %v3742 = vrcp.pop %v3474
    %v3743 = vmul.f32 %v3474, %v3742
    %v3744 = vsub.f32 1.0, %v3743
    %v3745 = vmul.f32 %v3742, %v3744
    %v3746 = vadd.f32 %v3742, %v3745
    %vm3747 = vweird.f32 %v3474
    %vm3748 = vweird.f32 %v3742
    %vm3749 = vmor %vm3747, %vm3748
    %v3750 = vsel %vm3749, %v3742, %v3746
    %v3751 = vand.u32 2147483647, %v3474
    %vm3752 = vcmp.eq.f32.partialorder %v3751, 8.507059e+37
    %v3753 = vand.u32 %v3474, 2147483648
    %v3754 = vor.u32 1.1754944e-38, %v3753
    %v3755 = vsel %vm3752, %v3754, %v3750
    %v3756 = vmul.f32 1.0, %v3755
    %v3757 = vrcp.pop %v3475
    %v3758 = vmul.f32 %v3475, %v3757
    %v3759 = vsub.f32 1.0, %v3758
    %v3760 = vmul.f32 %v3757, %v3759
    %v3761 = vadd.f32 %v3757, %v3760
    %vm3762 = vweird.f32 %v3475
    %vm3763 = vweird.f32 %v3757
    %vm3764 = vmor %vm3762, %vm3763
    %v3765 = vsel %vm3764, %v3757, %v3761
    %v3766 = vand.u32 2147483647, %v3475
    %vm3767 = vcmp.eq.f32.partialorder %v3766, 8.507059e+37
    %v3768 = vand.u32 %v3475, 2147483648
    %v3769 = vor.u32 1.1754944e-38, %v3768
    %v3770 = vsel %vm3767, %v3769, %v3765
    %v3771 = vmul.f32 1.0, %v3770
    %v3772 = vrcp.pop %v3476
    %v3773 = vmul.f32 %v3476, %v3772
    %v3774 = vsub.f32 1.0, %v3773
    %v3775 = vmul.f32 %v3772, %v3774
    %v3776 = vadd.f32 %v3772, %v3775
    %vm3777 = vweird.f32 %v3476
    %vm3778 = vweird.f32 %v3772
    %vm3779 = vmor %vm3777, %vm3778
    %v3780 = vsel %vm3779, %v3772, %v3776
    %v3781 = vand.u32 2147483647, %v3476
    %vm3782 = vcmp.eq.f32.partialorder %v3781, 8.507059e+37
    %v3783 = vand.u32 %v3476, 2147483648
    %v3784 = vor.u32 1.1754944e-38, %v3783
    %v3785 = vsel %vm3782, %v3784, %v3780
    %v3786 = vmul.f32 1.0, %v3785
    %v3787 = vrcp.pop %v3477
    %v3788 = vmul.f32 %v3477, %v3787
    %v3789 = vsub.f32 1.0, %v3788
    %v3790 = vmul.f32 %v3787, %v3789
    %v3791 = vadd.f32 %v3787, %v3790
    %vm3792 = vweird.f32 %v3477
    %vm3793 = vweird.f32 %v3787
    %vm3794 = vmor %vm3792, %vm3793
    %v3795 = vsel %vm3794, %v3787, %v3791
    %v3796 = vand.u32 2147483647, %v3477
    %vm3797 = vcmp.eq.f32.partialorder %v3796, 8.507059e+37
    %v3798 = vand.u32 %v3477, 2147483648
    %v3799 = vor.u32 1.1754944e-38, %v3798
    %v3800 = vsel %vm3797, %v3799, %v3795
    %v3801 = vmul.f32 1.0, %v3800
    %v3802 = vrcp.pop %v3478
    %v3803 = vmul.f32 %v3478, %v3802
    %v3804 = vsub.f32 1.0, %v3803
    %v3805 = vmul.f32 %v3802, %v3804
    %v3806 = vadd.f32 %v3802, %v3805
    %vm3807 = vweird.f32 %v3478
    %vm3808 = vweird.f32 %v3802
    %vm3809 = vmor %vm3807, %vm3808
    %v3810 = vsel %vm3809, %v3802, %v3806
    %v3811 = vand.u32 2147483647, %v3478
    %vm3812 = vcmp.eq.f32.partialorder %v3811, 8.507059e+37
    %v3813 = vand.u32 %v3478, 2147483648
    %v3814 = vor.u32 1.1754944e-38, %v3813
    %v3815 = vsel %vm3812, %v3814, %v3810
    %v3816 = vmul.f32 1.0, %v3815
    %v3817 = vrcp.pop %v3479
    %v3818 = vmul.f32 %v3479, %v3817
    %v3819 = vsub.f32 1.0, %v3818
    %v3820 = vmul.f32 %v3817, %v3819
    %v3821 = vadd.f32 %v3817, %v3820
    %vm3822 = vweird.f32 %v3479
    %vm3823 = vweird.f32 %v3817
    %vm3824 = vmor %vm3822, %vm3823
    %v3825 = vsel %vm3824, %v3817, %v3821
    %v3826 = vand.u32 2147483647, %v3479
    %vm3827 = vcmp.eq.f32.partialorder %v3826, 8.507059e+37
    %v3828 = vand.u32 %v3479, 2147483648
    %v3829 = vor.u32 1.1754944e-38, %v3828
    %v3830 = vsel %vm3827, %v3829, %v3825
    %v3831 = vmul.f32 1.0, %v3830
    %v3832 = vrcp.pop %v3480
    %v3833 = vmul.f32 %v3480, %v3832
    %v3834 = vsub.f32 1.0, %v3833
    %v3835 = vmul.f32 %v3832, %v3834
    %v3836 = vadd.f32 %v3832, %v3835
    %vm3837 = vweird.f32 %v3480
    %vm3838 = vweird.f32 %v3832
    %vm3839 = vmor %vm3837, %vm3838
    %v3840 = vsel %vm3839, %v3832, %v3836
    %v3841 = vand.u32 2147483647, %v3480
    %vm3842 = vcmp.eq.f32.partialorder %v3841, 8.507059e+37
    %v3843 = vand.u32 %v3480, 2147483648
    %v3844 = vor.u32 1.1754944e-38, %v3843
    %v3845 = vsel %vm3842, %v3844, %v3840
    %v3846 = vmul.f32 1.0, %v3845
    %v3847 = vrcp.pop %v3481
    %v3848 = vmul.f32 %v3481, %v3847
    %v3849 = vsub.f32 1.0, %v3848
    %v3850 = vmul.f32 %v3847, %v3849
    %v3851 = vadd.f32 %v3847, %v3850
    %vm3852 = vweird.f32 %v3481
    %vm3853 = vweird.f32 %v3847
    %vm3854 = vmor %vm3852, %vm3853
    %v3855 = vsel %vm3854, %v3847, %v3851
    %v3856 = vand.u32 2147483647, %v3481
    %vm3857 = vcmp.eq.f32.partialorder %v3856, 8.507059e+37
    %v3858 = vand.u32 %v3481, 2147483648
    %v3859 = vor.u32 1.1754944e-38, %v3858
    %v3860 = vsel %vm3857, %v3859, %v3855
    %v3861 = vmul.f32 1.0, %v3860
    %v3862 = vrcp.pop %v3482
    %v3863 = vmul.f32 %v3482, %v3862
    %v3864 = vsub.f32 1.0, %v3863
    %v3865 = vmul.f32 %v3862, %v3864
    %v3866 = vadd.f32 %v3862, %v3865
    %vm3867 = vweird.f32 %v3482
    %vm3868 = vweird.f32 %v3862
    %vm3869 = vmor %vm3867, %vm3868
    %v3870 = vsel %vm3869, %v3862, %v3866
    %v3871 = vand.u32 2147483647, %v3482
    %vm3872 = vcmp.eq.f32.partialorder %v3871, 8.507059e+37
    %v3873 = vand.u32 %v3482, 2147483648
    %v3874 = vor.u32 1.1754944e-38, %v3873
    %v3875 = vsel %vm3872, %v3874, %v3870
    %v3876 = vmul.f32 1.0, %v3875
    %v3877 = vrcp.pop %v3483
    %v3878 = vmul.f32 %v3483, %v3877
    %v3879 = vsub.f32 1.0, %v3878
    %v3880 = vmul.f32 %v3877, %v3879
    %v3881 = vadd.f32 %v3877, %v3880
    %vm3882 = vweird.f32 %v3483
    %vm3883 = vweird.f32 %v3877
    %vm3884 = vmor %vm3882, %vm3883
    %v3885 = vsel %vm3884, %v3877, %v3881
    %v3886 = vand.u32 2147483647, %v3483
    %vm3887 = vcmp.eq.f32.partialorder %v3886, 8.507059e+37
    %v3888 = vand.u32 %v3483, 2147483648
    %v3889 = vor.u32 1.1754944e-38, %v3888
    %v3890 = vsel %vm3887, %v3889, %v3885
    %v3891 = vmul.f32 1.0, %v3890
    %v3892 = vrcp.pop %v3484
    %v3893 = vmul.f32 %v3484, %v3892
    %v3894 = vsub.f32 1.0, %v3893
    %v3895 = vmul.f32 %v3892, %v3894
    %v3896 = vadd.f32 %v3892, %v3895
    %vm3897 = vweird.f32 %v3484
    %vm3898 = vweird.f32 %v3892
    %vm3899 = vmor %vm3897, %vm3898
    %v3900 = vsel %vm3899, %v3892, %v3896
    %v3901 = vand.u32 2147483647, %v3484
    %vm3902 = vcmp.eq.f32.partialorder %v3901, 8.507059e+37
    %v3903 = vand.u32 %v3484, 2147483648
    %v3904 = vor.u32 1.1754944e-38, %v3903
    %v3905 = vsel %vm3902, %v3904, %v3900
    %v3906 = vmul.f32 1.0, %v3905
    %v3907 = vrcp.pop %v3485
    %v3908 = vmul.f32 %v3485, %v3907
    %v3909 = vsub.f32 1.0, %v3908
    %v3910 = vmul.f32 %v3907, %v3909
    %v3911 = vadd.f32 %v3907, %v3910
    %vm3912 = vweird.f32 %v3485
    %vm3913 = vweird.f32 %v3907
    %vm3914 = vmor %vm3912, %vm3913
    %v3915 = vsel %vm3914, %v3907, %v3911
    %v3916 = vand.u32 2147483647, %v3485
    %vm3917 = vcmp.eq.f32.partialorder %v3916, 8.507059e+37
    %v3918 = vand.u32 %v3485, 2147483648
    %v3919 = vor.u32 1.1754944e-38, %v3918
    %v3920 = vsel %vm3917, %v3919, %v3915
    %v3921 = vmul.f32 1.0, %v3920
    %v3922 = vrcp.pop %v3486
    %v3923 = vmul.f32 %v3486, %v3922
    %v3924 = vsub.f32 1.0, %v3923
    %v3925 = vmul.f32 %v3922, %v3924
    %v3926 = vadd.f32 %v3922, %v3925
    %vm3927 = vweird.f32 %v3486
    %vm3928 = vweird.f32 %v3922
    %vm3929 = vmor %vm3927, %vm3928
    %v3930 = vsel %vm3929, %v3922, %v3926
    %v3931 = vand.u32 2147483647, %v3486
    %vm3932 = vcmp.eq.f32.partialorder %v3931, 8.507059e+37
    %v3933 = vand.u32 %v3486, 2147483648
    %v3934 = vor.u32 1.1754944e-38, %v3933
    %v3935 = vsel %vm3932, %v3934, %v3930
    %v3936 = vmul.f32 1.0, %v3935
    %v3937 = vrcp.pop %v3487
    %v3938 = vmul.f32 %v3487, %v3937
    %v3939 = vsub.f32 1.0, %v3938
    %v3940 = vmul.f32 %v3937, %v3939
    %v3941 = vadd.f32 %v3937, %v3940
    %vm3942 = vweird.f32 %v3487
    %vm3943 = vweird.f32 %v3937
    %vm3944 = vmor %vm3942, %vm3943
    %v3945 = vsel %vm3944, %v3937, %v3941
    %v3946 = vand.u32 2147483647, %v3487
    %vm3947 = vcmp.eq.f32.partialorder %v3946, 8.507059e+37
    %v3948 = vand.u32 %v3487, 2147483648
    %v3949 = vor.u32 1.1754944e-38, %v3948
    %v3950 = vsel %vm3947, %v3949, %v3945
    %v3951 = vmul.f32 1.0, %v3950
    %v3952 = vrcp.pop %v3488
    %v3953 = vmul.f32 %v3488, %v3952
    %v3954 = vsub.f32 1.0, %v3953
    %v3955 = vmul.f32 %v3952, %v3954
    %v3956 = vadd.f32 %v3952, %v3955
    %vm3957 = vweird.f32 %v3488
    %vm3958 = vweird.f32 %v3952
    %vm3959 = vmor %vm3957, %vm3958
    %v3960 = vsel %vm3959, %v3952, %v3956
    %v3961 = vand.u32 2147483647, %v3488
    %vm3962 = vcmp.eq.f32.partialorder %v3961, 8.507059e+37
    %v3963 = vand.u32 %v3488, 2147483648
    %v3964 = vor.u32 1.1754944e-38, %v3963
    %v3965 = vsel %vm3962, %v3964, %v3960
    %v3966 = vmul.f32 1.0, %v3965
    %v3967 = vrcp.pop %v3489
    %v3968 = vmul.f32 %v3489, %v3967
    %v3969 = vsub.f32 1.0, %v3968
    %v3970 = vmul.f32 %v3967, %v3969
    %v3971 = vadd.f32 %v3967, %v3970
    %vm3972 = vweird.f32 %v3489
    %vm3973 = vweird.f32 %v3967
    %vm3974 = vmor %vm3972, %vm3973
    %v3975 = vsel %vm3974, %v3967, %v3971
    %v3976 = vand.u32 2147483647, %v3489
    %vm3977 = vcmp.eq.f32.partialorder %v3976, 8.507059e+37
    %v3978 = vand.u32 %v3489, 2147483648
    %v3979 = vor.u32 1.1754944e-38, %v3978
    %v3980 = vsel %vm3977, %v3979, %v3975
    %v3981 = vmul.f32 1.0, %v3980
    %v3982 = vrcp.pop %v3490
    %v3983 = vmul.f32 %v3490, %v3982
    %v3984 = vsub.f32 1.0, %v3983
    %v3985 = vmul.f32 %v3982, %v3984
    %v3986 = vadd.f32 %v3982, %v3985
    %vm3987 = vweird.f32 %v3490
    %vm3988 = vweird.f32 %v3982
    %vm3989 = vmor %vm3987, %vm3988
    %v3990 = vsel %vm3989, %v3982, %v3986
    %v3991 = vand.u32 2147483647, %v3490
    %vm3992 = vcmp.eq.f32.partialorder %v3991, 8.507059e+37
    %v3993 = vand.u32 %v3490, 2147483648
    %v3994 = vor.u32 1.1754944e-38, %v3993
    %v3995 = vsel %vm3992, %v3994, %v3990
    %v3996 = vmul.f32 1.0, %v3995
    %v3997 = vrcp.pop %v3491
    %v3998 = vmul.f32 %v3491, %v3997
    %v3999 = vsub.f32 1.0, %v3998
    %v4000 = vmul.f32 %v3997, %v3999
    %v4001 = vadd.f32 %v3997, %v4000
    %vm4002 = vweird.f32 %v3491
    %vm4003 = vweird.f32 %v3997
    %vm4004 = vmor %vm4002, %vm4003
    %v4005 = vsel %vm4004, %v3997, %v4001
    %v4006 = vand.u32 2147483647, %v3491
    %vm4007 = vcmp.eq.f32.partialorder %v4006, 8.507059e+37
    %v4008 = vand.u32 %v3491, 2147483648
    %v4009 = vor.u32 1.1754944e-38, %v4008
    %v4010 = vsel %vm4007, %v4009, %v4005
    %v4011 = vmul.f32 1.0, %v4010
    %v4012 = vrcp.pop %v3492
    %v4013 = vmul.f32 %v3492, %v4012
    %v4014 = vsub.f32 1.0, %v4013
    %v4015 = vmul.f32 %v4012, %v4014
    %v4016 = vadd.f32 %v4012, %v4015
    %vm4017 = vweird.f32 %v3492
    %vm4018 = vweird.f32 %v4012
    %vm4019 = vmor %vm4017, %vm4018
    %v4020 = vsel %vm4019, %v4012, %v4016
    %v4021 = vand.u32 2147483647, %v3492
    %vm4022 = vcmp.eq.f32.partialorder %v4021, 8.507059e+37
    %v4023 = vand.u32 %v3492, 2147483648
    %v4024 = vor.u32 1.1754944e-38, %v4023
    %v4025 = vsel %vm4022, %v4024, %v4020
    %v4026 = vmul.f32 1.0, %v4025
    %v4027 = vrcp.pop %v3493
    %v4028 = vmul.f32 %v3493, %v4027
    %v4029 = vsub.f32 1.0, %v4028
    %v4030 = vmul.f32 %v4027, %v4029
    %v4031 = vadd.f32 %v4027, %v4030
    %vm4032 = vweird.f32 %v3493
    %vm4033 = vweird.f32 %v4027
    %vm4034 = vmor %vm4032, %vm4033
    %v4035 = vsel %vm4034, %v4027, %v4031
    %v4036 = vand.u32 2147483647, %v3493
    %vm4037 = vcmp.eq.f32.partialorder %v4036, 8.507059e+37
    %v4038 = vand.u32 %v3493, 2147483648
    %v4039 = vor.u32 1.1754944e-38, %v4038
    %v4040 = vsel %vm4037, %v4039, %v4035
    %v4041 = vmul.f32 1.0, %v4040
    %v4042 = vrcp.pop %v3494
    %v4043 = vmul.f32 %v3494, %v4042
    %v4044 = vsub.f32 1.0, %v4043
    %v4045 = vmul.f32 %v4042, %v4044
    %v4046 = vadd.f32 %v4042, %v4045
    %vm4047 = vweird.f32 %v3494
    %vm4048 = vweird.f32 %v4042
    %vm4049 = vmor %vm4047, %vm4048
    %v4050 = vsel %vm4049, %v4042, %v4046
    %v4051 = vand.u32 2147483647, %v3494
    %vm4052 = vcmp.eq.f32.partialorder %v4051, 8.507059e+37
    %v4053 = vand.u32 %v3494, 2147483648
    %v4054 = vor.u32 1.1754944e-38, %v4053
    %v4055 = vsel %vm4052, %v4054, %v4050
    %v4056 = vmul.f32 1.0, %v4055
    %v4057 = vrcp.pop %v3495
    %v4058 = vmul.f32 %v3495, %v4057
    %v4059 = vsub.f32 1.0, %v4058
    %v4060 = vmul.f32 %v4057, %v4059
    %v4061 = vadd.f32 %v4057, %v4060
    %vm4062 = vweird.f32 %v3495
    %vm4063 = vweird.f32 %v4057
    %vm4064 = vmor %vm4062, %vm4063
    %v4065 = vsel %vm4064, %v4057, %v4061
    %v4066 = vand.u32 2147483647, %v3495
    %vm4067 = vcmp.eq.f32.partialorder %v4066, 8.507059e+37
    %v4068 = vand.u32 %v3495, 2147483648
    %v4069 = vor.u32 1.1754944e-38, %v4068
    %v4070 = vsel %vm4067, %v4069, %v4065
    %v4071 = vmul.f32 1.0, %v4070
    %v4072 = vrcp.pop %v3496
    %v4073 = vmul.f32 %v3496, %v4072
    %v4074 = vsub.f32 1.0, %v4073
    %v4075 = vmul.f32 %v4072, %v4074
    %v4076 = vadd.f32 %v4072, %v4075
    %vm4077 = vweird.f32 %v3496
    %vm4078 = vweird.f32 %v4072
    %vm4079 = vmor %vm4077, %vm4078
    %v4080 = vsel %vm4079, %v4072, %v4076
    %v4081 = vand.u32 2147483647, %v3496
    %vm4082 = vcmp.eq.f32.partialorder %v4081, 8.507059e+37
    %v4083 = vand.u32 %v3496, 2147483648
    %v4084 = vor.u32 1.1754944e-38, %v4083
    %v4085 = vsel %vm4082, %v4084, %v4080
    %v4086 = vmul.f32 1.0, %v4085
    %v4087 = vrcp.pop %v3497
    %v4088 = vmul.f32 %v3497, %v4087
    %v4089 = vsub.f32 1.0, %v4088
    %v4090 = vmul.f32 %v4087, %v4089
    %v4091 = vadd.f32 %v4087, %v4090
    %vm4092 = vweird.f32 %v3497
    %vm4093 = vweird.f32 %v4087
    %vm4094 = vmor %vm4092, %vm4093
    %v4095 = vsel %vm4094, %v4087, %v4091
    %v4096 = vand.u32 2147483647, %v3497
    %vm4097 = vcmp.eq.f32.partialorder %v4096, 8.507059e+37
    %v4098 = vand.u32 %v3497, 2147483648
    %v4099 = vor.u32 1.1754944e-38, %v4098
    %v4100 = vsel %vm4097, %v4099, %v4095
    %v4101 = vmul.f32 1.0, %v4100
    %v4102 = vrcp.pop %v3498
    %v4103 = vmul.f32 %v3498, %v4102
    %v4104 = vsub.f32 1.0, %v4103
    %v4105 = vmul.f32 %v4102, %v4104
    %v4106 = vadd.f32 %v4102, %v4105
    %vm4107 = vweird.f32 %v3498
    %vm4108 = vweird.f32 %v4102
    %vm4109 = vmor %vm4107, %vm4108
    %v4110 = vsel %vm4109, %v4102, %v4106
    %v4111 = vand.u32 2147483647, %v3498
    %vm4112 = vcmp.eq.f32.partialorder %v4111, 8.507059e+37
    %v4113 = vand.u32 %v3498, 2147483648
    %v4114 = vor.u32 1.1754944e-38, %v4113
    %v4115 = vsel %vm4112, %v4114, %v4110
    %v4116 = vmul.f32 1.0, %v4115
    %v4117 = vrcp.pop %v3499
    %v4118 = vmul.f32 %v3499, %v4117
    %v4119 = vsub.f32 1.0, %v4118
    %v4120 = vmul.f32 %v4117, %v4119
    %v4121 = vadd.f32 %v4117, %v4120
    %vm4122 = vweird.f32 %v3499
    %vm4123 = vweird.f32 %v4117
    %vm4124 = vmor %vm4122, %vm4123
    %v4125 = vsel %vm4124, %v4117, %v4121
    %v4126 = vand.u32 2147483647, %v3499
    %vm4127 = vcmp.eq.f32.partialorder %v4126, 8.507059e+37
    %v4128 = vand.u32 %v3499, 2147483648
    %v4129 = vor.u32 1.1754944e-38, %v4128
    %v4130 = vsel %vm4127, %v4129, %v4125
    %v4131 = vmul.f32 1.0, %v4130
    %v4132 = vrcp.pop %v3500
    %v4133 = vmul.f32 %v3500, %v4132
    %v4134 = vsub.f32 1.0, %v4133
    %v4135 = vmul.f32 %v4132, %v4134
    %v4136 = vadd.f32 %v4132, %v4135
    %vm4137 = vweird.f32 %v3500
    %vm4138 = vweird.f32 %v4132
    %vm4139 = vmor %vm4137, %vm4138
    %v4140 = vsel %vm4139, %v4132, %v4136
    %v4141 = vand.u32 2147483647, %v3500
    %vm4142 = vcmp.eq.f32.partialorder %v4141, 8.507059e+37
    %v4143 = vand.u32 %v3500, 2147483648
    %v4144 = vor.u32 1.1754944e-38, %v4143
    %v4145 = vsel %vm4142, %v4144, %v4140
    %v4146 = vmul.f32 1.0, %v4145
    %v4147 = vrcp.pop %v3501
    %v4148 = vmul.f32 %v3501, %v4147
    %v4149 = vsub.f32 1.0, %v4148
    %v4150 = vmul.f32 %v4147, %v4149
    %v4151 = vadd.f32 %v4147, %v4150
    %vm4152 = vweird.f32 %v3501
    %vm4153 = vweird.f32 %v4147
    %vm4154 = vmor %vm4152, %vm4153
    %v4155 = vsel %vm4154, %v4147, %v4151
    %v4156 = vand.u32 2147483647, %v3501
    %vm4157 = vcmp.eq.f32.partialorder %v4156, 8.507059e+37
    %v4158 = vand.u32 %v3501, 2147483648
    %v4159 = vor.u32 1.1754944e-38, %v4158
    %v4160 = vsel %vm4157, %v4159, %v4155
    %v4161 = vmul.f32 1.0, %v4160
    %v4162 = vrcp.pop %v3502
    %v4163 = vmul.f32 %v3502, %v4162
    %v4164 = vsub.f32 1.0, %v4163
    %v4165 = vmul.f32 %v4162, %v4164
    %v4166 = vadd.f32 %v4162, %v4165
    %vm4167 = vweird.f32 %v3502
    %vm4168 = vweird.f32 %v4162
    %vm4169 = vmor %vm4167, %vm4168
    %v4170 = vsel %vm4169, %v4162, %v4166
    %v4171 = vand.u32 2147483647, %v3502
    %vm4172 = vcmp.eq.f32.partialorder %v4171, 8.507059e+37
    %v4173 = vand.u32 %v3502, 2147483648
    %v4174 = vor.u32 1.1754944e-38, %v4173
    %v4175 = vsel %vm4172, %v4174, %v4170
    %v4176 = vmul.f32 1.0, %v4175
    %v4177 = vrcp.pop %v3503
    %v4178 = vmul.f32 %v3503, %v4177
    %v4179 = vsub.f32 1.0, %v4178
    %v4180 = vmul.f32 %v4177, %v4179
    %v4181 = vadd.f32 %v4177, %v4180
    %vm4182 = vweird.f32 %v3503
    %vm4183 = vweird.f32 %v4177
    %vm4184 = vmor %vm4182, %vm4183
    %v4185 = vsel %vm4184, %v4177, %v4181
    %v4186 = vand.u32 2147483647, %v3503
    %vm4187 = vcmp.eq.f32.partialorder %v4186, 8.507059e+37
    %v4188 = vand.u32 %v3503, 2147483648
    %v4189 = vor.u32 1.1754944e-38, %v4188
    %v4190 = vsel %vm4187, %v4189, %v4185
    %v4191 = vmul.f32 1.0, %v4190
    %v4192 = vrcp.pop %v3504
    %v4193 = vmul.f32 %v3504, %v4192
    %v4194 = vsub.f32 1.0, %v4193
    %v4195 = vmul.f32 %v4192, %v4194
    %v4196 = vadd.f32 %v4192, %v4195
    %vm4197 = vweird.f32 %v3504
    %vm4198 = vweird.f32 %v4192
    %vm4199 = vmor %vm4197, %vm4198
    %v4200 = vsel %vm4199, %v4192, %v4196
    %v4201 = vand.u32 2147483647, %v3504
    %vm4202 = vcmp.eq.f32.partialorder %v4201, 8.507059e+37
    %v4203 = vand.u32 %v3504, 2147483648
    %v4204 = vor.u32 1.1754944e-38, %v4203
    %v4205 = vsel %vm4202, %v4204, %v4200
    %v4206 = vmul.f32 1.0, %v4205
    %v4207 = vrcp.pop %v3505
    %v4208 = vmul.f32 %v3505, %v4207
    %v4209 = vsub.f32 1.0, %v4208
    %v4210 = vmul.f32 %v4207, %v4209
    %v4211 = vadd.f32 %v4207, %v4210
    %vm4212 = vweird.f32 %v3505
    %vm4213 = vweird.f32 %v4207
    %vm4214 = vmor %vm4212, %vm4213
    %v4215 = vsel %vm4214, %v4207, %v4211
    %v4216 = vand.u32 2147483647, %v3505
    %vm4217 = vcmp.eq.f32.partialorder %v4216, 8.507059e+37
    %v4218 = vand.u32 %v3505, 2147483648
    %v4219 = vor.u32 1.1754944e-38, %v4218
    %v4220 = vsel %vm4217, %v4219, %v4215
    %v4221 = vmul.f32 1.0, %v4220
    %v4222 = vrcp.pop %v3506
    %v4223 = vmul.f32 %v3506, %v4222
    %v4224 = vsub.f32 1.0, %v4223
    %v4225 = vmul.f32 %v4222, %v4224
    %v4226 = vadd.f32 %v4222, %v4225
    %vm4227 = vweird.f32 %v3506
    %vm4228 = vweird.f32 %v4222
    %vm4229 = vmor %vm4227, %vm4228
    %v4230 = vsel %vm4229, %v4222, %v4226
    %v4231 = vand.u32 2147483647, %v3506
    %vm4232 = vcmp.eq.f32.partialorder %v4231, 8.507059e+37
    %v4233 = vand.u32 %v3506, 2147483648
    %v4234 = vor.u32 1.1754944e-38, %v4233
    %v4235 = vsel %vm4232, %v4234, %v4230
    %v4236 = vmul.f32 1.0, %v4235
    %v4237 = vrcp.pop %v3507
    %v4238 = vmul.f32 %v3507, %v4237
    %v4239 = vsub.f32 1.0, %v4238
    %v4240 = vmul.f32 %v4237, %v4239
    %v4241 = vadd.f32 %v4237, %v4240
    %vm4242 = vweird.f32 %v3507
    %vm4243 = vweird.f32 %v4237
    %vm4244 = vmor %vm4242, %vm4243
    %v4245 = vsel %vm4244, %v4237, %v4241
    %v4246 = vand.u32 2147483647, %v3507
    %vm4247 = vcmp.eq.f32.partialorder %v4246, 8.507059e+37
    %v4248 = vand.u32 %v3507, 2147483648
    %v4249 = vor.u32 1.1754944e-38, %v4248
    %v4250 = vsel %vm4247, %v4249, %v4245
    %v4251 = vmul.f32 1.0, %v4250
    %v4252 = vrcp.pop %v3508
    %v4253 = vmul.f32 %v3508, %v4252
    %v4254 = vsub.f32 1.0, %v4253
    %v4255 = vmul.f32 %v4252, %v4254
    %v4256 = vadd.f32 %v4252, %v4255
    %vm4257 = vweird.f32 %v3508
    %vm4258 = vweird.f32 %v4252
    %vm4259 = vmor %vm4257, %vm4258
    %v4260 = vsel %vm4259, %v4252, %v4256
    %v4261 = vand.u32 2147483647, %v3508
    %vm4262 = vcmp.eq.f32.partialorder %v4261, 8.507059e+37
    %v4263 = vand.u32 %v3508, 2147483648
    %v4264 = vor.u32 1.1754944e-38, %v4263
    %v4265 = vsel %vm4262, %v4264, %v4260
    %v4266 = vmul.f32 1.0, %v4265
    %v4267 = vrcp.pop %v3509
    %v4268 = vmul.f32 %v3509, %v4267
    %v4269 = vsub.f32 1.0, %v4268
    %v4270 = vmul.f32 %v4267, %v4269
    %v4271 = vadd.f32 %v4267, %v4270
    %vm4272 = vweird.f32 %v3509
    %vm4273 = vweird.f32 %v4267
    %vm4274 = vmor %vm4272, %vm4273
    %v4275 = vsel %vm4274, %v4267, %v4271
    %v4276 = vand.u32 2147483647, %v3509
    %vm4277 = vcmp.eq.f32.partialorder %v4276, 8.507059e+37
    %v4278 = vand.u32 %v3509, 2147483648
    %v4279 = vor.u32 1.1754944e-38, %v4278
    %v4280 = vsel %vm4277, %v4279, %v4275
    %v4281 = vmul.f32 1.0, %v4280
    %v4282 = vrcp.pop %v3510
    %v4283 = vmul.f32 %v3510, %v4282
    %v4284 = vsub.f32 1.0, %v4283
    %v4285 = vmul.f32 %v4282, %v4284
    %v4286 = vadd.f32 %v4282, %v4285
    %vm4287 = vweird.f32 %v3510
    %vm4288 = vweird.f32 %v4282
    %vm4289 = vmor %vm4287, %vm4288
    %v4290 = vsel %vm4289, %v4282, %v4286
    %v4291 = vand.u32 2147483647, %v3510
    %vm4292 = vcmp.eq.f32.partialorder %v4291, 8.507059e+37
    %v4293 = vand.u32 %v3510, 2147483648
    %v4294 = vor.u32 1.1754944e-38, %v4293
    %v4295 = vsel %vm4292, %v4294, %v4290
    %v4296 = vmul.f32 1.0, %v4295
    %v4297 = vrcp.pop %v3511
    %v4298 = vmul.f32 %v3511, %v4297
    %v4299 = vsub.f32 1.0, %v4298
    %v4300 = vmul.f32 %v4297, %v4299
    %v4301 = vadd.f32 %v4297, %v4300
    %vm4302 = vweird.f32 %v3511
    %vm4303 = vweird.f32 %v4297
    %vm4304 = vmor %vm4302, %vm4303
    %v4305 = vsel %vm4304, %v4297, %v4301
    %v4306 = vand.u32 2147483647, %v3511
    %vm4307 = vcmp.eq.f32.partialorder %v4306, 8.507059e+37
    %v4308 = vand.u32 %v3511, 2147483648
    %v4309 = vor.u32 1.1754944e-38, %v4308
    %v4310 = vsel %vm4307, %v4309, %v4305
    %v4311 = vmul.f32 1.0, %v4310
    %v4312 = vrcp.pop %v3512
    %v4313 = vmul.f32 %v3512, %v4312
    %v4314 = vsub.f32 1.0, %v4313
    %v4315 = vmul.f32 %v4312, %v4314
    %v4316 = vadd.f32 %v4312, %v4315
    %vm4317 = vweird.f32 %v3512
    %vm4318 = vweird.f32 %v4312
    %vm4319 = vmor %vm4317, %vm4318
    %v4320 = vsel %vm4319, %v4312, %v4316
    %v4321 = vand.u32 2147483647, %v3512
    %vm4322 = vcmp.eq.f32.partialorder %v4321, 8.507059e+37
    %v4323 = vand.u32 %v3512, 2147483648
    %v4324 = vor.u32 1.1754944e-38, %v4323
    %v4325 = vsel %vm4322, %v4324, %v4320
    %v4326 = vmul.f32 1.0, %v4325
    %v4327 = vrcp.pop %v3513
    %v4328 = vmul.f32 %v3513, %v4327
    %v4329 = vsub.f32 1.0, %v4328
    %v4330 = vmul.f32 %v4327, %v4329
    %v4331 = vadd.f32 %v4327, %v4330
    %vm4332 = vweird.f32 %v3513
    %vm4333 = vweird.f32 %v4327
    %vm4334 = vmor %vm4332, %vm4333
    %v4335 = vsel %vm4334, %v4327, %v4331
    %v4336 = vand.u32 2147483647, %v3513
    %vm4337 = vcmp.eq.f32.partialorder %v4336, 8.507059e+37
    %v4338 = vand.u32 %v3513, 2147483648
    %v4339 = vor.u32 1.1754944e-38, %v4338
    %v4340 = vsel %vm4337, %v4339, %v4335
    %v4341 = vmul.f32 1.0, %v4340
    %v4342 = vrcp.pop %v3514
    %v4343 = vmul.f32 %v3514, %v4342
    %v4344 = vsub.f32 1.0, %v4343
    %v4345 = vmul.f32 %v4342, %v4344
    %v4346 = vadd.f32 %v4342, %v4345
    %vm4347 = vweird.f32 %v3514
    %vm4348 = vweird.f32 %v4342
    %vm4349 = vmor %vm4347, %vm4348
    %v4350 = vsel %vm4349, %v4342, %v4346
    %v4351 = vand.u32 2147483647, %v3514
    %vm4352 = vcmp.eq.f32.partialorder %v4351, 8.507059e+37
    %v4353 = vand.u32 %v3514, 2147483648
    %v4354 = vor.u32 1.1754944e-38, %v4353
    %v4355 = vsel %vm4352, %v4354, %v4350
    %v4356 = vmul.f32 1.0, %v4355
    %v4357 = vrcp.pop %v3515
    %v4358 = vmul.f32 %v3515, %v4357
    %v4359 = vsub.f32 1.0, %v4358
    %v4360 = vmul.f32 %v4357, %v4359
    %v4361 = vadd.f32 %v4357, %v4360
    %vm4362 = vweird.f32 %v3515
    %vm4363 = vweird.f32 %v4357
    %vm4364 = vmor %vm4362, %vm4363
    %v4365 = vsel %vm4364, %v4357, %v4361
    %v4366 = vand.u32 2147483647, %v3515
    %vm4367 = vcmp.eq.f32.partialorder %v4366, 8.507059e+37
    %v4368 = vand.u32 %v3515, 2147483648
    %v4369 = vor.u32 1.1754944e-38, %v4368
    %v4370 = vsel %vm4367, %v4369, %v4365
    %v4371 = vmul.f32 1.0, %v4370
    %v4372 = vrcp.pop %v3516
    %v4373 = vmul.f32 %v3516, %v4372
    %v4374 = vsub.f32 1.0, %v4373
    %v4375 = vmul.f32 %v4372, %v4374
    %v4376 = vadd.f32 %v4372, %v4375
    %vm4377 = vweird.f32 %v3516
    %vm4378 = vweird.f32 %v4372
    %vm4379 = vmor %vm4377, %vm4378
    %v4380 = vsel %vm4379, %v4372, %v4376
    %v4381 = vand.u32 2147483647, %v3516
    %vm4382 = vcmp.eq.f32.partialorder %v4381, 8.507059e+37
    %v4383 = vand.u32 %v3516, 2147483648
    %v4384 = vor.u32 1.1754944e-38, %v4383
    %v4385 = vsel %vm4382, %v4384, %v4380
    %v4386 = vmul.f32 1.0, %v4385
    %v4387 = vrcp.pop %v3517
    %v4388 = vmul.f32 %v3517, %v4387
    %v4389 = vsub.f32 1.0, %v4388
    %v4390 = vmul.f32 %v4387, %v4389
    %v4391 = vadd.f32 %v4387, %v4390
    %vm4392 = vweird.f32 %v3517
    %vm4393 = vweird.f32 %v4387
    %vm4394 = vmor %vm4392, %vm4393
    %v4395 = vsel %vm4394, %v4387, %v4391
    %v4396 = vand.u32 2147483647, %v3517
    %vm4397 = vcmp.eq.f32.partialorder %v4396, 8.507059e+37
    %v4398 = vand.u32 %v3517, 2147483648
    %v4399 = vor.u32 1.1754944e-38, %v4398
    %v4400 = vsel %vm4397, %v4399, %v4395
    %v4401 = vmul.f32 1.0, %v4400
    %v4402 = vrcp.pop %v3518
    %v4403 = vmul.f32 %v3518, %v4402
    %v4404 = vsub.f32 1.0, %v4403
    %v4405 = vmul.f32 %v4402, %v4404
    %v4406 = vadd.f32 %v4402, %v4405
    %vm4407 = vweird.f32 %v3518
    %vm4408 = vweird.f32 %v4402
    %vm4409 = vmor %vm4407, %vm4408
    %v4410 = vsel %vm4409, %v4402, %v4406
    %v4411 = vand.u32 2147483647, %v3518
    %vm4412 = vcmp.eq.f32.partialorder %v4411, 8.507059e+37
    %v4413 = vand.u32 %v3518, 2147483648
    %v4414 = vor.u32 1.1754944e-38, %v4413
    %v4415 = vsel %vm4412, %v4414, %v4410
    %v4416 = vmul.f32 1.0, %v4415
    %v4417 = vrcp.pop %v3519
    %v4418 = vmul.f32 %v3519, %v4417
    %v4419 = vsub.f32 1.0, %v4418
    %v4420 = vmul.f32 %v4417, %v4419
    %v4421 = vadd.f32 %v4417, %v4420
    %vm4422 = vweird.f32 %v3519
    %vm4423 = vweird.f32 %v4417
    %vm4424 = vmor %vm4422, %vm4423
    %v4425 = vsel %vm4424, %v4417, %v4421
    %v4426 = vand.u32 2147483647, %v3519
    %vm4427 = vcmp.eq.f32.partialorder %v4426, 8.507059e+37
    %v4428 = vand.u32 %v3519, 2147483648
    %v4429 = vor.u32 1.1754944e-38, %v4428
    %v4430 = vsel %vm4427, %v4429, %v4425
    %v4431 = vmul.f32 1.0, %v4430
    %v4432 = vrcp.pop %v3520
    %v4433 = vmul.f32 %v3520, %v4432
    %v4434 = vsub.f32 1.0, %v4433
    %v4435 = vmul.f32 %v4432, %v4434
    %v4436 = vadd.f32 %v4432, %v4435
    %vm4437 = vweird.f32 %v3520
    %vm4438 = vweird.f32 %v4432
    %vm4439 = vmor %vm4437, %vm4438
    %v4440 = vsel %vm4439, %v4432, %v4436
    %v4441 = vand.u32 2147483647, %v3520
    %vm4442 = vcmp.eq.f32.partialorder %v4441, 8.507059e+37
    %v4443 = vand.u32 %v3520, 2147483648
    %v4444 = vor.u32 1.1754944e-38, %v4443
    %v4445 = vsel %vm4442, %v4444, %v4440
    %v4446 = vmul.f32 1.0, %v4445
    %v4447 = vrcp.pop %v3521
    %v4448 = vmul.f32 %v3521, %v4447
    %v4449 = vsub.f32 1.0, %v4448
    %v4450 = vmul.f32 %v4447, %v4449
    %v4451 = vadd.f32 %v4447, %v4450
    %vm4452 = vweird.f32 %v3521
    %vm4453 = vweird.f32 %v4447
    %vm4454 = vmor %vm4452, %vm4453
    %v4455 = vsel %vm4454, %v4447, %v4451
    %v4456 = vand.u32 2147483647, %v3521
    %vm4457 = vcmp.eq.f32.partialorder %v4456, 8.507059e+37
    %v4458 = vand.u32 %v3521, 2147483648
    %v4459 = vor.u32 1.1754944e-38, %v4458
    %v4460 = vsel %vm4457, %v4459, %v4455
    %v4461 = vmul.f32 1.0, %v4460
    %v4462 = vrcp.pop %v3522
    %v4463 = vmul.f32 %v3522, %v4462
    %v4464 = vsub.f32 1.0, %v4463
    %v4465 = vmul.f32 %v4462, %v4464
    %v4466 = vadd.f32 %v4462, %v4465
    %vm4467 = vweird.f32 %v3522
    %vm4468 = vweird.f32 %v4462
    %vm4469 = vmor %vm4467, %vm4468
    %v4470 = vsel %vm4469, %v4462, %v4466
    %v4471 = vand.u32 2147483647, %v3522
    %vm4472 = vcmp.eq.f32.partialorder %v4471, 8.507059e+37
    %v4473 = vand.u32 %v3522, 2147483648
    %v4474 = vor.u32 1.1754944e-38, %v4473
    %v4475 = vsel %vm4472, %v4474, %v4470
    %v4476 = vmul.f32 1.0, %v4475
    %v4477 = vrcp.pop %v3523
    %v4478 = vmul.f32 %v3523, %v4477
    %v4479 = vsub.f32 1.0, %v4478
    %v4480 = vmul.f32 %v4477, %v4479
    %v4481 = vadd.f32 %v4477, %v4480
    %vm4482 = vweird.f32 %v3523
    %vm4483 = vweird.f32 %v4477
    %vm4484 = vmor %vm4482, %vm4483
    %v4485 = vsel %vm4484, %v4477, %v4481
    %v4486 = vand.u32 2147483647, %v3523
    %vm4487 = vcmp.eq.f32.partialorder %v4486, 8.507059e+37
    %v4488 = vand.u32 %v3523, 2147483648
    %v4489 = vor.u32 1.1754944e-38, %v4488
    %v4490 = vsel %vm4487, %v4489, %v4485
    %v4491 = vmul.f32 1.0, %v4490
    %v4492 = vrcp.pop %v3524
    %v4493 = vmul.f32 %v3524, %v4492
    %v4494 = vsub.f32 1.0, %v4493
    %v4495 = vmul.f32 %v4492, %v4494
    %v4496 = vadd.f32 %v4492, %v4495
    %vm4497 = vweird.f32 %v3524
    %vm4498 = vweird.f32 %v4492
    %vm4499 = vmor %vm4497, %vm4498
    %v4500 = vsel %vm4499, %v4492, %v4496
    %v4501 = vand.u32 2147483647, %v3524
    %vm4502 = vcmp.eq.f32.partialorder %v4501, 8.507059e+37
    %v4503 = vand.u32 %v3524, 2147483648
    %v4504 = vor.u32 1.1754944e-38, %v4503
    %v4505 = vsel %vm4502, %v4504, %v4500
    %v4506 = vmul.f32 1.0, %v4505
    %v4507 = vrcp.pop %v3525
    %v4508 = vmul.f32 %v3525, %v4507
    %v4509 = vsub.f32 1.0, %v4508
    %v4510 = vmul.f32 %v4507, %v4509
    %v4511 = vadd.f32 %v4507, %v4510
    %vm4512 = vweird.f32 %v3525
    %vm4513 = vweird.f32 %v4507
    %vm4514 = vmor %vm4512, %vm4513
    %v4515 = vsel %vm4514, %v4507, %v4511
    %v4516 = vand.u32 2147483647, %v3525
    %vm4517 = vcmp.eq.f32.partialorder %v4516, 8.507059e+37
    %v4518 = vand.u32 %v3525, 2147483648
    %v4519 = vor.u32 1.1754944e-38, %v4518
    %v4520 = vsel %vm4517, %v4519, %v4515
    %v4521 = vmul.f32 1.0, %v4520
    %v4522 = vrcp.pop %v3526
    %v4523 = vmul.f32 %v3526, %v4522
    %v4524 = vsub.f32 1.0, %v4523
    %v4525 = vmul.f32 %v4522, %v4524
    %v4526 = vadd.f32 %v4522, %v4525
    %vm4527 = vweird.f32 %v3526
    %vm4528 = vweird.f32 %v4522
    %vm4529 = vmor %vm4527, %vm4528
    %v4530 = vsel %vm4529, %v4522, %v4526
    %v4531 = vand.u32 2147483647, %v3526
    %vm4532 = vcmp.eq.f32.partialorder %v4531, 8.507059e+37
    %v4533 = vand.u32 %v3526, 2147483648
    %v4534 = vor.u32 1.1754944e-38, %v4533
    %v4535 = vsel %vm4532, %v4534, %v4530
    %v4536 = vmul.f32 1.0, %v4535
    %v4537 = vrcp.pop %v3527
    %v4538 = vmul.f32 %v3527, %v4537
    %v4539 = vsub.f32 1.0, %v4538
    %v4540 = vmul.f32 %v4537, %v4539
    %v4541 = vadd.f32 %v4537, %v4540
    %vm4542 = vweird.f32 %v3527
    %vm4543 = vweird.f32 %v4537
    %vm4544 = vmor %vm4542, %vm4543
    %v4545 = vsel %vm4544, %v4537, %v4541
    %v4546 = vand.u32 2147483647, %v3527
    %vm4547 = vcmp.eq.f32.partialorder %v4546, 8.507059e+37
    %v4548 = vand.u32 %v3527, 2147483648
    %v4549 = vor.u32 1.1754944e-38, %v4548
    %v4550 = vsel %vm4547, %v4549, %v4545
    %v4551 = vmul.f32 1.0, %v4550
    %v4552 = vrcp.pop %v3528
    %v4553 = vmul.f32 %v3528, %v4552
    %v4554 = vsub.f32 1.0, %v4553
    %v4555 = vmul.f32 %v4552, %v4554
    %v4556 = vadd.f32 %v4552, %v4555
    %vm4557 = vweird.f32 %v3528
    %vm4558 = vweird.f32 %v4552
    %vm4559 = vmor %vm4557, %vm4558
    %v4560 = vsel %vm4559, %v4552, %v4556
    %v4561 = vand.u32 2147483647, %v3528
    %vm4562 = vcmp.eq.f32.partialorder %v4561, 8.507059e+37
    %v4563 = vand.u32 %v3528, 2147483648
    %v4564 = vor.u32 1.1754944e-38, %v4563
    %v4565 = vsel %vm4562, %v4564, %v4560
    %v4566 = vmul.f32 1.0, %v4565
    %v4567 = vrcp.pop %v3529
    %v4568 = vmul.f32 %v3529, %v4567
    %v4569 = vsub.f32 1.0, %v4568
    %v4570 = vmul.f32 %v4567, %v4569
    %v4571 = vadd.f32 %v4567, %v4570
    %vm4572 = vweird.f32 %v3529
    %vm4573 = vweird.f32 %v4567
    %vm4574 = vmor %vm4572, %vm4573
    %v4575 = vsel %vm4574, %v4567, %v4571
    %v4576 = vand.u32 2147483647, %v3529
    %vm4577 = vcmp.eq.f32.partialorder %v4576, 8.507059e+37
    %v4578 = vand.u32 %v3529, 2147483648
    %v4579 = vor.u32 1.1754944e-38, %v4578
    %v4580 = vsel %vm4577, %v4579, %v4575
    %v4581 = vmul.f32 1.0, %v4580
    %v4582 = vrcp.pop %v3530
    %v4583 = vmul.f32 %v3530, %v4582
    %v4584 = vsub.f32 1.0, %v4583
    %v4585 = vmul.f32 %v4582, %v4584
    %v4586 = vadd.f32 %v4582, %v4585
    %vm4587 = vweird.f32 %v3530
    %vm4588 = vweird.f32 %v4582
    %vm4589 = vmor %vm4587, %vm4588
    %v4590 = vsel %vm4589, %v4582, %v4586
    %v4591 = vand.u32 2147483647, %v3530
    %vm4592 = vcmp.eq.f32.partialorder %v4591, 8.507059e+37
    %v4593 = vand.u32 %v3530, 2147483648
    %v4594 = vor.u32 1.1754944e-38, %v4593
    %v4595 = vsel %vm4592, %v4594, %v4590
    %v4596 = vmul.f32 1.0, %v4595
    %v4597 = vrcp.pop %v3531
    %v4598 = vmul.f32 %v3531, %v4597
    %v4599 = vsub.f32 1.0, %v4598
    %v4600 = vmul.f32 %v4597, %v4599
    %v4601 = vadd.f32 %v4597, %v4600
    %vm4602 = vweird.f32 %v3531
    %vm4603 = vweird.f32 %v4597
    %vm4604 = vmor %vm4602, %vm4603
    %v4605 = vsel %vm4604, %v4597, %v4601
    %v4606 = vand.u32 2147483647, %v3531
    %vm4607 = vcmp.eq.f32.partialorder %v4606, 8.507059e+37
    %v4608 = vand.u32 %v3531, 2147483648
    %v4609 = vor.u32 1.1754944e-38, %v4608
    %v4610 = vsel %vm4607, %v4609, %v4605
    %v4611 = vmul.f32 1.0, %v4610
    %v4612 = vrcp.pop %v3532
    %v4613 = vmul.f32 %v3532, %v4612
    %v4614 = vsub.f32 1.0, %v4613
    %v4615 = vmul.f32 %v4612, %v4614
    %v4616 = vadd.f32 %v4612, %v4615
    %vm4617 = vweird.f32 %v3532
    %vm4618 = vweird.f32 %v4612
    %vm4619 = vmor %vm4617, %vm4618
    %v4620 = vsel %vm4619, %v4612, %v4616
    %v4621 = vand.u32 2147483647, %v3532
    %vm4622 = vcmp.eq.f32.partialorder %v4621, 8.507059e+37
    %v4623 = vand.u32 %v3532, 2147483648
    %v4624 = vor.u32 1.1754944e-38, %v4623
    %v4625 = vsel %vm4622, %v4624, %v4620
    %v4626 = vmul.f32 1.0, %v4625
    %v4627 = vrcp.pop %v3533
    %v4628 = vmul.f32 %v3533, %v4627
    %v4629 = vsub.f32 1.0, %v4628
    %v4630 = vmul.f32 %v4627, %v4629
    %v4631 = vadd.f32 %v4627, %v4630
    %vm4632 = vweird.f32 %v3533
    %vm4633 = vweird.f32 %v4627
    %vm4634 = vmor %vm4632, %vm4633
    %v4635 = vsel %vm4634, %v4627, %v4631
    %v4636 = vand.u32 2147483647, %v3533
    %vm4637 = vcmp.eq.f32.partialorder %v4636, 8.507059e+37
    %v4638 = vand.u32 %v3533, 2147483648
    %v4639 = vor.u32 1.1754944e-38, %v4638
    %v4640 = vsel %vm4637, %v4639, %v4635
    %v4641 = vmul.f32 1.0, %v4640
    %v4642 = vrcp.pop %v3534
    %v4643 = vmul.f32 %v3534, %v4642
    %v4644 = vsub.f32 1.0, %v4643
    %v4645 = vmul.f32 %v4642, %v4644
    %v4646 = vadd.f32 %v4642, %v4645
    %vm4647 = vweird.f32 %v3534
    %vm4648 = vweird.f32 %v4642
    %vm4649 = vmor %vm4647, %vm4648
    %v4650 = vsel %vm4649, %v4642, %v4646
    %v4651 = vand.u32 2147483647, %v3534
    %vm4652 = vcmp.eq.f32.partialorder %v4651, 8.507059e+37
    %v4653 = vand.u32 %v3534, 2147483648
    %v4654 = vor.u32 1.1754944e-38, %v4653
    %v4655 = vsel %vm4652, %v4654, %v4650
    %v4656 = vmul.f32 1.0, %v4655
    %v4657 = vrcp.pop %v3535
    %v4658 = vmul.f32 %v3535, %v4657
    %v4659 = vsub.f32 1.0, %v4658
    %v4660 = vmul.f32 %v4657, %v4659
    %v4661 = vadd.f32 %v4657, %v4660
    %vm4662 = vweird.f32 %v3535
    %vm4663 = vweird.f32 %v4657
    %vm4664 = vmor %vm4662, %vm4663
    %v4665 = vsel %vm4664, %v4657, %v4661
    %v4666 = vand.u32 2147483647, %v3535
    %vm4667 = vcmp.eq.f32.partialorder %v4666, 8.507059e+37
    %v4668 = vand.u32 %v3535, 2147483648
    %v4669 = vor.u32 1.1754944e-38, %v4668
    %v4670 = vsel %vm4667, %v4669, %v4665
    %v4671 = vmul.f32 1.0, %v4670
    %v4672 = vrcp.pop %v3536
    %v4673 = vmul.f32 %v3536, %v4672
    %v4674 = vsub.f32 1.0, %v4673
    %v4675 = vmul.f32 %v4672, %v4674
    %v4676 = vadd.f32 %v4672, %v4675
    %vm4677 = vweird.f32 %v3536
    %vm4678 = vweird.f32 %v4672
    %vm4679 = vmor %vm4677, %vm4678
    %v4680 = vsel %vm4679, %v4672, %v4676
    %v4681 = vand.u32 2147483647, %v3536
    %vm4682 = vcmp.eq.f32.partialorder %v4681, 8.507059e+37
    %v4683 = vand.u32 %v3536, 2147483648
    %v4684 = vor.u32 1.1754944e-38, %v4683
    %v4685 = vsel %vm4682, %v4684, %v4680
    %v4686 = vmul.f32 1.0, %v4685
    %v4687 = vrcp.pop %v3537
    %v4688 = vmul.f32 %v3537, %v4687
    %v4689 = vsub.f32 1.0, %v4688
    %v4690 = vmul.f32 %v4687, %v4689
    %v4691 = vadd.f32 %v4687, %v4690
    %vm4692 = vweird.f32 %v3537
    %vm4693 = vweird.f32 %v4687
    %vm4694 = vmor %vm4692, %vm4693
    %v4695 = vsel %vm4694, %v4687, %v4691
    %v4696 = vand.u32 2147483647, %v3537
    %vm4697 = vcmp.eq.f32.partialorder %v4696, 8.507059e+37
    %v4698 = vand.u32 %v3537, 2147483648
    %v4699 = vor.u32 1.1754944e-38, %v4698
    %v4700 = vsel %vm4697, %v4699, %v4695
    %v4701 = vmul.f32 1.0, %v4700
    %v4702 = vrcp.pop %v3538
    %v4703 = vmul.f32 %v3538, %v4702
    %v4704 = vsub.f32 1.0, %v4703
    %v4705 = vmul.f32 %v4702, %v4704
    %v4706 = vadd.f32 %v4702, %v4705
    %vm4707 = vweird.f32 %v3538
    %vm4708 = vweird.f32 %v4702
    %vm4709 = vmor %vm4707, %vm4708
    %v4710 = vsel %vm4709, %v4702, %v4706
    %v4711 = vand.u32 2147483647, %v3538
    %vm4712 = vcmp.eq.f32.partialorder %v4711, 8.507059e+37
    %v4713 = vand.u32 %v3538, 2147483648
    %v4714 = vor.u32 1.1754944e-38, %v4713
    %v4715 = vsel %vm4712, %v4714, %v4710
    %v4716 = vmul.f32 1.0, %v4715
    %v4717 = vrcp.pop %v3539
    %v4718 = vmul.f32 %v3539, %v4717
    %v4719 = vsub.f32 1.0, %v4718
    %v4720 = vmul.f32 %v4717, %v4719
    %v4721 = vadd.f32 %v4717, %v4720
    %vm4722 = vweird.f32 %v3539
    %vm4723 = vweird.f32 %v4717
    %vm4724 = vmor %vm4722, %vm4723
    %v4725 = vsel %vm4724, %v4717, %v4721
    %v4726 = vand.u32 2147483647, %v3539
    %vm4727 = vcmp.eq.f32.partialorder %v4726, 8.507059e+37
    %v4728 = vand.u32 %v3539, 2147483648
    %v4729 = vor.u32 1.1754944e-38, %v4728
    %v4730 = vsel %vm4727, %v4729, %v4725
    %v4731 = vmul.f32 1.0, %v4730
    %v4732 = vrcp.pop %v3540
    %v4733 = vmul.f32 %v3540, %v4732
    %v4734 = vsub.f32 1.0, %v4733
    %v4735 = vmul.f32 %v4732, %v4734
    %v4736 = vadd.f32 %v4732, %v4735
    %vm4737 = vweird.f32 %v3540
    %vm4738 = vweird.f32 %v4732
    %vm4739 = vmor %vm4737, %vm4738
    %v4740 = vsel %vm4739, %v4732, %v4736
    %v4741 = vand.u32 2147483647, %v3540
    %vm4742 = vcmp.eq.f32.partialorder %v4741, 8.507059e+37
    %v4743 = vand.u32 %v3540, 2147483648
    %v4744 = vor.u32 1.1754944e-38, %v4743
    %v4745 = vsel %vm4742, %v4744, %v4740
    %v4746 = vmul.f32 1.0, %v4745
    %v4747 = vrcp.pop %v3541
    %v4748 = vmul.f32 %v3541, %v4747
    %v4749 = vsub.f32 1.0, %v4748
    %v4750 = vmul.f32 %v4747, %v4749
    %v4751 = vadd.f32 %v4747, %v4750
    %vm4752 = vweird.f32 %v3541
    %vm4753 = vweird.f32 %v4747
    %vm4754 = vmor %vm4752, %vm4753
    %v4755 = vsel %vm4754, %v4747, %v4751
    %v4756 = vand.u32 2147483647, %v3541
    %vm4757 = vcmp.eq.f32.partialorder %v4756, 8.507059e+37
    %v4758 = vand.u32 %v3541, 2147483648
    %v4759 = vor.u32 1.1754944e-38, %v4758
    %v4760 = vsel %vm4757, %v4759, %v4755
    %v4761 = vmul.f32 1.0, %v4760
    %v4762 = vrcp.pop %v3542
    %v4763 = vmul.f32 %v3542, %v4762
    %v4764 = vsub.f32 1.0, %v4763
    %v4765 = vmul.f32 %v4762, %v4764
    %v4766 = vadd.f32 %v4762, %v4765
    %vm4767 = vweird.f32 %v3542
    %vm4768 = vweird.f32 %v4762
    %vm4769 = vmor %vm4767, %vm4768
    %v4770 = vsel %vm4769, %v4762, %v4766
    %v4771 = vand.u32 2147483647, %v3542
    %vm4772 = vcmp.eq.f32.partialorder %v4771, 8.507059e+37
    %v4773 = vand.u32 %v3542, 2147483648
    %v4774 = vor.u32 1.1754944e-38, %v4773
    %v4775 = vsel %vm4772, %v4774, %v4770
    %v4776 = vmul.f32 1.0, %v4775
    %v4777 = vrcp.pop %v3543
    %v4778 = vmul.f32 %v3543, %v4777
    %v4779 = vsub.f32 1.0, %v4778
    %v4780 = vmul.f32 %v4777, %v4779
    %v4781 = vadd.f32 %v4777, %v4780
    %vm4782 = vweird.f32 %v3543
    %vm4783 = vweird.f32 %v4777
    %vm4784 = vmor %vm4782, %vm4783
    %v4785 = vsel %vm4784, %v4777, %v4781
    %v4786 = vand.u32 2147483647, %v3543
    %vm4787 = vcmp.eq.f32.partialorder %v4786, 8.507059e+37
    %v4788 = vand.u32 %v3543, 2147483648
    %v4789 = vor.u32 1.1754944e-38, %v4788
    %v4790 = vsel %vm4787, %v4789, %v4785
    %v4791 = vmul.f32 1.0, %v4790
    %v4792 = vrcp.pop %v3544
    %v4793 = vmul.f32 %v3544, %v4792
    %v4794 = vsub.f32 1.0, %v4793
    %v4795 = vmul.f32 %v4792, %v4794
    %v4796 = vadd.f32 %v4792, %v4795
    %vm4797 = vweird.f32 %v3544
    %vm4798 = vweird.f32 %v4792
    %vm4799 = vmor %vm4797, %vm4798
    %v4800 = vsel %vm4799, %v4792, %v4796
    %v4801 = vand.u32 2147483647, %v3544
    %vm4802 = vcmp.eq.f32.partialorder %v4801, 8.507059e+37
    %v4803 = vand.u32 %v3544, 2147483648
    %v4804 = vor.u32 1.1754944e-38, %v4803
    %v4805 = vsel %vm4802, %v4804, %v4800
    %v4806 = vmul.f32 1.0, %v4805
    %v4807 = vrcp.pop %v3545
    %v4808 = vmul.f32 %v3545, %v4807
    %v4809 = vsub.f32 1.0, %v4808
    %v4810 = vmul.f32 %v4807, %v4809
    %v4811 = vadd.f32 %v4807, %v4810
    %vm4812 = vweird.f32 %v3545
    %vm4813 = vweird.f32 %v4807
    %vm4814 = vmor %vm4812, %vm4813
    %v4815 = vsel %vm4814, %v4807, %v4811
    %v4816 = vand.u32 2147483647, %v3545
    %vm4817 = vcmp.eq.f32.partialorder %v4816, 8.507059e+37
    %v4818 = vand.u32 %v3545, 2147483648
    %v4819 = vor.u32 1.1754944e-38, %v4818
    %v4820 = vsel %vm4817, %v4819, %v4815
    %v4821 = vmul.f32 1.0, %v4820
    %v4822 = vrcp.pop %v3546
    %v4823 = vmul.f32 %v3546, %v4822
    %v4824 = vsub.f32 1.0, %v4823
    %v4825 = vmul.f32 %v4822, %v4824
    %v4826 = vadd.f32 %v4822, %v4825
    %vm4827 = vweird.f32 %v3546
    %vm4828 = vweird.f32 %v4822
    %vm4829 = vmor %vm4827, %vm4828
    %v4830 = vsel %vm4829, %v4822, %v4826
    %v4831 = vand.u32 2147483647, %v3546
    %vm4832 = vcmp.eq.f32.partialorder %v4831, 8.507059e+37
    %v4833 = vand.u32 %v3546, 2147483648
    %v4834 = vor.u32 1.1754944e-38, %v4833
    %v4835 = vsel %vm4832, %v4834, %v4830
    %v4836 = vmul.f32 1.0, %v4835
    %v4837 = vrcp.pop %v3547
    %v4838 = vmul.f32 %v3547, %v4837
    %v4839 = vsub.f32 1.0, %v4838
    %v4840 = vmul.f32 %v4837, %v4839
    %v4841 = vadd.f32 %v4837, %v4840
    %vm4842 = vweird.f32 %v3547
    %vm4843 = vweird.f32 %v4837
    %vm4844 = vmor %vm4842, %vm4843
    %v4845 = vsel %vm4844, %v4837, %v4841
    %v4846 = vand.u32 2147483647, %v3547
    %vm4847 = vcmp.eq.f32.partialorder %v4846, 8.507059e+37
    %v4848 = vand.u32 %v3547, 2147483648
    %v4849 = vor.u32 1.1754944e-38, %v4848
    %v4850 = vsel %vm4847, %v4849, %v4845
    %v4851 = vmul.f32 1.0, %v4850
    %v4852 = vrcp.pop %v3548
    %v4853 = vmul.f32 %v3548, %v4852
    %v4854 = vsub.f32 1.0, %v4853
    %v4855 = vmul.f32 %v4852, %v4854
    %v4856 = vadd.f32 %v4852, %v4855
    %vm4857 = vweird.f32 %v3548
    %vm4858 = vweird.f32 %v4852
    %vm4859 = vmor %vm4857, %vm4858
    %v4860 = vsel %vm4859, %v4852, %v4856
    %v4861 = vand.u32 2147483647, %v3548
    %vm4862 = vcmp.eq.f32.partialorder %v4861, 8.507059e+37
    %v4863 = vand.u32 %v3548, 2147483648
    %v4864 = vor.u32 1.1754944e-38, %v4863
    %v4865 = vsel %vm4862, %v4864, %v4860
    %v4866 = vmul.f32 1.0, %v4865
    %v4867 = vrcp.pop %v3549
    %v4868 = vmul.f32 %v3549, %v4867
    %v4869 = vsub.f32 1.0, %v4868
    %v4870 = vmul.f32 %v4867, %v4869
    %v4871 = vadd.f32 %v4867, %v4870
    %vm4872 = vweird.f32 %v3549
    %vm4873 = vweird.f32 %v4867
    %vm4874 = vmor %vm4872, %vm4873
    %v4875 = vsel %vm4874, %v4867, %v4871
    %v4876 = vand.u32 2147483647, %v3549
    %vm4877 = vcmp.eq.f32.partialorder %v4876, 8.507059e+37
    %v4878 = vand.u32 %v3549, 2147483648
    %v4879 = vor.u32 1.1754944e-38, %v4878
    %v4880 = vsel %vm4877, %v4879, %v4875
    %v4881 = vmul.f32 1.0, %v4880
    %v4882 = vrcp.pop %v3550
    %v4883 = vmul.f32 %v3550, %v4882
    %v4884 = vsub.f32 1.0, %v4883
    %v4885 = vmul.f32 %v4882, %v4884
    %v4886 = vadd.f32 %v4882, %v4885
    %vm4887 = vweird.f32 %v3550
    %vm4888 = vweird.f32 %v4882
    %vm4889 = vmor %vm4887, %vm4888
    %v4890 = vsel %vm4889, %v4882, %v4886
    %v4891 = vand.u32 2147483647, %v3550
    %vm4892 = vcmp.eq.f32.partialorder %v4891, 8.507059e+37
    %v4893 = vand.u32 %v3550, 2147483648
    %v4894 = vor.u32 1.1754944e-38, %v4893
    %v4895 = vsel %vm4892, %v4894, %v4890
    %v4896 = vmul.f32 1.0, %v4895
    %v4897 = vrcp.pop %v3551
    %v4898 = vmul.f32 %v3551, %v4897
    %v4899 = vsub.f32 1.0, %v4898
    %v4900 = vmul.f32 %v4897, %v4899
    %v4901 = vadd.f32 %v4897, %v4900
    %vm4902 = vweird.f32 %v3551
    %vm4903 = vweird.f32 %v4897
    %vm4904 = vmor %vm4902, %vm4903
    %v4905 = vsel %vm4904, %v4897, %v4901
    %v4906 = vand.u32 2147483647, %v3551
    %vm4907 = vcmp.eq.f32.partialorder %v4906, 8.507059e+37
    %v4908 = vand.u32 %v3551, 2147483648
    %v4909 = vor.u32 1.1754944e-38, %v4908
    %v4910 = vsel %vm4907, %v4909, %v4905
    %v4911 = vmul.f32 1.0, %v4910
    %v4912 = vrcp.pop %v3552
    %v4913 = vmul.f32 %v3552, %v4912
    %v4914 = vsub.f32 1.0, %v4913
    %v4915 = vmul.f32 %v4912, %v4914
    %v4916 = vadd.f32 %v4912, %v4915
    %vm4917 = vweird.f32 %v3552
    %vm4918 = vweird.f32 %v4912
    %vm4919 = vmor %vm4917, %vm4918
    %v4920 = vsel %vm4919, %v4912, %v4916
    %v4921 = vand.u32 2147483647, %v3552
    %vm4922 = vcmp.eq.f32.partialorder %v4921, 8.507059e+37
    %v4923 = vand.u32 %v3552, 2147483648
    %v4924 = vor.u32 1.1754944e-38, %v4923
    %v4925 = vsel %vm4922, %v4924, %v4920
    %v4926 = vmul.f32 1.0, %v4925
    %v4927 = vrcp.pop %v3553
    %v4928 = vmul.f32 %v3553, %v4927
    %v4929 = vsub.f32 1.0, %v4928
    %v4930 = vmul.f32 %v4927, %v4929
    %v4931 = vadd.f32 %v4927, %v4930
    %vm4932 = vweird.f32 %v3553
    %vm4933 = vweird.f32 %v4927
    %vm4934 = vmor %vm4932, %vm4933
    %v4935 = vsel %vm4934, %v4927, %v4931
    %v4936 = vand.u32 2147483647, %v3553
    %vm4937 = vcmp.eq.f32.partialorder %v4936, 8.507059e+37
    %v4938 = vand.u32 %v3553, 2147483648
    %v4939 = vor.u32 1.1754944e-38, %v4938
    %v4940 = vsel %vm4937, %v4939, %v4935
    %v4941 = vmul.f32 1.0, %v4940
    %v4942 = vrcp.pop %v3554
    %v4943 = vmul.f32 %v3554, %v4942
    %v4944 = vsub.f32 1.0, %v4943
    %v4945 = vmul.f32 %v4942, %v4944
    %v4946 = vadd.f32 %v4942, %v4945
    %vm4947 = vweird.f32 %v3554
    %vm4948 = vweird.f32 %v4942
    %vm4949 = vmor %vm4947, %vm4948
    %v4950 = vsel %vm4949, %v4942, %v4946
    %v4951 = vand.u32 2147483647, %v3554
    %vm4952 = vcmp.eq.f32.partialorder %v4951, 8.507059e+37
    %v4953 = vand.u32 %v3554, 2147483648
    %v4954 = vor.u32 1.1754944e-38, %v4953
    %v4955 = vsel %vm4952, %v4954, %v4950
    %v4956 = vmul.f32 1.0, %v4955
    %v4957 = vrcp.pop %v3555
    %v4958 = vmul.f32 %v3555, %v4957
    %v4959 = vsub.f32 1.0, %v4958
    %v4960 = vmul.f32 %v4957, %v4959
    %v4961 = vadd.f32 %v4957, %v4960
    %vm4962 = vweird.f32 %v3555
    %vm4963 = vweird.f32 %v4957
    %vm4964 = vmor %vm4962, %vm4963
    %v4965 = vsel %vm4964, %v4957, %v4961
    %v4966 = vand.u32 2147483647, %v3555
    %vm4967 = vcmp.eq.f32.partialorder %v4966, 8.507059e+37
    %v4968 = vand.u32 %v3555, 2147483648
    %v4969 = vor.u32 1.1754944e-38, %v4968
    %v4970 = vsel %vm4967, %v4969, %v4965
    %v4971 = vmul.f32 1.0, %v4970
    %v4972 = vrcp.pop %v3556
    %v4973 = vmul.f32 %v3556, %v4972
    %v4974 = vsub.f32 1.0, %v4973
    %v4975 = vmul.f32 %v4972, %v4974
    %v4976 = vadd.f32 %v4972, %v4975
    %vm4977 = vweird.f32 %v3556
    %vm4978 = vweird.f32 %v4972
    %vm4979 = vmor %vm4977, %vm4978
    %v4980 = vsel %vm4979, %v4972, %v4976
    %v4981 = vand.u32 2147483647, %v3556
    %vm4982 = vcmp.eq.f32.partialorder %v4981, 8.507059e+37
    %v4983 = vand.u32 %v3556, 2147483648
    %v4984 = vor.u32 1.1754944e-38, %v4983
    %v4985 = vsel %vm4982, %v4984, %v4980
    %v4986 = vmul.f32 1.0, %v4985
    %v4987 = vrcp.pop %v3557
    %v4988 = vmul.f32 %v3557, %v4987
    %v4989 = vsub.f32 1.0, %v4988
    %v4990 = vmul.f32 %v4987, %v4989
    %v4991 = vadd.f32 %v4987, %v4990
    %vm4992 = vweird.f32 %v3557
    %vm4993 = vweird.f32 %v4987
    %vm4994 = vmor %vm4992, %vm4993
    %v4995 = vsel %vm4994, %v4987, %v4991
    %v4996 = vand.u32 2147483647, %v3557
    %vm4997 = vcmp.eq.f32.partialorder %v4996, 8.507059e+37
    %v4998 = vand.u32 %v3557, 2147483648
    %v4999 = vor.u32 1.1754944e-38, %v4998
    %v5000 = vsel %vm4997, %v4999, %v4995
    %v5001 = vmul.f32 1.0, %v5000
    %v5002 = vrcp.pop %v3558
    %v5003 = vmul.f32 %v3558, %v5002
    %v5004 = vsub.f32 1.0, %v5003
    %v5005 = vmul.f32 %v5002, %v5004
    %v5006 = vadd.f32 %v5002, %v5005
    %vm5007 = vweird.f32 %v3558
    %vm5008 = vweird.f32 %v5002
    %vm5009 = vmor %vm5007, %vm5008
    %v5010 = vsel %vm5009, %v5002, %v5006
    %v5011 = vand.u32 2147483647, %v3558
    %vm5012 = vcmp.eq.f32.partialorder %v5011, 8.507059e+37
    %v5013 = vand.u32 %v3558, 2147483648
    %v5014 = vor.u32 1.1754944e-38, %v5013
    %v5015 = vsel %vm5012, %v5014, %v5010
    %v5016 = vmul.f32 1.0, %v5015
    %v5017 = vrcp.pop %v3559
    %v5018 = vmul.f32 %v3559, %v5017
    %v5019 = vsub.f32 1.0, %v5018
    %v5020 = vmul.f32 %v5017, %v5019
    %v5021 = vadd.f32 %v5017, %v5020
    %vm5022 = vweird.f32 %v3559
    %vm5023 = vweird.f32 %v5017
    %vm5024 = vmor %vm5022, %vm5023
    %v5025 = vsel %vm5024, %v5017, %v5021
    %v5026 = vand.u32 2147483647, %v3559
    %vm5027 = vcmp.eq.f32.partialorder %v5026, 8.507059e+37
    %v5028 = vand.u32 %v3559, 2147483648
    %v5029 = vor.u32 1.1754944e-38, %v5028
    %v5030 = vsel %vm5027, %v5029, %v5025
    %v5031 = vmul.f32 1.0, %v5030
    %v5032 = vrcp.pop %v3560
    %v5033 = vmul.f32 %v3560, %v5032
    %v5034 = vsub.f32 1.0, %v5033
    %v5035 = vmul.f32 %v5032, %v5034
    %v5036 = vadd.f32 %v5032, %v5035
    %vm5037 = vweird.f32 %v3560
    %vm5038 = vweird.f32 %v5032
    %vm5039 = vmor %vm5037, %vm5038
    %v5040 = vsel %vm5039, %v5032, %v5036
    %v5041 = vand.u32 2147483647, %v3560
    %vm5042 = vcmp.eq.f32.partialorder %v5041, 8.507059e+37
    %v5043 = vand.u32 %v3560, 2147483648
    %v5044 = vor.u32 1.1754944e-38, %v5043
    %v5045 = vsel %vm5042, %v5044, %v5040
    %v5046 = vmul.f32 1.0, %v5045
    %v5047 = vrcp.pop %v3561
    %v5048 = vmul.f32 %v3561, %v5047
    %v5049 = vsub.f32 1.0, %v5048
    %v5050 = vmul.f32 %v5047, %v5049
    %v5051 = vadd.f32 %v5047, %v5050
    %vm5052 = vweird.f32 %v3561
    %vm5053 = vweird.f32 %v5047
    %vm5054 = vmor %vm5052, %vm5053
    %v5055 = vsel %vm5054, %v5047, %v5051
    %v5056 = vand.u32 2147483647, %v3561
    %vm5057 = vcmp.eq.f32.partialorder %v5056, 8.507059e+37
    %v5058 = vand.u32 %v3561, 2147483648
    %v5059 = vor.u32 1.1754944e-38, %v5058
    %v5060 = vsel %vm5057, %v5059, %v5055
    %v5061 = vmul.f32 1.0, %v5060
    %v5062 = vrcp.pop %v3562
    %v5063 = vmul.f32 %v3562, %v5062
    %v5064 = vsub.f32 1.0, %v5063
    %v5065 = vmul.f32 %v5062, %v5064
    %v5066 = vadd.f32 %v5062, %v5065
    %vm5067 = vweird.f32 %v3562
    %vm5068 = vweird.f32 %v5062
    %vm5069 = vmor %vm5067, %vm5068
    %v5070 = vsel %vm5069, %v5062, %v5066
    %v5071 = vand.u32 2147483647, %v3562
    %vm5072 = vcmp.eq.f32.partialorder %v5071, 8.507059e+37
    %v5073 = vand.u32 %v3562, 2147483648
    %v5074 = vor.u32 1.1754944e-38, %v5073
    %v5075 = vsel %vm5072, %v5074, %v5070
    %v5076 = vmul.f32 1.0, %v5075
    %v5077 = vrcp.pop %v3563
    %v5078 = vmul.f32 %v3563, %v5077
    %v5079 = vsub.f32 1.0, %v5078
    %v5080 = vmul.f32 %v5077, %v5079
    %v5081 = vadd.f32 %v5077, %v5080
    %vm5082 = vweird.f32 %v3563
    %vm5083 = vweird.f32 %v5077
    %vm5084 = vmor %vm5082, %vm5083
    %v5085 = vsel %vm5084, %v5077, %v5081
    %v5086 = vand.u32 2147483647, %v3563
    %vm5087 = vcmp.eq.f32.partialorder %v5086, 8.507059e+37
    %v5088 = vand.u32 %v3563, 2147483648
    %v5089 = vor.u32 1.1754944e-38, %v5088
    %v5090 = vsel %vm5087, %v5089, %v5085
    %v5091 = vmul.f32 1.0, %v5090
    %v5092 = vrcp.pop %v3564
    %v5093 = vmul.f32 %v3564, %v5092
    %v5094 = vsub.f32 1.0, %v5093
    %v5095 = vmul.f32 %v5092, %v5094
    %v5096 = vadd.f32 %v5092, %v5095
    %vm5097 = vweird.f32 %v3564
    %vm5098 = vweird.f32 %v5092
    %vm5099 = vmor %vm5097, %vm5098
    %v5100 = vsel %vm5099, %v5092, %v5096
    %v5101 = vand.u32 2147483647, %v3564
    %vm5102 = vcmp.eq.f32.partialorder %v5101, 8.507059e+37
    %v5103 = vand.u32 %v3564, 2147483648
    %v5104 = vor.u32 1.1754944e-38, %v5103
    %v5105 = vsel %vm5102, %v5104, %v5100
    %v5106 = vmul.f32 1.0, %v5105
    %v5107 = vrcp.pop %v3565
    %v5108 = vmul.f32 %v3565, %v5107
    %v5109 = vsub.f32 1.0, %v5108
    %v5110 = vmul.f32 %v5107, %v5109
    %v5111 = vadd.f32 %v5107, %v5110
    %vm5112 = vweird.f32 %v3565
    %vm5113 = vweird.f32 %v5107
    %vm5114 = vmor %vm5112, %vm5113
    %v5115 = vsel %vm5114, %v5107, %v5111
    %v5116 = vand.u32 2147483647, %v3565
    %vm5117 = vcmp.eq.f32.partialorder %v5116, 8.507059e+37
    %v5118 = vand.u32 %v3565, 2147483648
    %v5119 = vor.u32 1.1754944e-38, %v5118
    %v5120 = vsel %vm5117, %v5119, %v5115
    %v5121 = vmul.f32 1.0, %v5120
    %v5122 = vrcp.pop %v3566
    %v5123 = vmul.f32 %v3566, %v5122
    %v5124 = vsub.f32 1.0, %v5123
    %v5125 = vmul.f32 %v5122, %v5124
    %v5126 = vadd.f32 %v5122, %v5125
    %vm5127 = vweird.f32 %v3566
    %vm5128 = vweird.f32 %v5122
    %vm5129 = vmor %vm5127, %vm5128
    %v5130 = vsel %vm5129, %v5122, %v5126
    %v5131 = vand.u32 2147483647, %v3566
    %vm5132 = vcmp.eq.f32.partialorder %v5131, 8.507059e+37
    %v5133 = vand.u32 %v3566, 2147483648
    %v5134 = vor.u32 1.1754944e-38, %v5133
    %v5135 = vsel %vm5132, %v5134, %v5130
    %v5136 = vmul.f32 1.0, %v5135
    %v5137 = vrcp.pop %v3567
    %v5138 = vmul.f32 %v3567, %v5137
    %v5139 = vsub.f32 1.0, %v5138
    %v5140 = vmul.f32 %v5137, %v5139
    %v5141 = vadd.f32 %v5137, %v5140
    %vm5142 = vweird.f32 %v3567
    %vm5143 = vweird.f32 %v5137
    %vm5144 = vmor %vm5142, %vm5143
    %v5145 = vsel %vm5144, %v5137, %v5141
    %v5146 = vand.u32 2147483647, %v3567
    %vm5147 = vcmp.eq.f32.partialorder %v5146, 8.507059e+37
    %v5148 = vand.u32 %v3567, 2147483648
    %v5149 = vor.u32 1.1754944e-38, %v5148
    %v5150 = vsel %vm5147, %v5149, %v5145
    %v5151 = vmul.f32 1.0, %v5150
    %v5152 = vrcp.pop %v3568
    %v5153 = vmul.f32 %v3568, %v5152
    %v5154 = vsub.f32 1.0, %v5153
    %v5155 = vmul.f32 %v5152, %v5154
    %v5156 = vadd.f32 %v5152, %v5155
    %vm5157 = vweird.f32 %v3568
    %vm5158 = vweird.f32 %v5152
    %vm5159 = vmor %vm5157, %vm5158
    %v5160 = vsel %vm5159, %v5152, %v5156
    %v5161 = vand.u32 2147483647, %v3568
    %vm5162 = vcmp.eq.f32.partialorder %v5161, 8.507059e+37
    %v5163 = vand.u32 %v3568, 2147483648
    %v5164 = vor.u32 1.1754944e-38, %v5163
    %v5165 = vsel %vm5162, %v5164, %v5160
    %v5166 = vmul.f32 1.0, %v5165
    %v5167 = vrcp.pop %v3569
    %v5168 = vmul.f32 %v3569, %v5167
    %v5169 = vsub.f32 1.0, %v5168
    %v5170 = vmul.f32 %v5167, %v5169
    %v5171 = vadd.f32 %v5167, %v5170
    %vm5172 = vweird.f32 %v3569
    %vm5173 = vweird.f32 %v5167
    %vm5174 = vmor %vm5172, %vm5173
    %v5175 = vsel %vm5174, %v5167, %v5171
    %v5176 = vand.u32 2147483647, %v3569
    %vm5177 = vcmp.eq.f32.partialorder %v5176, 8.507059e+37
    %v5178 = vand.u32 %v3569, 2147483648
    %v5179 = vor.u32 1.1754944e-38, %v5178
    %v5180 = vsel %vm5177, %v5179, %v5175
    %v5181 = vmul.f32 1.0, %v5180
    %v5182 = vrcp.pop %v3570
    %v5183 = vmul.f32 %v3570, %v5182
    %v5184 = vsub.f32 1.0, %v5183
    %v5185 = vmul.f32 %v5182, %v5184
    %v5186 = vadd.f32 %v5182, %v5185
    %vm5187 = vweird.f32 %v3570
    %vm5188 = vweird.f32 %v5182
    %vm5189 = vmor %vm5187, %vm5188
    %v5190 = vsel %vm5189, %v5182, %v5186
    %v5191 = vand.u32 2147483647, %v3570
    %vm5192 = vcmp.eq.f32.partialorder %v5191, 8.507059e+37
    %v5193 = vand.u32 %v3570, 2147483648
    %v5194 = vor.u32 1.1754944e-38, %v5193
    %v5195 = vsel %vm5192, %v5194, %v5190
    %v5196 = vmul.f32 1.0, %v5195
    %v5197 = vrcp.pop %v3571
    %v5198 = vmul.f32 %v3571, %v5197
    %v5199 = vsub.f32 1.0, %v5198
    %v5200 = vmul.f32 %v5197, %v5199
    %v5201 = vadd.f32 %v5197, %v5200
    %vm5202 = vweird.f32 %v3571
    %vm5203 = vweird.f32 %v5197
    %vm5204 = vmor %vm5202, %vm5203
    %v5205 = vsel %vm5204, %v5197, %v5201
    %v5206 = vand.u32 2147483647, %v3571
    %vm5207 = vcmp.eq.f32.partialorder %v5206, 8.507059e+37
    %v5208 = vand.u32 %v3571, 2147483648
    %v5209 = vor.u32 1.1754944e-38, %v5208
    %v5210 = vsel %vm5207, %v5209, %v5205
    %v5211 = vmul.f32 1.0, %v5210
    %v5212 = vrcp.pop %v3572
    %v5213 = vmul.f32 %v3572, %v5212
    %v5214 = vsub.f32 1.0, %v5213
    %v5215 = vmul.f32 %v5212, %v5214
    %v5216 = vadd.f32 %v5212, %v5215
    %vm5217 = vweird.f32 %v3572
    %vm5218 = vweird.f32 %v5212
    %vm5219 = vmor %vm5217, %vm5218
    %v5220 = vsel %vm5219, %v5212, %v5216
    %v5221 = vand.u32 2147483647, %v3572
    %vm5222 = vcmp.eq.f32.partialorder %v5221, 8.507059e+37
    %v5223 = vand.u32 %v3572, 2147483648
    %v5224 = vor.u32 1.1754944e-38, %v5223
    %v5225 = vsel %vm5222, %v5224, %v5220
    %v5226 = vmul.f32 1.0, %v5225
    %v5227 = vrcp.pop %v3573
    %v5228 = vmul.f32 %v3573, %v5227
    %v5229 = vsub.f32 1.0, %v5228
    %v5230 = vmul.f32 %v5227, %v5229
    %v5231 = vadd.f32 %v5227, %v5230
    %vm5232 = vweird.f32 %v3573
    %vm5233 = vweird.f32 %v5227
    %vm5234 = vmor %vm5232, %vm5233
    %v5235 = vsel %vm5234, %v5227, %v5231
    %v5236 = vand.u32 2147483647, %v3573
    %vm5237 = vcmp.eq.f32.partialorder %v5236, 8.507059e+37
    %v5238 = vand.u32 %v3573, 2147483648
    %v5239 = vor.u32 1.1754944e-38, %v5238
    %v5240 = vsel %vm5237, %v5239, %v5235
    %v5241 = vmul.f32 1.0, %v5240
    %v5242 = vrcp.pop %v3574
    %v5243 = vmul.f32 %v3574, %v5242
    %v5244 = vsub.f32 1.0, %v5243
    %v5245 = vmul.f32 %v5242, %v5244
    %v5246 = vadd.f32 %v5242, %v5245
    %vm5247 = vweird.f32 %v3574
    %vm5248 = vweird.f32 %v5242
    %vm5249 = vmor %vm5247, %vm5248
    %v5250 = vsel %vm5249, %v5242, %v5246
    %v5251 = vand.u32 2147483647, %v3574
    %vm5252 = vcmp.eq.f32.partialorder %v5251, 8.507059e+37
    %v5253 = vand.u32 %v3574, 2147483648
    %v5254 = vor.u32 1.1754944e-38, %v5253
    %v5255 = vsel %vm5252, %v5254, %v5250
    %v5256 = vmul.f32 1.0, %v5255
    %v5257 = vrcp.pop %v3575
    %v5258 = vmul.f32 %v3575, %v5257
    %v5259 = vsub.f32 1.0, %v5258
    %v5260 = vmul.f32 %v5257, %v5259
    %v5261 = vadd.f32 %v5257, %v5260
    %vm5262 = vweird.f32 %v3575
    %vm5263 = vweird.f32 %v5257
    %vm5264 = vmor %vm5262, %vm5263
    %v5265 = vsel %vm5264, %v5257, %v5261
    %v5266 = vand.u32 2147483647, %v3575
    %vm5267 = vcmp.eq.f32.partialorder %v5266, 8.507059e+37
    %v5268 = vand.u32 %v3575, 2147483648
    %v5269 = vor.u32 1.1754944e-38, %v5268
    %v5270 = vsel %vm5267, %v5269, %v5265
    %v5271 = vmul.f32 1.0, %v5270
    %v5272 = vrcp.pop %v3576
    %v5273 = vmul.f32 %v3576, %v5272
    %v5274 = vsub.f32 1.0, %v5273
    %v5275 = vmul.f32 %v5272, %v5274
    %v5276 = vadd.f32 %v5272, %v5275
    %vm5277 = vweird.f32 %v3576
    %vm5278 = vweird.f32 %v5272
    %vm5279 = vmor %vm5277, %vm5278
    %v5280 = vsel %vm5279, %v5272, %v5276
    %v5281 = vand.u32 2147483647, %v3576
    %vm5282 = vcmp.eq.f32.partialorder %v5281, 8.507059e+37
    %v5283 = vand.u32 %v3576, 2147483648
    %v5284 = vor.u32 1.1754944e-38, %v5283
    %v5285 = vsel %vm5282, %v5284, %v5280
    %v5286 = vmul.f32 1.0, %v5285
    %v5287 = vrcp.pop %v3577
    %v5288 = vmul.f32 %v3577, %v5287
    %v5289 = vsub.f32 1.0, %v5288
    %v5290 = vmul.f32 %v5287, %v5289
    %v5291 = vadd.f32 %v5287, %v5290
    %vm5292 = vweird.f32 %v3577
    %vm5293 = vweird.f32 %v5287
    %vm5294 = vmor %vm5292, %vm5293
    %v5295 = vsel %vm5294, %v5287, %v5291
    %v5296 = vand.u32 2147483647, %v3577
    %vm5297 = vcmp.eq.f32.partialorder %v5296, 8.507059e+37
    %v5298 = vand.u32 %v3577, 2147483648
    %v5299 = vor.u32 1.1754944e-38, %v5298
    %v5300 = vsel %vm5297, %v5299, %v5295
    %v5301 = vmul.f32 1.0, %v5300
    %v5302 = vrcp.pop %v3578
    %v5303 = vmul.f32 %v3578, %v5302
    %v5304 = vsub.f32 1.0, %v5303
    %v5305 = vmul.f32 %v5302, %v5304
    %v5306 = vadd.f32 %v5302, %v5305
    %vm5307 = vweird.f32 %v3578
    %vm5308 = vweird.f32 %v5302
    %vm5309 = vmor %vm5307, %vm5308
    %v5310 = vsel %vm5309, %v5302, %v5306
    %v5311 = vand.u32 2147483647, %v3578
    %vm5312 = vcmp.eq.f32.partialorder %v5311, 8.507059e+37
    %v5313 = vand.u32 %v3578, 2147483648
    %v5314 = vor.u32 1.1754944e-38, %v5313
    %v5315 = vsel %vm5312, %v5314, %v5310
    %v5316 = vmul.f32 1.0, %v5315
    %v5317 = vrcp.pop %v3579
    %v5318 = vmul.f32 %v3579, %v5317
    %v5319 = vsub.f32 1.0, %v5318
    %v5320 = vmul.f32 %v5317, %v5319
    %v5321 = vadd.f32 %v5317, %v5320
    %vm5322 = vweird.f32 %v3579
    %vm5323 = vweird.f32 %v5317
    %vm5324 = vmor %vm5322, %vm5323
    %v5325 = vsel %vm5324, %v5317, %v5321
    %v5326 = vand.u32 2147483647, %v3579
    %vm5327 = vcmp.eq.f32.partialorder %v5326, 8.507059e+37
    %v5328 = vand.u32 %v3579, 2147483648
    %v5329 = vor.u32 1.1754944e-38, %v5328
    %v5330 = vsel %vm5327, %v5329, %v5325
    %v5331 = vmul.f32 1.0, %v5330
    %v5332 = vrcp.pop %v3580
    %v5333 = vmul.f32 %v3580, %v5332
    %v5334 = vsub.f32 1.0, %v5333
    %v5335 = vmul.f32 %v5332, %v5334
    %v5336 = vadd.f32 %v5332, %v5335
    %vm5337 = vweird.f32 %v3580
    %vm5338 = vweird.f32 %v5332
    %vm5339 = vmor %vm5337, %vm5338
    %v5340 = vsel %vm5339, %v5332, %v5336
    %v5341 = vand.u32 2147483647, %v3580
    %vm5342 = vcmp.eq.f32.partialorder %v5341, 8.507059e+37
    %v5343 = vand.u32 %v3580, 2147483648
    %v5344 = vor.u32 1.1754944e-38, %v5343
    %v5345 = vsel %vm5342, %v5344, %v5340
    %v5346 = vmul.f32 1.0, %v5345
    %v5347 = vrcp.pop %v3581
    %v5348 = vmul.f32 %v3581, %v5347
    %v5349 = vsub.f32 1.0, %v5348
    %v5350 = vmul.f32 %v5347, %v5349
    %v5351 = vadd.f32 %v5347, %v5350
    %vm5352 = vweird.f32 %v3581
    %vm5353 = vweird.f32 %v5347
    %vm5354 = vmor %vm5352, %vm5353
    %v5355 = vsel %vm5354, %v5347, %v5351
    %v5356 = vand.u32 2147483647, %v3581
    %vm5357 = vcmp.eq.f32.partialorder %v5356, 8.507059e+37
    %v5358 = vand.u32 %v3581, 2147483648
    %v5359 = vor.u32 1.1754944e-38, %v5358
    %v5360 = vsel %vm5357, %v5359, %v5355
    %v5361 = vmul.f32 1.0, %v5360
    %v5362 = vrcp.pop %v3582
    %v5363 = vmul.f32 %v3582, %v5362
    %v5364 = vsub.f32 1.0, %v5363
    %v5365 = vmul.f32 %v5362, %v5364
    %v5366 = vadd.f32 %v5362, %v5365
    %vm5367 = vweird.f32 %v3582
    %vm5368 = vweird.f32 %v5362
    %vm5369 = vmor %vm5367, %vm5368
    %v5370 = vsel %vm5369, %v5362, %v5366
    %v5371 = vand.u32 2147483647, %v3582
    %vm5372 = vcmp.eq.f32.partialorder %v5371, 8.507059e+37
    %v5373 = vand.u32 %v3582, 2147483648
    %v5374 = vor.u32 1.1754944e-38, %v5373
    %v5375 = vsel %vm5372, %v5374, %v5370
    %v5376 = vmul.f32 1.0, %v5375
    %v5377 = vrcp.pop %v3583
    %v5378 = vmul.f32 %v3583, %v5377
    %v5379 = vsub.f32 1.0, %v5378
    %v5380 = vmul.f32 %v5377, %v5379
    %v5381 = vadd.f32 %v5377, %v5380
    %vm5382 = vweird.f32 %v3583
    %vm5383 = vweird.f32 %v5377
    %vm5384 = vmor %vm5382, %vm5383
    %v5385 = vsel %vm5384, %v5377, %v5381
    %v5386 = vand.u32 2147483647, %v3583
    %vm5387 = vcmp.eq.f32.partialorder %v5386, 8.507059e+37
    %v5388 = vand.u32 %v3583, 2147483648
    %v5389 = vor.u32 1.1754944e-38, %v5388
    %v5390 = vsel %vm5387, %v5389, %v5385
    %v5391 = vmul.f32 1.0, %v5390
    %v5392 = vrcp.pop %v3584
    %v5393 = vmul.f32 %v3584, %v5392
    %v5394 = vsub.f32 1.0, %v5393
    %v5395 = vmul.f32 %v5392, %v5394
    %v5396 = vadd.f32 %v5392, %v5395
    %vm5397 = vweird.f32 %v3584
    %vm5398 = vweird.f32 %v5392
    %vm5399 = vmor %vm5397, %vm5398
    %v5400 = vsel %vm5399, %v5392, %v5396
    %v5401 = vand.u32 2147483647, %v3584
    %vm5402 = vcmp.eq.f32.partialorder %v5401, 8.507059e+37
    %v5403 = vand.u32 %v3584, 2147483648
    %v5404 = vor.u32 1.1754944e-38, %v5403
    %v5405 = vsel %vm5402, %v5404, %v5400
    %v5406 = vmul.f32 1.0, %v5405
    %v5407 = vrcp.pop %v3585
    %v5408 = vmul.f32 %v3585, %v5407
    %v5409 = vsub.f32 1.0, %v5408
    %v5410 = vmul.f32 %v5407, %v5409
    %v5411 = vadd.f32 %v5407, %v5410
    %vm5412 = vweird.f32 %v3585
    %vm5413 = vweird.f32 %v5407
    %vm5414 = vmor %vm5412, %vm5413
    %v5415 = vsel %vm5414, %v5407, %v5411
    %v5416 = vand.u32 2147483647, %v3585
    %vm5417 = vcmp.eq.f32.partialorder %v5416, 8.507059e+37
    %v5418 = vand.u32 %v3585, 2147483648
    %v5419 = vor.u32 1.1754944e-38, %v5418
    %v5420 = vsel %vm5417, %v5419, %v5415
    %v5421 = vmul.f32 1.0, %v5420
    %v5422 = vrcp.pop %v3586
    %v5423 = vmul.f32 %v3586, %v5422
    %v5424 = vsub.f32 1.0, %v5423
    %v5425 = vmul.f32 %v5422, %v5424
    %v5426 = vadd.f32 %v5422, %v5425
    %vm5427 = vweird.f32 %v3586
    %vm5428 = vweird.f32 %v5422
    %vm5429 = vmor %vm5427, %vm5428
    %v5430 = vsel %vm5429, %v5422, %v5426
    %v5431 = vand.u32 2147483647, %v3586
    %vm5432 = vcmp.eq.f32.partialorder %v5431, 8.507059e+37
    %v5433 = vand.u32 %v3586, 2147483648
    %v5434 = vor.u32 1.1754944e-38, %v5433
    %v5435 = vsel %vm5432, %v5434, %v5430
    %v5436 = vmul.f32 1.0, %v5435
    %v5437 = vrcp.pop %v3587
    %v5438 = vmul.f32 %v3587, %v5437
    %v5439 = vsub.f32 1.0, %v5438
    %v5440 = vmul.f32 %v5437, %v5439
    %v5441 = vadd.f32 %v5437, %v5440
    %vm5442 = vweird.f32 %v3587
    %vm5443 = vweird.f32 %v5437
    %vm5444 = vmor %vm5442, %vm5443
    %v5445 = vsel %vm5444, %v5437, %v5441
    %v5446 = vand.u32 2147483647, %v3587
    %vm5447 = vcmp.eq.f32.partialorder %v5446, 8.507059e+37
    %v5448 = vand.u32 %v3587, 2147483648
    %v5449 = vor.u32 1.1754944e-38, %v5448
    %v5450 = vsel %vm5447, %v5449, %v5445
    %v5451 = vmul.f32 1.0, %v5450
    %v5452 = vrcp.pop %v3588
    %v5453 = vmul.f32 %v3588, %v5452
    %v5454 = vsub.f32 1.0, %v5453
    %v5455 = vmul.f32 %v5452, %v5454
    %v5456 = vadd.f32 %v5452, %v5455
    %vm5457 = vweird.f32 %v3588
    %vm5458 = vweird.f32 %v5452
    %vm5459 = vmor %vm5457, %vm5458
    %v5460 = vsel %vm5459, %v5452, %v5456
    %v5461 = vand.u32 2147483647, %v3588
    %vm5462 = vcmp.eq.f32.partialorder %v5461, 8.507059e+37
    %v5463 = vand.u32 %v3588, 2147483648
    %v5464 = vor.u32 1.1754944e-38, %v5463
    %v5465 = vsel %vm5462, %v5464, %v5460
    %v5466 = vmul.f32 1.0, %v5465
    %v5467 = vrcp.pop %v3589
    %v5468 = vmul.f32 %v3589, %v5467
    %v5469 = vsub.f32 1.0, %v5468
    %v5470 = vmul.f32 %v5467, %v5469
    %v5471 = vadd.f32 %v5467, %v5470
    %vm5472 = vweird.f32 %v3589
    %vm5473 = vweird.f32 %v5467
    %vm5474 = vmor %vm5472, %vm5473
    %v5475 = vsel %vm5474, %v5467, %v5471
    %v5476 = vand.u32 2147483647, %v3589
    %vm5477 = vcmp.eq.f32.partialorder %v5476, 8.507059e+37
    %v5478 = vand.u32 %v3589, 2147483648
    %v5479 = vor.u32 1.1754944e-38, %v5478
    %v5480 = vsel %vm5477, %v5479, %v5475
    %v5481 = vmul.f32 1.0, %v5480
    %v5482 = vrcp.pop %v3590
    %v5483 = vmul.f32 %v3590, %v5482
    %v5484 = vsub.f32 1.0, %v5483
    %v5485 = vmul.f32 %v5482, %v5484
    %v5486 = vadd.f32 %v5482, %v5485
    %vm5487 = vweird.f32 %v3590
    %vm5488 = vweird.f32 %v5482
    %vm5489 = vmor %vm5487, %vm5488
    %v5490 = vsel %vm5489, %v5482, %v5486
    %v5491 = vand.u32 2147483647, %v3590
    %vm5492 = vcmp.eq.f32.partialorder %v5491, 8.507059e+37
    %v5493 = vand.u32 %v3590, 2147483648
    %v5494 = vor.u32 1.1754944e-38, %v5493
    %v5495 = vsel %vm5492, %v5494, %v5490
    %v5496 = vmul.f32 1.0, %v5495
    %v5497 = vrcp.pop %v3591
    %v5498 = vmul.f32 %v3591, %v5497
    %v5499 = vsub.f32 1.0, %v5498
    %v5500 = vmul.f32 %v5497, %v5499
    %v5501 = vadd.f32 %v5497, %v5500
    %vm5502 = vweird.f32 %v3591
    %vm5503 = vweird.f32 %v5497
    %vm5504 = vmor %vm5502, %vm5503
    %v5505 = vsel %vm5504, %v5497, %v5501
    %v5506 = vand.u32 2147483647, %v3591
    %vm5507 = vcmp.eq.f32.partialorder %v5506, 8.507059e+37
    %v5508 = vand.u32 %v3591, 2147483648
    %v5509 = vor.u32 1.1754944e-38, %v5508
    %v5510 = vsel %vm5507, %v5509, %v5505
    %v5511 = vmul.f32 1.0, %v5510
    %v5512 = vmul.f32 %v562, %v3606
    %v5513 = vmul.f32 %v563, %v3621
    %v5514 = vmul.f32 %v564, %v3636
    %v5515 = vmul.f32 %v565, %v3651
    %v5516 = vmul.f32 %v566, %v3666
    %v5517 = vmul.f32 %v567, %v3681
    %v5518 = vmul.f32 %v568, %v3696
    %v5519 = vmul.f32 %v569, %v3711
    %v5520 = vmul.f32 %v570, %v3726
    %v5521 = vmul.f32 %v571, %v3741
    %v5522 = vmul.f32 %v572, %v3756
    %v5523 = vmul.f32 %v573, %v3771
    %v5524 = vmul.f32 %v574, %v3786
    %v5525 = vmul.f32 %v575, %v3801
    %v5526 = vmul.f32 %v576, %v3816
    %v5527 = vmul.f32 %v577, %v3831
    %v5528 = vmul.f32 %v578, %v3846
    %v5529 = vmul.f32 %v579, %v3861
    %v5530 = vmul.f32 %v580, %v3876
    %v5531 = vmul.f32 %v581, %v3891
    %v5532 = vmul.f32 %v582, %v3906
    %v5533 = vmul.f32 %v583, %v3921
    %v5534 = vmul.f32 %v584, %v3936
    %v5535 = vmul.f32 %v585, %v3951
    %v5536 = vmul.f32 %v586, %v3966
    %v5537 = vmul.f32 %v587, %v3981
    %v5538 = vmul.f32 %v588, %v3996
    %v5539 = vmul.f32 %v589, %v4011
    %v5540 = vmul.f32 %v590, %v4026
    %v5541 = vmul.f32 %v591, %v4041
    %v5542 = vmul.f32 %v592, %v4056
    %v5543 = vmul.f32 %v593, %v4071
    %v5544 = vmul.f32 %v594, %v4086
    %v5545 = vmul.f32 %v595, %v4101
    %v5546 = vmul.f32 %v596, %v4116
    %v5547 = vmul.f32 %v597, %v4131
    %v5548 = vmul.f32 %v598, %v4146
    %v5549 = vmul.f32 %v599, %v4161
    %v5550 = vmul.f32 %v600, %v4176
    %v5551 = vmul.f32 %v601, %v4191
    %v5552 = vmul.f32 %v602, %v4206
    %v5553 = vmul.f32 %v603, %v4221
    %v5554 = vmul.f32 %v604, %v4236
    %v5555 = vmul.f32 %v605, %v4251
    %v5556 = vmul.f32 %v606, %v4266
    %v5557 = vmul.f32 %v607, %v4281
    %v5558 = vmul.f32 %v608, %v4296
    %v5559 = vmul.f32 %v609, %v4311
    %v5560 = vmul.f32 %v610, %v4326
    %v5561 = vmul.f32 %v611, %v4341
    %v5562 = vmul.f32 %v612, %v4356
    %v5563 = vmul.f32 %v613, %v4371
    %v5564 = vmul.f32 %v614, %v4386
    %v5565 = vmul.f32 %v615, %v4401
    %v5566 = vmul.f32 %v616, %v4416
    %v5567 = vmul.f32 %v617, %v4431
    %v5568 = vmul.f32 %v618, %v4446
    %v5569 = vmul.f32 %v619, %v4461
    %v5570 = vmul.f32 %v620, %v4476
    %v5571 = vmul.f32 %v621, %v4491
    %v5572 = vmul.f32 %v622, %v4506
    %v5573 = vmul.f32 %v623, %v4521
    %v5574 = vmul.f32 %v624, %v4536
    %v5575 = vmul.f32 %v625, %v4551
    %v5576 = vmul.f32 %v626, %v4566
    %v5577 = vmul.f32 %v627, %v4581
    %v5578 = vmul.f32 %v628, %v4596
    %v5579 = vmul.f32 %v629, %v4611
    %v5580 = vmul.f32 %v630, %v4626
    %v5581 = vmul.f32 %v631, %v4641
    %v5582 = vmul.f32 %v632, %v4656
    %v5583 = vmul.f32 %v633, %v4671
    %v5584 = vmul.f32 %v634, %v4686
    %v5585 = vmul.f32 %v635, %v4701
    %v5586 = vmul.f32 %v636, %v4716
    %v5587 = vmul.f32 %v637, %v4731
    %v5588 = vmul.f32 %v638, %v4746
    %v5589 = vmul.f32 %v639, %v4761
    %v5590 = vmul.f32 %v640, %v4776
    %v5591 = vmul.f32 %v641, %v4791
    %v5592 = vmul.f32 %v642, %v4806
    %v5593 = vmul.f32 %v643, %v4821
    %v5594 = vmul.f32 %v644, %v4836
    %v5595 = vmul.f32 %v645, %v4851
    %v5596 = vmul.f32 %v646, %v4866
    %v5597 = vmul.f32 %v647, %v4881
    %v5598 = vmul.f32 %v648, %v4896
    %v5599 = vmul.f32 %v649, %v4911
    %v5600 = vmul.f32 %v650, %v4926
    %v5601 = vmul.f32 %v651, %v4941
    %v5602 = vmul.f32 %v652, %v4956
    %v5603 = vmul.f32 %v653, %v4971
    %v5604 = vmul.f32 %v654, %v4986
    %v5605 = vmul.f32 %v655, %v5001
    %v5606 = vmul.f32 %v656, %v5016
    %v5607 = vmul.f32 %v657, %v5031
    %v5608 = vmul.f32 %v658, %v5046
    %v5609 = vmul.f32 %v659, %v5061
    %v5610 = vmul.f32 %v660, %v5076
    %v5611 = vmul.f32 %v661, %v5091
    %v5612 = vmul.f32 %v662, %v5106
    %v5613 = vmul.f32 %v663, %v5121
    %v5614 = vmul.f32 %v664, %v5136
    %v5615 = vmul.f32 %v665, %v5151
    %v5616 = vmul.f32 %v666, %v5166
    %v5617 = vmul.f32 %v667, %v5181
    %v5618 = vmul.f32 %v668, %v5196
    %v5619 = vmul.f32 %v669, %v5211
    %v5620 = vmul.f32 %v670, %v5226
    %v5621 = vmul.f32 %v671, %v5241
    %v5622 = vmul.f32 %v672, %v5256
    %v5623 = vmul.f32 %v673, %v5271
    %v5624 = vmul.f32 %v674, %v5286
    %v5625 = vmul.f32 %v675, %v5301
    %v5626 = vmul.f32 %v676, %v5316
    %v5627 = vmul.f32 %v677, %v5331
    %v5628 = vmul.f32 %v678, %v5346
    %v5629 = vmul.f32 %v679, %v5361
    %v5630 = vmul.f32 %v680, %v5376
    %v5631 = vmul.f32 %v681, %v5391
    %v5632 = vmul.f32 %v682, %v5406
    %v5633 = vmul.f32 %v683, %v5421
    %v5634 = vmul.f32 %v684, %v5436
    %v5635 = vmul.f32 %v685, %v5451
    %v5636 = vmul.f32 %v686, %v5466
    %v5637 = vmul.f32 %v687, %v5481
    %v5638 = vmul.f32 %v688, %v5496
    %v5639 = vmul.f32 %v689, %v5511
    %v5768 = vrot.slane %v5512, 4
    %v5769 = vrot.slane %v5513, 4
    %v5770 = vrot.slane %v5514, 4
    %v5771 = vrot.slane %v5515, 4
    %v5772 = vrot.slane %v5516, 4
    %v5773 = vrot.slane %v5517, 4
    %v5774 = vrot.slane %v5518, 4
    %v5775 = vrot.slane %v5519, 4
    %v5776 = vrot.slane %v5520, 4
    %v5777 = vrot.slane %v5521, 4
    %v5778 = vrot.slane %v5522, 4
    %v5779 = vrot.slane %v5523, 4
    %v5780 = vrot.slane %v5524, 4
    %v5781 = vrot.slane %v5525, 4
    %v5782 = vrot.slane %v5526, 4
    %v5783 = vrot.slane %v5527, 4
    %v5784 = vrot.slane %v5528, 4
    %v5785 = vrot.slane %v5529, 4
    %v5786 = vrot.slane %v5530, 4
    %v5787 = vrot.slane %v5531, 4
    %v5788 = vrot.slane %v5532, 4
    %v5789 = vrot.slane %v5533, 4
    %v5790 = vrot.slane %v5534, 4
    %v5791 = vrot.slane %v5535, 4
    %v5792 = vrot.slane %v5536, 4
    %v5793 = vrot.slane %v5537, 4
    %v5794 = vrot.slane %v5538, 4
    %v5795 = vrot.slane %v5539, 4
    %v5796 = vrot.slane %v5540, 4
    %v5797 = vrot.slane %v5541, 4
    %v5798 = vrot.slane %v5542, 4
    %v5799 = vrot.slane %v5543, 4
    %v5800 = vrot.slane %v5544, 4
    %v5801 = vrot.slane %v5545, 4
    %v5802 = vrot.slane %v5546, 4
    %v5803 = vrot.slane %v5547, 4
    %v5804 = vrot.slane %v5548, 4
    %v5805 = vrot.slane %v5549, 4
    %v5806 = vrot.slane %v5550, 4
    %v5807 = vrot.slane %v5551, 4
    %v5808 = vrot.slane %v5552, 4
    %v5809 = vrot.slane %v5553, 4
    %v5810 = vrot.slane %v5554, 4
    %v5811 = vrot.slane %v5555, 4
    %v5812 = vrot.slane %v5556, 4
    %v5813 = vrot.slane %v5557, 4
    %v5814 = vrot.slane %v5558, 4
    %v5815 = vrot.slane %v5559, 4
    %v5816 = vrot.slane %v5560, 4
    %v5817 = vrot.slane %v5561, 4
    %v5818 = vrot.slane %v5562, 4
    %v5819 = vrot.slane %v5563, 4
    %v5820 = vrot.slane %v5564, 4
    %v5821 = vrot.slane %v5565, 4
    %v5822 = vrot.slane %v5566, 4
    %v5823 = vrot.slane %v5567, 4
    %v5824 = vrot.slane %v5568, 4
    %v5825 = vrot.slane %v5569, 4
    %v5826 = vrot.slane %v5570, 4
    %v5827 = vrot.slane %v5571, 4
    %v5828 = vrot.slane %v5572, 4
    %v5829 = vrot.slane %v5573, 4
    %v5830 = vrot.slane %v5574, 4
    %v5831 = vrot.slane %v5575, 4
    %v5832 = vrot.slane %v5576, 4
    %v5833 = vrot.slane %v5577, 4
    %v5834 = vrot.slane %v5578, 4
    %v5835 = vrot.slane %v5579, 4
    %v5836 = vrot.slane %v5580, 4
    %v5837 = vrot.slane %v5581, 4
    %v5838 = vrot.slane %v5582, 4
    %v5839 = vrot.slane %v5583, 4
    %v5840 = vrot.slane %v5584, 4
    %v5841 = vrot.slane %v5585, 4
    %v5842 = vrot.slane %v5586, 4
    %v5843 = vrot.slane %v5587, 4
    %v5844 = vrot.slane %v5588, 4
    %v5845 = vrot.slane %v5589, 4
    %v5846 = vrot.slane %v5590, 4
    %v5847 = vrot.slane %v5591, 4
    %v5848 = vrot.slane %v5592, 4
    %v5849 = vrot.slane %v5593, 4
    %v5850 = vrot.slane %v5594, 4
    %v5851 = vrot.slane %v5595, 4
    %v5852 = vrot.slane %v5596, 4
    %v5853 = vrot.slane %v5597, 4
    %v5854 = vrot.slane %v5598, 4
    %v5855 = vrot.slane %v5599, 4
    %v5856 = vrot.slane %v5600, 4
    %v5857 = vrot.slane %v5601, 4
    %v5858 = vrot.slane %v5602, 4
    %v5859 = vrot.slane %v5603, 4
    %v5860 = vrot.slane %v5604, 4
    %v5861 = vrot.slane %v5605, 4
    %v5862 = vrot.slane %v5606, 4
    %v5863 = vrot.slane %v5607, 4
    %v5864 = vrot.slane %v5608, 4
    %v5865 = vrot.slane %v5609, 4
    %v5866 = vrot.slane %v5610, 4
    %v5867 = vrot.slane %v5611, 4
    %v5868 = vrot.slane %v5612, 4
    %v5869 = vrot.slane %v5613, 4
    %v5870 = vrot.slane %v5614, 4
    %v5871 = vrot.slane %v5615, 4
    %v5872 = vrot.slane %v5616, 4
    %v5873 = vrot.slane %v5617, 4
    %v5874 = vrot.slane %v5618, 4
    %v5875 = vrot.slane %v5619, 4
    %v5876 = vrot.slane %v5620, 4
    %v5877 = vrot.slane %v5621, 4
    %v5878 = vrot.slane %v5622, 4
    %v5879 = vrot.slane %v5623, 4
    %v5880 = vrot.slane %v5624, 4
    %v5881 = vrot.slane %v5625, 4
    %v5882 = vrot.slane %v5626, 4
    %v5883 = vrot.slane %v5627, 4
    %v5884 = vrot.slane %v5628, 4
    %v5885 = vrot.slane %v5629, 4
    %v5886 = vrot.slane %v5630, 4
    %v5887 = vrot.slane %v5631, 4
    %v5888 = vrot.slane %v5632, 4
    %v5889 = vrot.slane %v5633, 4
    %v5890 = vrot.slane %v5634, 4
    %v5891 = vrot.slane %v5635, 4
    %v5892 = vrot.slane %v5636, 4
    %v5893 = vrot.slane %v5637, 4
    %v5894 = vrot.slane %v5638, 4
    %v5895 = vrot.slane %v5639, 4
    %5896 = vst [vmem:[#allocation1] ss:$2 sm:$0xff] %v5512
    %s5897 = scalar_lea.vmem [#allocation1], 1
    %5898 = vst [vmem:[%s5897] ss:$2 sm:$0xff] %v5768
    %s5899 = scalar_lea.vmem [#allocation1], 16
    %5900 = vst [vmem:[%s5899] ss:$2 sm:$0xff] %v5513
    %s5901 = scalar_lea.vmem [#allocation1], 17
    %5902 = vst [vmem:[%s5901] ss:$2 sm:$0xff] %v5769
    %s5903 = scalar_lea.vmem [#allocation1], 32
    %5904 = vst [vmem:[%s5903] ss:$2 sm:$0xff] %v5514
    %s5905 = scalar_lea.vmem [#allocation1], 33
    %5906 = vst [vmem:[%s5905] ss:$2 sm:$0xff] %v5770
    %s5907 = scalar_lea.vmem [#allocation1], 48
    %5908 = vst [vmem:[%s5907] ss:$2 sm:$0xff] %v5515
    %s5909 = scalar_lea.vmem [#allocation1], 49
    %5910 = vst [vmem:[%s5909] ss:$2 sm:$0xff] %v5771
    %v5911 = vld.sshfl [vmem:[#allocation1] sm:$0xff pattern:$0x75316420]
    %v5912 = vld.sshfl [vmem:[#allocation1 + $0x10] sm:$0xff pattern:$0x75316420]
    %v5913 = vld.sshfl [vmem:[#allocation1 + $0x20] sm:$0xff pattern:$0x75316420]
    %v5914 = vld.sshfl [vmem:[#allocation1 + $0x30] sm:$0xff pattern:$0x75316420]
    %5915 = vst [vmem:[#allocation1] ss:$2 sm:$0xff] %v5516
    %5916 = vst [vmem:[%s5897] ss:$2 sm:$0xff] %v5772
    %5917 = vst [vmem:[%s5899] ss:$2 sm:$0xff] %v5517
    %5918 = vst [vmem:[%s5901] ss:$2 sm:$0xff] %v5773
    %5919 = vst [vmem:[%s5903] ss:$2 sm:$0xff] %v5518
    %5920 = vst [vmem:[%s5905] ss:$2 sm:$0xff] %v5774
    %5921 = vst [vmem:[%s5907] ss:$2 sm:$0xff] %v5519
    %5922 = vst [vmem:[%s5909] ss:$2 sm:$0xff] %v5775
    %v5923 = vld.sshfl [vmem:[#allocation1] sm:$0xff pattern:$0x75316420]
    %v5924 = vld.sshfl [vmem:[#allocation1 + $0x10] sm:$0xff pattern:$0x75316420]
    %v5925 = vld.sshfl [vmem:[#allocation1 + $0x20] sm:$0xff pattern:$0x75316420]
    %v5926 = vld.sshfl [vmem:[#allocation1 + $0x30] sm:$0xff pattern:$0x75316420]
    %5927 = vst [vmem:[#allocation1] ss:$2 sm:$0xff] %v5520
    %5928 = vst [vmem:[%s5897] ss:$2 sm:$0xff] %v5776
    %5929 = vst [vmem:[%s5899] ss:$2 sm:$0xff] %v5521
    %5930 = vst [vmem:[%s5901] ss:$2 sm:$0xff] %v5777
    %5931 = vst [vmem:[%s5903] ss:$2 sm:$0xff] %v5522
    %5932 = vst [vmem:[%s5905] ss:$2 sm:$0xff] %v5778
    %5933 = vst [vmem:[%s5907] ss:$2 sm:$0xff] %v5523
    %5934 = vst [vmem:[%s5909] ss:$2 sm:$0xff] %v5779
    %v5935 = vld.sshfl [vmem:[#allocation1] sm:$0xff pattern:$0x75316420]
    %v5936 = vld.sshfl [vmem:[#allocation1 + $0x10] sm:$0xff pattern:$0x75316420]
    %v5937 = vld.sshfl [vmem:[#allocation1 + $0x20] sm:$0xff pattern:$0x75316420]
    %v5938 = vld.sshfl [vmem:[#allocation1 + $0x30] sm:$0xff pattern:$0x75316420]
    %5939 = vst [vmem:[#allocation1] ss:$2 sm:$0xff] %v5524
    %5940 = vst [vmem:[%s5897] ss:$2 sm:$0xff] %v5780
    %5941 = vst [vmem:[%s5899] ss:$2 sm:$0xff] %v5525
    %5942 = vst [vmem:[%s5901] ss:$2 sm:$0xff] %v5781
    %5943 = vst [vmem:[%s5903] ss:$2 sm:$0xff] %v5526
    %5944 = vst [vmem:[%s5905] ss:$2 sm:$0xff] %v5782
    %5945 = vst [vmem:[%s5907] ss:$2 sm:$0xff] %v5527
    %5946 = vst [vmem:[%s5909] ss:$2 sm:$0xff] %v5783
    %v5947 = vld.sshfl [vmem:[#allocation1] sm:$0xff pattern:$0x75316420]
    %v5948 = vld.sshfl [vmem:[#allocation1 + $0x10] sm:$0xff pattern:$0x75316420]
    %v5949 = vld.sshfl [vmem:[#allocation1 + $0x20] sm:$0xff pattern:$0x75316420]
    %v5950 = vld.sshfl [vmem:[#allocation1 + $0x30] sm:$0xff pattern:$0x75316420]
    %5951 = vst [vmem:[#allocation1] ss:$2 sm:$0xff] %v5528
    %5952 = vst [vmem:[%s5897] ss:$2 sm:$0xff] %v5784
    %5953 = vst [vmem:[%s5899] ss:$2 sm:$0xff] %v5529
    %5954 = vst [vmem:[%s5901] ss:$2 sm:$0xff] %v5785
    %5955 = vst [vmem:[%s5903] ss:$2 sm:$0xff] %v5530
    %5956 = vst [vmem:[%s5905] ss:$2 sm:$0xff] %v5786
    %5957 = vst [vmem:[%s5907] ss:$2 sm:$0xff] %v5531
    %5958 = vst [vmem:[%s5909] ss:$2 sm:$0xff] %v5787
    %v5959 = vld.sshfl [vmem:[#allocation1] sm:$0xff pattern:$0x75316420]
    %v5960 = vld.sshfl [vmem:[#allocation1 + $0x10] sm:$0xff pattern:$0x75316420]
    %v5961 = vld.sshfl [vmem:[#allocation1 + $0x20] sm:$0xff pattern:$0x75316420]
    %v5962 = vld.sshfl [vmem:[#allocation1 + $0x30] sm:$0xff pattern:$0x75316420]
    %5963 = vst [vmem:[#allocation1] ss:$2 sm:$0xff] %v5532
    %5964 = vst [vmem:[%s5897] ss:$2 sm:$0xff] %v5788
    %5965 = vst [vmem:[%s5899] ss:$2 sm:$0xff] %v5533
    %5966 = vst [vmem:[%s5901] ss:$2 sm:$0xff] %v5789
    %5967 = vst [vmem:[%s5903] ss:$2 sm:$0xff] %v5534
    %5968 = vst [vmem:[%s5905] ss:$2 sm:$0xff] %v5790
    %5969 = vst [vmem:[%s5907] ss:$2 sm:$0xff] %v5535
    %5970 = vst [vmem:[%s5909] ss:$2 sm:$0xff] %v5791
    %v5971 = vld.sshfl [vmem:[#allocation1] sm:$0xff pattern:$0x75316420]
    %v5972 = vld.sshfl [vmem:[#allocation1 + $0x10] sm:$0xff pattern:$0x75316420]
    %v5973 = vld.sshfl [vmem:[#allocation1 + $0x20] sm:$0xff pattern:$0x75316420]
    %v5974 = vld.sshfl [vmem:[#allocation1 + $0x30] sm:$0xff pattern:$0x75316420]
    %5975 = vst [vmem:[#allocation1] ss:$2 sm:$0xff] %v5536
    %5976 = vst [vmem:[%s5897] ss:$2 sm:$0xff] %v5792
    %5977 = vst [vmem:[%s5899] ss:$2 sm:$0xff] %v5537
    %5978 = vst [vmem:[%s5901] ss:$2 sm:$0xff] %v5793
    %5979 = vst [vmem:[%s5903] ss:$2 sm:$0xff] %v5538
    %5980 = vst [vmem:[%s5905] ss:$2 sm:$0xff] %v5794
    %5981 = vst [vmem:[%s5907] ss:$2 sm:$0xff] %v5539
    %5982 = vst [vmem:[%s5909] ss:$2 sm:$0xff] %v5795
    %v5983 = vld.sshfl [vmem:[#allocation1] sm:$0xff pattern:$0x75316420]
    %v5984 = vld.sshfl [vmem:[#allocation1 + $0x10] sm:$0xff pattern:$0x75316420]
    %v5985 = vld.sshfl [vmem:[#allocation1 + $0x20] sm:$0xff pattern:$0x75316420]
    %v5986 = vld.sshfl [vmem:[#allocation1 + $0x30] sm:$0xff pattern:$0x75316420]
    %5987 = vst [vmem:[#allocation1] ss:$2 sm:$0xff] %v5540
    %5988 = vst [vmem:[%s5897] ss:$2 sm:$0xff] %v5796
    %5989 = vst [vmem:[%s5899] ss:$2 sm:$0xff] %v5541
    %5990 = vst [vmem:[%s5901] ss:$2 sm:$0xff] %v5797
    %5991 = vst [vmem:[%s5903] ss:$2 sm:$0xff] %v5542
    %5992 = vst [vmem:[%s5905] ss:$2 sm:$0xff] %v5798
    %5993 = vst [vmem:[%s5907] ss:$2 sm:$0xff] %v5543
    %5994 = vst [vmem:[%s5909] ss:$2 sm:$0xff] %v5799
    %v5995 = vld.sshfl [vmem:[#allocation1] sm:$0xff pattern:$0x75316420]
    %v5996 = vld.sshfl [vmem:[#allocation1 + $0x10] sm:$0xff pattern:$0x75316420]
    %v5997 = vld.sshfl [vmem:[#allocation1 + $0x20] sm:$0xff pattern:$0x75316420]
    %v5998 = vld.sshfl [vmem:[#allocation1 + $0x30] sm:$0xff pattern:$0x75316420]
    %5999 = vst [vmem:[#allocation1] ss:$2 sm:$0xff] %v5544
    %6000 = vst [vmem:[%s5897] ss:$2 sm:$0xff] %v5800
    %6001 = vst [vmem:[%s5899] ss:$2 sm:$0xff] %v5545
    %6002 = vst [vmem:[%s5901] ss:$2 sm:$0xff] %v5801
    %6003 = vst [vmem:[%s5903] ss:$2 sm:$0xff] %v5546
    %6004 = vst [vmem:[%s5905] ss:$2 sm:$0xff] %v5802
    %6005 = vst [vmem:[%s5907] ss:$2 sm:$0xff] %v5547
    %6006 = vst [vmem:[%s5909] ss:$2 sm:$0xff] %v5803
    %v6007 = vld.sshfl [vmem:[#allocation1] sm:$0xff pattern:$0x75316420]
    %v6008 = vld.sshfl [vmem:[#allocation1 + $0x10] sm:$0xff pattern:$0x75316420]
    %v6009 = vld.sshfl [vmem:[#allocation1 + $0x20] sm:$0xff pattern:$0x75316420]
    %v6010 = vld.sshfl [vmem:[#allocation1 + $0x30] sm:$0xff pattern:$0x75316420]
    %6011 = vst [vmem:[#allocation1] ss:$2 sm:$0xff] %v5548
    %6012 = vst [vmem:[%s5897] ss:$2 sm:$0xff] %v5804
    %6013 = vst [vmem:[%s5899] ss:$2 sm:$0xff] %v5549
    %6014 = vst [vmem:[%s5901] ss:$2 sm:$0xff] %v5805
    %6015 = vst [vmem:[%s5903] ss:$2 sm:$0xff] %v5550
    %6016 = vst [vmem:[%s5905] ss:$2 sm:$0xff] %v5806
    %6017 = vst [vmem:[%s5907] ss:$2 sm:$0xff] %v5551
    %6018 = vst [vmem:[%s5909] ss:$2 sm:$0xff] %v5807
    %v6019 = vld.sshfl [vmem:[#allocation1] sm:$0xff pattern:$0x75316420]
    %v6020 = vld.sshfl [vmem:[#allocation1 + $0x10] sm:$0xff pattern:$0x75316420]
    %v6021 = vld.sshfl [vmem:[#allocation1 + $0x20] sm:$0xff pattern:$0x75316420]
    %v6022 = vld.sshfl [vmem:[#allocation1 + $0x30] sm:$0xff pattern:$0x75316420]
    %6023 = vst [vmem:[#allocation1] ss:$2 sm:$0xff] %v5552
    %6024 = vst [vmem:[%s5897] ss:$2 sm:$0xff] %v5808
    %6025 = vst [vmem:[%s5899] ss:$2 sm:$0xff] %v5553
    %6026 = vst [vmem:[%s5901] ss:$2 sm:$0xff] %v5809
    %6027 = vst [vmem:[%s5903] ss:$2 sm:$0xff] %v5554
    %6028 = vst [vmem:[%s5905] ss:$2 sm:$0xff] %v5810
    %6029 = vst [vmem:[%s5907] ss:$2 sm:$0xff] %v5555
    %6030 = vst [vmem:[%s5909] ss:$2 sm:$0xff] %v5811
    %v6031 = vld.sshfl [vmem:[#allocation1] sm:$0xff pattern:$0x75316420]
    %v6032 = vld.sshfl [vmem:[#allocation1 + $0x10] sm:$0xff pattern:$0x75316420]
    %v6033 = vld.sshfl [vmem:[#allocation1 + $0x20] sm:$0xff pattern:$0x75316420]
    %v6034 = vld.sshfl [vmem:[#allocation1 + $0x30] sm:$0xff pattern:$0x75316420]
    %6035 = vst [vmem:[#allocation1] ss:$2 sm:$0xff] %v5556
    %6036 = vst [vmem:[%s5897] ss:$2 sm:$0xff] %v5812
    %6037 = vst [vmem:[%s5899] ss:$2 sm:$0xff] %v5557
    %6038 = vst [vmem:[%s5901] ss:$2 sm:$0xff] %v5813
    %6039 = vst [vmem:[%s5903] ss:$2 sm:$0xff] %v5558
    %6040 = vst [vmem:[%s5905] ss:$2 sm:$0xff] %v5814
    %6041 = vst [vmem:[%s5907] ss:$2 sm:$0xff] %v5559
    %6042 = vst [vmem:[%s5909] ss:$2 sm:$0xff] %v5815
    %v6043 = vld.sshfl [vmem:[#allocation1] sm:$0xff pattern:$0x75316420]
    %v6044 = vld.sshfl [vmem:[#allocation1 + $0x10] sm:$0xff pattern:$0x75316420]
    %v6045 = vld.sshfl [vmem:[#allocation1 + $0x20] sm:$0xff pattern:$0x75316420]
    %v6046 = vld.sshfl [vmem:[#allocation1 + $0x30] sm:$0xff pattern:$0x75316420]
    %6047 = vst [vmem:[#allocation1] ss:$2 sm:$0xff] %v5560
    %6048 = vst [vmem:[%s5897] ss:$2 sm:$0xff] %v5816
    %6049 = vst [vmem:[%s5899] ss:$2 sm:$0xff] %v5561
    %6050 = vst [vmem:[%s5901] ss:$2 sm:$0xff] %v5817
    %6051 = vst [vmem:[%s5903] ss:$2 sm:$0xff] %v5562
    %6052 = vst [vmem:[%s5905] ss:$2 sm:$0xff] %v5818
    %6053 = vst [vmem:[%s5907] ss:$2 sm:$0xff] %v5563
    %6054 = vst [vmem:[%s5909] ss:$2 sm:$0xff] %v5819
    %v6055 = vld.sshfl [vmem:[#allocation1] sm:$0xff pattern:$0x75316420]
    %v6056 = vld.sshfl [vmem:[#allocation1 + $0x10] sm:$0xff pattern:$0x75316420]
    %v6057 = vld.sshfl [vmem:[#allocation1 + $0x20] sm:$0xff pattern:$0x75316420]
    %v6058 = vld.sshfl [vmem:[#allocation1 + $0x30] sm:$0xff pattern:$0x75316420]
    %6059 = vst [vmem:[#allocation1] ss:$2 sm:$0xff] %v5564
    %6060 = vst [vmem:[%s5897] ss:$2 sm:$0xff] %v5820
    %6061 = vst [vmem:[%s5899] ss:$2 sm:$0xff] %v5565
    %6062 = vst [vmem:[%s5901] ss:$2 sm:$0xff] %v5821
    %6063 = vst [vmem:[%s5903] ss:$2 sm:$0xff] %v5566
    %6064 = vst [vmem:[%s5905] ss:$2 sm:$0xff] %v5822
    %6065 = vst [vmem:[%s5907] ss:$2 sm:$0xff] %v5567
    %6066 = vst [vmem:[%s5909] ss:$2 sm:$0xff] %v5823
    %v6067 = vld.sshfl [vmem:[#allocation1] sm:$0xff pattern:$0x75316420]
    %v6068 = vld.sshfl [vmem:[#allocation1 + $0x10] sm:$0xff pattern:$0x75316420]
    %v6069 = vld.sshfl [vmem:[#allocation1 + $0x20] sm:$0xff pattern:$0x75316420]
    %v6070 = vld.sshfl [vmem:[#allocation1 + $0x30] sm:$0xff pattern:$0x75316420]
    %6071 = vst [vmem:[#allocation1] ss:$2 sm:$0xff] %v5568
    %6072 = vst [vmem:[%s5897] ss:$2 sm:$0xff] %v5824
    %6073 = vst [vmem:[%s5899] ss:$2 sm:$0xff] %v5569
    %6074 = vst [vmem:[%s5901] ss:$2 sm:$0xff] %v5825
    %6075 = vst [vmem:[%s5903] ss:$2 sm:$0xff] %v5570
    %6076 = vst [vmem:[%s5905] ss:$2 sm:$0xff] %v5826
    %6077 = vst [vmem:[%s5907] ss:$2 sm:$0xff] %v5571
    %6078 = vst [vmem:[%s5909] ss:$2 sm:$0xff] %v5827
    %v6079 = vld.sshfl [vmem:[#allocation1] sm:$0xff pattern:$0x75316420]
    %v6080 = vld.sshfl [vmem:[#allocation1 + $0x10] sm:$0xff pattern:$0x75316420]
    %v6081 = vld.sshfl [vmem:[#allocation1 + $0x20] sm:$0xff pattern:$0x75316420]
    %v6082 = vld.sshfl [vmem:[#allocation1 + $0x30] sm:$0xff pattern:$0x75316420]
    %6083 = vst [vmem:[#allocation1] ss:$2 sm:$0xff] %v5572
    %6084 = vst [vmem:[%s5897] ss:$2 sm:$0xff] %v5828
    %6085 = vst [vmem:[%s5899] ss:$2 sm:$0xff] %v5573
    %6086 = vst [vmem:[%s5901] ss:$2 sm:$0xff] %v5829
    %6087 = vst [vmem:[%s5903] ss:$2 sm:$0xff] %v5574
    %6088 = vst [vmem:[%s5905] ss:$2 sm:$0xff] %v5830
    %6089 = vst [vmem:[%s5907] ss:$2 sm:$0xff] %v5575
    %6090 = vst [vmem:[%s5909] ss:$2 sm:$0xff] %v5831
    %v6091 = vld.sshfl [vmem:[#allocation1] sm:$0xff pattern:$0x75316420]
    %v6092 = vld.sshfl [vmem:[#allocation1 + $0x10] sm:$0xff pattern:$0x75316420]
    %v6093 = vld.sshfl [vmem:[#allocation1 + $0x20] sm:$0xff pattern:$0x75316420]
    %v6094 = vld.sshfl [vmem:[#allocation1 + $0x30] sm:$0xff pattern:$0x75316420]
    %6095 = vst [vmem:[#allocation1] ss:$2 sm:$0xff] %v5576
    %6096 = vst [vmem:[%s5897] ss:$2 sm:$0xff] %v5832
    %6097 = vst [vmem:[%s5899] ss:$2 sm:$0xff] %v5577
    %6098 = vst [vmem:[%s5901] ss:$2 sm:$0xff] %v5833
    %6099 = vst [vmem:[%s5903] ss:$2 sm:$0xff] %v5578
    %6100 = vst [vmem:[%s5905] ss:$2 sm:$0xff] %v5834
    %6101 = vst [vmem:[%s5907] ss:$2 sm:$0xff] %v5579
    %6102 = vst [vmem:[%s5909] ss:$2 sm:$0xff] %v5835
    %v6103 = vld.sshfl [vmem:[#allocation1] sm:$0xff pattern:$0x75316420]
    %v6104 = vld.sshfl [vmem:[#allocation1 + $0x10] sm:$0xff pattern:$0x75316420]
    %v6105 = vld.sshfl [vmem:[#allocation1 + $0x20] sm:$0xff pattern:$0x75316420]
    %v6106 = vld.sshfl [vmem:[#allocation1 + $0x30] sm:$0xff pattern:$0x75316420]
    %6107 = vst [vmem:[#allocation1] ss:$2 sm:$0xff] %v5580
    %6108 = vst [vmem:[%s5897] ss:$2 sm:$0xff] %v5836
    %6109 = vst [vmem:[%s5899] ss:$2 sm:$0xff] %v5581
    %6110 = vst [vmem:[%s5901] ss:$2 sm:$0xff] %v5837
    %6111 = vst [vmem:[%s5903] ss:$2 sm:$0xff] %v5582
    %6112 = vst [vmem:[%s5905] ss:$2 sm:$0xff] %v5838
    %6113 = vst [vmem:[%s5907] ss:$2 sm:$0xff] %v5583
    %6114 = vst [vmem:[%s5909] ss:$2 sm:$0xff] %v5839
    %v6115 = vld.sshfl [vmem:[#allocation1] sm:$0xff pattern:$0x75316420]
    %v6116 = vld.sshfl [vmem:[#allocation1 + $0x10] sm:$0xff pattern:$0x75316420]
    %v6117 = vld.sshfl [vmem:[#allocation1 + $0x20] sm:$0xff pattern:$0x75316420]
    %v6118 = vld.sshfl [vmem:[#allocation1 + $0x30] sm:$0xff pattern:$0x75316420]
    %6119 = vst [vmem:[#allocation1] ss:$2 sm:$0xff] %v5584
    %6120 = vst [vmem:[%s5897] ss:$2 sm:$0xff] %v5840
    %6121 = vst [vmem:[%s5899] ss:$2 sm:$0xff] %v5585
    %6122 = vst [vmem:[%s5901] ss:$2 sm:$0xff] %v5841
    %6123 = vst [vmem:[%s5903] ss:$2 sm:$0xff] %v5586
    %6124 = vst [vmem:[%s5905] ss:$2 sm:$0xff] %v5842
    %6125 = vst [vmem:[%s5907] ss:$2 sm:$0xff] %v5587
    %6126 = vst [vmem:[%s5909] ss:$2 sm:$0xff] %v5843
    %v6127 = vld.sshfl [vmem:[#allocation1] sm:$0xff pattern:$0x75316420]
    %v6128 = vld.sshfl [vmem:[#allocation1 + $0x10] sm:$0xff pattern:$0x75316420]
    %v6129 = vld.sshfl [vmem:[#allocation1 + $0x20] sm:$0xff pattern:$0x75316420]
    %v6130 = vld.sshfl [vmem:[#allocation1 + $0x30] sm:$0xff pattern:$0x75316420]
    %6131 = vst [vmem:[#allocation1] ss:$2 sm:$0xff] %v5588
    %6132 = vst [vmem:[%s5897] ss:$2 sm:$0xff] %v5844
    %6133 = vst [vmem:[%s5899] ss:$2 sm:$0xff] %v5589
    %6134 = vst [vmem:[%s5901] ss:$2 sm:$0xff] %v5845
    %6135 = vst [vmem:[%s5903] ss:$2 sm:$0xff] %v5590
    %6136 = vst [vmem:[%s5905] ss:$2 sm:$0xff] %v5846
    %6137 = vst [vmem:[%s5907] ss:$2 sm:$0xff] %v5591
    %6138 = vst [vmem:[%s5909] ss:$2 sm:$0xff] %v5847
    %v6139 = vld.sshfl [vmem:[#allocation1] sm:$0xff pattern:$0x75316420]
    %v6140 = vld.sshfl [vmem:[#allocation1 + $0x10] sm:$0xff pattern:$0x75316420]
    %v6141 = vld.sshfl [vmem:[#allocation1 + $0x20] sm:$0xff pattern:$0x75316420]
    %v6142 = vld.sshfl [vmem:[#allocation1 + $0x30] sm:$0xff pattern:$0x75316420]
    %6143 = vst [vmem:[#allocation1] ss:$2 sm:$0xff] %v5592
    %6144 = vst [vmem:[%s5897] ss:$2 sm:$0xff] %v5848
    %6145 = vst [vmem:[%s5899] ss:$2 sm:$0xff] %v5593
    %6146 = vst [vmem:[%s5901] ss:$2 sm:$0xff] %v5849
    %6147 = vst [vmem:[%s5903] ss:$2 sm:$0xff] %v5594
    %6148 = vst [vmem:[%s5905] ss:$2 sm:$0xff] %v5850
    %6149 = vst [vmem:[%s5907] ss:$2 sm:$0xff] %v5595
    %6150 = vst [vmem:[%s5909] ss:$2 sm:$0xff] %v5851
    %v6151 = vld.sshfl [vmem:[#allocation1] sm:$0xff pattern:$0x75316420]
    %v6152 = vld.sshfl [vmem:[#allocation1 + $0x10] sm:$0xff pattern:$0x75316420]
    %v6153 = vld.sshfl [vmem:[#allocation1 + $0x20] sm:$0xff pattern:$0x75316420]
    %v6154 = vld.sshfl [vmem:[#allocation1 + $0x30] sm:$0xff pattern:$0x75316420]
    %6155 = vst [vmem:[#allocation1] ss:$2 sm:$0xff] %v5596
    %6156 = vst [vmem:[%s5897] ss:$2 sm:$0xff] %v5852
    %6157 = vst [vmem:[%s5899] ss:$2 sm:$0xff] %v5597
    %6158 = vst [vmem:[%s5901] ss:$2 sm:$0xff] %v5853
    %6159 = vst [vmem:[%s5903] ss:$2 sm:$0xff] %v5598
    %6160 = vst [vmem:[%s5905] ss:$2 sm:$0xff] %v5854
    %6161 = vst [vmem:[%s5907] ss:$2 sm:$0xff] %v5599
    %6162 = vst [vmem:[%s5909] ss:$2 sm:$0xff] %v5855
    %v6163 = vld.sshfl [vmem:[#allocation1] sm:$0xff pattern:$0x75316420]
    %v6164 = vld.sshfl [vmem:[#allocation1 + $0x10] sm:$0xff pattern:$0x75316420]
    %v6165 = vld.sshfl [vmem:[#allocation1 + $0x20] sm:$0xff pattern:$0x75316420]
    %v6166 = vld.sshfl [vmem:[#allocation1 + $0x30] sm:$0xff pattern:$0x75316420]
    %6167 = vst [vmem:[#allocation1] ss:$2 sm:$0xff] %v5600
    %6168 = vst [vmem:[%s5897] ss:$2 sm:$0xff] %v5856
    %6169 = vst [vmem:[%s5899] ss:$2 sm:$0xff] %v5601
    %6170 = vst [vmem:[%s5901] ss:$2 sm:$0xff] %v5857
    %6171 = vst [vmem:[%s5903] ss:$2 sm:$0xff] %v5602
    %6172 = vst [vmem:[%s5905] ss:$2 sm:$0xff] %v5858
    %6173 = vst [vmem:[%s5907] ss:$2 sm:$0xff] %v5603
    %6174 = vst [vmem:[%s5909] ss:$2 sm:$0xff] %v5859
    %v6175 = vld.sshfl [vmem:[#allocation1] sm:$0xff pattern:$0x75316420]
    %v6176 = vld.sshfl [vmem:[#allocation1 + $0x10] sm:$0xff pattern:$0x75316420]
    %v6177 = vld.sshfl [vmem:[#allocation1 + $0x20] sm:$0xff pattern:$0x75316420]
    %v6178 = vld.sshfl [vmem:[#allocation1 + $0x30] sm:$0xff pattern:$0x75316420]
    %6179 = vst [vmem:[#allocation1] ss:$2 sm:$0xff] %v5604
    %6180 = vst [vmem:[%s5897] ss:$2 sm:$0xff] %v5860
    %6181 = vst [vmem:[%s5899] ss:$2 sm:$0xff] %v5605
    %6182 = vst [vmem:[%s5901] ss:$2 sm:$0xff] %v5861
    %6183 = vst [vmem:[%s5903] ss:$2 sm:$0xff] %v5606
    %6184 = vst [vmem:[%s5905] ss:$2 sm:$0xff] %v5862
    %6185 = vst [vmem:[%s5907] ss:$2 sm:$0xff] %v5607
    %6186 = vst [vmem:[%s5909] ss:$2 sm:$0xff] %v5863
    %v6187 = vld.sshfl [vmem:[#allocation1] sm:$0xff pattern:$0x75316420]
    %v6188 = vld.sshfl [vmem:[#allocation1 + $0x10] sm:$0xff pattern:$0x75316420]
    %v6189 = vld.sshfl [vmem:[#allocation1 + $0x20] sm:$0xff pattern:$0x75316420]
    %v6190 = vld.sshfl [vmem:[#allocation1 + $0x30] sm:$0xff pattern:$0x75316420]
    %6191 = vst [vmem:[#allocation1] ss:$2 sm:$0xff] %v5608
    %6192 = vst [vmem:[%s5897] ss:$2 sm:$0xff] %v5864
    %6193 = vst [vmem:[%s5899] ss:$2 sm:$0xff] %v5609
    %6194 = vst [vmem:[%s5901] ss:$2 sm:$0xff] %v5865
    %6195 = vst [vmem:[%s5903] ss:$2 sm:$0xff] %v5610
    %6196 = vst [vmem:[%s5905] ss:$2 sm:$0xff] %v5866
    %6197 = vst [vmem:[%s5907] ss:$2 sm:$0xff] %v5611
    %6198 = vst [vmem:[%s5909] ss:$2 sm:$0xff] %v5867
    %v6199 = vld.sshfl [vmem:[#allocation1] sm:$0xff pattern:$0x75316420]
    %v6200 = vld.sshfl [vmem:[#allocation1 + $0x10] sm:$0xff pattern:$0x75316420]
    %v6201 = vld.sshfl [vmem:[#allocation1 + $0x20] sm:$0xff pattern:$0x75316420]
    %v6202 = vld.sshfl [vmem:[#allocation1 + $0x30] sm:$0xff pattern:$0x75316420]
    %6203 = vst [vmem:[#allocation1] ss:$2 sm:$0xff] %v5612
    %6204 = vst [vmem:[%s5897] ss:$2 sm:$0xff] %v5868
    %6205 = vst [vmem:[%s5899] ss:$2 sm:$0xff] %v5613
    %6206 = vst [vmem:[%s5901] ss:$2 sm:$0xff] %v5869
    %6207 = vst [vmem:[%s5903] ss:$2 sm:$0xff] %v5614
    %6208 = vst [vmem:[%s5905] ss:$2 sm:$0xff] %v5870
    %6209 = vst [vmem:[%s5907] ss:$2 sm:$0xff] %v5615
    %6210 = vst [vmem:[%s5909] ss:$2 sm:$0xff] %v5871
    %v6211 = vld.sshfl [vmem:[#allocation1] sm:$0xff pattern:$0x75316420]
    %v6212 = vld.sshfl [vmem:[#allocation1 + $0x10] sm:$0xff pattern:$0x75316420]
    %v6213 = vld.sshfl [vmem:[#allocation1 + $0x20] sm:$0xff pattern:$0x75316420]
    %v6214 = vld.sshfl [vmem:[#allocation1 + $0x30] sm:$0xff pattern:$0x75316420]
    %6215 = vst [vmem:[#allocation1] ss:$2 sm:$0xff] %v5616
    %6216 = vst [vmem:[%s5897] ss:$2 sm:$0xff] %v5872
    %6217 = vst [vmem:[%s5899] ss:$2 sm:$0xff] %v5617
    %6218 = vst [vmem:[%s5901] ss:$2 sm:$0xff] %v5873
    %6219 = vst [vmem:[%s5903] ss:$2 sm:$0xff] %v5618
    %6220 = vst [vmem:[%s5905] ss:$2 sm:$0xff] %v5874
    %6221 = vst [vmem:[%s5907] ss:$2 sm:$0xff] %v5619
    %6222 = vst [vmem:[%s5909] ss:$2 sm:$0xff] %v5875
    %v6223 = vld.sshfl [vmem:[#allocation1] sm:$0xff pattern:$0x75316420]
    %v6224 = vld.sshfl [vmem:[#allocation1 + $0x10] sm:$0xff pattern:$0x75316420]
    %v6225 = vld.sshfl [vmem:[#allocation1 + $0x20] sm:$0xff pattern:$0x75316420]
    %v6226 = vld.sshfl [vmem:[#allocation1 + $0x30] sm:$0xff pattern:$0x75316420]
    %6227 = vst [vmem:[#allocation1] ss:$2 sm:$0xff] %v5620
    %6228 = vst [vmem:[%s5897] ss:$2 sm:$0xff] %v5876
    %6229 = vst [vmem:[%s5899] ss:$2 sm:$0xff] %v5621
    %6230 = vst [vmem:[%s5901] ss:$2 sm:$0xff] %v5877
    %6231 = vst [vmem:[%s5903] ss:$2 sm:$0xff] %v5622
    %6232 = vst [vmem:[%s5905] ss:$2 sm:$0xff] %v5878
    %6233 = vst [vmem:[%s5907] ss:$2 sm:$0xff] %v5623
    %6234 = vst [vmem:[%s5909] ss:$2 sm:$0xff] %v5879
    %v6235 = vld.sshfl [vmem:[#allocation1] sm:$0xff pattern:$0x75316420]
    %v6236 = vld.sshfl [vmem:[#allocation1 + $0x10] sm:$0xff pattern:$0x75316420]
    %v6237 = vld.sshfl [vmem:[#allocation1 + $0x20] sm:$0xff pattern:$0x75316420]
    %v6238 = vld.sshfl [vmem:[#allocation1 + $0x30] sm:$0xff pattern:$0x75316420]
    %6239 = vst [vmem:[#allocation1] ss:$2 sm:$0xff] %v5624
    %6240 = vst [vmem:[%s5897] ss:$2 sm:$0xff] %v5880
    %6241 = vst [vmem:[%s5899] ss:$2 sm:$0xff] %v5625
    %6242 = vst [vmem:[%s5901] ss:$2 sm:$0xff] %v5881
    %6243 = vst [vmem:[%s5903] ss:$2 sm:$0xff] %v5626
    %6244 = vst [vmem:[%s5905] ss:$2 sm:$0xff] %v5882
    %6245 = vst [vmem:[%s5907] ss:$2 sm:$0xff] %v5627
    %6246 = vst [vmem:[%s5909] ss:$2 sm:$0xff] %v5883
    %v6247 = vld.sshfl [vmem:[#allocation1] sm:$0xff pattern:$0x75316420]
    %v6248 = vld.sshfl [vmem:[#allocation1 + $0x10] sm:$0xff pattern:$0x75316420]
    %v6249 = vld.sshfl [vmem:[#allocation1 + $0x20] sm:$0xff pattern:$0x75316420]
    %v6250 = vld.sshfl [vmem:[#allocation1 + $0x30] sm:$0xff pattern:$0x75316420]
    %6251 = vst [vmem:[#allocation1] ss:$2 sm:$0xff] %v5628
    %6252 = vst [vmem:[%s5897] ss:$2 sm:$0xff] %v5884
    %6253 = vst [vmem:[%s5899] ss:$2 sm:$0xff] %v5629
    %6254 = vst [vmem:[%s5901] ss:$2 sm:$0xff] %v5885
    %6255 = vst [vmem:[%s5903] ss:$2 sm:$0xff] %v5630
    %6256 = vst [vmem:[%s5905] ss:$2 sm:$0xff] %v5886
    %6257 = vst [vmem:[%s5907] ss:$2 sm:$0xff] %v5631
    %6258 = vst [vmem:[%s5909] ss:$2 sm:$0xff] %v5887
    %v6259 = vld.sshfl [vmem:[#allocation1] sm:$0xff pattern:$0x75316420]
    %v6260 = vld.sshfl [vmem:[#allocation1 + $0x10] sm:$0xff pattern:$0x75316420]
    %v6261 = vld.sshfl [vmem:[#allocation1 + $0x20] sm:$0xff pattern:$0x75316420]
    %v6262 = vld.sshfl [vmem:[#allocation1 + $0x30] sm:$0xff pattern:$0x75316420]
    %6263 = vst [vmem:[#allocation1] ss:$2 sm:$0xff] %v5632
    %6264 = vst [vmem:[%s5897] ss:$2 sm:$0xff] %v5888
    %6265 = vst [vmem:[%s5899] ss:$2 sm:$0xff] %v5633
    %6266 = vst [vmem:[%s5901] ss:$2 sm:$0xff] %v5889
    %6267 = vst [vmem:[%s5903] ss:$2 sm:$0xff] %v5634
    %6268 = vst [vmem:[%s5905] ss:$2 sm:$0xff] %v5890
    %6269 = vst [vmem:[%s5907] ss:$2 sm:$0xff] %v5635
    %6270 = vst [vmem:[%s5909] ss:$2 sm:$0xff] %v5891
    %v6271 = vld.sshfl [vmem:[#allocation1] sm:$0xff pattern:$0x75316420]
    %v6272 = vld.sshfl [vmem:[#allocation1 + $0x10] sm:$0xff pattern:$0x75316420]
    %v6273 = vld.sshfl [vmem:[#allocation1 + $0x20] sm:$0xff pattern:$0x75316420]
    %v6274 = vld.sshfl [vmem:[#allocation1 + $0x30] sm:$0xff pattern:$0x75316420]
    %6275 = vst [vmem:[#allocation1] ss:$2 sm:$0xff] %v5636
    %6276 = vst [vmem:[%s5897] ss:$2 sm:$0xff] %v5892
    %6277 = vst [vmem:[%s5899] ss:$2 sm:$0xff] %v5637
    %6278 = vst [vmem:[%s5901] ss:$2 sm:$0xff] %v5893
    %6279 = vst [vmem:[%s5903] ss:$2 sm:$0xff] %v5638
    %6280 = vst [vmem:[%s5905] ss:$2 sm:$0xff] %v5894
    %6281 = vst [vmem:[%s5907] ss:$2 sm:$0xff] %v5639
    %6282 = vst [vmem:[%s5909] ss:$2 sm:$0xff] %v5895
    %v6283 = vld.sshfl [vmem:[#allocation1] sm:$0xff pattern:$0x75316420]
    %v6284 = vld.sshfl [vmem:[#allocation1 + $0x10] sm:$0xff pattern:$0x75316420]
    %v6285 = vld.sshfl [vmem:[#allocation1 + $0x20] sm:$0xff pattern:$0x75316420]
    %v6286 = vld.sshfl [vmem:[#allocation1 + $0x30] sm:$0xff pattern:$0x75316420]
    %6287 = vset.pattern.permute.xlu0 0
    %6288 = vperm.xlu0 %6287, %v5911
    %v6289 = vpop.permute.xlu0 %6288
    %6290 = vset.pattern.permute.xlu0 0
    %6291 = vperm.xlu0 %6290, %v5912
    %v6292 = vpop.permute.xlu0 %6291
    %6293 = vset.pattern.permute.xlu0 0
    %6294 = vperm.xlu0 %6293, %v5913
    %v6295 = vpop.permute.xlu0 %6294
    %6296 = vset.pattern.permute.xlu0 0
    %6297 = vperm.xlu0 %6296, %v5914
    %v6298 = vpop.permute.xlu0 %6297
    %6299 = vset.pattern.permute.xlu0 0
    %6300 = vperm.xlu0 %6299, %v5923
    %v6301 = vpop.permute.xlu0 %6300
    %6302 = vset.pattern.permute.xlu0 0
    %6303 = vperm.xlu0 %6302, %v5924
    %v6304 = vpop.permute.xlu0 %6303
    %6305 = vset.pattern.permute.xlu0 0
    %6306 = vperm.xlu0 %6305, %v5925
    %v6307 = vpop.permute.xlu0 %6306
    %6308 = vset.pattern.permute.xlu0 0
    %6309 = vperm.xlu0 %6308, %v5926
    %v6310 = vpop.permute.xlu0 %6309
    %6311 = vset.pattern.permute.xlu0 0
    %6312 = vperm.xlu0 %6311, %v5935
    %v6313 = vpop.permute.xlu0 %6312
    %6314 = vset.pattern.permute.xlu0 0
    %6315 = vperm.xlu0 %6314, %v5936
    %v6316 = vpop.permute.xlu0 %6315
    %6317 = vset.pattern.permute.xlu0 0
    %6318 = vperm.xlu0 %6317, %v5937
    %v6319 = vpop.permute.xlu0 %6318
    %6320 = vset.pattern.permute.xlu0 0
    %6321 = vperm.xlu0 %6320, %v5938
    %v6322 = vpop.permute.xlu0 %6321
    %6323 = vset.pattern.permute.xlu0 0
    %6324 = vperm.xlu0 %6323, %v5947
    %v6325 = vpop.permute.xlu0 %6324
    %6326 = vset.pattern.permute.xlu0 0
    %6327 = vperm.xlu0 %6326, %v5948
    %v6328 = vpop.permute.xlu0 %6327
    %6329 = vset.pattern.permute.xlu0 0
    %6330 = vperm.xlu0 %6329, %v5949
    %v6331 = vpop.permute.xlu0 %6330
    %6332 = vset.pattern.permute.xlu0 0
    %6333 = vperm.xlu0 %6332, %v5950
    %v6334 = vpop.permute.xlu0 %6333
    %6335 = vset.pattern.permute.xlu0 0
    %6336 = vperm.xlu0 %6335, %v5959
    %v6337 = vpop.permute.xlu0 %6336
    %6338 = vset.pattern.permute.xlu0 0
    %6339 = vperm.xlu0 %6338, %v5960
    %v6340 = vpop.permute.xlu0 %6339
    %6341 = vset.pattern.permute.xlu0 0
    %6342 = vperm.xlu0 %6341, %v5961
    %v6343 = vpop.permute.xlu0 %6342
    %6344 = vset.pattern.permute.xlu0 0
    %6345 = vperm.xlu0 %6344, %v5962
    %v6346 = vpop.permute.xlu0 %6345
    %6347 = vset.pattern.permute.xlu0 0
    %6348 = vperm.xlu0 %6347, %v5971
    %v6349 = vpop.permute.xlu0 %6348
    %6350 = vset.pattern.permute.xlu0 0
    %6351 = vperm.xlu0 %6350, %v5972
    %v6352 = vpop.permute.xlu0 %6351
    %6353 = vset.pattern.permute.xlu0 0
    %6354 = vperm.xlu0 %6353, %v5973
    %v6355 = vpop.permute.xlu0 %6354
    %6356 = vset.pattern.permute.xlu0 0
    %6357 = vperm.xlu0 %6356, %v5974
    %v6358 = vpop.permute.xlu0 %6357
    %6359 = vset.pattern.permute.xlu0 0
    %6360 = vperm.xlu0 %6359, %v5983
    %v6361 = vpop.permute.xlu0 %6360
    %6362 = vset.pattern.permute.xlu0 0
    %6363 = vperm.xlu0 %6362, %v5984
    %v6364 = vpop.permute.xlu0 %6363
    %6365 = vset.pattern.permute.xlu0 0
    %6366 = vperm.xlu0 %6365, %v5985
    %v6367 = vpop.permute.xlu0 %6366
    %6368 = vset.pattern.permute.xlu0 0
    %6369 = vperm.xlu0 %6368, %v5986
    %v6370 = vpop.permute.xlu0 %6369
    %6371 = vset.pattern.permute.xlu0 0
    %6372 = vperm.xlu0 %6371, %v5995
    %v6373 = vpop.permute.xlu0 %6372
    %6374 = vset.pattern.permute.xlu0 0
    %6375 = vperm.xlu0 %6374, %v5996
    %v6376 = vpop.permute.xlu0 %6375
    %6377 = vset.pattern.permute.xlu0 0
    %6378 = vperm.xlu0 %6377, %v5997
    %v6379 = vpop.permute.xlu0 %6378
    %6380 = vset.pattern.permute.xlu0 0
    %6381 = vperm.xlu0 %6380, %v5998
    %v6382 = vpop.permute.xlu0 %6381
    %6383 = vset.pattern.permute.xlu0 0
    %6384 = vperm.xlu0 %6383, %v6007
    %v6385 = vpop.permute.xlu0 %6384
    %6386 = vset.pattern.permute.xlu0 0
    %6387 = vperm.xlu0 %6386, %v6008
    %v6388 = vpop.permute.xlu0 %6387
    %6389 = vset.pattern.permute.xlu0 0
    %6390 = vperm.xlu0 %6389, %v6009
    %v6391 = vpop.permute.xlu0 %6390
    %6392 = vset.pattern.permute.xlu0 0
    %6393 = vperm.xlu0 %6392, %v6010
    %v6394 = vpop.permute.xlu0 %6393
    %6395 = vset.pattern.permute.xlu0 0
    %6396 = vperm.xlu0 %6395, %v6019
    %v6397 = vpop.permute.xlu0 %6396
    %6398 = vset.pattern.permute.xlu0 0
    %6399 = vperm.xlu0 %6398, %v6020
    %v6400 = vpop.permute.xlu0 %6399
    %6401 = vset.pattern.permute.xlu0 0
    %6402 = vperm.xlu0 %6401, %v6021
    %v6403 = vpop.permute.xlu0 %6402
    %6404 = vset.pattern.permute.xlu0 0
    %6405 = vperm.xlu0 %6404, %v6022
    %v6406 = vpop.permute.xlu0 %6405
    %6407 = vset.pattern.permute.xlu0 0
    %6408 = vperm.xlu0 %6407, %v6031
    %v6409 = vpop.permute.xlu0 %6408
    %6410 = vset.pattern.permute.xlu0 0
    %6411 = vperm.xlu0 %6410, %v6032
    %v6412 = vpop.permute.xlu0 %6411
    %6413 = vset.pattern.permute.xlu0 0
    %6414 = vperm.xlu0 %6413, %v6033
    %v6415 = vpop.permute.xlu0 %6414
    %6416 = vset.pattern.permute.xlu0 0
    %6417 = vperm.xlu0 %6416, %v6034
    %v6418 = vpop.permute.xlu0 %6417
    %6419 = vset.pattern.permute.xlu0 0
    %6420 = vperm.xlu0 %6419, %v6043
    %v6421 = vpop.permute.xlu0 %6420
    %6422 = vset.pattern.permute.xlu0 0
    %6423 = vperm.xlu0 %6422, %v6044
    %v6424 = vpop.permute.xlu0 %6423
    %6425 = vset.pattern.permute.xlu0 0
    %6426 = vperm.xlu0 %6425, %v6045
    %v6427 = vpop.permute.xlu0 %6426
    %6428 = vset.pattern.permute.xlu0 0
    %6429 = vperm.xlu0 %6428, %v6046
    %v6430 = vpop.permute.xlu0 %6429
    %6431 = vset.pattern.permute.xlu0 0
    %6432 = vperm.xlu0 %6431, %v6055
    %v6433 = vpop.permute.xlu0 %6432
    %6434 = vset.pattern.permute.xlu0 0
    %6435 = vperm.xlu0 %6434, %v6056
    %v6436 = vpop.permute.xlu0 %6435
    %6437 = vset.pattern.permute.xlu0 0
    %6438 = vperm.xlu0 %6437, %v6057
    %v6439 = vpop.permute.xlu0 %6438
    %6440 = vset.pattern.permute.xlu0 0
    %6441 = vperm.xlu0 %6440, %v6058
    %v6442 = vpop.permute.xlu0 %6441
    %6443 = vset.pattern.permute.xlu0 0
    %6444 = vperm.xlu0 %6443, %v6067
    %v6445 = vpop.permute.xlu0 %6444
    %6446 = vset.pattern.permute.xlu0 0
    %6447 = vperm.xlu0 %6446, %v6068
    %v6448 = vpop.permute.xlu0 %6447
    %6449 = vset.pattern.permute.xlu0 0
    %6450 = vperm.xlu0 %6449, %v6069
    %v6451 = vpop.permute.xlu0 %6450
    %6452 = vset.pattern.permute.xlu0 0
    %6453 = vperm.xlu0 %6452, %v6070
    %v6454 = vpop.permute.xlu0 %6453
    %6455 = vset.pattern.permute.xlu0 0
    %6456 = vperm.xlu0 %6455, %v6079
    %v6457 = vpop.permute.xlu0 %6456
    %6458 = vset.pattern.permute.xlu0 0
    %6459 = vperm.xlu0 %6458, %v6080
    %v6460 = vpop.permute.xlu0 %6459
    %6461 = vset.pattern.permute.xlu0 0
    %6462 = vperm.xlu0 %6461, %v6081
    %v6463 = vpop.permute.xlu0 %6462
    %6464 = vset.pattern.permute.xlu0 0
    %6465 = vperm.xlu0 %6464, %v6082
    %v6466 = vpop.permute.xlu0 %6465
    %6467 = vset.pattern.permute.xlu0 0
    %6468 = vperm.xlu0 %6467, %v6091
    %v6469 = vpop.permute.xlu0 %6468
    %6470 = vset.pattern.permute.xlu0 0
    %6471 = vperm.xlu0 %6470, %v6092
    %v6472 = vpop.permute.xlu0 %6471
    %6473 = vset.pattern.permute.xlu0 0
    %6474 = vperm.xlu0 %6473, %v6093
    %v6475 = vpop.permute.xlu0 %6474
    %6476 = vset.pattern.permute.xlu0 0
    %6477 = vperm.xlu0 %6476, %v6094
    %v6478 = vpop.permute.xlu0 %6477
    %6479 = vset.pattern.permute.xlu0 0
    %6480 = vperm.xlu0 %6479, %v6103
    %v6481 = vpop.permute.xlu0 %6480
    %6482 = vset.pattern.permute.xlu0 0
    %6483 = vperm.xlu0 %6482, %v6104
    %v6484 = vpop.permute.xlu0 %6483
    %6485 = vset.pattern.permute.xlu0 0
    %6486 = vperm.xlu0 %6485, %v6105
    %v6487 = vpop.permute.xlu0 %6486
    %6488 = vset.pattern.permute.xlu0 0
    %6489 = vperm.xlu0 %6488, %v6106
    %v6490 = vpop.permute.xlu0 %6489
    %6491 = vset.pattern.permute.xlu0 0
    %6492 = vperm.xlu0 %6491, %v6115
    %v6493 = vpop.permute.xlu0 %6492
    %6494 = vset.pattern.permute.xlu0 0
    %6495 = vperm.xlu0 %6494, %v6116
    %v6496 = vpop.permute.xlu0 %6495
    %6497 = vset.pattern.permute.xlu0 0
    %6498 = vperm.xlu0 %6497, %v6117
    %v6499 = vpop.permute.xlu0 %6498
    %6500 = vset.pattern.permute.xlu0 0
    %6501 = vperm.xlu0 %6500, %v6118
    %v6502 = vpop.permute.xlu0 %6501
    %6503 = vset.pattern.permute.xlu0 0
    %6504 = vperm.xlu0 %6503, %v6127
    %v6505 = vpop.permute.xlu0 %6504
    %6506 = vset.pattern.permute.xlu0 0
    %6507 = vperm.xlu0 %6506, %v6128
    %v6508 = vpop.permute.xlu0 %6507
    %6509 = vset.pattern.permute.xlu0 0
    %6510 = vperm.xlu0 %6509, %v6129
    %v6511 = vpop.permute.xlu0 %6510
    %6512 = vset.pattern.permute.xlu0 0
    %6513 = vperm.xlu0 %6512, %v6130
    %v6514 = vpop.permute.xlu0 %6513
    %6515 = vset.pattern.permute.xlu0 0
    %6516 = vperm.xlu0 %6515, %v6139
    %v6517 = vpop.permute.xlu0 %6516
    %6518 = vset.pattern.permute.xlu0 0
    %6519 = vperm.xlu0 %6518, %v6140
    %v6520 = vpop.permute.xlu0 %6519
    %6521 = vset.pattern.permute.xlu0 0
    %6522 = vperm.xlu0 %6521, %v6141
    %v6523 = vpop.permute.xlu0 %6522
    %6524 = vset.pattern.permute.xlu0 0
    %6525 = vperm.xlu0 %6524, %v6142
    %v6526 = vpop.permute.xlu0 %6525
    %6527 = vset.pattern.permute.xlu0 0
    %6528 = vperm.xlu0 %6527, %v6151
    %v6529 = vpop.permute.xlu0 %6528
    %6530 = vset.pattern.permute.xlu0 0
    %6531 = vperm.xlu0 %6530, %v6152
    %v6532 = vpop.permute.xlu0 %6531
    %6533 = vset.pattern.permute.xlu0 0
    %6534 = vperm.xlu0 %6533, %v6153
    %v6535 = vpop.permute.xlu0 %6534
    %6536 = vset.pattern.permute.xlu0 0
    %6537 = vperm.xlu0 %6536, %v6154
    %v6538 = vpop.permute.xlu0 %6537
    %6539 = vset.pattern.permute.xlu0 0
    %6540 = vperm.xlu0 %6539, %v6163
    %v6541 = vpop.permute.xlu0 %6540
    %6542 = vset.pattern.permute.xlu0 0
    %6543 = vperm.xlu0 %6542, %v6164
    %v6544 = vpop.permute.xlu0 %6543
    %6545 = vset.pattern.permute.xlu0 0
    %6546 = vperm.xlu0 %6545, %v6165
    %v6547 = vpop.permute.xlu0 %6546
    %6548 = vset.pattern.permute.xlu0 0
    %6549 = vperm.xlu0 %6548, %v6166
    %v6550 = vpop.permute.xlu0 %6549
    %6551 = vset.pattern.permute.xlu0 0
    %6552 = vperm.xlu0 %6551, %v6175
    %v6553 = vpop.permute.xlu0 %6552
    %6554 = vset.pattern.permute.xlu0 0
    %6555 = vperm.xlu0 %6554, %v6176
    %v6556 = vpop.permute.xlu0 %6555
    %6557 = vset.pattern.permute.xlu0 0
    %6558 = vperm.xlu0 %6557, %v6177
    %v6559 = vpop.permute.xlu0 %6558
    %6560 = vset.pattern.permute.xlu0 0
    %6561 = vperm.xlu0 %6560, %v6178
    %v6562 = vpop.permute.xlu0 %6561
    %6563 = vset.pattern.permute.xlu0 0
    %6564 = vperm.xlu0 %6563, %v6187
    %v6565 = vpop.permute.xlu0 %6564
    %6566 = vset.pattern.permute.xlu0 0
    %6567 = vperm.xlu0 %6566, %v6188
    %v6568 = vpop.permute.xlu0 %6567
    %6569 = vset.pattern.permute.xlu0 0
    %6570 = vperm.xlu0 %6569, %v6189
    %v6571 = vpop.permute.xlu0 %6570
    %6572 = vset.pattern.permute.xlu0 0
    %6573 = vperm.xlu0 %6572, %v6190
    %v6574 = vpop.permute.xlu0 %6573
    %6575 = vset.pattern.permute.xlu0 0
    %6576 = vperm.xlu0 %6575, %v6199
    %v6577 = vpop.permute.xlu0 %6576
    %6578 = vset.pattern.permute.xlu0 0
    %6579 = vperm.xlu0 %6578, %v6200
    %v6580 = vpop.permute.xlu0 %6579
    %6581 = vset.pattern.permute.xlu0 0
    %6582 = vperm.xlu0 %6581, %v6201
    %v6583 = vpop.permute.xlu0 %6582
    %6584 = vset.pattern.permute.xlu0 0
    %6585 = vperm.xlu0 %6584, %v6202
    %v6586 = vpop.permute.xlu0 %6585
    %6587 = vset.pattern.permute.xlu0 0
    %6588 = vperm.xlu0 %6587, %v6211
    %v6589 = vpop.permute.xlu0 %6588
    %6590 = vset.pattern.permute.xlu0 0
    %6591 = vperm.xlu0 %6590, %v6212
    %v6592 = vpop.permute.xlu0 %6591
    %6593 = vset.pattern.permute.xlu0 0
    %6594 = vperm.xlu0 %6593, %v6213
    %v6595 = vpop.permute.xlu0 %6594
    %6596 = vset.pattern.permute.xlu0 0
    %6597 = vperm.xlu0 %6596, %v6214
    %v6598 = vpop.permute.xlu0 %6597
    %6599 = vset.pattern.permute.xlu0 0
    %6600 = vperm.xlu0 %6599, %v6223
    %v6601 = vpop.permute.xlu0 %6600
    %6602 = vset.pattern.permute.xlu0 0
    %6603 = vperm.xlu0 %6602, %v6224
    %v6604 = vpop.permute.xlu0 %6603
    %6605 = vset.pattern.permute.xlu0 0
    %6606 = vperm.xlu0 %6605, %v6225
    %v6607 = vpop.permute.xlu0 %6606
    %6608 = vset.pattern.permute.xlu0 0
    %6609 = vperm.xlu0 %6608, %v6226
    %v6610 = vpop.permute.xlu0 %6609
    %6611 = vset.pattern.permute.xlu0 0
    %6612 = vperm.xlu0 %6611, %v6235
    %v6613 = vpop.permute.xlu0 %6612
    %6614 = vset.pattern.permute.xlu0 0
    %6615 = vperm.xlu0 %6614, %v6236
    %v6616 = vpop.permute.xlu0 %6615
    %6617 = vset.pattern.permute.xlu0 0
    %6618 = vperm.xlu0 %6617, %v6237
    %v6619 = vpop.permute.xlu0 %6618
    %6620 = vset.pattern.permute.xlu0 0
    %6621 = vperm.xlu0 %6620, %v6238
    %v6622 = vpop.permute.xlu0 %6621
    %6623 = vset.pattern.permute.xlu0 0
    %6624 = vperm.xlu0 %6623, %v6247
    %v6625 = vpop.permute.xlu0 %6624
    %6626 = vset.pattern.permute.xlu0 0
    %6627 = vperm.xlu0 %6626, %v6248
    %v6628 = vpop.permute.xlu0 %6627
    %6629 = vset.pattern.permute.xlu0 0
    %6630 = vperm.xlu0 %6629, %v6249
    %v6631 = vpop.permute.xlu0 %6630
    %6632 = vset.pattern.permute.xlu0 0
    %6633 = vperm.xlu0 %6632, %v6250
    %v6634 = vpop.permute.xlu0 %6633
    %6635 = vset.pattern.permute.xlu0 0
    %6636 = vperm.xlu0 %6635, %v6259
    %v6637 = vpop.permute.xlu0 %6636
    %6638 = vset.pattern.permute.xlu0 0
    %6639 = vperm.xlu0 %6638, %v6260
    %v6640 = vpop.permute.xlu0 %6639
    %6641 = vset.pattern.permute.xlu0 0
    %6642 = vperm.xlu0 %6641, %v6261
    %v6643 = vpop.permute.xlu0 %6642
    %6644 = vset.pattern.permute.xlu0 0
    %6645 = vperm.xlu0 %6644, %v6262
    %v6646 = vpop.permute.xlu0 %6645
    %6647 = vset.pattern.permute.xlu0 0
    %6648 = vperm.xlu0 %6647, %v6271
    %v6649 = vpop.permute.xlu0 %6648
    %6650 = vset.pattern.permute.xlu0 0
    %6651 = vperm.xlu0 %6650, %v6272
    %v6652 = vpop.permute.xlu0 %6651
    %6653 = vset.pattern.permute.xlu0 0
    %6654 = vperm.xlu0 %6653, %v6273
    %v6655 = vpop.permute.xlu0 %6654
    %6656 = vset.pattern.permute.xlu0 0
    %6657 = vperm.xlu0 %6656, %v6274
    %v6658 = vpop.permute.xlu0 %6657
    %6659 = vset.pattern.permute.xlu0 0
    %6660 = vperm.xlu0 %6659, %v6283
    %v6661 = vpop.permute.xlu0 %6660
    %6662 = vset.pattern.permute.xlu0 0
    %6663 = vperm.xlu0 %6662, %v6284
    %v6664 = vpop.permute.xlu0 %6663
    %6665 = vset.pattern.permute.xlu0 0
    %6666 = vperm.xlu0 %6665, %v6285
    %v6667 = vpop.permute.xlu0 %6666
    %6668 = vset.pattern.permute.xlu0 0
    %6669 = vperm.xlu0 %6668, %v6286
    %v6670 = vpop.permute.xlu0 %6669
    %v6671 = vperm.slane %v6289, %v819
    %v6672 = vperm.slane %v6292, %v821
    %v6673 = vsel %vm823, %v6672, %v6671
    %v6674 = vperm.slane %v6295, %v825
    %v6675 = vsel %vm827, %v6674, %v6673
    %v6676 = vperm.slane %v6298, %v829
    %v6677 = vsel %vm831, %v6676, %v6675
    %v6678 = vperm.slane %v6301, %v833
    %v6679 = vsel %vm835, %v6678, %v6677
    %v6680 = vperm.slane %v6304, %v837
    %v6681 = vsel %vm839, %v6680, %v6679
    %v6682 = vperm.slane %v6307, %v841
    %v6683 = vsel %vm843, %v6682, %v6681
    %v6684 = vperm.slane %v6310, %v845
    %v6685 = vsel %vm847, %v6684, %v6683
    %v6686 = vperm.slane %v6313, %v849
    %v6687 = vsel %vm851, %v6686, %v6685
    %v6688 = vperm.slane %v6316, %v853
    %v6689 = vsel %vm855, %v6688, %v6687
    %v6690 = vperm.slane %v6319, %v857
    %v6691 = vsel %vm859, %v6690, %v6689
    %v6692 = vperm.slane %v6322, %v861
    %v6693 = vsel %vm863, %v6692, %v6691
    %v6694 = vperm.slane %v6325, %v865
    %v6695 = vsel %vm867, %v6694, %v6693
    %v6696 = vperm.slane %v6328, %v869
    %v6697 = vsel %vm871, %v6696, %v6695
    %v6698 = vperm.slane %v6331, %v873
    %v6699 = vsel %vm875, %v6698, %v6697
    %v6700 = vperm.slane %v6334, %v877
    %v6701 = vsel %vm879, %v6700, %v6699
    %v6702 = vperm.slane %v6337, %v819
    %v6703 = vperm.slane %v6340, %v821
    %v6704 = vsel %vm823, %v6703, %v6702
    %v6705 = vperm.slane %v6343, %v825
    %v6706 = vsel %vm827, %v6705, %v6704
    %v6707 = vperm.slane %v6346, %v829
    %v6708 = vsel %vm831, %v6707, %v6706
    %v6709 = vperm.slane %v6349, %v833
    %v6710 = vsel %vm835, %v6709, %v6708
    %v6711 = vperm.slane %v6352, %v837
    %v6712 = vsel %vm839, %v6711, %v6710
    %v6713 = vperm.slane %v6355, %v841
    %v6714 = vsel %vm843, %v6713, %v6712
    %v6715 = vperm.slane %v6358, %v845
    %v6716 = vsel %vm847, %v6715, %v6714
    %v6717 = vperm.slane %v6361, %v849
    %v6718 = vsel %vm851, %v6717, %v6716
    %v6719 = vperm.slane %v6364, %v853
    %v6720 = vsel %vm855, %v6719, %v6718
    %v6721 = vperm.slane %v6367, %v857
    %v6722 = vsel %vm859, %v6721, %v6720
    %v6723 = vperm.slane %v6370, %v861
    %v6724 = vsel %vm863, %v6723, %v6722
    %v6725 = vperm.slane %v6373, %v865
    %v6726 = vsel %vm867, %v6725, %v6724
    %v6727 = vperm.slane %v6376, %v869
    %v6728 = vsel %vm871, %v6727, %v6726
    %v6729 = vperm.slane %v6379, %v873
    %v6730 = vsel %vm875, %v6729, %v6728
    %v6731 = vperm.slane %v6382, %v877
    %v6732 = vsel %vm879, %v6731, %v6730
    %v6733 = vperm.slane %v6385, %v819
    %v6734 = vperm.slane %v6388, %v821
    %v6735 = vsel %vm823, %v6734, %v6733
    %v6736 = vperm.slane %v6391, %v825
    %v6737 = vsel %vm827, %v6736, %v6735
    %v6738 = vperm.slane %v6394, %v829
    %v6739 = vsel %vm831, %v6738, %v6737
    %v6740 = vperm.slane %v6397, %v833
    %v6741 = vsel %vm835, %v6740, %v6739
    %v6742 = vperm.slane %v6400, %v837
    %v6743 = vsel %vm839, %v6742, %v6741
    %v6744 = vperm.slane %v6403, %v841
    %v6745 = vsel %vm843, %v6744, %v6743
    %v6746 = vperm.slane %v6406, %v845
    %v6747 = vsel %vm847, %v6746, %v6745
    %v6748 = vperm.slane %v6409, %v849
    %v6749 = vsel %vm851, %v6748, %v6747
    %v6750 = vperm.slane %v6412, %v853
    %v6751 = vsel %vm855, %v6750, %v6749
    %v6752 = vperm.slane %v6415, %v857
    %v6753 = vsel %vm859, %v6752, %v6751
    %v6754 = vperm.slane %v6418, %v861
    %v6755 = vsel %vm863, %v6754, %v6753
    %v6756 = vperm.slane %v6421, %v865
    %v6757 = vsel %vm867, %v6756, %v6755
    %v6758 = vperm.slane %v6424, %v869
    %v6759 = vsel %vm871, %v6758, %v6757
    %v6760 = vperm.slane %v6427, %v873
    %v6761 = vsel %vm875, %v6760, %v6759
    %v6762 = vperm.slane %v6430, %v877
    %v6763 = vsel %vm879, %v6762, %v6761
    %v6764 = vperm.slane %v6433, %v819
    %v6765 = vperm.slane %v6436, %v821
    %v6766 = vsel %vm823, %v6765, %v6764
    %v6767 = vperm.slane %v6439, %v825
    %v6768 = vsel %vm827, %v6767, %v6766
    %v6769 = vperm.slane %v6442, %v829
    %v6770 = vsel %vm831, %v6769, %v6768
    %v6771 = vperm.slane %v6445, %v833
    %v6772 = vsel %vm835, %v6771, %v6770
    %v6773 = vperm.slane %v6448, %v837
    %v6774 = vsel %vm839, %v6773, %v6772
    %v6775 = vperm.slane %v6451, %v841
    %v6776 = vsel %vm843, %v6775, %v6774
    %v6777 = vperm.slane %v6454, %v845
    %v6778 = vsel %vm847, %v6777, %v6776
    %v6779 = vperm.slane %v6457, %v849
    %v6780 = vsel %vm851, %v6779, %v6778
    %v6781 = vperm.slane %v6460, %v853
    %v6782 = vsel %vm855, %v6781, %v6780
    %v6783 = vperm.slane %v6463, %v857
    %v6784 = vsel %vm859, %v6783, %v6782
    %v6785 = vperm.slane %v6466, %v861
    %v6786 = vsel %vm863, %v6785, %v6784
    %v6787 = vperm.slane %v6469, %v865
    %v6788 = vsel %vm867, %v6787, %v6786
    %v6789 = vperm.slane %v6472, %v869
    %v6790 = vsel %vm871, %v6789, %v6788
    %v6791 = vperm.slane %v6475, %v873
    %v6792 = vsel %vm875, %v6791, %v6790
    %v6793 = vperm.slane %v6478, %v877
    %v6794 = vsel %vm879, %v6793, %v6792
    %v6795 = vperm.slane %v6481, %v819
    %v6796 = vperm.slane %v6484, %v821
    %v6797 = vsel %vm823, %v6796, %v6795
    %v6798 = vperm.slane %v6487, %v825
    %v6799 = vsel %vm827, %v6798, %v6797
    %v6800 = vperm.slane %v6490, %v829
    %v6801 = vsel %vm831, %v6800, %v6799
    %v6802 = vperm.slane %v6493, %v833
    %v6803 = vsel %vm835, %v6802, %v6801
    %v6804 = vperm.slane %v6496, %v837
    %v6805 = vsel %vm839, %v6804, %v6803
    %v6806 = vperm.slane %v6499, %v841
    %v6807 = vsel %vm843, %v6806, %v6805
    %v6808 = vperm.slane %v6502, %v845
    %v6809 = vsel %vm847, %v6808, %v6807
    %v6810 = vperm.slane %v6505, %v849
    %v6811 = vsel %vm851, %v6810, %v6809
    %v6812 = vperm.slane %v6508, %v853
    %v6813 = vsel %vm855, %v6812, %v6811
    %v6814 = vperm.slane %v6511, %v857
    %v6815 = vsel %vm859, %v6814, %v6813
    %v6816 = vperm.slane %v6514, %v861
    %v6817 = vsel %vm863, %v6816, %v6815
    %v6818 = vperm.slane %v6517, %v865
    %v6819 = vsel %vm867, %v6818, %v6817
    %v6820 = vperm.slane %v6520, %v869
    %v6821 = vsel %vm871, %v6820, %v6819
    %v6822 = vperm.slane %v6523, %v873
    %v6823 = vsel %vm875, %v6822, %v6821
    %v6824 = vperm.slane %v6526, %v877
    %v6825 = vsel %vm879, %v6824, %v6823
    %v6826 = vperm.slane %v6529, %v819
    %v6827 = vperm.slane %v6532, %v821
    %v6828 = vsel %vm823, %v6827, %v6826
    %v6829 = vperm.slane %v6535, %v825
    %v6830 = vsel %vm827, %v6829, %v6828
    %v6831 = vperm.slane %v6538, %v829
    %v6832 = vsel %vm831, %v6831, %v6830
    %v6833 = vperm.slane %v6541, %v833
    %v6834 = vsel %vm835, %v6833, %v6832
    %v6835 = vperm.slane %v6544, %v837
    %v6836 = vsel %vm839, %v6835, %v6834
    %v6837 = vperm.slane %v6547, %v841
    %v6838 = vsel %vm843, %v6837, %v6836
    %v6839 = vperm.slane %v6550, %v845
    %v6840 = vsel %vm847, %v6839, %v6838
    %v6841 = vperm.slane %v6553, %v849
    %v6842 = vsel %vm851, %v6841, %v6840
    %v6843 = vperm.slane %v6556, %v853
    %v6844 = vsel %vm855, %v6843, %v6842
    %v6845 = vperm.slane %v6559, %v857
    %v6846 = vsel %vm859, %v6845, %v6844
    %v6847 = vperm.slane %v6562, %v861
    %v6848 = vsel %vm863, %v6847, %v6846
    %v6849 = vperm.slane %v6565, %v865
    %v6850 = vsel %vm867, %v6849, %v6848
    %v6851 = vperm.slane %v6568, %v869
    %v6852 = vsel %vm871, %v6851, %v6850
    %v6853 = vperm.slane %v6571, %v873
    %v6854 = vsel %vm875, %v6853, %v6852
    %v6855 = vperm.slane %v6574, %v877
    %v6856 = vsel %vm879, %v6855, %v6854
    %v6857 = vperm.slane %v6577, %v819
    %v6858 = vperm.slane %v6580, %v821
    %v6859 = vsel %vm823, %v6858, %v6857
    %v6860 = vperm.slane %v6583, %v825
    %v6861 = vsel %vm827, %v6860, %v6859
    %v6862 = vperm.slane %v6586, %v829
    %v6863 = vsel %vm831, %v6862, %v6861
    %v6864 = vperm.slane %v6589, %v833
    %v6865 = vsel %vm835, %v6864, %v6863
    %v6866 = vperm.slane %v6592, %v837
    %v6867 = vsel %vm839, %v6866, %v6865
    %v6868 = vperm.slane %v6595, %v841
    %v6869 = vsel %vm843, %v6868, %v6867
    %v6870 = vperm.slane %v6598, %v845
    %v6871 = vsel %vm847, %v6870, %v6869
    %v6872 = vperm.slane %v6601, %v849
    %v6873 = vsel %vm851, %v6872, %v6871
    %v6874 = vperm.slane %v6604, %v853
    %v6875 = vsel %vm855, %v6874, %v6873
    %v6876 = vperm.slane %v6607, %v857
    %v6877 = vsel %vm859, %v6876, %v6875
    %v6878 = vperm.slane %v6610, %v861
    %v6879 = vsel %vm863, %v6878, %v6877
    %v6880 = vperm.slane %v6613, %v865
    %v6881 = vsel %vm867, %v6880, %v6879
    %v6882 = vperm.slane %v6616, %v869
    %v6883 = vsel %vm871, %v6882, %v6881
    %v6884 = vperm.slane %v6619, %v873
    %v6885 = vsel %vm875, %v6884, %v6883
    %v6886 = vperm.slane %v6622, %v877
    %v6887 = vsel %vm879, %v6886, %v6885
    %v6888 = vperm.slane %v6625, %v819
    %v6889 = vperm.slane %v6628, %v821
    %v6890 = vsel %vm823, %v6889, %v6888
    %v6891 = vperm.slane %v6631, %v825
    %v6892 = vsel %vm827, %v6891, %v6890
    %v6893 = vperm.slane %v6634, %v829
    %v6894 = vsel %vm831, %v6893, %v6892
    %v6895 = vperm.slane %v6637, %v833
    %v6896 = vsel %vm835, %v6895, %v6894
    %v6897 = vperm.slane %v6640, %v837
    %v6898 = vsel %vm839, %v6897, %v6896
    %v6899 = vperm.slane %v6643, %v841
    %v6900 = vsel %vm843, %v6899, %v6898
    %v6901 = vperm.slane %v6646, %v845
    %v6902 = vsel %vm847, %v6901, %v6900
    %v6903 = vperm.slane %v6649, %v849
    %v6904 = vsel %vm851, %v6903, %v6902
    %v6905 = vperm.slane %v6652, %v853
    %v6906 = vsel %vm855, %v6905, %v6904
    %v6907 = vperm.slane %v6655, %v857
    %v6908 = vsel %vm859, %v6907, %v6906
    %v6909 = vperm.slane %v6658, %v861
    %v6910 = vsel %vm863, %v6909, %v6908
    %v6911 = vperm.slane %v6661, %v865
    %v6912 = vsel %vm867, %v6911, %v6910
    %v6913 = vperm.slane %v6664, %v869
    %v6914 = vsel %vm871, %v6913, %v6912
    %v6915 = vperm.slane %v6667, %v873
    %v6916 = vsel %vm875, %v6915, %v6914
    %v6917 = vperm.slane %v6670, %v877
    %v6918 = vsel %vm879, %v6917, %v6916
    %v6919 = vsel %vm1098, %v6763, %v6701
    %v6920 = vsel %vm1100, %v6825, %v6919
    %v6921 = vsel %vm1102, %v6887, %v6920
    %v6922 = vsel %vm1098, %v6794, %v6732
    %v6923 = vsel %vm1100, %v6856, %v6922
    %v6924 = vsel %vm1102, %v6918, %v6923
    %v6925 = vrot.slane %v6924, 4
    %v6926 = vsel %vm1109, %v6921, %v6925
    %6928 = vst [vmem:[#allocation5] sm:$0xff] %v6926
    %s6929 = sld [smem:[#allocation2]]
    %s6930 = sld [smem:[#allocation2 + $0x1]]
    %vm6931 = vcmp.ge.f32.partialorder %v5512, 0.0
    %vm6932 = vcmp.ge.f32.partialorder %v5513, 0.0
    %vm6933 = vcmp.ge.f32.partialorder %v5514, 0.0
    %vm6934 = vcmp.ge.f32.partialorder %v5515, 0.0
    %vm6935 = vcmp.ge.f32.partialorder %v5516, 0.0
    %vm6936 = vcmp.ge.f32.partialorder %v5517, 0.0
    %vm6937 = vcmp.ge.f32.partialorder %v5518, 0.0
    %vm6938 = vcmp.ge.f32.partialorder %v5519, 0.0
    %vm6939 = vcmp.ge.f32.partialorder %v5520, 0.0
    %vm6940 = vcmp.ge.f32.partialorder %v5521, 0.0
    %vm6941 = vcmp.ge.f32.partialorder %v5522, 0.0
    %vm6942 = vcmp.ge.f32.partialorder %v5523, 0.0
    %vm6943 = vcmp.ge.f32.partialorder %v5524, 0.0
    %vm6944 = vcmp.ge.f32.partialorder %v5525, 0.0
    %vm6945 = vcmp.ge.f32.partialorder %v5526, 0.0
    %vm6946 = vcmp.ge.f32.partialorder %v5527, 0.0
    %vm6947 = vcmp.ge.f32.partialorder %v5528, 0.0
    %vm6948 = vcmp.ge.f32.partialorder %v5529, 0.0
    %vm6949 = vcmp.ge.f32.partialorder %v5530, 0.0
    %vm6950 = vcmp.ge.f32.partialorder %v5531, 0.0
    %vm6951 = vcmp.ge.f32.partialorder %v5532, 0.0
    %vm6952 = vcmp.ge.f32.partialorder %v5533, 0.0
    %vm6953 = vcmp.ge.f32.partialorder %v5534, 0.0
    %vm6954 = vcmp.ge.f32.partialorder %v5535, 0.0
    %vm6955 = vcmp.ge.f32.partialorder %v5536, 0.0
    %vm6956 = vcmp.ge.f32.partialorder %v5537, 0.0
    %vm6957 = vcmp.ge.f32.partialorder %v5538, 0.0
    %vm6958 = vcmp.ge.f32.partialorder %v5539, 0.0
    %vm6959 = vcmp.ge.f32.partialorder %v5540, 0.0
    %vm6960 = vcmp.ge.f32.partialorder %v5541, 0.0
    %vm6961 = vcmp.ge.f32.partialorder %v5542, 0.0
    %vm6962 = vcmp.ge.f32.partialorder %v5543, 0.0
    %vm6963 = vcmp.ge.f32.partialorder %v5544, 0.0
    %vm6964 = vcmp.ge.f32.partialorder %v5545, 0.0
    %vm6965 = vcmp.ge.f32.partialorder %v5546, 0.0
    %vm6966 = vcmp.ge.f32.partialorder %v5547, 0.0
    %vm6967 = vcmp.ge.f32.partialorder %v5548, 0.0
    %vm6968 = vcmp.ge.f32.partialorder %v5549, 0.0
    %vm6969 = vcmp.ge.f32.partialorder %v5550, 0.0
    %vm6970 = vcmp.ge.f32.partialorder %v5551, 0.0
    %vm6971 = vcmp.ge.f32.partialorder %v5552, 0.0
    %vm6972 = vcmp.ge.f32.partialorder %v5553, 0.0
    %vm6973 = vcmp.ge.f32.partialorder %v5554, 0.0
    %vm6974 = vcmp.ge.f32.partialorder %v5555, 0.0
    %vm6975 = vcmp.ge.f32.partialorder %v5556, 0.0
    %vm6976 = vcmp.ge.f32.partialorder %v5557, 0.0
    %vm6977 = vcmp.ge.f32.partialorder %v5558, 0.0
    %vm6978 = vcmp.ge.f32.partialorder %v5559, 0.0
    %vm6979 = vcmp.ge.f32.partialorder %v5560, 0.0
    %vm6980 = vcmp.ge.f32.partialorder %v5561, 0.0
    %vm6981 = vcmp.ge.f32.partialorder %v5562, 0.0
    %vm6982 = vcmp.ge.f32.partialorder %v5563, 0.0
    %vm6983 = vcmp.ge.f32.partialorder %v5564, 0.0
    %vm6984 = vcmp.ge.f32.partialorder %v5565, 0.0
    %vm6985 = vcmp.ge.f32.partialorder %v5566, 0.0
    %vm6986 = vcmp.ge.f32.partialorder %v5567, 0.0
    %vm6987 = vcmp.ge.f32.partialorder %v5568, 0.0
    %vm6988 = vcmp.ge.f32.partialorder %v5569, 0.0
    %vm6989 = vcmp.ge.f32.partialorder %v5570, 0.0
    %vm6990 = vcmp.ge.f32.partialorder %v5571, 0.0
    %vm6991 = vcmp.ge.f32.partialorder %v5572, 0.0
    %vm6992 = vcmp.ge.f32.partialorder %v5573, 0.0
    %vm6993 = vcmp.ge.f32.partialorder %v5574, 0.0
    %vm6994 = vcmp.ge.f32.partialorder %v5575, 0.0
    %vm6995 = vcmp.ge.f32.partialorder %v5576, 0.0
    %vm6996 = vcmp.ge.f32.partialorder %v5577, 0.0
    %vm6997 = vcmp.ge.f32.partialorder %v5578, 0.0
    %vm6998 = vcmp.ge.f32.partialorder %v5579, 0.0
    %vm6999 = vcmp.ge.f32.partialorder %v5580, 0.0
    %vm7000 = vcmp.ge.f32.partialorder %v5581, 0.0
    %vm7001 = vcmp.ge.f32.partialorder %v5582, 0.0
    %vm7002 = vcmp.ge.f32.partialorder %v5583, 0.0
    %vm7003 = vcmp.ge.f32.partialorder %v5584, 0.0
    %vm7004 = vcmp.ge.f32.partialorder %v5585, 0.0
    %vm7005 = vcmp.ge.f32.partialorder %v5586, 0.0
    %vm7006 = vcmp.ge.f32.partialorder %v5587, 0.0
    %vm7007 = vcmp.ge.f32.partialorder %v5588, 0.0
    %vm7008 = vcmp.ge.f32.partialorder %v5589, 0.0
    %vm7009 = vcmp.ge.f32.partialorder %v5590, 0.0
    %vm7010 = vcmp.ge.f32.partialorder %v5591, 0.0
    %vm7011 = vcmp.ge.f32.partialorder %v5592, 0.0
    %vm7012 = vcmp.ge.f32.partialorder %v5593, 0.0
    %vm7013 = vcmp.ge.f32.partialorder %v5594, 0.0
    %vm7014 = vcmp.ge.f32.partialorder %v5595, 0.0
    %vm7015 = vcmp.ge.f32.partialorder %v5596, 0.0
    %vm7016 = vcmp.ge.f32.partialorder %v5597, 0.0
    %vm7017 = vcmp.ge.f32.partialorder %v5598, 0.0
    %vm7018 = vcmp.ge.f32.partialorder %v5599, 0.0
    %vm7019 = vcmp.ge.f32.partialorder %v5600, 0.0
    %vm7020 = vcmp.ge.f32.partialorder %v5601, 0.0
    %vm7021 = vcmp.ge.f32.partialorder %v5602, 0.0
    %vm7022 = vcmp.ge.f32.partialorder %v5603, 0.0
    %vm7023 = vcmp.ge.f32.partialorder %v5604, 0.0
    %vm7024 = vcmp.ge.f32.partialorder %v5605, 0.0
    %vm7025 = vcmp.ge.f32.partialorder %v5606, 0.0
    %vm7026 = vcmp.ge.f32.partialorder %v5607, 0.0
    %vm7027 = vcmp.ge.f32.partialorder %v5608, 0.0
    %vm7028 = vcmp.ge.f32.partialorder %v5609, 0.0
    %vm7029 = vcmp.ge.f32.partialorder %v5610, 0.0
    %vm7030 = vcmp.ge.f32.partialorder %v5611, 0.0
    %vm7031 = vcmp.ge.f32.partialorder %v5612, 0.0
    %vm7032 = vcmp.ge.f32.partialorder %v5613, 0.0
    %vm7033 = vcmp.ge.f32.partialorder %v5614, 0.0
    %vm7034 = vcmp.ge.f32.partialorder %v5615, 0.0
    %vm7035 = vcmp.ge.f32.partialorder %v5616, 0.0
    %vm7036 = vcmp.ge.f32.partialorder %v5617, 0.0
    %vm7037 = vcmp.ge.f32.partialorder %v5618, 0.0
    %vm7038 = vcmp.ge.f32.partialorder %v5619, 0.0
    %vm7039 = vcmp.ge.f32.partialorder %v5620, 0.0
    %vm7040 = vcmp.ge.f32.partialorder %v5621, 0.0
    %vm7041 = vcmp.ge.f32.partialorder %v5622, 0.0
    %vm7042 = vcmp.ge.f32.partialorder %v5623, 0.0
    %vm7043 = vcmp.ge.f32.partialorder %v5624, 0.0
    %vm7044 = vcmp.ge.f32.partialorder %v5625, 0.0
    %vm7045 = vcmp.ge.f32.partialorder %v5626, 0.0
    %vm7046 = vcmp.ge.f32.partialorder %v5627, 0.0
    %vm7047 = vcmp.ge.f32.partialorder %v5628, 0.0
    %vm7048 = vcmp.ge.f32.partialorder %v5629, 0.0
    %vm7049 = vcmp.ge.f32.partialorder %v5630, 0.0
    %vm7050 = vcmp.ge.f32.partialorder %v5631, 0.0
    %vm7051 = vcmp.ge.f32.partialorder %v5632, 0.0
    %vm7052 = vcmp.ge.f32.partialorder %v5633, 0.0
    %vm7053 = vcmp.ge.f32.partialorder %v5634, 0.0
    %vm7054 = vcmp.ge.f32.partialorder %v5635, 0.0
    %vm7055 = vcmp.ge.f32.partialorder %v5636, 0.0
    %vm7056 = vcmp.ge.f32.partialorder %v5637, 0.0
    %vm7057 = vcmp.ge.f32.partialorder %v5638, 0.0
    %vm7058 = vcmp.ge.f32.partialorder %v5639, 0.0
    %v7059 = vstv %s6929
    %v7060 = vmul.f32 %v7059, %v5512
    %v7061 = vmul.f32 %v7059, %v5513
    %v7062 = vmul.f32 %v7059, %v5514
    %v7063 = vmul.f32 %v7059, %v5515
    %v7064 = vmul.f32 %v7059, %v5516
    %v7065 = vmul.f32 %v7059, %v5517
    %v7066 = vmul.f32 %v7059, %v5518
    %v7067 = vmul.f32 %v7059, %v5519
    %v7068 = vmul.f32 %v7059, %v5520
    %v7069 = vmul.f32 %v7059, %v5521
    %v7070 = vmul.f32 %v7059, %v5522
    %v7071 = vmul.f32 %v7059, %v5523
    %v7072 = vmul.f32 %v7059, %v5524
    %v7073 = vmul.f32 %v7059, %v5525
    %v7074 = vmul.f32 %v7059, %v5526
    %v7075 = vmul.f32 %v7059, %v5527
    %v7076 = vmul.f32 %v7059, %v5528
    %v7077 = vmul.f32 %v7059, %v5529
    %v7078 = vmul.f32 %v7059, %v5530
    %v7079 = vmul.f32 %v7059, %v5531
    %v7080 = vmul.f32 %v7059, %v5532
    %v7081 = vmul.f32 %v7059, %v5533
    %v7082 = vmul.f32 %v7059, %v5534
    %v7083 = vmul.f32 %v7059, %v5535
    %v7084 = vmul.f32 %v7059, %v5536
    %v7085 = vmul.f32 %v7059, %v5537
    %v7086 = vmul.f32 %v7059, %v5538
    %v7087 = vmul.f32 %v7059, %v5539
    %v7088 = vmul.f32 %v7059, %v5540
    %v7089 = vmul.f32 %v7059, %v5541
    %v7090 = vmul.f32 %v7059, %v5542
    %v7091 = vmul.f32 %v7059, %v5543
    %v7092 = vmul.f32 %v7059, %v5544
    %v7093 = vmul.f32 %v7059, %v5545
    %v7094 = vmul.f32 %v7059, %v5546
    %v7095 = vmul.f32 %v7059, %v5547
    %v7096 = vmul.f32 %v7059, %v5548
    %v7097 = vmul.f32 %v7059, %v5549
    %v7098 = vmul.f32 %v7059, %v5550
    %v7099 = vmul.f32 %v7059, %v5551
    %v7100 = vmul.f32 %v7059, %v5552
    %v7101 = vmul.f32 %v7059, %v5553
    %v7102 = vmul.f32 %v7059, %v5554
    %v7103 = vmul.f32 %v7059, %v5555
    %v7104 = vmul.f32 %v7059, %v5556
    %v7105 = vmul.f32 %v7059, %v5557
    %v7106 = vmul.f32 %v7059, %v5558
    %v7107 = vmul.f32 %v7059, %v5559
    %v7108 = vmul.f32 %v7059, %v5560
    %v7109 = vmul.f32 %v7059, %v5561
    %v7110 = vmul.f32 %v7059, %v5562
    %v7111 = vmul.f32 %v7059, %v5563
    %v7112 = vmul.f32 %v7059, %v5564
    %v7113 = vmul.f32 %v7059, %v5565
    %v7114 = vmul.f32 %v7059, %v5566
    %v7115 = vmul.f32 %v7059, %v5567
    %v7116 = vmul.f32 %v7059, %v5568
    %v7117 = vmul.f32 %v7059, %v5569
    %v7118 = vmul.f32 %v7059, %v5570
    %v7119 = vmul.f32 %v7059, %v5571
    %v7120 = vmul.f32 %v7059, %v5572
    %v7121 = vmul.f32 %v7059, %v5573
    %v7122 = vmul.f32 %v7059, %v5574
    %v7123 = vmul.f32 %v7059, %v5575
    %v7124 = vmul.f32 %v7059, %v5576
    %v7125 = vmul.f32 %v7059, %v5577
    %v7126 = vmul.f32 %v7059, %v5578
    %v7127 = vmul.f32 %v7059, %v5579
    %v7128 = vmul.f32 %v7059, %v5580
    %v7129 = vmul.f32 %v7059, %v5581
    %v7130 = vmul.f32 %v7059, %v5582
    %v7131 = vmul.f32 %v7059, %v5583
    %v7132 = vmul.f32 %v7059, %v5584
    %v7133 = vmul.f32 %v7059, %v5585
    %v7134 = vmul.f32 %v7059, %v5586
    %v7135 = vmul.f32 %v7059, %v5587
    %v7136 = vmul.f32 %v7059, %v5588
    %v7137 = vmul.f32 %v7059, %v5589
    %v7138 = vmul.f32 %v7059, %v5590
    %v7139 = vmul.f32 %v7059, %v5591
    %v7140 = vmul.f32 %v7059, %v5592
    %v7141 = vmul.f32 %v7059, %v5593
    %v7142 = vmul.f32 %v7059, %v5594
    %v7143 = vmul.f32 %v7059, %v5595
    %v7144 = vmul.f32 %v7059, %v5596
    %v7145 = vmul.f32 %v7059, %v5597
    %v7146 = vmul.f32 %v7059, %v5598
    %v7147 = vmul.f32 %v7059, %v5599
    %v7148 = vmul.f32 %v7059, %v5600
    %v7149 = vmul.f32 %v7059, %v5601
    %v7150 = vmul.f32 %v7059, %v5602
    %v7151 = vmul.f32 %v7059, %v5603
    %v7152 = vmul.f32 %v7059, %v5604
    %v7153 = vmul.f32 %v7059, %v5605
    %v7154 = vmul.f32 %v7059, %v5606
    %v7155 = vmul.f32 %v7059, %v5607
    %v7156 = vmul.f32 %v7059, %v5608
    %v7157 = vmul.f32 %v7059, %v5609
    %v7158 = vmul.f32 %v7059, %v5610
    %v7159 = vmul.f32 %v7059, %v5611
    %v7160 = vmul.f32 %v7059, %v5612
    %v7161 = vmul.f32 %v7059, %v5613
    %v7162 = vmul.f32 %v7059, %v5614
    %v7163 = vmul.f32 %v7059, %v5615
    %v7164 = vmul.f32 %v7059, %v5616
    %v7165 = vmul.f32 %v7059, %v5617
    %v7166 = vmul.f32 %v7059, %v5618
    %v7167 = vmul.f32 %v7059, %v5619
    %v7168 = vmul.f32 %v7059, %v5620
    %v7169 = vmul.f32 %v7059, %v5621
    %v7170 = vmul.f32 %v7059, %v5622
    %v7171 = vmul.f32 %v7059, %v5623
    %v7172 = vmul.f32 %v7059, %v5624
    %v7173 = vmul.f32 %v7059, %v5625
    %v7174 = vmul.f32 %v7059, %v5626
    %v7175 = vmul.f32 %v7059, %v5627
    %v7176 = vmul.f32 %v7059, %v5628
    %v7177 = vmul.f32 %v7059, %v5629
    %v7178 = vmul.f32 %v7059, %v5630
    %v7179 = vmul.f32 %v7059, %v5631
    %v7180 = vmul.f32 %v7059, %v5632
    %v7181 = vmul.f32 %v7059, %v5633
    %v7182 = vmul.f32 %v7059, %v5634
    %v7183 = vmul.f32 %v7059, %v5635
    %v7184 = vmul.f32 %v7059, %v5636
    %v7185 = vmul.f32 %v7059, %v5637
    %v7186 = vmul.f32 %v7059, %v5638
    %v7187 = vmul.f32 %v7059, %v5639
    %v7188 = vsel %vm6931, %v5512, %v7060
    %v7189 = vsel %vm6932, %v5513, %v7061
    %v7190 = vsel %vm6933, %v5514, %v7062
    %v7191 = vsel %vm6934, %v5515, %v7063
    %v7192 = vsel %vm6935, %v5516, %v7064
    %v7193 = vsel %vm6936, %v5517, %v7065
    %v7194 = vsel %vm6937, %v5518, %v7066
    %v7195 = vsel %vm6938, %v5519, %v7067
    %v7196 = vsel %vm6939, %v5520, %v7068
    %v7197 = vsel %vm6940, %v5521, %v7069
    %v7198 = vsel %vm6941, %v5522, %v7070
    %v7199 = vsel %vm6942, %v5523, %v7071
    %v7200 = vsel %vm6943, %v5524, %v7072
    %v7201 = vsel %vm6944, %v5525, %v7073
    %v7202 = vsel %vm6945, %v5526, %v7074
    %v7203 = vsel %vm6946, %v5527, %v7075
    %v7204 = vsel %vm6947, %v5528, %v7076
    %v7205 = vsel %vm6948, %v5529, %v7077
    %v7206 = vsel %vm6949, %v5530, %v7078
    %v7207 = vsel %vm6950, %v5531, %v7079
    %v7208 = vsel %vm6951, %v5532, %v7080
    %v7209 = vsel %vm6952, %v5533, %v7081
    %v7210 = vsel %vm6953, %v5534, %v7082
    %v7211 = vsel %vm6954, %v5535, %v7083
    %v7212 = vsel %vm6955, %v5536, %v7084
    %v7213 = vsel %vm6956, %v5537, %v7085
    %v7214 = vsel %vm6957, %v5538, %v7086
    %v7215 = vsel %vm6958, %v5539, %v7087
    %v7216 = vsel %vm6959, %v5540, %v7088
    %v7217 = vsel %vm6960, %v5541, %v7089
    %v7218 = vsel %vm6961, %v5542, %v7090
    %v7219 = vsel %vm6962, %v5543, %v7091
    %v7220 = vsel %vm6963, %v5544, %v7092
    %v7221 = vsel %vm6964, %v5545, %v7093
    %v7222 = vsel %vm6965, %v5546, %v7094
    %v7223 = vsel %vm6966, %v5547, %v7095
    %v7224 = vsel %vm6967, %v5548, %v7096
    %v7225 = vsel %vm6968, %v5549, %v7097
    %v7226 = vsel %vm6969, %v5550, %v7098
    %v7227 = vsel %vm6970, %v5551, %v7099
    %v7228 = vsel %vm6971, %v5552, %v7100
    %v7229 = vsel %vm6972, %v5553, %v7101
    %v7230 = vsel %vm6973, %v5554, %v7102
    %v7231 = vsel %vm6974, %v5555, %v7103
    %v7232 = vsel %vm6975, %v5556, %v7104
    %v7233 = vsel %vm6976, %v5557, %v7105
    %v7234 = vsel %vm6977, %v5558, %v7106
    %v7235 = vsel %vm6978, %v5559, %v7107
    %v7236 = vsel %vm6979, %v5560, %v7108
    %v7237 = vsel %vm6980, %v5561, %v7109
    %v7238 = vsel %vm6981, %v5562, %v7110
    %v7239 = vsel %vm6982, %v5563, %v7111
    %v7240 = vsel %vm6983, %v5564, %v7112
    %v7241 = vsel %vm6984, %v5565, %v7113
    %v7242 = vsel %vm6985, %v5566, %v7114
    %v7243 = vsel %vm6986, %v5567, %v7115
    %v7244 = vsel %vm6987, %v5568, %v7116
    %v7245 = vsel %vm6988, %v5569, %v7117
    %v7246 = vsel %vm6989, %v5570, %v7118
    %v7247 = vsel %vm6990, %v5571, %v7119
    %v7248 = vsel %vm6991, %v5572, %v7120
    %v7249 = vsel %vm6992, %v5573, %v7121
    %v7250 = vsel %vm6993, %v5574, %v7122
    %v7251 = vsel %vm6994, %v5575, %v7123
    %v7252 = vsel %vm6995, %v5576, %v7124
    %v7253 = vsel %vm6996, %v5577, %v7125
    %v7254 = vsel %vm6997, %v5578, %v7126
    %v7255 = vsel %vm6998, %v5579, %v7127
    %v7256 = vsel %vm6999, %v5580, %v7128
    %v7257 = vsel %vm7000, %v5581, %v7129
    %v7258 = vsel %vm7001, %v5582, %v7130
    %v7259 = vsel %vm7002, %v5583, %v7131
    %v7260 = vsel %vm7003, %v5584, %v7132
    %v7261 = vsel %vm7004, %v5585, %v7133
    %v7262 = vsel %vm7005, %v5586, %v7134
    %v7263 = vsel %vm7006, %v5587, %v7135
    %v7264 = vsel %vm7007, %v5588, %v7136
    %v7265 = vsel %vm7008, %v5589, %v7137
    %v7266 = vsel %vm7009, %v5590, %v7138
    %v7267 = vsel %vm7010, %v5591, %v7139
    %v7268 = vsel %vm7011, %v5592, %v7140
    %v7269 = vsel %vm7012, %v5593, %v7141
    %v7270 = vsel %vm7013, %v5594, %v7142
    %v7271 = vsel %vm7014, %v5595, %v7143
    %v7272 = vsel %vm7015, %v5596, %v7144
    %v7273 = vsel %vm7016, %v5597, %v7145
    %v7274 = vsel %vm7017, %v5598, %v7146
    %v7275 = vsel %vm7018, %v5599, %v7147
    %v7276 = vsel %vm7019, %v5600, %v7148
    %v7277 = vsel %vm7020, %v5601, %v7149
    %v7278 = vsel %vm7021, %v5602, %v7150
    %v7279 = vsel %vm7022, %v5603, %v7151
    %v7280 = vsel %vm7023, %v5604, %v7152
    %v7281 = vsel %vm7024, %v5605, %v7153
    %v7282 = vsel %vm7025, %v5606, %v7154
    %v7283 = vsel %vm7026, %v5607, %v7155
    %v7284 = vsel %vm7027, %v5608, %v7156
    %v7285 = vsel %vm7028, %v5609, %v7157
    %v7286 = vsel %vm7029, %v5610, %v7158
    %v7287 = vsel %vm7030, %v5611, %v7159
    %v7288 = vsel %vm7031, %v5612, %v7160
    %v7289 = vsel %vm7032, %v5613, %v7161
    %v7290 = vsel %vm7033, %v5614, %v7162
    %v7291 = vsel %vm7034, %v5615, %v7163
    %v7292 = vsel %vm7035, %v5616, %v7164
    %v7293 = vsel %vm7036, %v5617, %v7165
    %v7294 = vsel %vm7037, %v5618, %v7166
    %v7295 = vsel %vm7038, %v5619, %v7167
    %v7296 = vsel %vm7039, %v5620, %v7168
    %v7297 = vsel %vm7040, %v5621, %v7169
    %v7298 = vsel %vm7041, %v5622, %v7170
    %v7299 = vsel %vm7042, %v5623, %v7171
    %v7300 = vsel %vm7043, %v5624, %v7172
    %v7301 = vsel %vm7044, %v5625, %v7173
    %v7302 = vsel %vm7045, %v5626, %v7174
    %v7303 = vsel %vm7046, %v5627, %v7175
    %v7304 = vsel %vm7047, %v5628, %v7176
    %v7305 = vsel %vm7048, %v5629, %v7177
    %v7306 = vsel %vm7049, %v5630, %v7178
    %v7307 = vsel %vm7050, %v5631, %v7179
    %v7308 = vsel %vm7051, %v5632, %v7180
    %v7309 = vsel %vm7052, %v5633, %v7181
    %v7310 = vsel %vm7053, %v5634, %v7182
    %v7311 = vsel %vm7054, %v5635, %v7183
    %v7312 = vsel %vm7055, %v5636, %v7184
    %v7313 = vsel %vm7056, %v5637, %v7185
    %v7314 = vsel %vm7057, %v5638, %v7186
    %v7315 = vsel %vm7058, %v5639, %v7187
    %v7316 = vld [vmem:[%s4] sm:$0xff]
    %v7317 = vld [vmem:[%s4 + $0x8] sm:$0xff]
    %v7318 = vld [vmem:[%s4 + $0x10] sm:$0xff]
    %v7319 = vld [vmem:[%s4 + $0x18] sm:$0xff]
    %v7320 = vld [vmem:[%s4 + $0x20] sm:$0xff]
    %v7321 = vld [vmem:[%s4 + $0x28] sm:$0xff]
    %v7322 = vld [vmem:[%s4 + $0x30] sm:$0xff]
    %v7323 = vld [vmem:[%s4 + $0x38] sm:$0xff]
    %v7324 = vld [vmem:[%s4 + $0x40] sm:$0xff]
    %v7325 = vld [vmem:[%s4 + $0x48] sm:$0xff]
    %v7326 = vld [vmem:[%s4 + $0x50] sm:$0xff]
    %v7327 = vld [vmem:[%s4 + $0x58] sm:$0xff]
    %v7328 = vld [vmem:[%s4 + $0x60] sm:$0xff]
    %v7329 = vld [vmem:[%s4 + $0x68] sm:$0xff]
    %v7330 = vld [vmem:[%s4 + $0x70] sm:$0xff]
    %v7331 = vld [vmem:[%s4 + $0x78] sm:$0xff]
    %v7332 = vld [vmem:[%s4 + $0x80] sm:$0xff]
    %v7333 = vld [vmem:[%s4 + $0x88] sm:$0xff]
    %v7334 = vld [vmem:[%s4 + $0x90] sm:$0xff]
    %v7335 = vld [vmem:[%s4 + $0x98] sm:$0xff]
    %v7336 = vld [vmem:[%s4 + $0xa0] sm:$0xff]
    %v7337 = vld [vmem:[%s4 + $0xa8] sm:$0xff]
    %v7338 = vld [vmem:[%s4 + $0xb0] sm:$0xff]
    %v7339 = vld [vmem:[%s4 + $0xb8] sm:$0xff]
    %v7340 = vld [vmem:[%s4 + $0xc0] sm:$0xff]
    %v7341 = vld [vmem:[%s4 + $0xc8] sm:$0xff]
    %v7342 = vld [vmem:[%s4 + $0xd0] sm:$0xff]
    %v7343 = vld [vmem:[%s4 + $0xd8] sm:$0xff]
    %v7344 = vld [vmem:[%s4 + $0xe0] sm:$0xff]
    %v7345 = vld [vmem:[%s4 + $0xe8] sm:$0xff]
    %v7346 = vld [vmem:[%s4 + $0xf0] sm:$0xff]
    %v7347 = vld [vmem:[%s4 + $0xf8] sm:$0xff]
    %7476 = vset.pattern.permute.xlu0 0
    %7477 = vperm.xlu0 %7476, %v7188
    %v7478 = vpop.permute.xlu0 %7477
    %7479 = vset.pattern.permute.xlu0 0
    %7480 = vperm.xlu0 %7479, %v7189
    %v7481 = vpop.permute.xlu0 %7480
    %7482 = vset.pattern.permute.xlu0 0
    %7483 = vperm.xlu0 %7482, %v7190
    %v7484 = vpop.permute.xlu0 %7483
    %7485 = vset.pattern.permute.xlu0 0
    %7486 = vperm.xlu0 %7485, %v7191
    %v7487 = vpop.permute.xlu0 %7486
    %7488 = vset.pattern.permute.xlu0 0
    %7489 = vperm.xlu0 %7488, %v7192
    %v7490 = vpop.permute.xlu0 %7489
    %7491 = vset.pattern.permute.xlu0 0
    %7492 = vperm.xlu0 %7491, %v7193
    %v7493 = vpop.permute.xlu0 %7492
    %7494 = vset.pattern.permute.xlu0 0
    %7495 = vperm.xlu0 %7494, %v7194
    %v7496 = vpop.permute.xlu0 %7495
    %7497 = vset.pattern.permute.xlu0 0
    %7498 = vperm.xlu0 %7497, %v7195
    %v7499 = vpop.permute.xlu0 %7498
    %7500 = vset.pattern.permute.xlu0 0
    %7501 = vperm.xlu0 %7500, %v7196
    %v7502 = vpop.permute.xlu0 %7501
    %7503 = vset.pattern.permute.xlu0 0
    %7504 = vperm.xlu0 %7503, %v7197
    %v7505 = vpop.permute.xlu0 %7504
    %7506 = vset.pattern.permute.xlu0 0
    %7507 = vperm.xlu0 %7506, %v7198
    %v7508 = vpop.permute.xlu0 %7507
    %7509 = vset.pattern.permute.xlu0 0
    %7510 = vperm.xlu0 %7509, %v7199
    %v7511 = vpop.permute.xlu0 %7510
    %7512 = vset.pattern.permute.xlu0 0
    %7513 = vperm.xlu0 %7512, %v7200
    %v7514 = vpop.permute.xlu0 %7513
    %7515 = vset.pattern.permute.xlu0 0
    %7516 = vperm.xlu0 %7515, %v7201
    %v7517 = vpop.permute.xlu0 %7516
    %7518 = vset.pattern.permute.xlu0 0
    %7519 = vperm.xlu0 %7518, %v7202
    %v7520 = vpop.permute.xlu0 %7519
    %7521 = vset.pattern.permute.xlu0 0
    %7522 = vperm.xlu0 %7521, %v7203
    %v7523 = vpop.permute.xlu0 %7522
    %7524 = vset.pattern.permute.xlu0 0
    %7525 = vperm.xlu0 %7524, %v7204
    %v7526 = vpop.permute.xlu0 %7525
    %7527 = vset.pattern.permute.xlu0 0
    %7528 = vperm.xlu0 %7527, %v7205
    %v7529 = vpop.permute.xlu0 %7528
    %7530 = vset.pattern.permute.xlu0 0
    %7531 = vperm.xlu0 %7530, %v7206
    %v7532 = vpop.permute.xlu0 %7531
    %7533 = vset.pattern.permute.xlu0 0
    %7534 = vperm.xlu0 %7533, %v7207
    %v7535 = vpop.permute.xlu0 %7534
    %7536 = vset.pattern.permute.xlu0 0
    %7537 = vperm.xlu0 %7536, %v7208
    %v7538 = vpop.permute.xlu0 %7537
    %7539 = vset.pattern.permute.xlu0 0
    %7540 = vperm.xlu0 %7539, %v7209
    %v7541 = vpop.permute.xlu0 %7540
    %7542 = vset.pattern.permute.xlu0 0
    %7543 = vperm.xlu0 %7542, %v7210
    %v7544 = vpop.permute.xlu0 %7543
    %7545 = vset.pattern.permute.xlu0 0
    %7546 = vperm.xlu0 %7545, %v7211
    %v7547 = vpop.permute.xlu0 %7546
    %7548 = vset.pattern.permute.xlu0 0
    %7549 = vperm.xlu0 %7548, %v7212
    %v7550 = vpop.permute.xlu0 %7549
    %7551 = vset.pattern.permute.xlu0 0
    %7552 = vperm.xlu0 %7551, %v7213
    %v7553 = vpop.permute.xlu0 %7552
    %7554 = vset.pattern.permute.xlu0 0
    %7555 = vperm.xlu0 %7554, %v7214
    %v7556 = vpop.permute.xlu0 %7555
    %7557 = vset.pattern.permute.xlu0 0
    %7558 = vperm.xlu0 %7557, %v7215
    %v7559 = vpop.permute.xlu0 %7558
    %7560 = vset.pattern.permute.xlu0 0
    %7561 = vperm.xlu0 %7560, %v7216
    %v7562 = vpop.permute.xlu0 %7561
    %7563 = vset.pattern.permute.xlu0 0
    %7564 = vperm.xlu0 %7563, %v7217
    %v7565 = vpop.permute.xlu0 %7564
    %7566 = vset.pattern.permute.xlu0 0
    %7567 = vperm.xlu0 %7566, %v7218
    %v7568 = vpop.permute.xlu0 %7567
    %7569 = vset.pattern.permute.xlu0 0
    %7570 = vperm.xlu0 %7569, %v7219
    %v7571 = vpop.permute.xlu0 %7570
    %7572 = vset.pattern.permute.xlu0 0
    %7573 = vperm.xlu0 %7572, %v7220
    %v7574 = vpop.permute.xlu0 %7573
    %7575 = vset.pattern.permute.xlu0 0
    %7576 = vperm.xlu0 %7575, %v7221
    %v7577 = vpop.permute.xlu0 %7576
    %7578 = vset.pattern.permute.xlu0 0
    %7579 = vperm.xlu0 %7578, %v7222
    %v7580 = vpop.permute.xlu0 %7579
    %7581 = vset.pattern.permute.xlu0 0
    %7582 = vperm.xlu0 %7581, %v7223
    %v7583 = vpop.permute.xlu0 %7582
    %7584 = vset.pattern.permute.xlu0 0
    %7585 = vperm.xlu0 %7584, %v7224
    %v7586 = vpop.permute.xlu0 %7585
    %7587 = vset.pattern.permute.xlu0 0
    %7588 = vperm.xlu0 %7587, %v7225
    %v7589 = vpop.permute.xlu0 %7588
    %7590 = vset.pattern.permute.xlu0 0
    %7591 = vperm.xlu0 %7590, %v7226
    %v7592 = vpop.permute.xlu0 %7591
    %7593 = vset.pattern.permute.xlu0 0
    %7594 = vperm.xlu0 %7593, %v7227
    %v7595 = vpop.permute.xlu0 %7594
    %7596 = vset.pattern.permute.xlu0 0
    %7597 = vperm.xlu0 %7596, %v7228
    %v7598 = vpop.permute.xlu0 %7597
    %7599 = vset.pattern.permute.xlu0 0
    %7600 = vperm.xlu0 %7599, %v7229
    %v7601 = vpop.permute.xlu0 %7600
    %7602 = vset.pattern.permute.xlu0 0
    %7603 = vperm.xlu0 %7602, %v7230
    %v7604 = vpop.permute.xlu0 %7603
    %7605 = vset.pattern.permute.xlu0 0
    %7606 = vperm.xlu0 %7605, %v7231
    %v7607 = vpop.permute.xlu0 %7606
    %7608 = vset.pattern.permute.xlu0 0
    %7609 = vperm.xlu0 %7608, %v7232
    %v7610 = vpop.permute.xlu0 %7609
    %7611 = vset.pattern.permute.xlu0 0
    %7612 = vperm.xlu0 %7611, %v7233
    %v7613 = vpop.permute.xlu0 %7612
    %7614 = vset.pattern.permute.xlu0 0
    %7615 = vperm.xlu0 %7614, %v7234
    %v7616 = vpop.permute.xlu0 %7615
    %7617 = vset.pattern.permute.xlu0 0
    %7618 = vperm.xlu0 %7617, %v7235
    %v7619 = vpop.permute.xlu0 %7618
    %7620 = vset.pattern.permute.xlu0 0
    %7621 = vperm.xlu0 %7620, %v7236
    %v7622 = vpop.permute.xlu0 %7621
    %7623 = vset.pattern.permute.xlu0 0
    %7624 = vperm.xlu0 %7623, %v7237
    %v7625 = vpop.permute.xlu0 %7624
    %7626 = vset.pattern.permute.xlu0 0
    %7627 = vperm.xlu0 %7626, %v7238
    %v7628 = vpop.permute.xlu0 %7627
    %7629 = vset.pattern.permute.xlu0 0
    %7630 = vperm.xlu0 %7629, %v7239
    %v7631 = vpop.permute.xlu0 %7630
    %7632 = vset.pattern.permute.xlu0 0
    %7633 = vperm.xlu0 %7632, %v7240
    %v7634 = vpop.permute.xlu0 %7633
    %7635 = vset.pattern.permute.xlu0 0
    %7636 = vperm.xlu0 %7635, %v7241
    %v7637 = vpop.permute.xlu0 %7636
    %7638 = vset.pattern.permute.xlu0 0
    %7639 = vperm.xlu0 %7638, %v7242
    %v7640 = vpop.permute.xlu0 %7639
    %7641 = vset.pattern.permute.xlu0 0
    %7642 = vperm.xlu0 %7641, %v7243
    %v7643 = vpop.permute.xlu0 %7642
    %7644 = vset.pattern.permute.xlu0 0
    %7645 = vperm.xlu0 %7644, %v7244
    %v7646 = vpop.permute.xlu0 %7645
    %7647 = vset.pattern.permute.xlu0 0
    %7648 = vperm.xlu0 %7647, %v7245
    %v7649 = vpop.permute.xlu0 %7648
    %7650 = vset.pattern.permute.xlu0 0
    %7651 = vperm.xlu0 %7650, %v7246
    %v7652 = vpop.permute.xlu0 %7651
    %7653 = vset.pattern.permute.xlu0 0
    %7654 = vperm.xlu0 %7653, %v7247
    %v7655 = vpop.permute.xlu0 %7654
    %7656 = vset.pattern.permute.xlu0 0
    %7657 = vperm.xlu0 %7656, %v7248
    %v7658 = vpop.permute.xlu0 %7657
    %7659 = vset.pattern.permute.xlu0 0
    %7660 = vperm.xlu0 %7659, %v7249
    %v7661 = vpop.permute.xlu0 %7660
    %7662 = vset.pattern.permute.xlu0 0
    %7663 = vperm.xlu0 %7662, %v7250
    %v7664 = vpop.permute.xlu0 %7663
    %7665 = vset.pattern.permute.xlu0 0
    %7666 = vperm.xlu0 %7665, %v7251
    %v7667 = vpop.permute.xlu0 %7666
    %7668 = vset.pattern.permute.xlu0 0
    %7669 = vperm.xlu0 %7668, %v7252
    %v7670 = vpop.permute.xlu0 %7669
    %7671 = vset.pattern.permute.xlu0 0
    %7672 = vperm.xlu0 %7671, %v7253
    %v7673 = vpop.permute.xlu0 %7672
    %7674 = vset.pattern.permute.xlu0 0
    %7675 = vperm.xlu0 %7674, %v7254
    %v7676 = vpop.permute.xlu0 %7675
    %7677 = vset.pattern.permute.xlu0 0
    %7678 = vperm.xlu0 %7677, %v7255
    %v7679 = vpop.permute.xlu0 %7678
    %7680 = vset.pattern.permute.xlu0 0
    %7681 = vperm.xlu0 %7680, %v7256
    %v7682 = vpop.permute.xlu0 %7681
    %7683 = vset.pattern.permute.xlu0 0
    %7684 = vperm.xlu0 %7683, %v7257
    %v7685 = vpop.permute.xlu0 %7684
    %7686 = vset.pattern.permute.xlu0 0
    %7687 = vperm.xlu0 %7686, %v7258
    %v7688 = vpop.permute.xlu0 %7687
    %7689 = vset.pattern.permute.xlu0 0
    %7690 = vperm.xlu0 %7689, %v7259
    %v7691 = vpop.permute.xlu0 %7690
    %7692 = vset.pattern.permute.xlu0 0
    %7693 = vperm.xlu0 %7692, %v7260
    %v7694 = vpop.permute.xlu0 %7693
    %7695 = vset.pattern.permute.xlu0 0
    %7696 = vperm.xlu0 %7695, %v7261
    %v7697 = vpop.permute.xlu0 %7696
    %7698 = vset.pattern.permute.xlu0 0
    %7699 = vperm.xlu0 %7698, %v7262
    %v7700 = vpop.permute.xlu0 %7699
    %7701 = vset.pattern.permute.xlu0 0
    %7702 = vperm.xlu0 %7701, %v7263
    %v7703 = vpop.permute.xlu0 %7702
    %7704 = vset.pattern.permute.xlu0 0
    %7705 = vperm.xlu0 %7704, %v7264
    %v7706 = vpop.permute.xlu0 %7705
    %7707 = vset.pattern.permute.xlu0 0
    %7708 = vperm.xlu0 %7707, %v7265
    %v7709 = vpop.permute.xlu0 %7708
    %7710 = vset.pattern.permute.xlu0 0
    %7711 = vperm.xlu0 %7710, %v7266
    %v7712 = vpop.permute.xlu0 %7711
    %7713 = vset.pattern.permute.xlu0 0
    %7714 = vperm.xlu0 %7713, %v7267
    %v7715 = vpop.permute.xlu0 %7714
    %7716 = vset.pattern.permute.xlu0 0
    %7717 = vperm.xlu0 %7716, %v7268
    %v7718 = vpop.permute.xlu0 %7717
    %7719 = vset.pattern.permute.xlu0 0
    %7720 = vperm.xlu0 %7719, %v7269
    %v7721 = vpop.permute.xlu0 %7720
    %7722 = vset.pattern.permute.xlu0 0
    %7723 = vperm.xlu0 %7722, %v7270
    %v7724 = vpop.permute.xlu0 %7723
    %7725 = vset.pattern.permute.xlu0 0
    %7726 = vperm.xlu0 %7725, %v7271
    %v7727 = vpop.permute.xlu0 %7726
    %7728 = vset.pattern.permute.xlu0 0
    %7729 = vperm.xlu0 %7728, %v7272
    %v7730 = vpop.permute.xlu0 %7729
    %7731 = vset.pattern.permute.xlu0 0
    %7732 = vperm.xlu0 %7731, %v7273
    %v7733 = vpop.permute.xlu0 %7732
    %7734 = vset.pattern.permute.xlu0 0
    %7735 = vperm.xlu0 %7734, %v7274
    %v7736 = vpop.permute.xlu0 %7735
    %7737 = vset.pattern.permute.xlu0 0
    %7738 = vperm.xlu0 %7737, %v7275
    %v7739 = vpop.permute.xlu0 %7738
    %7740 = vset.pattern.permute.xlu0 0
    %7741 = vperm.xlu0 %7740, %v7276
    %v7742 = vpop.permute.xlu0 %7741
    %7743 = vset.pattern.permute.xlu0 0
    %7744 = vperm.xlu0 %7743, %v7277
    %v7745 = vpop.permute.xlu0 %7744
    %7746 = vset.pattern.permute.xlu0 0
    %7747 = vperm.xlu0 %7746, %v7278
    %v7748 = vpop.permute.xlu0 %7747
    %7749 = vset.pattern.permute.xlu0 0
    %7750 = vperm.xlu0 %7749, %v7279
    %v7751 = vpop.permute.xlu0 %7750
    %7752 = vset.pattern.permute.xlu0 0
    %7753 = vperm.xlu0 %7752, %v7280
    %v7754 = vpop.permute.xlu0 %7753
    %7755 = vset.pattern.permute.xlu0 0
    %7756 = vperm.xlu0 %7755, %v7281
    %v7757 = vpop.permute.xlu0 %7756
    %7758 = vset.pattern.permute.xlu0 0
    %7759 = vperm.xlu0 %7758, %v7282
    %v7760 = vpop.permute.xlu0 %7759
    %7761 = vset.pattern.permute.xlu0 0
    %7762 = vperm.xlu0 %7761, %v7283
    %v7763 = vpop.permute.xlu0 %7762
    %7764 = vset.pattern.permute.xlu0 0
    %7765 = vperm.xlu0 %7764, %v7284
    %v7766 = vpop.permute.xlu0 %7765
    %7767 = vset.pattern.permute.xlu0 0
    %7768 = vperm.xlu0 %7767, %v7285
    %v7769 = vpop.permute.xlu0 %7768
    %7770 = vset.pattern.permute.xlu0 0
    %7771 = vperm.xlu0 %7770, %v7286
    %v7772 = vpop.permute.xlu0 %7771
    %7773 = vset.pattern.permute.xlu0 0
    %7774 = vperm.xlu0 %7773, %v7287
    %v7775 = vpop.permute.xlu0 %7774
    %7776 = vset.pattern.permute.xlu0 0
    %7777 = vperm.xlu0 %7776, %v7288
    %v7778 = vpop.permute.xlu0 %7777
    %7779 = vset.pattern.permute.xlu0 0
    %7780 = vperm.xlu0 %7779, %v7289
    %v7781 = vpop.permute.xlu0 %7780
    %7782 = vset.pattern.permute.xlu0 0
    %7783 = vperm.xlu0 %7782, %v7290
    %v7784 = vpop.permute.xlu0 %7783
    %7785 = vset.pattern.permute.xlu0 0
    %7786 = vperm.xlu0 %7785, %v7291
    %v7787 = vpop.permute.xlu0 %7786
    %7788 = vset.pattern.permute.xlu0 0
    %7789 = vperm.xlu0 %7788, %v7292
    %v7790 = vpop.permute.xlu0 %7789
    %7791 = vset.pattern.permute.xlu0 0
    %7792 = vperm.xlu0 %7791, %v7293
    %v7793 = vpop.permute.xlu0 %7792
    %7794 = vset.pattern.permute.xlu0 0
    %7795 = vperm.xlu0 %7794, %v7294
    %v7796 = vpop.permute.xlu0 %7795
    %7797 = vset.pattern.permute.xlu0 0
    %7798 = vperm.xlu0 %7797, %v7295
    %v7799 = vpop.permute.xlu0 %7798
    %7800 = vset.pattern.permute.xlu0 0
    %7801 = vperm.xlu0 %7800, %v7296
    %v7802 = vpop.permute.xlu0 %7801
    %7803 = vset.pattern.permute.xlu0 0
    %7804 = vperm.xlu0 %7803, %v7297
    %v7805 = vpop.permute.xlu0 %7804
    %7806 = vset.pattern.permute.xlu0 0
    %7807 = vperm.xlu0 %7806, %v7298
    %v7808 = vpop.permute.xlu0 %7807
    %7809 = vset.pattern.permute.xlu0 0
    %7810 = vperm.xlu0 %7809, %v7299
    %v7811 = vpop.permute.xlu0 %7810
    %7812 = vset.pattern.permute.xlu0 0
    %7813 = vperm.xlu0 %7812, %v7300
    %v7814 = vpop.permute.xlu0 %7813
    %7815 = vset.pattern.permute.xlu0 0
    %7816 = vperm.xlu0 %7815, %v7301
    %v7817 = vpop.permute.xlu0 %7816
    %7818 = vset.pattern.permute.xlu0 0
    %7819 = vperm.xlu0 %7818, %v7302
    %v7820 = vpop.permute.xlu0 %7819
    %7821 = vset.pattern.permute.xlu0 0
    %7822 = vperm.xlu0 %7821, %v7303
    %v7823 = vpop.permute.xlu0 %7822
    %7824 = vset.pattern.permute.xlu0 0
    %7825 = vperm.xlu0 %7824, %v7304
    %v7826 = vpop.permute.xlu0 %7825
    %7827 = vset.pattern.permute.xlu0 0
    %7828 = vperm.xlu0 %7827, %v7305
    %v7829 = vpop.permute.xlu0 %7828
    %7830 = vset.pattern.permute.xlu0 0
    %7831 = vperm.xlu0 %7830, %v7306
    %v7832 = vpop.permute.xlu0 %7831
    %7833 = vset.pattern.permute.xlu0 0
    %7834 = vperm.xlu0 %7833, %v7307
    %v7835 = vpop.permute.xlu0 %7834
    %7836 = vset.pattern.permute.xlu0 0
    %7837 = vperm.xlu0 %7836, %v7308
    %v7838 = vpop.permute.xlu0 %7837
    %7839 = vset.pattern.permute.xlu0 0
    %7840 = vperm.xlu0 %7839, %v7309
    %v7841 = vpop.permute.xlu0 %7840
    %7842 = vset.pattern.permute.xlu0 0
    %7843 = vperm.xlu0 %7842, %v7310
    %v7844 = vpop.permute.xlu0 %7843
    %7845 = vset.pattern.permute.xlu0 0
    %7846 = vperm.xlu0 %7845, %v7311
    %v7847 = vpop.permute.xlu0 %7846
    %7848 = vset.pattern.permute.xlu0 0
    %7849 = vperm.xlu0 %7848, %v7312
    %v7850 = vpop.permute.xlu0 %7849
    %7851 = vset.pattern.permute.xlu0 0
    %7852 = vperm.xlu0 %7851, %v7313
    %v7853 = vpop.permute.xlu0 %7852
    %7854 = vset.pattern.permute.xlu0 0
    %7855 = vperm.xlu0 %7854, %v7314
    %v7856 = vpop.permute.xlu0 %7855
    %7857 = vset.pattern.permute.xlu0 0
    %7858 = vperm.xlu0 %7857, %v7315
    %v7859 = vpop.permute.xlu0 %7858
    %v7860 = vperm.slane %v7478, %v819
    %v7861 = vperm.slane %v7481, %v821
    %v7862 = vsel %vm823, %v7861, %v7860
    %v7863 = vperm.slane %v7484, %v825
    %v7864 = vsel %vm827, %v7863, %v7862
    %v7865 = vperm.slane %v7487, %v829
    %v7866 = vsel %vm831, %v7865, %v7864
    %v7867 = vperm.slane %v7490, %v833
    %v7868 = vsel %vm835, %v7867, %v7866
    %v7869 = vperm.slane %v7493, %v837
    %v7870 = vsel %vm839, %v7869, %v7868
    %v7871 = vperm.slane %v7496, %v841
    %v7872 = vsel %vm843, %v7871, %v7870
    %v7873 = vperm.slane %v7499, %v845
    %v7874 = vsel %vm847, %v7873, %v7872
    %v7875 = vperm.slane %v7502, %v849
    %v7876 = vsel %vm851, %v7875, %v7874
    %v7877 = vperm.slane %v7505, %v853
    %v7878 = vsel %vm855, %v7877, %v7876
    %v7879 = vperm.slane %v7508, %v857
    %v7880 = vsel %vm859, %v7879, %v7878
    %v7881 = vperm.slane %v7511, %v861
    %v7882 = vsel %vm863, %v7881, %v7880
    %v7883 = vperm.slane %v7514, %v865
    %v7884 = vsel %vm867, %v7883, %v7882
    %v7885 = vperm.slane %v7517, %v869
    %v7886 = vsel %vm871, %v7885, %v7884
    %v7887 = vperm.slane %v7520, %v873
    %v7888 = vsel %vm875, %v7887, %v7886
    %v7889 = vperm.slane %v7523, %v877
    %v7890 = vsel %vm879, %v7889, %v7888
    %v7891 = vperm.slane %v7526, %v819
    %v7892 = vperm.slane %v7529, %v821
    %v7893 = vsel %vm823, %v7892, %v7891
    %v7894 = vperm.slane %v7532, %v825
    %v7895 = vsel %vm827, %v7894, %v7893
    %v7896 = vperm.slane %v7535, %v829
    %v7897 = vsel %vm831, %v7896, %v7895
    %v7898 = vperm.slane %v7538, %v833
    %v7899 = vsel %vm835, %v7898, %v7897
    %v7900 = vperm.slane %v7541, %v837
    %v7901 = vsel %vm839, %v7900, %v7899
    %v7902 = vperm.slane %v7544, %v841
    %v7903 = vsel %vm843, %v7902, %v7901
    %v7904 = vperm.slane %v7547, %v845
    %v7905 = vsel %vm847, %v7904, %v7903
    %v7906 = vperm.slane %v7550, %v849
    %v7907 = vsel %vm851, %v7906, %v7905
    %v7908 = vperm.slane %v7553, %v853
    %v7909 = vsel %vm855, %v7908, %v7907
    %v7910 = vperm.slane %v7556, %v857
    %v7911 = vsel %vm859, %v7910, %v7909
    %v7912 = vperm.slane %v7559, %v861
    %v7913 = vsel %vm863, %v7912, %v7911
    %v7914 = vperm.slane %v7562, %v865
    %v7915 = vsel %vm867, %v7914, %v7913
    %v7916 = vperm.slane %v7565, %v869
    %v7917 = vsel %vm871, %v7916, %v7915
    %v7918 = vperm.slane %v7568, %v873
    %v7919 = vsel %vm875, %v7918, %v7917
    %v7920 = vperm.slane %v7571, %v877
    %v7921 = vsel %vm879, %v7920, %v7919
    %v7922 = vperm.slane %v7574, %v819
    %v7923 = vperm.slane %v7577, %v821
    %v7924 = vsel %vm823, %v7923, %v7922
    %v7925 = vperm.slane %v7580, %v825
    %v7926 = vsel %vm827, %v7925, %v7924
    %v7927 = vperm.slane %v7583, %v829
    %v7928 = vsel %vm831, %v7927, %v7926
    %v7929 = vperm.slane %v7586, %v833
    %v7930 = vsel %vm835, %v7929, %v7928
    %v7931 = vperm.slane %v7589, %v837
    %v7932 = vsel %vm839, %v7931, %v7930
    %v7933 = vperm.slane %v7592, %v841
    %v7934 = vsel %vm843, %v7933, %v7932
    %v7935 = vperm.slane %v7595, %v845
    %v7936 = vsel %vm847, %v7935, %v7934
    %v7937 = vperm.slane %v7598, %v849
    %v7938 = vsel %vm851, %v7937, %v7936
    %v7939 = vperm.slane %v7601, %v853
    %v7940 = vsel %vm855, %v7939, %v7938
    %v7941 = vperm.slane %v7604, %v857
    %v7942 = vsel %vm859, %v7941, %v7940
    %v7943 = vperm.slane %v7607, %v861
    %v7944 = vsel %vm863, %v7943, %v7942
    %v7945 = vperm.slane %v7610, %v865
    %v7946 = vsel %vm867, %v7945, %v7944
    %v7947 = vperm.slane %v7613, %v869
    %v7948 = vsel %vm871, %v7947, %v7946
    %v7949 = vperm.slane %v7616, %v873
    %v7950 = vsel %vm875, %v7949, %v7948
    %v7951 = vperm.slane %v7619, %v877
    %v7952 = vsel %vm879, %v7951, %v7950
    %v7953 = vperm.slane %v7622, %v819
    %v7954 = vperm.slane %v7625, %v821
    %v7955 = vsel %vm823, %v7954, %v7953
    %v7956 = vperm.slane %v7628, %v825
    %v7957 = vsel %vm827, %v7956, %v7955
    %v7958 = vperm.slane %v7631, %v829
    %v7959 = vsel %vm831, %v7958, %v7957
    %v7960 = vperm.slane %v7634, %v833
    %v7961 = vsel %vm835, %v7960, %v7959
    %v7962 = vperm.slane %v7637, %v837
    %v7963 = vsel %vm839, %v7962, %v7961
    %v7964 = vperm.slane %v7640, %v841
    %v7965 = vsel %vm843, %v7964, %v7963
    %v7966 = vperm.slane %v7643, %v845
    %v7967 = vsel %vm847, %v7966, %v7965
    %v7968 = vperm.slane %v7646, %v849
    %v7969 = vsel %vm851, %v7968, %v7967
    %v7970 = vperm.slane %v7649, %v853
    %v7971 = vsel %vm855, %v7970, %v7969
    %v7972 = vperm.slane %v7652, %v857
    %v7973 = vsel %vm859, %v7972, %v7971
    %v7974 = vperm.slane %v7655, %v861
    %v7975 = vsel %vm863, %v7974, %v7973
    %v7976 = vperm.slane %v7658, %v865
    %v7977 = vsel %vm867, %v7976, %v7975
    %v7978 = vperm.slane %v7661, %v869
    %v7979 = vsel %vm871, %v7978, %v7977
    %v7980 = vperm.slane %v7664, %v873
    %v7981 = vsel %vm875, %v7980, %v7979
    %v7982 = vperm.slane %v7667, %v877
    %v7983 = vsel %vm879, %v7982, %v7981
    %v7984 = vperm.slane %v7670, %v819
    %v7985 = vperm.slane %v7673, %v821
    %v7986 = vsel %vm823, %v7985, %v7984
    %v7987 = vperm.slane %v7676, %v825
    %v7988 = vsel %vm827, %v7987, %v7986
    %v7989 = vperm.slane %v7679, %v829
    %v7990 = vsel %vm831, %v7989, %v7988
    %v7991 = vperm.slane %v7682, %v833
    %v7992 = vsel %vm835, %v7991, %v7990
    %v7993 = vperm.slane %v7685, %v837
    %v7994 = vsel %vm839, %v7993, %v7992
    %v7995 = vperm.slane %v7688, %v841
    %v7996 = vsel %vm843, %v7995, %v7994
    %v7997 = vperm.slane %v7691, %v845
    %v7998 = vsel %vm847, %v7997, %v7996
    %v7999 = vperm.slane %v7694, %v849
    %v8000 = vsel %vm851, %v7999, %v7998
    %v8001 = vperm.slane %v7697, %v853
    %v8002 = vsel %vm855, %v8001, %v8000
    %v8003 = vperm.slane %v7700, %v857
    %v8004 = vsel %vm859, %v8003, %v8002
    %v8005 = vperm.slane %v7703, %v861
    %v8006 = vsel %vm863, %v8005, %v8004
    %v8007 = vperm.slane %v7706, %v865
    %v8008 = vsel %vm867, %v8007, %v8006
    %v8009 = vperm.slane %v7709, %v869
    %v8010 = vsel %vm871, %v8009, %v8008
    %v8011 = vperm.slane %v7712, %v873
    %v8012 = vsel %vm875, %v8011, %v8010
    %v8013 = vperm.slane %v7715, %v877
    %v8014 = vsel %vm879, %v8013, %v8012
    %v8015 = vperm.slane %v7718, %v819
    %v8016 = vperm.slane %v7721, %v821
    %v8017 = vsel %vm823, %v8016, %v8015
    %v8018 = vperm.slane %v7724, %v825
    %v8019 = vsel %vm827, %v8018, %v8017
    %v8020 = vperm.slane %v7727, %v829
    %v8021 = vsel %vm831, %v8020, %v8019
    %v8022 = vperm.slane %v7730, %v833
    %v8023 = vsel %vm835, %v8022, %v8021
    %v8024 = vperm.slane %v7733, %v837
    %v8025 = vsel %vm839, %v8024, %v8023
    %v8026 = vperm.slane %v7736, %v841
    %v8027 = vsel %vm843, %v8026, %v8025
    %v8028 = vperm.slane %v7739, %v845
    %v8029 = vsel %vm847, %v8028, %v8027
    %v8030 = vperm.slane %v7742, %v849
    %v8031 = vsel %vm851, %v8030, %v8029
    %v8032 = vperm.slane %v7745, %v853
    %v8033 = vsel %vm855, %v8032, %v8031
    %v8034 = vperm.slane %v7748, %v857
    %v8035 = vsel %vm859, %v8034, %v8033
    %v8036 = vperm.slane %v7751, %v861
    %v8037 = vsel %vm863, %v8036, %v8035
    %v8038 = vperm.slane %v7754, %v865
    %v8039 = vsel %vm867, %v8038, %v8037
    %v8040 = vperm.slane %v7757, %v869
    %v8041 = vsel %vm871, %v8040, %v8039
    %v8042 = vperm.slane %v7760, %v873
    %v8043 = vsel %vm875, %v8042, %v8041
    %v8044 = vperm.slane %v7763, %v877
    %v8045 = vsel %vm879, %v8044, %v8043
    %v8046 = vperm.slane %v7766, %v819
    %v8047 = vperm.slane %v7769, %v821
    %v8048 = vsel %vm823, %v8047, %v8046
    %v8049 = vperm.slane %v7772, %v825
    %v8050 = vsel %vm827, %v8049, %v8048
    %v8051 = vperm.slane %v7775, %v829
    %v8052 = vsel %vm831, %v8051, %v8050
    %v8053 = vperm.slane %v7778, %v833
    %v8054 = vsel %vm835, %v8053, %v8052
    %v8055 = vperm.slane %v7781, %v837
    %v8056 = vsel %vm839, %v8055, %v8054
    %v8057 = vperm.slane %v7784, %v841
    %v8058 = vsel %vm843, %v8057, %v8056
    %v8059 = vperm.slane %v7787, %v845
    %v8060 = vsel %vm847, %v8059, %v8058
    %v8061 = vperm.slane %v7790, %v849
    %v8062 = vsel %vm851, %v8061, %v8060
    %v8063 = vperm.slane %v7793, %v853
    %v8064 = vsel %vm855, %v8063, %v8062
    %v8065 = vperm.slane %v7796, %v857
    %v8066 = vsel %vm859, %v8065, %v8064
    %v8067 = vperm.slane %v7799, %v861
    %v8068 = vsel %vm863, %v8067, %v8066
    %v8069 = vperm.slane %v7802, %v865
    %v8070 = vsel %vm867, %v8069, %v8068
    %v8071 = vperm.slane %v7805, %v869
    %v8072 = vsel %vm871, %v8071, %v8070
    %v8073 = vperm.slane %v7808, %v873
    %v8074 = vsel %vm875, %v8073, %v8072
    %v8075 = vperm.slane %v7811, %v877
    %v8076 = vsel %vm879, %v8075, %v8074
    %v8077 = vperm.slane %v7814, %v819
    %v8078 = vperm.slane %v7817, %v821
    %v8079 = vsel %vm823, %v8078, %v8077
    %v8080 = vperm.slane %v7820, %v825
    %v8081 = vsel %vm827, %v8080, %v8079
    %v8082 = vperm.slane %v7823, %v829
    %v8083 = vsel %vm831, %v8082, %v8081
    %v8084 = vperm.slane %v7826, %v833
    %v8085 = vsel %vm835, %v8084, %v8083
    %v8086 = vperm.slane %v7829, %v837
    %v8087 = vsel %vm839, %v8086, %v8085
    %v8088 = vperm.slane %v7832, %v841
    %v8089 = vsel %vm843, %v8088, %v8087
    %v8090 = vperm.slane %v7835, %v845
    %v8091 = vsel %vm847, %v8090, %v8089
    %v8092 = vperm.slane %v7838, %v849
    %v8093 = vsel %vm851, %v8092, %v8091
    %v8094 = vperm.slane %v7841, %v853
    %v8095 = vsel %vm855, %v8094, %v8093
    %v8096 = vperm.slane %v7844, %v857
    %v8097 = vsel %vm859, %v8096, %v8095
    %v8098 = vperm.slane %v7847, %v861
    %v8099 = vsel %vm863, %v8098, %v8097
    %v8100 = vperm.slane %v7850, %v865
    %v8101 = vsel %vm867, %v8100, %v8099
    %v8102 = vperm.slane %v7853, %v869
    %v8103 = vsel %vm871, %v8102, %v8101
    %v8104 = vperm.slane %v7856, %v873
    %v8105 = vsel %vm875, %v8104, %v8103
    %v8106 = vperm.slane %v7859, %v877
    %v8107 = vsel %vm879, %v8106, %v8105
    %v8108 = vsel %vm1098, %v7952, %v7890
    %v8109 = vsel %vm1100, %v8014, %v8108
    %v8110 = vsel %vm1102, %v8076, %v8109
    %v8111 = vsel %vm1098, %v7983, %v7921
    %v8112 = vsel %vm1100, %v8045, %v8111
    %v8113 = vsel %vm1102, %v8107, %v8112
    %8116 = vmatpush.msra.mxu0 %v7331
    %8117 = vmatpush.msra.mxu0 %v7330
    %8118 = vmatpush.msra.mxu0 %v7329
    %8119 = vmatpush.msra.mxu0 %v7328
    %8120 = vmatpush.msra.mxu0 %v7327
    %8121 = vmatpush.msra.mxu0 %v7326
    %8122 = vmatpush.msra.mxu0 %v7325
    %8123 = vmatpush.msra.mxu0 %v7324
    %8124 = vmatpush.msra.mxu0 %v7323
    %8125 = vmatpush.msra.mxu0 %v7322
    %8126 = vmatpush.msra.mxu0 %v7321
    %8127 = vmatpush.msra.mxu0 %v7320
    %8128 = vmatpush.msra.mxu0 %v7319
    %8129 = vmatpush.msra.mxu0 %v7318
    %8130 = vmatpush.msra.mxu0 %v7317
    %8131 = vmatpush.msra.mxu0 %v7316
    %8132 = vmatmul.f32.gmra.mxu0 %v8110
    %v8133 = vpop.f32.mrf.mxu0
    %v8134 = vadd.f32 0.0, %v8133
    %8135 = vdwg.mxu0
    %8136 = vmatpush.msra.mxu0 %v7347
    %8137 = vmatpush.msra.mxu0 %v7346
    %8138 = vmatpush.msra.mxu0 %v7345
    %8139 = vmatpush.msra.mxu0 %v7344
    %8140 = vmatpush.msra.mxu0 %v7343
    %8141 = vmatpush.msra.mxu0 %v7342
    %8142 = vmatpush.msra.mxu0 %v7341
    %8143 = vmatpush.msra.mxu0 %v7340
    %8144 = vmatpush.msra.mxu0 %v7339
    %8145 = vmatpush.msra.mxu0 %v7338
    %8146 = vmatpush.msra.mxu0 %v7337
    %8147 = vmatpush.msra.mxu0 %v7336
    %8148 = vmatpush.msra.mxu0 %v7335
    %8149 = vmatpush.msra.mxu0 %v7334
    %8150 = vmatpush.msra.mxu0 %v7333
    %8151 = vmatpush.msra.mxu0 %v7332
    %8152 = vmatmul.f32.gmra.mxu0 %v8113
    %v8153 = vpop.f32.mrf.mxu0
    %v8154 = vadd.f32 %v8134, %v8153
    %8155 = vdwg.mxu0
    %vm8156 = vcmp.ge.f32.partialorder %v8154, 0.0
    %v8157 = vstv %s6930
    %v8158 = vmul.f32 %v8157, %v8154
    %v8159 = vsel %vm8156, %v8154, %v8158
    %v8160 = vld [vmem:[%s5] sm:$0xff]
    %v8161 = vld [vmem:[%s5 + $0x8] sm:$0xff]
    %v8162 = vld [vmem:[%s5 + $0x10] sm:$0xff]
    %v8163 = vld [vmem:[%s5 + $0x18] sm:$0xff]
    %v8164 = vld [vmem:[%s5 + $0x20] sm:$0xff]
    %v8165 = vld [vmem:[%s5 + $0x28] sm:$0xff]
    %v8166 = vld [vmem:[%s5 + $0x30] sm:$0xff]
    %v8167 = vld [vmem:[%s5 + $0x38] sm:$0xff]
    %v8168 = vld [vmem:[%s5 + $0x40] sm:$0xff]
    %v8169 = vld [vmem:[%s5 + $0x48] sm:$0xff]
    %v8170 = vld [vmem:[%s5 + $0x50] sm:$0xff]
    %v8171 = vld [vmem:[%s5 + $0x58] sm:$0xff]
    %v8172 = vld [vmem:[%s5 + $0x60] sm:$0xff]
    %v8173 = vld [vmem:[%s5 + $0x68] sm:$0xff]
    %v8174 = vld [vmem:[%s5 + $0x70] sm:$0xff]
    %v8175 = vld [vmem:[%s5 + $0x78] sm:$0xff]
    %8176 = vmatpush.msra.mxu0 %v8175
    %8177 = vmatpush.msra.mxu0 %v8174
    %8178 = vmatpush.msra.mxu0 %v8173
    %8179 = vmatpush.msra.mxu0 %v8172
    %8180 = vmatpush.msra.mxu0 %v8171
    %8181 = vmatpush.msra.mxu0 %v8170
    %8182 = vmatpush.msra.mxu0 %v8169
    %8183 = vmatpush.msra.mxu0 %v8168
    %8184 = vmatpush.msra.mxu0 %v8167
    %8185 = vmatpush.msra.mxu0 %v8166
    %8186 = vmatpush.msra.mxu0 %v8165
    %8187 = vmatpush.msra.mxu0 %v8164
    %8188 = vmatpush.msra.mxu0 %v8163
    %8189 = vmatpush.msra.mxu0 %v8162
    %8190 = vmatpush.msra.mxu0 %v8161
    %8191 = vmatpush.msra.mxu0 %v8160
    %8192 = vmatmul.f32.gmra.mxu0 %v8159
    %v8193 = vpop.f32.mrf.mxu0
    %v8194 = vadd.f32 0.0, %v8193
    %8195 = vdwg.mxu0
    %8196 = vst [vmem:[#allocation6] sm:$0xf] %v8194
    %v8197 = vld [vmem:[%s6] sm:$0xff]
    %v8198 = vld [vmem:[%s6 + $0x8] sm:$0xff]
    %v8199 = vld [vmem:[%s6 + $0x10] sm:$0xff]
    %v8200 = vld [vmem:[%s6 + $0x18] sm:$0xff]
    %v8201 = vld [vmem:[%s6 + $0x20] sm:$0xff]
    %v8202 = vld [vmem:[%s6 + $0x28] sm:$0xff]
    %v8203 = vld [vmem:[%s6 + $0x30] sm:$0xff]
    %v8204 = vld [vmem:[%s6 + $0x38] sm:$0xff]
    %v8205 = vld [vmem:[%s6 + $0x40] sm:$0xff]
    %v8206 = vld [vmem:[%s6 + $0x48] sm:$0xff]
    %v8207 = vld [vmem:[%s6 + $0x50] sm:$0xff]
    %v8208 = vld [vmem:[%s6 + $0x58] sm:$0xff]
    %v8209 = vld [vmem:[%s6 + $0x60] sm:$0xff]
    %v8210 = vld [vmem:[%s6 + $0x68] sm:$0xff]
    %v8211 = vld [vmem:[%s6 + $0x70] sm:$0xff]
    %v8212 = vld [vmem:[%s6 + $0x78] sm:$0xff]
    %8213 = vmatpush.xpose.msra.mxu0 %v8212
    %8214 = vmatpush.xpose.msra.mxu0 %v8211
    %8215 = vmatpush.xpose.msra.mxu0 %v8210
    %8216 = vmatpush.xpose.msra.mxu0 %v8209
    %8217 = vmatpush.xpose.msra.mxu0 %v8208
    %8218 = vmatpush.xpose.msra.mxu0 %v8207
    %8219 = vmatpush.xpose.msra.mxu0 %v8206
    %8220 = vmatpush.xpose.msra.mxu0 %v8205
    %8221 = vmatpush.xpose.msra.mxu0 %v8204
    %8222 = vmatpush.xpose.msra.mxu0 %v8203
    %8223 = vmatpush.xpose.msra.mxu0 %v8202
    %8224 = vmatpush.xpose.msra.mxu0 %v8201
    %8225 = vmatpush.xpose.msra.mxu0 %v8200
    %8226 = vmatpush.xpose.msra.mxu0 %v8199
    %8227 = vmatpush.xpose.msra.mxu0 %v8198
    %8228 = vmatpush.xpose.msra.mxu0 %v8197
    %8229 = vmatmul.f32.gmra.mxu0 %v8194
    %v8230 = vpop.f32.mrf.mxu0
    %v8231 = vadd.f32 0.0, %v8230
    %8232 = vdwg.mxu0
    %v8233 = vmul.f32 %v8231, 0.015625
    %8234 = vst [vmem:[#allocation8] sm:$0xf] %v8233
    %v8235 = vmul.f32 %v8194, %v8194
    %v8236 = vsel %vm1109, %v8235, 0.0
    %8237 = vadd.xlane.f32.xlu0 %v8236
    %v8238 = vpop.xlane.xlu0 %8237
    %v8239 = vld [vmem:[%s7] sm:$0x1]
    %v8241 = vperm.slane %v8239, 0
    %v8243 = vadd.f32 %v8238, %v8241
    %v8244 = vmul.f32 %v8231, 2.0
    %v8245 = vsub.f32 %v8243, %v8244
    %v8246 = vmax.f32 %v8245, 0.0
    %v8247 = vmul.f32 %v8246, 0.015625
    %8248 = vst [vmem:[#allocation9] sm:$0xf] %v8247
    // Predicated region
    $region38: #{tpu_custom_call.1} parent=1 // pred_check
      _
    $region39: #{tpu_custom_call.1} parent=1 // pred_check_branch
      %8250 = sbr.rel (0) target = $region41
    $region40: #{tpu_custom_call.1} parent=1 // pred_region
      %8252 = vsyncadd [#allocation3], 0
      %s8254 = sshll.u32 [#allocation5], 4
      %s8255 = int_to_ptr.vmem [resolvable:$true] %s8254
      %s8256 = sshll.u32 %s8, 4
      %s8257 = int_to_ptr.hbm [resolvable:$true] %s8256
      %8259 = dma.vmem_to_hbm [thread:$0]  %s8255, 128, %s8257, [#allocation3]
    $region41: #{tpu_custom_call.1} parent=1 // pred_fallthru
      _
    // Predicated region
    $region42: #{tpu_custom_call.1} parent=1 // pred_check
      _
    $region43: #{tpu_custom_call.1} parent=1 // pred_check_branch
      %8261 = sbr.rel (0) target = $region45
    $region44: #{tpu_custom_call.1} parent=1 // pred_region
      %8263 = vsyncadd [#allocation7], 0
      %s8265 = sshll.u32 [#allocation6], 4
      %s8266 = int_to_ptr.vmem [resolvable:$true] %s8265
      %s8267 = sshll.u32 %s9, 4
      %s8268 = int_to_ptr.hbm [resolvable:$true] %s8267
      %8270 = dma.vmem_to_hbm [thread:$0]  %s8266, 64, %s8268, [#allocation7]
    $region45: #{tpu_custom_call.1} parent=1 // pred_fallthru
      _
    // Predicated region
    $region46: #{tpu_custom_call.1} parent=1 // pred_check
      _
    $region47: #{tpu_custom_call.1} parent=1 // pred_check_branch
      %8272 = sbr.rel (0) target = $region49
    $region48: #{tpu_custom_call.1} parent=1 // pred_region
      %8274 = vsyncadd [#allocation7], 0
      %s8276 = sshll.u32 [#allocation8], 4
      %s8277 = int_to_ptr.vmem [resolvable:$true] %s8276
      %s8278 = sshll.u32 %s10, 4
      %s8279 = int_to_ptr.hbm [resolvable:$true] %s8278
      %8281 = dma.vmem_to_hbm [thread:$0]  %s8277, 64, %s8279, [#allocation7]
    $region49: #{tpu_custom_call.1} parent=1 // pred_fallthru
      _
    // Predicated region
    $region50: #{tpu_custom_call.1} parent=1 // pred_check
      _
    $region51: #{tpu_custom_call.1} parent=1 // pred_check_branch
      %8283 = sbr.rel (0) target = $region53
    $region52: #{tpu_custom_call.1} parent=1 // pred_region
      %8285 = vsyncadd [#allocation10], 0
      %s8287 = sshll.u32 [#allocation9], 4
      %s8288 = int_to_ptr.vmem [resolvable:$true] %s8287
      %s8289 = sshll.u32 %s11, 4
      %s8290 = int_to_ptr.hbm [resolvable:$true] %s8289
      %8292 = dma.vmem_to_hbm [thread:$0]  %s8288, 64, %s8290, [#allocation10]
    $region53: #{tpu_custom_call.1} parent=1 // pred_fallthru
      _
    // Predicated region
    $region54: #{tpu_custom_call.1} parent=1 // pred_check
      _
    $region55: #{tpu_custom_call.1} parent=1 // pred_check_branch
      %8294 = sbr.rel (0) target = $region57
    $region56: #{tpu_custom_call.1} parent=1 // pred_region
      %8296 = dma.done [#allocation3], 128
    $region57: #{tpu_custom_call.1} parent=1 // pred_fallthru
      _
    // Predicated region
    $region58: #{tpu_custom_call.1} parent=1 // pred_check
      _
    $region59: #{tpu_custom_call.1} parent=1 // pred_check_branch
      %8298 = sbr.rel (0) target = $region61
    $region60: #{tpu_custom_call.1} parent=1 // pred_region
      %8300 = dma.done [#allocation7], 64
    $region61: #{tpu_custom_call.1} parent=1 // pred_fallthru
      _
    // Predicated region
    $region62: #{tpu_custom_call.1} parent=1 // pred_check
      _
    $region63: #{tpu_custom_call.1} parent=1 // pred_check_branch
      %8302 = sbr.rel (0) target = $region65
    $region64: #{tpu_custom_call.1} parent=1 // pred_region
      %8304 = dma.done [#allocation7], 64
    $region65: #{tpu_custom_call.1} parent=1 // pred_fallthru
      _
    // Predicated region
    $region66: #{tpu_custom_call.1} parent=1 // pred_check
      _
    $region67: #{tpu_custom_call.1} parent=1 // pred_check_branch
      %8306 = sbr.rel (0) target = $region69
    $region68: #{tpu_custom_call.1} parent=1 // pred_region
      %8308 = dma.done [#allocation10], 64
    $region69: #{tpu_custom_call.1} parent=1 // pred_fallthru
      _
    %8309 = vsyncpa [#allocation3], 1
    %8310 = vsyncpa [#allocation7], 1
    %8311 = vsyncpa [#allocation10], 1
    %8312 = vsyncpa [#allocation4], 1

</llo_original>
